<compile_context>
chip_gen: v7x
topology: tpu7x:2x2x1
jax: 0.10.0
libtpu: 0.0.40
codegen_flags: <defaults>
</compile_context>

<pallas_src>
import jax
import jax.numpy as jnp
from jax.experimental import pallas as pl
from jax.experimental.pallas import tpu as pltpu

# ----------------------------- hyper-parameters ------------------------------
N_ATOMS = 8           # number of atoms (nodes)
F_DIM = 32            # n_atom_basis == n_filters
B_DIM = 16            # n_basis (gaussian expansion)
D_DIM = 16            # dipole_features
N_INTER = 2           # n_interactions (small for the demo)
MAX_Z = 20            # embedding table size
CUTOFF = 3.0          # cutoff radius
_WIDTH = CUTOFF / (B_DIM - 1)
GAMMA = 0.5 / (_WIDTH * _WIDTH)   # gaussian smearing coefficient

_f32 = jnp.float32

# Stacked-per-layer weight arrays passed to the fused kernel, in this order.
WEIGHT_NAMES = (
    # SchNetConv (its filter layer-1 is folded into the fused filter matmul)
    "conv_in2f", "conv_w2", "conv_b2", "conv_f2out", "conv_bo1", "conv_wo2", "conv_bo2",
    # message_v (its filter layer-1 is folded into the fused filter matmul)
    "msg_ws", "msg_wf2", "msg_bf2",
    # fused first-layer radial filter MLP: [B, F(conv) + F(msg) + D(tensor)]
    "fil_w", "fil_b",
    # dipole gated_update_v (wu|wv fused, w1 split into w1a/w1b)
    "dip_wuv", "dip_w1a", "dip_w1b", "dip_b1", "dip_w2", "dip_b2",
    # final gated_update_v
    "upd_wuv", "upd_w1a", "upd_w1b", "upd_b1", "upd_w2", "upd_b2",
    # multipole_interaction
    "mul_wq", "mul_wmu", "mul_wso", "mul_wvo",
    # TensorInteraction (its radial filter is folded into the fused filter matmul)
    "ten_wmu", "ten_wfeat", "ten_wos", "ten_wov",
)


def _swish(x):
    # x * sigmoid(x); the reciprocal rides the otherwise-idle EUP slot.
    return x * pl.reciprocal(1.0 + jnp.exp(-x), approx=True)


def SDS(shape, dtype=_f32):
    return jax.ShapeDtypeStruct(shape, dtype)


# ----------------------------- the fused kernel -------------------------------
def fieldnet_kernel(feat0_ref, R_ref, centers_ref, *rest):
    nw = len(WEIGHT_NAMES)
    w = dict(zip(WEIGHT_NAMES, rest[:nw]))
    out_ref = rest[nw]

    N, F = feat0_ref.shape
    D = D_DIM
    L = w["fil_w"].shape[0]

    # ----------------------------- geometry ----------------------------------
    R = R_ref[...]                                        # [N, 3]
    diff = R[None, :, :] - R[:, None, :]                  # vij = r_j - r_i  [N,N,3]
    rij = jnp.sqrt(jnp.sum(diff * diff, axis=-1) + 1e-12)  # [N, N]
    inv1p = 1.0 / (1.0 + rij)
    vh = [diff[:, :, c] * inv1p for c in range(3)]        # vij/(1+rij), per component

    centers = centers_ref[...]                            # [1, B]
    fij = jnp.exp(-GAMMA * (rij[:, :, None] - centers[None, :, :]) ** 2)  # [N,N,B]
    fij_flat = fij.reshape(N * N, B_DIM)

    row = jax.lax.broadcasted_iota(jnp.int32, (N, N), 0)
    col = jax.lax.broadcasted_iota(jnp.int32, (N, N), 1)
    mask = jnp.logical_and(rij < CUTOFF, row != col)
    x2 = jnp.minimum((rij / CUTOFF) ** 2, 1.0 - 1e-6)
    cut = jnp.where(mask, jnp.exp(1.0 - 1.0 / (1.0 - x2)), 0.0)   # Mollifier [N,N]
    cut3 = cut[:, :, None]

    feat = feat0_ref[...]                                 # [N, F]
    fv = jnp.zeros((3 * N, F), _f32)                      # vector features, c-major rows

    # ------------------------ gated scalar/vector mix -------------------------
    def gated(prefix, l, feat_in, fv_in):
        UV = jnp.dot(fv_in, w[prefix + "_wuv"][l], preferred_element_type=_f32)  # [3N,2F]
        U, V = UV[:, :F], UV[:, F:]
        Uc = [U[c * N:(c + 1) * N] for c in range(3)]
        Vc = [V[c * N:(c + 1) * N] for c in range(3)]
        vn = jnp.sqrt(Vc[0] * Vc[0] + Vc[1] * Vc[1] + Vc[2] * Vc[2] + 1e-8)       # [N,F]
        h = _swish(jnp.dot(feat_in, w[prefix + "_w1a"][l], preferred_element_type=_f32)
                   + jnp.dot(vn, w[prefix + "_w1b"][l], preferred_element_type=_f32)
                   + w[prefix + "_b1"][l])
        a = jnp.dot(h, w[prefix + "_w2"][l], preferred_element_type=_f32) + w[prefix + "_b2"][l]
        a_ss, a_sv, a_vv = a[:, :F], a[:, F:2 * F], a[:, 2 * F:]
        uv = Uc[0] * Vc[0] + Uc[1] * Vc[1] + Uc[2] * Vc[2]                        # [N,F]
        ds = a_ss + a_sv * uv
        dv = jnp.concatenate([a_vv * Uc[0], a_vv * Uc[1], a_vv * Uc[2]], axis=0)  # [3N,F]
        return ds, dv

    # ------------------------- interaction blocks -----------------------------
    for l in range(L):
        # fused radial filter MLP layer-1 for conv | message_v | tensor
        filt_all = _swish(jnp.dot(fij_flat, w["fil_w"][l], preferred_element_type=_f32)
                          + w["fil_b"][l])                                        # [NN,2F+D]
        h_conv = filt_all[:, :F]
        h_msg = filt_all[:, F:2 * F]
        filt_ten = filt_all[:, 2 * F:].reshape(N, N, D) * cut3                    # [N,N,D]

        # ---- SchNet continuous-filter convolution (scalar messages) ----
        xj = jnp.dot(feat, w["conv_in2f"][l], preferred_element_type=_f32)        # [N,F]
        Wc = (jnp.dot(h_conv, w["conv_w2"][l], preferred_element_type=_f32)
              + w["conv_b2"][l]).reshape(N, N, F) * cut3
        msg = jnp.sum(Wc * xj[None, :, :], axis=1)                                # [N,F]
        y = _swish(jnp.dot(msg, w["conv_f2out"][l], preferred_element_type=_f32)
                   + w["conv_bo1"][l])
        v_total = jnp.dot(y, w["conv_wo2"][l], preferred_element_type=_f32) + w["conv_bo2"][l]

        # ---- equivariant vector messages (message_v) ----
        s = jnp.dot(feat, w["msg_ws"][l], preferred_element_type=_f32)            # [N,F]
        ff = (jnp.dot(h_msg, w["msg_wf2"][l], preferred_element_type=_f32)
              + w["msg_bf2"][l]).reshape(N, N, 2 * F) * cut3
        W1, W2 = ff[:, :, :F], ff[:, :, F:]
        A = W1 * s[None, :, :]                                                    # [N,N,F]
        mv = []
        for c in range(3):
            t1 = jnp.sum(vh[c][:, :, None] * A, axis=1)                           # [N,F]
            t2 = jnp.sum(W2 * fv[c * N:(c + 1) * N][None, :, :], axis=1)          # [N,F]
            mv.append(t1 + t2)
        m_v = jnp.concatenate(mv, axis=0)                                         # [3N,F]

        feat = feat + v_total
        fv = fv + m_v

        # ---- dipole features + multipole interaction ----
        q, mu = gated("dip", l, feat, fv)
        qd = jnp.dot(q, w["mul_wq"][l], preferred_element_type=_f32)              # [N,D]
        mud = jnp.dot(mu, w["mul_wmu"][l], preferred_element_type=_f32)           # [3N,D]
        agg_s = jnp.dot(cut, qd, preferred_element_type=_f32)                     # [N,D]
        agg_v = jnp.concatenate(
            [jnp.dot(cut, mud[c * N:(c + 1) * N], preferred_element_type=_f32)
             for c in range(3)], axis=0)                                          # [3N,D]
        feat = feat + jnp.dot(_swish(agg_s), w["mul_wso"][l], preferred_element_type=_f32)
        fv = fv + jnp.dot(agg_v, w["mul_wvo"][l], preferred_element_type=_f32)

        # ---- TensorInteraction (dipole / field coupling) ----
        mud_t = jnp.dot(mu, w["ten_wmu"][l], preferred_element_type=_f32)         # [3N,D]
        featd = jnp.dot(feat, w["ten_wfeat"][l], preferred_element_type=_f32)     # [N,D]
        # dot[i,j,d] = sum_c vhat[i,j,c] * mud_t[j,c,d]
        dot_ijd = (vh[0][:, :, None] * mud_t[0:N][None, :, :]
                   + vh[1][:, :, None] * mud_t[N:2 * N][None, :, :]
                   + vh[2][:, :, None] * mud_t[2 * N:][None, :, :])               # [N,N,D]
        s_agg = jnp.sum(filt_ten * dot_ijd, axis=1)                               # [N,D]
        Bm = filt_ten * featd[None, :, :]                                         # [N,N,D]
        v_agg = jnp.concatenate(
            [jnp.sum(Bm * vh[c][:, :, None], axis=1) for c in range(3)], axis=0)  # [3N,D]
        feat = feat + jnp.dot(_swish(s_agg), w["ten_wos"][l], preferred_element_type=_f32)
        fv = fv + jnp.dot(v_agg, w["ten_wov"][l], preferred_element_type=_f32)

        # ---- final gated scalar/vector mixing ----
        mg_s, mg_v = gated("upd", l, feat, fv)
        feat = feat + mg_s
        fv = fv + mg_v

    # single lane-dense [N, 4F] (= [8,128]) store: [ feat | fv_x | fv_y | fv_z ]
    out_ref[...] = jnp.concatenate([feat, fv[0:N], fv[N:2 * N], fv[2 * N:]], axis=1)


# -------------------------- parameters (deterministic) -----------------------
def init_params(key):
    state = {"key": key}

    def take():
        state["key"], sub = jax.random.split(state["key"])
        return sub

    def W(shape):
        fan_in = shape[0]
        return jax.random.normal(take(), shape, _f32) / jnp.sqrt(jnp.asarray(fan_in, _f32))

    def Bz(shape):
        return jnp.zeros(shape, _f32)

    emb = 0.5 * jax.random.normal(take(), (MAX_Z, F_DIM), _f32)
    emb = emb.at[0].set(0.0)                        # padding_idx=0
    centers = jnp.linspace(0.0, CUTOFF, B_DIM, dtype=_f32).reshape(1, B_DIM)

    def gated():
        return (W((F_DIM, F_DIM)), W((F_DIM, F_DIM)),
                W((2 * F_DIM, F_DIM)), Bz((1, F_DIM)),
                W((F_DIM, 3 * F_DIM)), Bz((1, 3 * F_DIM)))

    layers = []
    for _ in range(N_INTER):
        conv = (W((F_DIM, F_DIM)),
                W((B_DIM, F_DIM)), Bz((1, F_DIM)),
                W((F_DIM, F_DIM)), Bz((1, F_DIM)),
                W((F_DIM, F_DIM)), Bz((1, F_DIM)),
                W((F_DIM, F_DIM)), Bz((1, F_DIM)))
        msg_v = (W((F_DIM, F_DIM)),
                 W((B_DIM, F_DIM)), Bz((1, F_DIM)),
                 W((F_DIM, 2 * F_DIM)), Bz((1, 2 * F_DIM)))
        multipole = (W((F_DIM, D_DIM)), W((F_DIM, D_DIM)),
                     W((D_DIM, F_DIM)), W((D_DIM, F_DIM)))
        tensor = (W((B_DIM, D_DIM)), Bz((1, D_DIM)),
                  W((F_DIM, D_DIM)), W((F_DIM, D_DIM)),
                  W((D_DIM, F_DIM)), W((D_DIM, F_DIM)))
        layers.append(dict(conv=conv, msg_v=msg_v, dipole=gated(),
                           update=gated(), multipole=multipole, tensor=tensor))
    return dict(embedding=emb, centers=centers, layers=layers)


def pack_params(params):
    """Fuse/stack the per-layer weights for the single fused kernel."""
    acc = {name: [] for name in WEIGHT_NAMES}
    for p in params["layers"]:
        in2f, c_w1, c_b1, c_w2, c_b2, f2out, bo1, wo2, bo2 = p["conv"]
        m_ws, m_wf1, m_bf1, m_wf2, m_bf2 = p["msg_v"]
        t_wfil, t_bfil, t_wmu, t_wfeat, t_wos, t_wov = p["tensor"]
        wq, wmu_m, wso, wvo = p["multipole"]
        d_wu, d_wv, d_w1, d_b1, d_w2, d_b2 = p["dipole"]
        u_wu, u_wv, u_w1, u_b1, u_w2, u_b2 = p["update"]

        acc["conv_in2f"].append(in2f)
        acc["conv_w2"].append(c_w2);   acc["conv_b2"].append(c_b2)
        acc["conv_f2out"].append(f2out); acc["conv_bo1"].append(bo1)
        acc["conv_wo2"].append(wo2);   acc["conv_bo2"].append(bo2)
        acc["msg_ws"].append(m_ws)
        acc["msg_wf2"].append(m_wf2);  acc["msg_bf2"].append(m_bf2)
        # fused first-layer radial filter:   [B, F + F + D]
        acc["fil_w"].append(jnp.concatenate([c_w1, m_wf1, t_wfil], axis=1))
        acc["fil_b"].append(jnp.concatenate([c_b1, m_bf1, t_bfil], axis=1))
        acc["dip_wuv"].append(jnp.concatenate([d_wu, d_wv], axis=1))
        acc["dip_w1a"].append(d_w1[:F_DIM]); acc["dip_w1b"].append(d_w1[F_DIM:])
        acc["dip_b1"].append(d_b1); acc["dip_w2"].append(d_w2); acc["dip_b2"].append(d_b2)
        acc["upd_wuv"].append(jnp.concatenate([u_wu, u_wv], axis=1))
        acc["upd_w1a"].append(u_w1[:F_DIM]); acc["upd_w1b"].append(u_w1[F_DIM:])
        acc["upd_b1"].append(u_b1); acc["upd_w2"].append(u_w2); acc["upd_b2"].append(u_b2)
        acc["mul_wq"].append(wq);   acc["mul_wmu"].append(wmu_m)
        acc["mul_wso"].append(wso); acc["mul_wvo"].append(wvo)
        acc["ten_wmu"].append(t_wmu);  acc["ten_wfeat"].append(t_wfeat)
        acc["ten_wos"].append(t_wos);  acc["ten_wov"].append(t_wov)
    return [jnp.stack(acc[name], axis=0) for name in WEIGHT_NAMES]


# --------------------------------- forward -----------------------------------
@jax.jit
def fieldnet_forward(z, R, params):
    N = z.shape[0]
    feat0 = jnp.take(params["embedding"], z, axis=0)            # [N, F]
    packed = pack_params(params)

    vmem = pl.BlockSpec(memory_space=pltpu.MemorySpace.VMEM)
    out = pl.pallas_call(
        fieldnet_kernel,
        out_shape=SDS((N, 4 * F_DIM)),
        in_specs=[vmem] * (3 + len(WEIGHT_NAMES)),
        out_specs=vmem,
    )(feat0, R, params["centers"], *packed)

    feat = out[:, :F_DIM]
    # [N, 3F] (c-major blocks) -> [N, 3, F] -> PyTorch's [N, F, 3]
    feat_v = jnp.transpose(out[:, F_DIM:].reshape(N, 3, F_DIM), (0, 2, 1))
    graph_rep = None                                  # graph_rep=False (default)
    return feat, feat_v, graph_rep


# ----------------------------------- main -------------------------------------
if __name__ == "__main__":
    key = jax.random.PRNGKey(0)
    kz, kr, kp = jax.random.split(key, 3)
    z = jax.random.randint(kz, (N_ATOMS,), 1, MAX_Z, dtype=jnp.int32)
    R = 2.5 * jax.random.uniform(kr, (N_ATOMS, 3), dtype=_f32)
    params = init_params(kp)

    feat, feat_v, graph_rep = fieldnet_forward(z, R, params)
    jax.block_until_ready((feat, feat_v))

    assert feat.shape == (N_ATOMS, F_DIM)
    assert feat_v.shape == (N_ATOMS, F_DIM, 3)
    assert graph_rep is None
    assert bool(jnp.all(jnp.isfinite(feat)))
    assert bool(jnp.all(jnp.isfinite(feat_v)))
    print("KERNEL_OK")
</pallas_src>

<mosaic_0001>
module attributes {stable_mosaic.version = 11 : i64} {
  func.func @fieldnet_kernel(%arg0: memref<8x32xf32, #tpu.memory_space<vmem>>, %arg1: memref<8x3xf32, #tpu.memory_space<vmem>>, %arg2: memref<1x16xf32, #tpu.memory_space<vmem>>, %arg3: memref<2x32x32xf32, #tpu.memory_space<vmem>>, %arg4: memref<2x32x32xf32, #tpu.memory_space<vmem>>, %arg5: memref<2x1x32xf32, #tpu.memory_space<vmem>>, %arg6: memref<2x32x32xf32, #tpu.memory_space<vmem>>, %arg7: memref<2x1x32xf32, #tpu.memory_space<vmem>>, %arg8: memref<2x32x32xf32, #tpu.memory_space<vmem>>, %arg9: memref<2x1x32xf32, #tpu.memory_space<vmem>>, %arg10: memref<2x32x32xf32, #tpu.memory_space<vmem>>, %arg11: memref<2x32x64xf32, #tpu.memory_space<vmem>>, %arg12: memref<2x1x64xf32, #tpu.memory_space<vmem>>, %arg13: memref<2x16x80xf32, #tpu.memory_space<vmem>>, %arg14: memref<2x1x80xf32, #tpu.memory_space<vmem>>, %arg15: memref<2x32x64xf32, #tpu.memory_space<vmem>>, %arg16: memref<2x32x32xf32, #tpu.memory_space<vmem>>, %arg17: memref<2x32x32xf32, #tpu.memory_space<vmem>>, %arg18: memref<2x1x32xf32, #tpu.memory_space<vmem>>, %arg19: memref<2x32x96xf32, #tpu.memory_space<vmem>>, %arg20: memref<2x1x96xf32, #tpu.memory_space<vmem>>, %arg21: memref<2x32x64xf32, #tpu.memory_space<vmem>>, %arg22: memref<2x32x32xf32, #tpu.memory_space<vmem>>, %arg23: memref<2x32x32xf32, #tpu.memory_space<vmem>>, %arg24: memref<2x1x32xf32, #tpu.memory_space<vmem>>, %arg25: memref<2x32x96xf32, #tpu.memory_space<vmem>>, %arg26: memref<2x1x96xf32, #tpu.memory_space<vmem>>, %arg27: memref<2x32x16xf32, #tpu.memory_space<vmem>>, %arg28: memref<2x32x16xf32, #tpu.memory_space<vmem>>, %arg29: memref<2x16x32xf32, #tpu.memory_space<vmem>>, %arg30: memref<2x16x32xf32, #tpu.memory_space<vmem>>, %arg31: memref<2x32x16xf32, #tpu.memory_space<vmem>>, %arg32: memref<2x32x16xf32, #tpu.memory_space<vmem>>, %arg33: memref<2x16x32xf32, #tpu.memory_space<vmem>>, %arg34: memref<2x16x32xf32, #tpu.memory_space<vmem>>, %arg35: memref<8x128xf32, #tpu.memory_space<vmem>>) attributes {dimension_semantics = [], scalar_prefetch = 0 : i64, scratch_operands = 0 : i64, tpu.core_type = #tpu.core_type<tc>} {
    %c0 = arith.constant 0 : index
    %c0_0 = arith.constant 0 : index
    %0 = vector.load %arg1[%c0, %c0_0] : memref<8x3xf32, #tpu.memory_space<vmem>>, vector<8x3xf32>
    %1 = vector.shape_cast %0 : vector<8x3xf32> to vector<1x8x3xf32>
    %2 = vector.shape_cast %0 : vector<8x3xf32> to vector<8x1x3xf32>
    %3 = vector.broadcast %1 : vector<1x8x3xf32> to vector<8x8x3xf32>
    %4 = vector.broadcast %2 : vector<8x1x3xf32> to vector<8x8x3xf32>
    %5 = arith.subf %3, %4 : vector<8x8x3xf32>
    %6 = arith.mulf %5, %5 : vector<8x8x3xf32>
    %cst = arith.constant dense<0.000000e+00> : vector<8x8xf32>
    %7 = vector.multi_reduction <add>, %6, %cst [2] : vector<8x8x3xf32> to vector<8x8xf32>
    %cst_1 = arith.constant 9.99999996E-13 : f32
    %8 = vector.broadcast %cst_1 : f32 to vector<8x8xf32>
    %9 = arith.addf %7, %8 : vector<8x8xf32>
    %10 = math.sqrt %9 : vector<8x8xf32>
    %cst_2 = arith.constant 1.000000e+00 : f32
    %11 = vector.broadcast %cst_2 : f32 to vector<8x8xf32>
    %12 = arith.addf %11, %10 : vector<8x8xf32>
    %cst_3 = arith.constant 1.000000e+00 : f32
    %13 = vector.broadcast %cst_3 : f32 to vector<8x8xf32>
    %14 = arith.divf %13, %12 : vector<8x8xf32>
    %15 = vector.extract_strided_slice %5 {offsets = [0, 0, 0], sizes = [8, 8, 1], strides = [1, 1, 1]} : vector<8x8x3xf32> to vector<8x8x1xf32>
    %16 = vector.shape_cast %15 : vector<8x8x1xf32> to vector<8x8xf32>
    %17 = arith.mulf %16, %14 : vector<8x8xf32>
    %18 = vector.extract_strided_slice %5 {offsets = [0, 0, 1], sizes = [8, 8, 1], strides = [1, 1, 1]} : vector<8x8x3xf32> to vector<8x8x1xf32>
    %19 = vector.shape_cast %18 : vector<8x8x1xf32> to vector<8x8xf32>
    %20 = arith.mulf %19, %14 : vector<8x8xf32>
    %21 = vector.extract_strided_slice %5 {offsets = [0, 0, 2], sizes = [8, 8, 1], strides = [1, 1, 1]} : vector<8x8x3xf32> to vector<8x8x1xf32>
    %22 = vector.shape_cast %21 : vector<8x8x1xf32> to vector<8x8xf32>
    %23 = arith.mulf %22, %14 : vector<8x8xf32>
    %c0_4 = arith.constant 0 : index
    %c0_5 = arith.constant 0 : index
    %24 = vector.load %arg2[%c0_4, %c0_5] : memref<1x16xf32, #tpu.memory_space<vmem>>, vector<1x16xf32>
    %25 = vector.shape_cast %10 : vector<8x8xf32> to vector<8x8x1xf32>
    %26 = vector.shape_cast %24 : vector<1x16xf32> to vector<1x1x16xf32>
    %27 = vector.broadcast %25 : vector<8x8x1xf32> to vector<8x8x16xf32>
    %28 = vector.broadcast %26 : vector<1x1x16xf32> to vector<8x8x16xf32>
    %29 = arith.subf %27, %28 : vector<8x8x16xf32>
    %30 = arith.mulf %29, %29 : vector<8x8x16xf32>
    %cst_6 = arith.constant -1.250000e+01 : f32
    %31 = vector.broadcast %cst_6 : f32 to vector<8x8x16xf32>
    %32 = arith.mulf %31, %30 : vector<8x8x16xf32>
    %33 = math.exp %32 : vector<8x8x16xf32>
    %34 = vector.shape_cast %33 : vector<8x8x16xf32> to vector<64x16xf32>
    %35 = tpu.iota {dimensions = array<i32: 0>} : vector<8x8xi32>
    %36 = tpu.iota {dimensions = array<i32: 1>} : vector<8x8xi32>
    %cst_7 = arith.constant 3.000000e+00 : f32
    %37 = vector.broadcast %cst_7 : f32 to vector<8x8xf32>
    %38 = arith.cmpf olt, %10, %37 : vector<8x8xf32>
    %39 = arith.cmpi ne, %35, %36 : vector<8x8xi32>
    %40 = arith.andi %38, %39 : vector<8x8xi1>
    %cst_8 = arith.constant 3.000000e+00 : f32
    %41 = vector.broadcast %cst_8 : f32 to vector<8x8xf32>
    %42 = arith.divf %10, %41 : vector<8x8xf32>
    %43 = arith.mulf %42, %42 : vector<8x8xf32>
    %cst_9 = arith.constant 0.999998986 : f32
    %44 = vector.broadcast %cst_9 : f32 to vector<8x8xf32>
    %45 = arith.minimumf %43, %44 : vector<8x8xf32>
    %cst_10 = arith.constant 1.000000e+00 : f32
    %46 = vector.broadcast %cst_10 : f32 to vector<8x8xf32>
    %47 = arith.subf %46, %45 : vector<8x8xf32>
    %cst_11 = arith.constant 1.000000e+00 : f32
    %48 = vector.broadcast %cst_11 : f32 to vector<8x8xf32>
    %49 = arith.divf %48, %47 : vector<8x8xf32>
    %cst_12 = arith.constant 1.000000e+00 : f32
    %50 = vector.broadcast %cst_12 : f32 to vector<8x8xf32>
    %51 = arith.subf %50, %49 : vector<8x8xf32>
    %52 = math.exp %51 : vector<8x8xf32>
    %cst_13 = arith.constant 0.000000e+00 : f32
    %53 = vector.broadcast %cst_13 : f32 to vector<8x8xf32>
    %54 = arith.select %40, %52, %53 : vector<8x8xi1>, vector<8x8xf32>
    %55 = vector.shape_cast %54 : vector<8x8xf32> to vector<8x8x1xf32>
    %c0_14 = arith.constant 0 : index
    %c0_15 = arith.constant 0 : index
    %56 = vector.load %arg0[%c0_14, %c0_15] : memref<8x32xf32, #tpu.memory_space<vmem>>, vector<8x32xf32>
    %cst_16 = arith.constant 0.000000e+00 : f32
    %57 = vector.broadcast %cst_16 : f32 to vector<24x32xf32>
    %c0_17 = arith.constant 0 : index
    %c0_18 = arith.constant 0 : index
    %c0_19 = arith.constant 0 : index
    %58 = vector.load %arg13[%c0_17, %c0_18, %c0_19] : memref<2x16x80xf32, #tpu.memory_space<vmem>>, vector<1x16x80xf32>
    %59 = vector.shape_cast %58 : vector<1x16x80xf32> to vector<16x80xf32>
    %cst_20 = arith.constant dense<0.000000e+00> : vector<64x80xf32>
    %60 = tpu.matmul %34, %59, %cst_20 {dimension_numbers = #tpu.dot_dimension_numbers<[1], [0], [0], [1], [0, 0, 1, 1], [], []>} : vector<64x16xf32>, vector<16x80xf32>, vector<64x80xf32> -> vector<64x80xf32>
    %c0_21 = arith.constant 0 : index
    %c0_22 = arith.constant 0 : index
    %c0_23 = arith.constant 0 : index
    %61 = vector.load %arg14[%c0_21, %c0_22, %c0_23] : memref<2x1x80xf32, #tpu.memory_space<vmem>>, vector<1x1x80xf32>
    %62 = vector.shape_cast %61 : vector<1x1x80xf32> to vector<1x80xf32>
    %63 = vector.broadcast %62 : vector<1x80xf32> to vector<64x80xf32>
    %64 = arith.addf %60, %63 : vector<64x80xf32>
    %cst_24 = arith.constant 0.000000e+00 : f32
    %65 = vector.broadcast %cst_24 : f32 to vector<64x80xf32>
    %66 = arith.subf %65, %64 : vector<64x80xf32>
    %67 = math.exp %66 : vector<64x80xf32>
    %cst_25 = arith.constant 1.000000e+00 : f32
    %68 = vector.broadcast %cst_25 : f32 to vector<64x80xf32>
    %69 = arith.addf %68, %67 : vector<64x80xf32>
    %70 = tpu.reciprocal %69 {approx = true} : vector<64x80xf32> -> vector<64x80xf32>
    %71 = arith.mulf %64, %70 : vector<64x80xf32>
    %72 = vector.extract_strided_slice %71 {offsets = [0, 0], sizes = [64, 32], strides = [1, 1]} : vector<64x80xf32> to vector<64x32xf32>
    %73 = vector.extract_strided_slice %71 {offsets = [0, 32], sizes = [64, 32], strides = [1, 1]} : vector<64x80xf32> to vector<64x32xf32>
    %74 = vector.extract_strided_slice %71 {offsets = [0, 64], sizes = [64, 16], strides = [1, 1]} : vector<64x80xf32> to vector<64x16xf32>
    %75 = vector.shape_cast %74 : vector<64x16xf32> to vector<8x8x16xf32>
    %76 = vector.broadcast %55 : vector<8x8x1xf32> to vector<8x8x16xf32>
    %77 = arith.mulf %75, %76 : vector<8x8x16xf32>
    %c0_26 = arith.constant 0 : index
    %c0_27 = arith.constant 0 : index
    %c0_28 = arith.constant 0 : index
    %78 = vector.load %arg3[%c0_26, %c0_27, %c0_28] : memref<2x32x32xf32, #tpu.memory_space<vmem>>, vector<1x32x32xf32>
    %79 = vector.shape_cast %78 : vector<1x32x32xf32> to vector<32x32xf32>
    %cst_29 = arith.constant dense<0.000000e+00> : vector<8x32xf32>
    %80 = tpu.matmul %56, %79, %cst_29 {dimension_numbers = #tpu.dot_dimension_numbers<[1], [0], [0], [1], [0, 0, 1, 1], [], []>} : vector<8x32xf32>, vector<32x32xf32>, vector<8x32xf32> -> vector<8x32xf32>
    %c0_30 = arith.constant 0 : index
    %c0_31 = arith.constant 0 : index
    %c0_32 = arith.constant 0 : index
    %81 = vector.load %arg4[%c0_30, %c0_31, %c0_32] : memref<2x32x32xf32, #tpu.memory_space<vmem>>, vector<1x32x32xf32>
    %82 = vector.shape_cast %81 : vector<1x32x32xf32> to vector<32x32xf32>
    %cst_33 = arith.constant dense<0.000000e+00> : vector<64x32xf32>
    %83 = tpu.matmul %72, %82, %cst_33 {dimension_numbers = #tpu.dot_dimension_numbers<[1], [0], [0], [1], [0, 0, 1, 1], [], []>} : vector<64x32xf32>, vector<32x32xf32>, vector<64x32xf32> -> vector<64x32xf32>
    %c0_34 = arith.constant 0 : index
    %c0_35 = arith.constant 0 : index
    %c0_36 = arith.constant 0 : index
    %84 = vector.load %arg5[%c0_34, %c0_35, %c0_36] : memref<2x1x32xf32, #tpu.memory_space<vmem>>, vector<1x1x32xf32>
    %85 = vector.shape_cast %84 : vector<1x1x32xf32> to vector<1x32xf32>
    %86 = vector.broadcast %85 : vector<1x32xf32> to vector<64x32xf32>
    %87 = arith.addf %83, %86 : vector<64x32xf32>
    %88 = vector.shape_cast %87 : vector<64x32xf32> to vector<8x8x32xf32>
    %89 = vector.broadcast %55 : vector<8x8x1xf32> to vector<8x8x32xf32>
    %90 = arith.mulf %88, %89 : vector<8x8x32xf32>
    %91 = vector.shape_cast %80 : vector<8x32xf32> to vector<1x8x32xf32>
    %92 = vector.broadcast %91 : vector<1x8x32xf32> to vector<8x8x32xf32>
    %93 = arith.mulf %90, %92 : vector<8x8x32xf32>
    %cst_37 = arith.constant dense<0.000000e+00> : vector<8x32xf32>
    %94 = vector.multi_reduction <add>, %93, %cst_37 [1] : vector<8x8x32xf32> to vector<8x32xf32>
    %c0_38 = arith.constant 0 : index
    %c0_39 = arith.constant 0 : index
    %c0_40 = arith.constant 0 : index
    %95 = vector.load %arg6[%c0_38, %c0_39, %c0_40] : memref<2x32x32xf32, #tpu.memory_space<vmem>>, vector<1x32x32xf32>
    %96 = vector.shape_cast %95 : vector<1x32x32xf32> to vector<32x32xf32>
    %cst_41 = arith.constant dense<0.000000e+00> : vector<8x32xf32>
    %97 = tpu.matmul %94, %96, %cst_41 {dimension_numbers = #tpu.dot_dimension_numbers<[1], [0], [0], [1], [0, 0, 1, 1], [], []>} : vector<8x32xf32>, vector<32x32xf32>, vector<8x32xf32> -> vector<8x32xf32>
    %c0_42 = arith.constant 0 : index
    %c0_43 = arith.constant 0 : index
    %c0_44 = arith.constant 0 : index
    %98 = vector.load %arg7[%c0_42, %c0_43, %c0_44] : memref<2x1x32xf32, #tpu.memory_space<vmem>>, vector<1x1x32xf32>
    %99 = vector.shape_cast %98 : vector<1x1x32xf32> to vector<1x32xf32>
    %100 = vector.broadcast %99 : vector<1x32xf32> to vector<8x32xf32>
    %101 = arith.addf %97, %100 : vector<8x32xf32>
    %cst_45 = arith.constant 0.000000e+00 : f32
    %102 = vector.broadcast %cst_45 : f32 to vector<8x32xf32>
    %103 = arith.subf %102, %101 : vector<8x32xf32>
    %104 = math.exp %103 : vector<8x32xf32>
    %cst_46 = arith.constant 1.000000e+00 : f32
    %105 = vector.broadcast %cst_46 : f32 to vector<8x32xf32>
    %106 = arith.addf %105, %104 : vector<8x32xf32>
    %107 = tpu.reciprocal %106 {approx = true} : vector<8x32xf32> -> vector<8x32xf32>
    %108 = arith.mulf %101, %107 : vector<8x32xf32>
    %c0_47 = arith.constant 0 : index
    %c0_48 = arith.constant 0 : index
    %c0_49 = arith.constant 0 : index
    %109 = vector.load %arg8[%c0_47, %c0_48, %c0_49] : memref<2x32x32xf32, #tpu.memory_space<vmem>>, vector<1x32x32xf32>
    %110 = vector.shape_cast %109 : vector<1x32x32xf32> to vector<32x32xf32>
    %cst_50 = arith.constant dense<0.000000e+00> : vector<8x32xf32>
    %111 = tpu.matmul %108, %110, %cst_50 {dimension_numbers = #tpu.dot_dimension_numbers<[1], [0], [0], [1], [0, 0, 1, 1], [], []>} : vector<8x32xf32>, vector<32x32xf32>, vector<8x32xf32> -> vector<8x32xf32>
    %c0_51 = arith.constant 0 : index
    %c0_52 = arith.constant 0 : index
    %c0_53 = arith.constant 0 : index
    %112 = vector.load %arg9[%c0_51, %c0_52, %c0_53] : memref<2x1x32xf32, #tpu.memory_space<vmem>>, vector<1x1x32xf32>
    %113 = vector.shape_cast %112 : vector<1x1x32xf32> to vector<1x32xf32>
    %114 = vector.broadcast %113 : vector<1x32xf32> to vector<8x32xf32>
    %115 = arith.addf %111, %114 : vector<8x32xf32>
    %c0_54 = arith.constant 0 : index
    %c0_55 = arith.constant 0 : index
    %c0_56 = arith.constant 0 : index
    %116 = vector.load %arg10[%c0_54, %c0_55, %c0_56] : memref<2x32x32xf32, #tpu.memory_space<vmem>>, vector<1x32x32xf32>
    %117 = vector.shape_cast %116 : vector<1x32x32xf32> to vector<32x32xf32>
    %cst_57 = arith.constant dense<0.000000e+00> : vector<8x32xf32>
    %118 = tpu.matmul %56, %117, %cst_57 {dimension_numbers = #tpu.dot_dimension_numbers<[1], [0], [0], [1], [0, 0, 1, 1], [], []>} : vector<8x32xf32>, vector<32x32xf32>, vector<8x32xf32> -> vector<8x32xf32>
    %c0_58 = arith.constant 0 : index
    %c0_59 = arith.constant 0 : index
    %c0_60 = arith.constant 0 : index
    %119 = vector.load %arg11[%c0_58, %c0_59, %c0_60] : memref<2x32x64xf32, #tpu.memory_space<vmem>>, vector<1x32x64xf32>
    %120 = vector.shape_cast %119 : vector<1x32x64xf32> to vector<32x64xf32>
    %cst_61 = arith.constant dense<0.000000e+00> : vector<64x64xf32>
    %121 = tpu.matmul %73, %120, %cst_61 {dimension_numbers = #tpu.dot_dimension_numbers<[1], [0], [0], [1], [0, 0, 1, 1], [], []>} : vector<64x32xf32>, vector<32x64xf32>, vector<64x64xf32> -> vector<64x64xf32>
    %c0_62 = arith.constant 0 : index
    %c0_63 = arith.constant 0 : index
    %c0_64 = arith.constant 0 : index
    %122 = vector.load %arg12[%c0_62, %c0_63, %c0_64] : memref<2x1x64xf32, #tpu.memory_space<vmem>>, vector<1x1x64xf32>
    %123 = vector.shape_cast %122 : vector<1x1x64xf32> to vector<1x64xf32>
    %124 = vector.broadcast %123 : vector<1x64xf32> to vector<64x64xf32>
    %125 = arith.addf %121, %124 : vector<64x64xf32>
    %126 = vector.shape_cast %125 : vector<64x64xf32> to vector<8x8x64xf32>
    %127 = vector.broadcast %55 : vector<8x8x1xf32> to vector<8x8x64xf32>
    %128 = arith.mulf %126, %127 : vector<8x8x64xf32>
    %129 = vector.extract_strided_slice %128 {offsets = [0, 0, 0], sizes = [8, 8, 32], strides = [1, 1, 1]} : vector<8x8x64xf32> to vector<8x8x32xf32>
    %130 = vector.extract_strided_slice %128 {offsets = [0, 0, 32], sizes = [8, 8, 32], strides = [1, 1, 1]} : vector<8x8x64xf32> to vector<8x8x32xf32>
    %131 = vector.shape_cast %118 : vector<8x32xf32> to vector<1x8x32xf32>
    %132 = vector.broadcast %131 : vector<1x8x32xf32> to vector<8x8x32xf32>
    %133 = arith.mulf %129, %132 : vector<8x8x32xf32>
    %134 = vector.shape_cast %17 : vector<8x8xf32> to vector<8x8x1xf32>
    %135 = vector.broadcast %134 : vector<8x8x1xf32> to vector<8x8x32xf32>
    %136 = arith.mulf %135, %133 : vector<8x8x32xf32>
    %cst_65 = arith.constant dense<0.000000e+00> : vector<8x32xf32>
    %137 = vector.multi_reduction <add>, %136, %cst_65 [1] : vector<8x8x32xf32> to vector<8x32xf32>
    %138 = vector.extract_strided_slice %57 {offsets = [0, 0], sizes = [8, 32], strides = [1, 1]} : vector<24x32xf32> to vector<8x32xf32>
    %139 = vector.shape_cast %138 : vector<8x32xf32> to vector<1x8x32xf32>
    %140 = vector.broadcast %139 : vector<1x8x32xf32> to vector<8x8x32xf32>
    %141 = arith.mulf %130, %140 : vector<8x8x32xf32>
    %cst_66 = arith.constant dense<0.000000e+00> : vector<8x32xf32>
    %142 = vector.multi_reduction <add>, %141, %cst_66 [1] : vector<8x8x32xf32> to vector<8x32xf32>
    %143 = arith.addf %137, %142 : vector<8x32xf32>
    %144 = vector.shape_cast %20 : vector<8x8xf32> to vector<8x8x1xf32>
    %145 = vector.broadcast %144 : vector<8x8x1xf32> to vector<8x8x32xf32>
    %146 = arith.mulf %145, %133 : vector<8x8x32xf32>
    %cst_67 = arith.constant dense<0.000000e+00> : vector<8x32xf32>
    %147 = vector.multi_reduction <add>, %146, %cst_67 [1] : vector<8x8x32xf32> to vector<8x32xf32>
    %148 = vector.extract_strided_slice %57 {offsets = [8, 0], sizes = [8, 32], strides = [1, 1]} : vector<24x32xf32> to vector<8x32xf32>
    %149 = vector.shape_cast %148 : vector<8x32xf32> to vector<1x8x32xf32>
    %150 = vector.broadcast %149 : vector<1x8x32xf32> to vector<8x8x32xf32>
    %151 = arith.mulf %130, %150 : vector<8x8x32xf32>
    %cst_68 = arith.constant dense<0.000000e+00> : vector<8x32xf32>
    %152 = vector.multi_reduction <add>, %151, %cst_68 [1] : vector<8x8x32xf32> to vector<8x32xf32>
    %153 = arith.addf %147, %152 : vector<8x32xf32>
    %154 = vector.shape_cast %23 : vector<8x8xf32> to vector<8x8x1xf32>
    %155 = vector.broadcast %154 : vector<8x8x1xf32> to vector<8x8x32xf32>
    %156 = arith.mulf %155, %133 : vector<8x8x32xf32>
    %cst_69 = arith.constant dense<0.000000e+00> : vector<8x32xf32>
    %157 = vector.multi_reduction <add>, %156, %cst_69 [1] : vector<8x8x32xf32> to vector<8x32xf32>
    %158 = vector.extract_strided_slice %57 {offsets = [16, 0], sizes = [8, 32], strides = [1, 1]} : vector<24x32xf32> to vector<8x32xf32>
    %159 = vector.shape_cast %158 : vector<8x32xf32> to vector<1x8x32xf32>
    %160 = vector.broadcast %159 : vector<1x8x32xf32> to vector<8x8x32xf32>
    %161 = arith.mulf %130, %160 : vector<8x8x32xf32>
    %cst_70 = arith.constant dense<0.000000e+00> : vector<8x32xf32>
    %162 = vector.multi_reduction <add>, %161, %cst_70 [1] : vector<8x8x32xf32> to vector<8x32xf32>
    %163 = arith.addf %157, %162 : vector<8x32xf32>
    %164 = tpu.concatenate %143, %153, %163 in 0 : vector<8x32xf32>, vector<8x32xf32>, vector<8x32xf32> -> vector<24x32xf32>
    %165 = arith.addf %56, %115 : vector<8x32xf32>
    %166 = arith.addf %57, %164 : vector<24x32xf32>
    %c0_71 = arith.constant 0 : index
    %c0_72 = arith.constant 0 : index
    %c0_73 = arith.constant 0 : index
    %167 = vector.load %arg15[%c0_71, %c0_72, %c0_73] : memref<2x32x64xf32, #tpu.memory_space<vmem>>, vector<1x32x64xf32>
    %168 = vector.shape_cast %167 : vector<1x32x64xf32> to vector<32x64xf32>
    %cst_74 = arith.constant dense<0.000000e+00> : vector<24x64xf32>
    %169 = tpu.matmul %166, %168, %cst_74 {dimension_numbers = #tpu.dot_dimension_numbers<[1], [0], [0], [1], [0, 0, 1, 1], [], []>} : vector<24x32xf32>, vector<32x64xf32>, vector<24x64xf32> -> vector<24x64xf32>
    %170 = vector.extract_strided_slice %169 {offsets = [0, 0], sizes = [24, 32], strides = [1, 1]} : vector<24x64xf32> to vector<24x32xf32>
    %171 = vector.extract_strided_slice %169 {offsets = [0, 32], sizes = [24, 32], strides = [1, 1]} : vector<24x64xf32> to vector<24x32xf32>
    %172 = vector.extract_strided_slice %170 {offsets = [0, 0], sizes = [8, 32], strides = [1, 1]} : vector<24x32xf32> to vector<8x32xf32>
    %173 = vector.extract_strided_slice %170 {offsets = [8, 0], sizes = [8, 32], strides = [1, 1]} : vector<24x32xf32> to vector<8x32xf32>
    %174 = vector.extract_strided_slice %170 {offsets = [16, 0], sizes = [8, 32], strides = [1, 1]} : vector<24x32xf32> to vector<8x32xf32>
    %175 = vector.extract_strided_slice %171 {offsets = [0, 0], sizes = [8, 32], strides = [1, 1]} : vector<24x32xf32> to vector<8x32xf32>
    %176 = vector.extract_strided_slice %171 {offsets = [8, 0], sizes = [8, 32], strides = [1, 1]} : vector<24x32xf32> to vector<8x32xf32>
    %177 = vector.extract_strided_slice %171 {offsets = [16, 0], sizes = [8, 32], strides = [1, 1]} : vector<24x32xf32> to vector<8x32xf32>
    %178 = arith.mulf %175, %175 : vector<8x32xf32>
    %179 = arith.mulf %176, %176 : vector<8x32xf32>
    %180 = arith.addf %178, %179 : vector<8x32xf32>
    %181 = arith.mulf %177, %177 : vector<8x32xf32>
    %182 = arith.addf %180, %181 : vector<8x32xf32>
    %cst_75 = arith.constant 9.99999993E-9 : f32
    %183 = vector.broadcast %cst_75 : f32 to vector<8x32xf32>
    %184 = arith.addf %182, %183 : vector<8x32xf32>
    %185 = math.sqrt %184 : vector<8x32xf32>
    %c0_76 = arith.constant 0 : index
    %c0_77 = arith.constant 0 : index
    %c0_78 = arith.constant 0 : index
    %186 = vector.load %arg16[%c0_76, %c0_77, %c0_78] : memref<2x32x32xf32, #tpu.memory_space<vmem>>, vector<1x32x32xf32>
    %187 = vector.shape_cast %186 : vector<1x32x32xf32> to vector<32x32xf32>
    %cst_79 = arith.constant dense<0.000000e+00> : vector<8x32xf32>
    %188 = tpu.matmul %165, %187, %cst_79 {dimension_numbers = #tpu.dot_dimension_numbers<[1], [0], [0], [1], [0, 0, 1, 1], [], []>} : vector<8x32xf32>, vector<32x32xf32>, vector<8x32xf32> -> vector<8x32xf32>
    %c0_80 = arith.constant 0 : index
    %c0_81 = arith.constant 0 : index
    %c0_82 = arith.constant 0 : index
    %189 = vector.load %arg17[%c0_80, %c0_81, %c0_82] : memref<2x32x32xf32, #tpu.memory_space<vmem>>, vector<1x32x32xf32>
    %190 = vector.shape_cast %189 : vector<1x32x32xf32> to vector<32x32xf32>
    %cst_83 = arith.constant dense<0.000000e+00> : vector<8x32xf32>
    %191 = tpu.matmul %185, %190, %cst_83 {dimension_numbers = #tpu.dot_dimension_numbers<[1], [0], [0], [1], [0, 0, 1, 1], [], []>} : vector<8x32xf32>, vector<32x32xf32>, vector<8x32xf32> -> vector<8x32xf32>
    %192 = arith.addf %188, %191 : vector<8x32xf32>
    %c0_84 = arith.constant 0 : index
    %c0_85 = arith.constant 0 : index
    %c0_86 = arith.constant 0 : index
    %193 = vector.load %arg18[%c0_84, %c0_85, %c0_86] : memref<2x1x32xf32, #tpu.memory_space<vmem>>, vector<1x1x32xf32>
    %194 = vector.shape_cast %193 : vector<1x1x32xf32> to vector<1x32xf32>
    %195 = vector.broadcast %194 : vector<1x32xf32> to vector<8x32xf32>
    %196 = arith.addf %192, %195 : vector<8x32xf32>
    %cst_87 = arith.constant 0.000000e+00 : f32
    %197 = vector.broadcast %cst_87 : f32 to vector<8x32xf32>
    %198 = arith.subf %197, %196 : vector<8x32xf32>
    %199 = math.exp %198 : vector<8x32xf32>
    %cst_88 = arith.constant 1.000000e+00 : f32
    %200 = vector.broadcast %cst_88 : f32 to vector<8x32xf32>
    %201 = arith.addf %200, %199 : vector<8x32xf32>
    %202 = tpu.reciprocal %201 {approx = true} : vector<8x32xf32> -> vector<8x32xf32>
    %203 = arith.mulf %196, %202 : vector<8x32xf32>
    %c0_89 = arith.constant 0 : index
    %c0_90 = arith.constant 0 : index
    %c0_91 = arith.constant 0 : index
    %204 = vector.load %arg19[%c0_89, %c0_90, %c0_91] : memref<2x32x96xf32, #tpu.memory_space<vmem>>, vector<1x32x96xf32>
    %205 = vector.shape_cast %204 : vector<1x32x96xf32> to vector<32x96xf32>
    %cst_92 = arith.constant dense<0.000000e+00> : vector<8x96xf32>
    %206 = tpu.matmul %203, %205, %cst_92 {dimension_numbers = #tpu.dot_dimension_numbers<[1], [0], [0], [1], [0, 0, 1, 1], [], []>} : vector<8x32xf32>, vector<32x96xf32>, vector<8x96xf32> -> vector<8x96xf32>
    %c0_93 = arith.constant 0 : index
    %c0_94 = arith.constant 0 : index
    %c0_95 = arith.constant 0 : index
    %207 = vector.load %arg20[%c0_93, %c0_94, %c0_95] : memref<2x1x96xf32, #tpu.memory_space<vmem>>, vector<1x1x96xf32>
    %208 = vector.shape_cast %207 : vector<1x1x96xf32> to vector<1x96xf32>
    %209 = vector.broadcast %208 : vector<1x96xf32> to vector<8x96xf32>
    %210 = arith.addf %206, %209 : vector<8x96xf32>
    %211 = vector.extract_strided_slice %210 {offsets = [0, 0], sizes = [8, 32], strides = [1, 1]} : vector<8x96xf32> to vector<8x32xf32>
    %212 = vector.extract_strided_slice %210 {offsets = [0, 32], sizes = [8, 32], strides = [1, 1]} : vector<8x96xf32> to vector<8x32xf32>
    %213 = vector.extract_strided_slice %210 {offsets = [0, 64], sizes = [8, 32], strides = [1, 1]} : vector<8x96xf32> to vector<8x32xf32>
    %214 = arith.mulf %172, %175 : vector<8x32xf32>
    %215 = arith.mulf %173, %176 : vector<8x32xf32>
    %216 = arith.addf %214, %215 : vector<8x32xf32>
    %217 = arith.mulf %174, %177 : vector<8x32xf32>
    %218 = arith.addf %216, %217 : vector<8x32xf32>
    %219 = arith.mulf %212, %218 : vector<8x32xf32>
    %220 = arith.addf %211, %219 : vector<8x32xf32>
    %221 = arith.mulf %213, %172 : vector<8x32xf32>
    %222 = arith.mulf %213, %173 : vector<8x32xf32>
    %223 = arith.mulf %213, %174 : vector<8x32xf32>
    %224 = tpu.concatenate %221, %222, %223 in 0 : vector<8x32xf32>, vector<8x32xf32>, vector<8x32xf32> -> vector<24x32xf32>
    %c0_96 = arith.constant 0 : index
    %c0_97 = arith.constant 0 : index
    %c0_98 = arith.constant 0 : index
    %225 = vector.load %arg27[%c0_96, %c0_97, %c0_98] : memref<2x32x16xf32, #tpu.memory_space<vmem>>, vector<1x32x16xf32>
    %226 = vector.shape_cast %225 : vector<1x32x16xf32> to vector<32x16xf32>
    %cst_99 = arith.constant dense<0.000000e+00> : vector<8x16xf32>
    %227 = tpu.matmul %220, %226, %cst_99 {dimension_numbers = #tpu.dot_dimension_numbers<[1], [0], [0], [1], [0, 0, 1, 1], [], []>} : vector<8x32xf32>, vector<32x16xf32>, vector<8x16xf32> -> vector<8x16xf32>
    %c0_100 = arith.constant 0 : index
    %c0_101 = arith.constant 0 : index
    %c0_102 = arith.constant 0 : index
    %228 = vector.load %arg28[%c0_100, %c0_101, %c0_102] : memref<2x32x16xf32, #tpu.memory_space<vmem>>, vector<1x32x16xf32>
    %229 = vector.shape_cast %228 : vector<1x32x16xf32> to vector<32x16xf32>
    %cst_103 = arith.constant dense<0.000000e+00> : vector<24x16xf32>
    %230 = tpu.matmul %224, %229, %cst_103 {dimension_numbers = #tpu.dot_dimension_numbers<[1], [0], [0], [1], [0, 0, 1, 1], [], []>} : vector<24x32xf32>, vector<32x16xf32>, vector<24x16xf32> -> vector<24x16xf32>
    %cst_104 = arith.constant dense<0.000000e+00> : vector<8x16xf32>
    %231 = tpu.matmul %54, %227, %cst_104 {dimension_numbers = #tpu.dot_dimension_numbers<[1], [0], [0], [1], [0, 0, 1, 1], [], []>} : vector<8x8xf32>, vector<8x16xf32>, vector<8x16xf32> -> vector<8x16xf32>
    %232 = vector.extract_strided_slice %230 {offsets = [0, 0], sizes = [8, 16], strides = [1, 1]} : vector<24x16xf32> to vector<8x16xf32>
    %cst_105 = arith.constant dense<0.000000e+00> : vector<8x16xf32>
    %233 = tpu.matmul %54, %232, %cst_105 {dimension_numbers = #tpu.dot_dimension_numbers<[1], [0], [0], [1], [0, 0, 1, 1], [], []>} : vector<8x8xf32>, vector<8x16xf32>, vector<8x16xf32> -> vector<8x16xf32>
    %234 = vector.extract_strided_slice %230 {offsets = [8, 0], sizes = [8, 16], strides = [1, 1]} : vector<24x16xf32> to vector<8x16xf32>
    %cst_106 = arith.constant dense<0.000000e+00> : vector<8x16xf32>
    %235 = tpu.matmul %54, %234, %cst_106 {dimension_numbers = #tpu.dot_dimension_numbers<[1], [0], [0], [1], [0, 0, 1, 1], [], []>} : vector<8x8xf32>, vector<8x16xf32>, vector<8x16xf32> -> vector<8x16xf32>
    %236 = vector.extract_strided_slice %230 {offsets = [16, 0], sizes = [8, 16], strides = [1, 1]} : vector<24x16xf32> to vector<8x16xf32>
    %cst_107 = arith.constant dense<0.000000e+00> : vector<8x16xf32>
    %237 = tpu.matmul %54, %236, %cst_107 {dimension_numbers = #tpu.dot_dimension_numbers<[1], [0], [0], [1], [0, 0, 1, 1], [], []>} : vector<8x8xf32>, vector<8x16xf32>, vector<8x16xf32> -> vector<8x16xf32>
    %238 = tpu.concatenate %233, %235, %237 in 0 : vector<8x16xf32>, vector<8x16xf32>, vector<8x16xf32> -> vector<24x16xf32>
    %cst_108 = arith.constant 0.000000e+00 : f32
    %239 = vector.broadcast %cst_108 : f32 to vector<8x16xf32>
    %240 = arith.subf %239, %231 : vector<8x16xf32>
    %241 = math.exp %240 : vector<8x16xf32>
    %cst_109 = arith.constant 1.000000e+00 : f32
    %242 = vector.broadcast %cst_109 : f32 to vector<8x16xf32>
    %243 = arith.addf %242, %241 : vector<8x16xf32>
    %244 = tpu.reciprocal %243 {approx = true} : vector<8x16xf32> -> vector<8x16xf32>
    %245 = arith.mulf %231, %244 : vector<8x16xf32>
    %c0_110 = arith.constant 0 : index
    %c0_111 = arith.constant 0 : index
    %c0_112 = arith.constant 0 : index
    %246 = vector.load %arg29[%c0_110, %c0_111, %c0_112] : memref<2x16x32xf32, #tpu.memory_space<vmem>>, vector<1x16x32xf32>
    %247 = vector.shape_cast %246 : vector<1x16x32xf32> to vector<16x32xf32>
    %cst_113 = arith.constant dense<0.000000e+00> : vector<8x32xf32>
    %248 = tpu.matmul %245, %247, %cst_113 {dimension_numbers = #tpu.dot_dimension_numbers<[1], [0], [0], [1], [0, 0, 1, 1], [], []>} : vector<8x16xf32>, vector<16x32xf32>, vector<8x32xf32> -> vector<8x32xf32>
    %249 = arith.addf %165, %248 : vector<8x32xf32>
    %c0_114 = arith.constant 0 : index
    %c0_115 = arith.constant 0 : index
    %c0_116 = arith.constant 0 : index
    %250 = vector.load %arg30[%c0_114, %c0_115, %c0_116] : memref<2x16x32xf32, #tpu.memory_space<vmem>>, vector<1x16x32xf32>
    %251 = vector.shape_cast %250 : vector<1x16x32xf32> to vector<16x32xf32>
    %cst_117 = arith.constant dense<0.000000e+00> : vector<24x32xf32>
    %252 = tpu.matmul %238, %251, %cst_117 {dimension_numbers = #tpu.dot_dimension_numbers<[1], [0], [0], [1], [0, 0, 1, 1], [], []>} : vector<24x16xf32>, vector<16x32xf32>, vector<24x32xf32> -> vector<24x32xf32>
    %253 = arith.addf %166, %252 : vector<24x32xf32>
    %c0_118 = arith.constant 0 : index
    %c0_119 = arith.constant 0 : index
    %c0_120 = arith.constant 0 : index
    %254 = vector.load %arg31[%c0_118, %c0_119, %c0_120] : memref<2x32x16xf32, #tpu.memory_space<vmem>>, vector<1x32x16xf32>
    %255 = vector.shape_cast %254 : vector<1x32x16xf32> to vector<32x16xf32>
    %cst_121 = arith.constant dense<0.000000e+00> : vector<24x16xf32>
    %256 = tpu.matmul %224, %255, %cst_121 {dimension_numbers = #tpu.dot_dimension_numbers<[1], [0], [0], [1], [0, 0, 1, 1], [], []>} : vector<24x32xf32>, vector<32x16xf32>, vector<24x16xf32> -> vector<24x16xf32>
    %c0_122 = arith.constant 0 : index
    %c0_123 = arith.constant 0 : index
    %c0_124 = arith.constant 0 : index
    %257 = vector.load %arg32[%c0_122, %c0_123, %c0_124] : memref<2x32x16xf32, #tpu.memory_space<vmem>>, vector<1x32x16xf32>
    %258 = vector.shape_cast %257 : vector<1x32x16xf32> to vector<32x16xf32>
    %cst_125 = arith.constant dense<0.000000e+00> : vector<8x16xf32>
    %259 = tpu.matmul %249, %258, %cst_125 {dimension_numbers = #tpu.dot_dimension_numbers<[1], [0], [0], [1], [0, 0, 1, 1], [], []>} : vector<8x32xf32>, vector<32x16xf32>, vector<8x16xf32> -> vector<8x16xf32>
    %260 = vector.shape_cast %17 : vector<8x8xf32> to vector<8x8x1xf32>
    %261 = vector.extract_strided_slice %256 {offsets = [0, 0], sizes = [8, 16], strides = [1, 1]} : vector<24x16xf32> to vector<8x16xf32>
    %262 = vector.shape_cast %261 : vector<8x16xf32> to vector<1x8x16xf32>
    %263 = vector.broadcast %260 : vector<8x8x1xf32> to vector<8x8x16xf32>
    %264 = vector.broadcast %262 : vector<1x8x16xf32> to vector<8x8x16xf32>
    %265 = arith.mulf %263, %264 : vector<8x8x16xf32>
    %266 = vector.shape_cast %20 : vector<8x8xf32> to vector<8x8x1xf32>
    %267 = vector.extract_strided_slice %256 {offsets = [8, 0], sizes = [8, 16], strides = [1, 1]} : vector<24x16xf32> to vector<8x16xf32>
    %268 = vector.shape_cast %267 : vector<8x16xf32> to vector<1x8x16xf32>
    %269 = vector.broadcast %266 : vector<8x8x1xf32> to vector<8x8x16xf32>
    %270 = vector.broadcast %268 : vector<1x8x16xf32> to vector<8x8x16xf32>
    %271 = arith.mulf %269, %270 : vector<8x8x16xf32>
    %272 = arith.addf %265, %271 : vector<8x8x16xf32>
    %273 = vector.shape_cast %23 : vector<8x8xf32> to vector<8x8x1xf32>
    %274 = vector.extract_strided_slice %256 {offsets = [16, 0], sizes = [8, 16], strides = [1, 1]} : vector<24x16xf32> to vector<8x16xf32>
    %275 = vector.shape_cast %274 : vector<8x16xf32> to vector<1x8x16xf32>
    %276 = vector.broadcast %273 : vector<8x8x1xf32> to vector<8x8x16xf32>
    %277 = vector.broadcast %275 : vector<1x8x16xf32> to vector<8x8x16xf32>
    %278 = arith.mulf %276, %277 : vector<8x8x16xf32>
    %279 = arith.addf %272, %278 : vector<8x8x16xf32>
    %280 = arith.mulf %77, %279 : vector<8x8x16xf32>
    %cst_126 = arith.constant dense<0.000000e+00> : vector<8x16xf32>
    %281 = vector.multi_reduction <add>, %280, %cst_126 [1] : vector<8x8x16xf32> to vector<8x16xf32>
    %282 = vector.shape_cast %259 : vector<8x16xf32> to vector<1x8x16xf32>
    %283 = vector.broadcast %282 : vector<1x8x16xf32> to vector<8x8x16xf32>
    %284 = arith.mulf %77, %283 : vector<8x8x16xf32>
    %285 = vector.shape_cast %17 : vector<8x8xf32> to vector<8x8x1xf32>
    %286 = vector.broadcast %285 : vector<8x8x1xf32> to vector<8x8x16xf32>
    %287 = arith.mulf %284, %286 : vector<8x8x16xf32>
    %cst_127 = arith.constant dense<0.000000e+00> : vector<8x16xf32>
    %288 = vector.multi_reduction <add>, %287, %cst_127 [1] : vector<8x8x16xf32> to vector<8x16xf32>
    %289 = vector.shape_cast %20 : vector<8x8xf32> to vector<8x8x1xf32>
    %290 = vector.broadcast %289 : vector<8x8x1xf32> to vector<8x8x16xf32>
    %291 = arith.mulf %284, %290 : vector<8x8x16xf32>
    %cst_128 = arith.constant dense<0.000000e+00> : vector<8x16xf32>
    %292 = vector.multi_reduction <add>, %291, %cst_128 [1] : vector<8x8x16xf32> to vector<8x16xf32>
    %293 = vector.shape_cast %23 : vector<8x8xf32> to vector<8x8x1xf32>
    %294 = vector.broadcast %293 : vector<8x8x1xf32> to vector<8x8x16xf32>
    %295 = arith.mulf %284, %294 : vector<8x8x16xf32>
    %cst_129 = arith.constant dense<0.000000e+00> : vector<8x16xf32>
    %296 = vector.multi_reduction <add>, %295, %cst_129 [1] : vector<8x8x16xf32> to vector<8x16xf32>
    %297 = tpu.concatenate %288, %292, %296 in 0 : vector<8x16xf32>, vector<8x16xf32>, vector<8x16xf32> -> vector<24x16xf32>
    %cst_130 = arith.constant 0.000000e+00 : f32
    %298 = vector.broadcast %cst_130 : f32 to vector<8x16xf32>
    %299 = arith.subf %298, %281 : vector<8x16xf32>
    %300 = math.exp %299 : vector<8x16xf32>
    %cst_131 = arith.constant 1.000000e+00 : f32
    %301 = vector.broadcast %cst_131 : f32 to vector<8x16xf32>
    %302 = arith.addf %301, %300 : vector<8x16xf32>
    %303 = tpu.reciprocal %302 {approx = true} : vector<8x16xf32> -> vector<8x16xf32>
    %304 = arith.mulf %281, %303 : vector<8x16xf32>
    %c0_132 = arith.constant 0 : index
    %c0_133 = arith.constant 0 : index
    %c0_134 = arith.constant 0 : index
    %305 = vector.load %arg33[%c0_132, %c0_133, %c0_134] : memref<2x16x32xf32, #tpu.memory_space<vmem>>, vector<1x16x32xf32>
    %306 = vector.shape_cast %305 : vector<1x16x32xf32> to vector<16x32xf32>
    %cst_135 = arith.constant dense<0.000000e+00> : vector<8x32xf32>
    %307 = tpu.matmul %304, %306, %cst_135 {dimension_numbers = #tpu.dot_dimension_numbers<[1], [0], [0], [1], [0, 0, 1, 1], [], []>} : vector<8x16xf32>, vector<16x32xf32>, vector<8x32xf32> -> vector<8x32xf32>
    %308 = arith.addf %249, %307 : vector<8x32xf32>
    %c0_136 = arith.constant 0 : index
    %c0_137 = arith.constant 0 : index
    %c0_138 = arith.constant 0 : index
    %309 = vector.load %arg34[%c0_136, %c0_137, %c0_138] : memref<2x16x32xf32, #tpu.memory_space<vmem>>, vector<1x16x32xf32>
    %310 = vector.shape_cast %309 : vector<1x16x32xf32> to vector<16x32xf32>
    %cst_139 = arith.constant dense<0.000000e+00> : vector<24x32xf32>
    %311 = tpu.matmul %297, %310, %cst_139 {dimension_numbers = #tpu.dot_dimension_numbers<[1], [0], [0], [1], [0, 0, 1, 1], [], []>} : vector<24x16xf32>, vector<16x32xf32>, vector<24x32xf32> -> vector<24x32xf32>
    %312 = arith.addf %253, %311 : vector<24x32xf32>
    %c0_140 = arith.constant 0 : index
    %c0_141 = arith.constant 0 : index
    %c0_142 = arith.constant 0 : index
    %313 = vector.load %arg21[%c0_140, %c0_141, %c0_142] : memref<2x32x64xf32, #tpu.memory_space<vmem>>, vector<1x32x64xf32>
    %314 = vector.shape_cast %313 : vector<1x32x64xf32> to vector<32x64xf32>
    %cst_143 = arith.constant dense<0.000000e+00> : vector<24x64xf32>
    %315 = tpu.matmul %312, %314, %cst_143 {dimension_numbers = #tpu.dot_dimension_numbers<[1], [0], [0], [1], [0, 0, 1, 1], [], []>} : vector<24x32xf32>, vector<32x64xf32>, vector<24x64xf32> -> vector<24x64xf32>
    %316 = vector.extract_strided_slice %315 {offsets = [0, 0], sizes = [24, 32], strides = [1, 1]} : vector<24x64xf32> to vector<24x32xf32>
    %317 = vector.extract_strided_slice %315 {offsets = [0, 32], sizes = [24, 32], strides = [1, 1]} : vector<24x64xf32> to vector<24x32xf32>
    %318 = vector.extract_strided_slice %316 {offsets = [0, 0], sizes = [8, 32], strides = [1, 1]} : vector<24x32xf32> to vector<8x32xf32>
    %319 = vector.extract_strided_slice %316 {offsets = [8, 0], sizes = [8, 32], strides = [1, 1]} : vector<24x32xf32> to vector<8x32xf32>
    %320 = vector.extract_strided_slice %316 {offsets = [16, 0], sizes = [8, 32], strides = [1, 1]} : vector<24x32xf32> to vector<8x32xf32>
    %321 = vector.extract_strided_slice %317 {offsets = [0, 0], sizes = [8, 32], strides = [1, 1]} : vector<24x32xf32> to vector<8x32xf32>
    %322 = vector.extract_strided_slice %317 {offsets = [8, 0], sizes = [8, 32], strides = [1, 1]} : vector<24x32xf32> to vector<8x32xf32>
    %323 = vector.extract_strided_slice %317 {offsets = [16, 0], sizes = [8, 32], strides = [1, 1]} : vector<24x32xf32> to vector<8x32xf32>
    %324 = arith.mulf %321, %321 : vector<8x32xf32>
    %325 = arith.mulf %322, %322 : vector<8x32xf32>
    %326 = arith.addf %324, %325 : vector<8x32xf32>
    %327 = arith.mulf %323, %323 : vector<8x32xf32>
    %328 = arith.addf %326, %327 : vector<8x32xf32>
    %cst_144 = arith.constant 9.99999993E-9 : f32
    %329 = vector.broadcast %cst_144 : f32 to vector<8x32xf32>
    %330 = arith.addf %328, %329 : vector<8x32xf32>
    %331 = math.sqrt %330 : vector<8x32xf32>
    %c0_145 = arith.constant 0 : index
    %c0_146 = arith.constant 0 : index
    %c0_147 = arith.constant 0 : index
    %332 = vector.load %arg22[%c0_145, %c0_146, %c0_147] : memref<2x32x32xf32, #tpu.memory_space<vmem>>, vector<1x32x32xf32>
    %333 = vector.shape_cast %332 : vector<1x32x32xf32> to vector<32x32xf32>
    %cst_148 = arith.constant dense<0.000000e+00> : vector<8x32xf32>
    %334 = tpu.matmul %308, %333, %cst_148 {dimension_numbers = #tpu.dot_dimension_numbers<[1], [0], [0], [1], [0, 0, 1, 1], [], []>} : vector<8x32xf32>, vector<32x32xf32>, vector<8x32xf32> -> vector<8x32xf32>
    %c0_149 = arith.constant 0 : index
    %c0_150 = arith.constant 0 : index
    %c0_151 = arith.constant 0 : index
    %335 = vector.load %arg23[%c0_149, %c0_150, %c0_151] : memref<2x32x32xf32, #tpu.memory_space<vmem>>, vector<1x32x32xf32>
    %336 = vector.shape_cast %335 : vector<1x32x32xf32> to vector<32x32xf32>
    %cst_152 = arith.constant dense<0.000000e+00> : vector<8x32xf32>
    %337 = tpu.matmul %331, %336, %cst_152 {dimension_numbers = #tpu.dot_dimension_numbers<[1], [0], [0], [1], [0, 0, 1, 1], [], []>} : vector<8x32xf32>, vector<32x32xf32>, vector<8x32xf32> -> vector<8x32xf32>
    %338 = arith.addf %334, %337 : vector<8x32xf32>
    %c0_153 = arith.constant 0 : index
    %c0_154 = arith.constant 0 : index
    %c0_155 = arith.constant 0 : index
    %339 = vector.load %arg24[%c0_153, %c0_154, %c0_155] : memref<2x1x32xf32, #tpu.memory_space<vmem>>, vector<1x1x32xf32>
    %340 = vector.shape_cast %339 : vector<1x1x32xf32> to vector<1x32xf32>
    %341 = vector.broadcast %340 : vector<1x32xf32> to vector<8x32xf32>
    %342 = arith.addf %338, %341 : vector<8x32xf32>
    %cst_156 = arith.constant 0.000000e+00 : f32
    %343 = vector.broadcast %cst_156 : f32 to vector<8x32xf32>
    %344 = arith.subf %343, %342 : vector<8x32xf32>
    %345 = math.exp %344 : vector<8x32xf32>
    %cst_157 = arith.constant 1.000000e+00 : f32
    %346 = vector.broadcast %cst_157 : f32 to vector<8x32xf32>
    %347 = arith.addf %346, %345 : vector<8x32xf32>
    %348 = tpu.reciprocal %347 {approx = true} : vector<8x32xf32> -> vector<8x32xf32>
    %349 = arith.mulf %342, %348 : vector<8x32xf32>
    %c0_158 = arith.constant 0 : index
    %c0_159 = arith.constant 0 : index
    %c0_160 = arith.constant 0 : index
    %350 = vector.load %arg25[%c0_158, %c0_159, %c0_160] : memref<2x32x96xf32, #tpu.memory_space<vmem>>, vector<1x32x96xf32>
    %351 = vector.shape_cast %350 : vector<1x32x96xf32> to vector<32x96xf32>
    %cst_161 = arith.constant dense<0.000000e+00> : vector<8x96xf32>
    %352 = tpu.matmul %349, %351, %cst_161 {dimension_numbers = #tpu.dot_dimension_numbers<[1], [0], [0], [1], [0, 0, 1, 1], [], []>} : vector<8x32xf32>, vector<32x96xf32>, vector<8x96xf32> -> vector<8x96xf32>
    %c0_162 = arith.constant 0 : index
    %c0_163 = arith.constant 0 : index
    %c0_164 = arith.constant 0 : index
    %353 = vector.load %arg26[%c0_162, %c0_163, %c0_164] : memref<2x1x96xf32, #tpu.memory_space<vmem>>, vector<1x1x96xf32>
    %354 = vector.shape_cast %353 : vector<1x1x96xf32> to vector<1x96xf32>
    %355 = vector.broadcast %354 : vector<1x96xf32> to vector<8x96xf32>
    %356 = arith.addf %352, %355 : vector<8x96xf32>
    %357 = vector.extract_strided_slice %356 {offsets = [0, 0], sizes = [8, 32], strides = [1, 1]} : vector<8x96xf32> to vector<8x32xf32>
    %358 = vector.extract_strided_slice %356 {offsets = [0, 32], sizes = [8, 32], strides = [1, 1]} : vector<8x96xf32> to vector<8x32xf32>
    %359 = vector.extract_strided_slice %356 {offsets = [0, 64], sizes = [8, 32], strides = [1, 1]} : vector<8x96xf32> to vector<8x32xf32>
    %360 = arith.mulf %318, %321 : vector<8x32xf32>
    %361 = arith.mulf %319, %322 : vector<8x32xf32>
    %362 = arith.addf %360, %361 : vector<8x32xf32>
    %363 = arith.mulf %320, %323 : vector<8x32xf32>
    %364 = arith.addf %362, %363 : vector<8x32xf32>
    %365 = arith.mulf %358, %364 : vector<8x32xf32>
    %366 = arith.addf %357, %365 : vector<8x32xf32>
    %367 = arith.mulf %359, %318 : vector<8x32xf32>
    %368 = arith.mulf %359, %319 : vector<8x32xf32>
    %369 = arith.mulf %359, %320 : vector<8x32xf32>
    %370 = tpu.concatenate %367, %368, %369 in 0 : vector<8x32xf32>, vector<8x32xf32>, vector<8x32xf32> -> vector<24x32xf32>
    %371 = arith.addf %308, %366 : vector<8x32xf32>
    %372 = arith.addf %312, %370 : vector<24x32xf32>
    %c1 = arith.constant 1 : index
    %c0_165 = arith.constant 0 : index
    %c0_166 = arith.constant 0 : index
    %373 = vector.load %arg13[%c1, %c0_165, %c0_166] : memref<2x16x80xf32, #tpu.memory_space<vmem>>, vector<1x16x80xf32>
    %374 = vector.shape_cast %373 : vector<1x16x80xf32> to vector<16x80xf32>
    %cst_167 = arith.constant dense<0.000000e+00> : vector<64x80xf32>
    %375 = tpu.matmul %34, %374, %cst_167 {dimension_numbers = #tpu.dot_dimension_numbers<[1], [0], [0], [1], [0, 0, 1, 1], [], []>} : vector<64x16xf32>, vector<16x80xf32>, vector<64x80xf32> -> vector<64x80xf32>
    %c1_168 = arith.constant 1 : index
    %c0_169 = arith.constant 0 : index
    %c0_170 = arith.constant 0 : index
    %376 = vector.load %arg14[%c1_168, %c0_169, %c0_170] : memref<2x1x80xf32, #tpu.memory_space<vmem>>, vector<1x1x80xf32>
    %377 = vector.shape_cast %376 : vector<1x1x80xf32> to vector<1x80xf32>
    %378 = vector.broadcast %377 : vector<1x80xf32> to vector<64x80xf32>
    %379 = arith.addf %375, %378 : vector<64x80xf32>
    %cst_171 = arith.constant 0.000000e+00 : f32
    %380 = vector.broadcast %cst_171 : f32 to vector<64x80xf32>
    %381 = arith.subf %380, %379 : vector<64x80xf32>
    %382 = math.exp %381 : vector<64x80xf32>
    %cst_172 = arith.constant 1.000000e+00 : f32
    %383 = vector.broadcast %cst_172 : f32 to vector<64x80xf32>
    %384 = arith.addf %383, %382 : vector<64x80xf32>
    %385 = tpu.reciprocal %384 {approx = true} : vector<64x80xf32> -> vector<64x80xf32>
    %386 = arith.mulf %379, %385 : vector<64x80xf32>
    %387 = vector.extract_strided_slice %386 {offsets = [0, 0], sizes = [64, 32], strides = [1, 1]} : vector<64x80xf32> to vector<64x32xf32>
    %388 = vector.extract_strided_slice %386 {offsets = [0, 32], sizes = [64, 32], strides = [1, 1]} : vector<64x80xf32> to vector<64x32xf32>
    %389 = vector.extract_strided_slice %386 {offsets = [0, 64], sizes = [64, 16], strides = [1, 1]} : vector<64x80xf32> to vector<64x16xf32>
    %390 = vector.shape_cast %389 : vector<64x16xf32> to vector<8x8x16xf32>
    %391 = vector.broadcast %55 : vector<8x8x1xf32> to vector<8x8x16xf32>
    %392 = arith.mulf %390, %391 : vector<8x8x16xf32>
    %c1_173 = arith.constant 1 : index
    %c0_174 = arith.constant 0 : index
    %c0_175 = arith.constant 0 : index
    %393 = vector.load %arg3[%c1_173, %c0_174, %c0_175] : memref<2x32x32xf32, #tpu.memory_space<vmem>>, vector<1x32x32xf32>
    %394 = vector.shape_cast %393 : vector<1x32x32xf32> to vector<32x32xf32>
    %cst_176 = arith.constant dense<0.000000e+00> : vector<8x32xf32>
    %395 = tpu.matmul %371, %394, %cst_176 {dimension_numbers = #tpu.dot_dimension_numbers<[1], [0], [0], [1], [0, 0, 1, 1], [], []>} : vector<8x32xf32>, vector<32x32xf32>, vector<8x32xf32> -> vector<8x32xf32>
    %c1_177 = arith.constant 1 : index
    %c0_178 = arith.constant 0 : index
    %c0_179 = arith.constant 0 : index
    %396 = vector.load %arg4[%c1_177, %c0_178, %c0_179] : memref<2x32x32xf32, #tpu.memory_space<vmem>>, vector<1x32x32xf32>
    %397 = vector.shape_cast %396 : vector<1x32x32xf32> to vector<32x32xf32>
    %cst_180 = arith.constant dense<0.000000e+00> : vector<64x32xf32>
    %398 = tpu.matmul %387, %397, %cst_180 {dimension_numbers = #tpu.dot_dimension_numbers<[1], [0], [0], [1], [0, 0, 1, 1], [], []>} : vector<64x32xf32>, vector<32x32xf32>, vector<64x32xf32> -> vector<64x32xf32>
    %c1_181 = arith.constant 1 : index
    %c0_182 = arith.constant 0 : index
    %c0_183 = arith.constant 0 : index
    %399 = vector.load %arg5[%c1_181, %c0_182, %c0_183] : memref<2x1x32xf32, #tpu.memory_space<vmem>>, vector<1x1x32xf32>
    %400 = vector.shape_cast %399 : vector<1x1x32xf32> to vector<1x32xf32>
    %401 = vector.broadcast %400 : vector<1x32xf32> to vector<64x32xf32>
    %402 = arith.addf %398, %401 : vector<64x32xf32>
    %403 = vector.shape_cast %402 : vector<64x32xf32> to vector<8x8x32xf32>
    %404 = vector.broadcast %55 : vector<8x8x1xf32> to vector<8x8x32xf32>
    %405 = arith.mulf %403, %404 : vector<8x8x32xf32>
    %406 = vector.shape_cast %395 : vector<8x32xf32> to vector<1x8x32xf32>
    %407 = vector.broadcast %406 : vector<1x8x32xf32> to vector<8x8x32xf32>
    %408 = arith.mulf %405, %407 : vector<8x8x32xf32>
    %cst_184 = arith.constant dense<0.000000e+00> : vector<8x32xf32>
    %409 = vector.multi_reduction <add>, %408, %cst_184 [1] : vector<8x8x32xf32> to vector<8x32xf32>
    %c1_185 = arith.constant 1 : index
    %c0_186 = arith.constant 0 : index
    %c0_187 = arith.constant 0 : index
    %410 = vector.load %arg6[%c1_185, %c0_186, %c0_187] : memref<2x32x32xf32, #tpu.memory_space<vmem>>, vector<1x32x32xf32>
    %411 = vector.shape_cast %410 : vector<1x32x32xf32> to vector<32x32xf32>
    %cst_188 = arith.constant dense<0.000000e+00> : vector<8x32xf32>
    %412 = tpu.matmul %409, %411, %cst_188 {dimension_numbers = #tpu.dot_dimension_numbers<[1], [0], [0], [1], [0, 0, 1, 1], [], []>} : vector<8x32xf32>, vector<32x32xf32>, vector<8x32xf32> -> vector<8x32xf32>
    %c1_189 = arith.constant 1 : index
    %c0_190 = arith.constant 0 : index
    %c0_191 = arith.constant 0 : index
    %413 = vector.load %arg7[%c1_189, %c0_190, %c0_191] : memref<2x1x32xf32, #tpu.memory_space<vmem>>, vector<1x1x32xf32>
    %414 = vector.shape_cast %413 : vector<1x1x32xf32> to vector<1x32xf32>
    %415 = vector.broadcast %414 : vector<1x32xf32> to vector<8x32xf32>
    %416 = arith.addf %412, %415 : vector<8x32xf32>
    %cst_192 = arith.constant 0.000000e+00 : f32
    %417 = vector.broadcast %cst_192 : f32 to vector<8x32xf32>
    %418 = arith.subf %417, %416 : vector<8x32xf32>
    %419 = math.exp %418 : vector<8x32xf32>
    %cst_193 = arith.constant 1.000000e+00 : f32
    %420 = vector.broadcast %cst_193 : f32 to vector<8x32xf32>
    %421 = arith.addf %420, %419 : vector<8x32xf32>
    %422 = tpu.reciprocal %421 {approx = true} : vector<8x32xf32> -> vector<8x32xf32>
    %423 = arith.mulf %416, %422 : vector<8x32xf32>
    %c1_194 = arith.constant 1 : index
    %c0_195 = arith.constant 0 : index
    %c0_196 = arith.constant 0 : index
    %424 = vector.load %arg8[%c1_194, %c0_195, %c0_196] : memref<2x32x32xf32, #tpu.memory_space<vmem>>, vector<1x32x32xf32>
    %425 = vector.shape_cast %424 : vector<1x32x32xf32> to vector<32x32xf32>
    %cst_197 = arith.constant dense<0.000000e+00> : vector<8x32xf32>
    %426 = tpu.matmul %423, %425, %cst_197 {dimension_numbers = #tpu.dot_dimension_numbers<[1], [0], [0], [1], [0, 0, 1, 1], [], []>} : vector<8x32xf32>, vector<32x32xf32>, vector<8x32xf32> -> vector<8x32xf32>
    %c1_198 = arith.constant 1 : index
    %c0_199 = arith.constant 0 : index
    %c0_200 = arith.constant 0 : index
    %427 = vector.load %arg9[%c1_198, %c0_199, %c0_200] : memref<2x1x32xf32, #tpu.memory_space<vmem>>, vector<1x1x32xf32>
    %428 = vector.shape_cast %427 : vector<1x1x32xf32> to vector<1x32xf32>
    %429 = vector.broadcast %428 : vector<1x32xf32> to vector<8x32xf32>
    %430 = arith.addf %426, %429 : vector<8x32xf32>
    %c1_201 = arith.constant 1 : index
    %c0_202 = arith.constant 0 : index
    %c0_203 = arith.constant 0 : index
    %431 = vector.load %arg10[%c1_201, %c0_202, %c0_203] : memref<2x32x32xf32, #tpu.memory_space<vmem>>, vector<1x32x32xf32>
    %432 = vector.shape_cast %431 : vector<1x32x32xf32> to vector<32x32xf32>
    %cst_204 = arith.constant dense<0.000000e+00> : vector<8x32xf32>
    %433 = tpu.matmul %371, %432, %cst_204 {dimension_numbers = #tpu.dot_dimension_numbers<[1], [0], [0], [1], [0, 0, 1, 1], [], []>} : vector<8x32xf32>, vector<32x32xf32>, vector<8x32xf32> -> vector<8x32xf32>
    %c1_205 = arith.constant 1 : index
    %c0_206 = arith.constant 0 : index
    %c0_207 = arith.constant 0 : index
    %434 = vector.load %arg11[%c1_205, %c0_206, %c0_207] : memref<2x32x64xf32, #tpu.memory_space<vmem>>, vector<1x32x64xf32>
    %435 = vector.shape_cast %434 : vector<1x32x64xf32> to vector<32x64xf32>
    %cst_208 = arith.constant dense<0.000000e+00> : vector<64x64xf32>
    %436 = tpu.matmul %388, %435, %cst_208 {dimension_numbers = #tpu.dot_dimension_numbers<[1], [0], [0], [1], [0, 0, 1, 1], [], []>} : vector<64x32xf32>, vector<32x64xf32>, vector<64x64xf32> -> vector<64x64xf32>
    %c1_209 = arith.constant 1 : index
    %c0_210 = arith.constant 0 : index
    %c0_211 = arith.constant 0 : index
    %437 = vector.load %arg12[%c1_209, %c0_210, %c0_211] : memref<2x1x64xf32, #tpu.memory_space<vmem>>, vector<1x1x64xf32>
    %438 = vector.shape_cast %437 : vector<1x1x64xf32> to vector<1x64xf32>
    %439 = vector.broadcast %438 : vector<1x64xf32> to vector<64x64xf32>
    %440 = arith.addf %436, %439 : vector<64x64xf32>
    %441 = vector.shape_cast %440 : vector<64x64xf32> to vector<8x8x64xf32>
    %442 = vector.broadcast %55 : vector<8x8x1xf32> to vector<8x8x64xf32>
    %443 = arith.mulf %441, %442 : vector<8x8x64xf32>
    %444 = vector.extract_strided_slice %443 {offsets = [0, 0, 0], sizes = [8, 8, 32], strides = [1, 1, 1]} : vector<8x8x64xf32> to vector<8x8x32xf32>
    %445 = vector.extract_strided_slice %443 {offsets = [0, 0, 32], sizes = [8, 8, 32], strides = [1, 1, 1]} : vector<8x8x64xf32> to vector<8x8x32xf32>
    %446 = vector.shape_cast %433 : vector<8x32xf32> to vector<1x8x32xf32>
    %447 = vector.broadcast %446 : vector<1x8x32xf32> to vector<8x8x32xf32>
    %448 = arith.mulf %444, %447 : vector<8x8x32xf32>
    %449 = vector.shape_cast %17 : vector<8x8xf32> to vector<8x8x1xf32>
    %450 = vector.broadcast %449 : vector<8x8x1xf32> to vector<8x8x32xf32>
    %451 = arith.mulf %450, %448 : vector<8x8x32xf32>
    %cst_212 = arith.constant dense<0.000000e+00> : vector<8x32xf32>
    %452 = vector.multi_reduction <add>, %451, %cst_212 [1] : vector<8x8x32xf32> to vector<8x32xf32>
    %453 = vector.extract_strided_slice %372 {offsets = [0, 0], sizes = [8, 32], strides = [1, 1]} : vector<24x32xf32> to vector<8x32xf32>
    %454 = vector.shape_cast %453 : vector<8x32xf32> to vector<1x8x32xf32>
    %455 = vector.broadcast %454 : vector<1x8x32xf32> to vector<8x8x32xf32>
    %456 = arith.mulf %445, %455 : vector<8x8x32xf32>
    %cst_213 = arith.constant dense<0.000000e+00> : vector<8x32xf32>
    %457 = vector.multi_reduction <add>, %456, %cst_213 [1] : vector<8x8x32xf32> to vector<8x32xf32>
    %458 = arith.addf %452, %457 : vector<8x32xf32>
    %459 = vector.shape_cast %20 : vector<8x8xf32> to vector<8x8x1xf32>
    %460 = vector.broadcast %459 : vector<8x8x1xf32> to vector<8x8x32xf32>
    %461 = arith.mulf %460, %448 : vector<8x8x32xf32>
    %cst_214 = arith.constant dense<0.000000e+00> : vector<8x32xf32>
    %462 = vector.multi_reduction <add>, %461, %cst_214 [1] : vector<8x8x32xf32> to vector<8x32xf32>
    %463 = vector.extract_strided_slice %372 {offsets = [8, 0], sizes = [8, 32], strides = [1, 1]} : vector<24x32xf32> to vector<8x32xf32>
    %464 = vector.shape_cast %463 : vector<8x32xf32> to vector<1x8x32xf32>
    %465 = vector.broadcast %464 : vector<1x8x32xf32> to vector<8x8x32xf32>
    %466 = arith.mulf %445, %465 : vector<8x8x32xf32>
    %cst_215 = arith.constant dense<0.000000e+00> : vector<8x32xf32>
    %467 = vector.multi_reduction <add>, %466, %cst_215 [1] : vector<8x8x32xf32> to vector<8x32xf32>
    %468 = arith.addf %462, %467 : vector<8x32xf32>
    %469 = vector.shape_cast %23 : vector<8x8xf32> to vector<8x8x1xf32>
    %470 = vector.broadcast %469 : vector<8x8x1xf32> to vector<8x8x32xf32>
    %471 = arith.mulf %470, %448 : vector<8x8x32xf32>
    %cst_216 = arith.constant dense<0.000000e+00> : vector<8x32xf32>
    %472 = vector.multi_reduction <add>, %471, %cst_216 [1] : vector<8x8x32xf32> to vector<8x32xf32>
    %473 = vector.extract_strided_slice %372 {offsets = [16, 0], sizes = [8, 32], strides = [1, 1]} : vector<24x32xf32> to vector<8x32xf32>
    %474 = vector.shape_cast %473 : vector<8x32xf32> to vector<1x8x32xf32>
    %475 = vector.broadcast %474 : vector<1x8x32xf32> to vector<8x8x32xf32>
    %476 = arith.mulf %445, %475 : vector<8x8x32xf32>
    %cst_217 = arith.constant dense<0.000000e+00> : vector<8x32xf32>
    %477 = vector.multi_reduction <add>, %476, %cst_217 [1] : vector<8x8x32xf32> to vector<8x32xf32>
    %478 = arith.addf %472, %477 : vector<8x32xf32>
    %479 = tpu.concatenate %458, %468, %478 in 0 : vector<8x32xf32>, vector<8x32xf32>, vector<8x32xf32> -> vector<24x32xf32>
    %480 = arith.addf %371, %430 : vector<8x32xf32>
    %481 = arith.addf %372, %479 : vector<24x32xf32>
    %c1_218 = arith.constant 1 : index
    %c0_219 = arith.constant 0 : index
    %c0_220 = arith.constant 0 : index
    %482 = vector.load %arg15[%c1_218, %c0_219, %c0_220] : memref<2x32x64xf32, #tpu.memory_space<vmem>>, vector<1x32x64xf32>
    %483 = vector.shape_cast %482 : vector<1x32x64xf32> to vector<32x64xf32>
    %cst_221 = arith.constant dense<0.000000e+00> : vector<24x64xf32>
    %484 = tpu.matmul %481, %483, %cst_221 {dimension_numbers = #tpu.dot_dimension_numbers<[1], [0], [0], [1], [0, 0, 1, 1], [], []>} : vector<24x32xf32>, vector<32x64xf32>, vector<24x64xf32> -> vector<24x64xf32>
    %485 = vector.extract_strided_slice %484 {offsets = [0, 0], sizes = [24, 32], strides = [1, 1]} : vector<24x64xf32> to vector<24x32xf32>
    %486 = vector.extract_strided_slice %484 {offsets = [0, 32], sizes = [24, 32], strides = [1, 1]} : vector<24x64xf32> to vector<24x32xf32>
    %487 = vector.extract_strided_slice %485 {offsets = [0, 0], sizes = [8, 32], strides = [1, 1]} : vector<24x32xf32> to vector<8x32xf32>
    %488 = vector.extract_strided_slice %485 {offsets = [8, 0], sizes = [8, 32], strides = [1, 1]} : vector<24x32xf32> to vector<8x32xf32>
    %489 = vector.extract_strided_slice %485 {offsets = [16, 0], sizes = [8, 32], strides = [1, 1]} : vector<24x32xf32> to vector<8x32xf32>
    %490 = vector.extract_strided_slice %486 {offsets = [0, 0], sizes = [8, 32], strides = [1, 1]} : vector<24x32xf32> to vector<8x32xf32>
    %491 = vector.extract_strided_slice %486 {offsets = [8, 0], sizes = [8, 32], strides = [1, 1]} : vector<24x32xf32> to vector<8x32xf32>
    %492 = vector.extract_strided_slice %486 {offsets = [16, 0], sizes = [8, 32], strides = [1, 1]} : vector<24x32xf32> to vector<8x32xf32>
    %493 = arith.mulf %490, %490 : vector<8x32xf32>
    %494 = arith.mulf %491, %491 : vector<8x32xf32>
    %495 = arith.addf %493, %494 : vector<8x32xf32>
    %496 = arith.mulf %492, %492 : vector<8x32xf32>
    %497 = arith.addf %495, %496 : vector<8x32xf32>
    %cst_222 = arith.constant 9.99999993E-9 : f32
    %498 = vector.broadcast %cst_222 : f32 to vector<8x32xf32>
    %499 = arith.addf %497, %498 : vector<8x32xf32>
    %500 = math.sqrt %499 : vector<8x32xf32>
    %c1_223 = arith.constant 1 : index
    %c0_224 = arith.constant 0 : index
    %c0_225 = arith.constant 0 : index
    %501 = vector.load %arg16[%c1_223, %c0_224, %c0_225] : memref<2x32x32xf32, #tpu.memory_space<vmem>>, vector<1x32x32xf32>
    %502 = vector.shape_cast %501 : vector<1x32x32xf32> to vector<32x32xf32>
    %cst_226 = arith.constant dense<0.000000e+00> : vector<8x32xf32>
    %503 = tpu.matmul %480, %502, %cst_226 {dimension_numbers = #tpu.dot_dimension_numbers<[1], [0], [0], [1], [0, 0, 1, 1], [], []>} : vector<8x32xf32>, vector<32x32xf32>, vector<8x32xf32> -> vector<8x32xf32>
    %c1_227 = arith.constant 1 : index
    %c0_228 = arith.constant 0 : index
    %c0_229 = arith.constant 0 : index
    %504 = vector.load %arg17[%c1_227, %c0_228, %c0_229] : memref<2x32x32xf32, #tpu.memory_space<vmem>>, vector<1x32x32xf32>
    %505 = vector.shape_cast %504 : vector<1x32x32xf32> to vector<32x32xf32>
    %cst_230 = arith.constant dense<0.000000e+00> : vector<8x32xf32>
    %506 = tpu.matmul %500, %505, %cst_230 {dimension_numbers = #tpu.dot_dimension_numbers<[1], [0], [0], [1], [0, 0, 1, 1], [], []>} : vector<8x32xf32>, vector<32x32xf32>, vector<8x32xf32> -> vector<8x32xf32>
    %507 = arith.addf %503, %506 : vector<8x32xf32>
    %c1_231 = arith.constant 1 : index
    %c0_232 = arith.constant 0 : index
    %c0_233 = arith.constant 0 : index
    %508 = vector.load %arg18[%c1_231, %c0_232, %c0_233] : memref<2x1x32xf32, #tpu.memory_space<vmem>>, vector<1x1x32xf32>
    %509 = vector.shape_cast %508 : vector<1x1x32xf32> to vector<1x32xf32>
    %510 = vector.broadcast %509 : vector<1x32xf32> to vector<8x32xf32>
    %511 = arith.addf %507, %510 : vector<8x32xf32>
    %cst_234 = arith.constant 0.000000e+00 : f32
    %512 = vector.broadcast %cst_234 : f32 to vector<8x32xf32>
    %513 = arith.subf %512, %511 : vector<8x32xf32>
    %514 = math.exp %513 : vector<8x32xf32>
    %cst_235 = arith.constant 1.000000e+00 : f32
    %515 = vector.broadcast %cst_235 : f32 to vector<8x32xf32>
    %516 = arith.addf %515, %514 : vector<8x32xf32>
    %517 = tpu.reciprocal %516 {approx = true} : vector<8x32xf32> -> vector<8x32xf32>
    %518 = arith.mulf %511, %517 : vector<8x32xf32>
    %c1_236 = arith.constant 1 : index
    %c0_237 = arith.constant 0 : index
    %c0_238 = arith.constant 0 : index
    %519 = vector.load %arg19[%c1_236, %c0_237, %c0_238] : memref<2x32x96xf32, #tpu.memory_space<vmem>>, vector<1x32x96xf32>
    %520 = vector.shape_cast %519 : vector<1x32x96xf32> to vector<32x96xf32>
    %cst_239 = arith.constant dense<0.000000e+00> : vector<8x96xf32>
    %521 = tpu.matmul %518, %520, %cst_239 {dimension_numbers = #tpu.dot_dimension_numbers<[1], [0], [0], [1], [0, 0, 1, 1], [], []>} : vector<8x32xf32>, vector<32x96xf32>, vector<8x96xf32> -> vector<8x96xf32>
    %c1_240 = arith.constant 1 : index
    %c0_241 = arith.constant 0 : index
    %c0_242 = arith.constant 0 : index
    %522 = vector.load %arg20[%c1_240, %c0_241, %c0_242] : memref<2x1x96xf32, #tpu.memory_space<vmem>>, vector<1x1x96xf32>
    %523 = vector.shape_cast %522 : vector<1x1x96xf32> to vector<1x96xf32>
    %524 = vector.broadcast %523 : vector<1x96xf32> to vector<8x96xf32>
    %525 = arith.addf %521, %524 : vector<8x96xf32>
    %526 = vector.extract_strided_slice %525 {offsets = [0, 0], sizes = [8, 32], strides = [1, 1]} : vector<8x96xf32> to vector<8x32xf32>
    %527 = vector.extract_strided_slice %525 {offsets = [0, 32], sizes = [8, 32], strides = [1, 1]} : vector<8x96xf32> to vector<8x32xf32>
    %528 = vector.extract_strided_slice %525 {offsets = [0, 64], sizes = [8, 32], strides = [1, 1]} : vector<8x96xf32> to vector<8x32xf32>
    %529 = arith.mulf %487, %490 : vector<8x32xf32>
    %530 = arith.mulf %488, %491 : vector<8x32xf32>
    %531 = arith.addf %529, %530 : vector<8x32xf32>
    %532 = arith.mulf %489, %492 : vector<8x32xf32>
    %533 = arith.addf %531, %532 : vector<8x32xf32>
    %534 = arith.mulf %527, %533 : vector<8x32xf32>
    %535 = arith.addf %526, %534 : vector<8x32xf32>
    %536 = arith.mulf %528, %487 : vector<8x32xf32>
    %537 = arith.mulf %528, %488 : vector<8x32xf32>
    %538 = arith.mulf %528, %489 : vector<8x32xf32>
    %539 = tpu.concatenate %536, %537, %538 in 0 : vector<8x32xf32>, vector<8x32xf32>, vector<8x32xf32> -> vector<24x32xf32>
    %c1_243 = arith.constant 1 : index
    %c0_244 = arith.constant 0 : index
    %c0_245 = arith.constant 0 : index
    %540 = vector.load %arg27[%c1_243, %c0_244, %c0_245] : memref<2x32x16xf32, #tpu.memory_space<vmem>>, vector<1x32x16xf32>
    %541 = vector.shape_cast %540 : vector<1x32x16xf32> to vector<32x16xf32>
    %cst_246 = arith.constant dense<0.000000e+00> : vector<8x16xf32>
    %542 = tpu.matmul %535, %541, %cst_246 {dimension_numbers = #tpu.dot_dimension_numbers<[1], [0], [0], [1], [0, 0, 1, 1], [], []>} : vector<8x32xf32>, vector<32x16xf32>, vector<8x16xf32> -> vector<8x16xf32>
    %c1_247 = arith.constant 1 : index
    %c0_248 = arith.constant 0 : index
    %c0_249 = arith.constant 0 : index
    %543 = vector.load %arg28[%c1_247, %c0_248, %c0_249] : memref<2x32x16xf32, #tpu.memory_space<vmem>>, vector<1x32x16xf32>
    %544 = vector.shape_cast %543 : vector<1x32x16xf32> to vector<32x16xf32>
    %cst_250 = arith.constant dense<0.000000e+00> : vector<24x16xf32>
    %545 = tpu.matmul %539, %544, %cst_250 {dimension_numbers = #tpu.dot_dimension_numbers<[1], [0], [0], [1], [0, 0, 1, 1], [], []>} : vector<24x32xf32>, vector<32x16xf32>, vector<24x16xf32> -> vector<24x16xf32>
    %cst_251 = arith.constant dense<0.000000e+00> : vector<8x16xf32>
    %546 = tpu.matmul %54, %542, %cst_251 {dimension_numbers = #tpu.dot_dimension_numbers<[1], [0], [0], [1], [0, 0, 1, 1], [], []>} : vector<8x8xf32>, vector<8x16xf32>, vector<8x16xf32> -> vector<8x16xf32>
    %547 = vector.extract_strided_slice %545 {offsets = [0, 0], sizes = [8, 16], strides = [1, 1]} : vector<24x16xf32> to vector<8x16xf32>
    %cst_252 = arith.constant dense<0.000000e+00> : vector<8x16xf32>
    %548 = tpu.matmul %54, %547, %cst_252 {dimension_numbers = #tpu.dot_dimension_numbers<[1], [0], [0], [1], [0, 0, 1, 1], [], []>} : vector<8x8xf32>, vector<8x16xf32>, vector<8x16xf32> -> vector<8x16xf32>
    %549 = vector.extract_strided_slice %545 {offsets = [8, 0], sizes = [8, 16], strides = [1, 1]} : vector<24x16xf32> to vector<8x16xf32>
    %cst_253 = arith.constant dense<0.000000e+00> : vector<8x16xf32>
    %550 = tpu.matmul %54, %549, %cst_253 {dimension_numbers = #tpu.dot_dimension_numbers<[1], [0], [0], [1], [0, 0, 1, 1], [], []>} : vector<8x8xf32>, vector<8x16xf32>, vector<8x16xf32> -> vector<8x16xf32>
    %551 = vector.extract_strided_slice %545 {offsets = [16, 0], sizes = [8, 16], strides = [1, 1]} : vector<24x16xf32> to vector<8x16xf32>
    %cst_254 = arith.constant dense<0.000000e+00> : vector<8x16xf32>
    %552 = tpu.matmul %54, %551, %cst_254 {dimension_numbers = #tpu.dot_dimension_numbers<[1], [0], [0], [1], [0, 0, 1, 1], [], []>} : vector<8x8xf32>, vector<8x16xf32>, vector<8x16xf32> -> vector<8x16xf32>
    %553 = tpu.concatenate %548, %550, %552 in 0 : vector<8x16xf32>, vector<8x16xf32>, vector<8x16xf32> -> vector<24x16xf32>
    %cst_255 = arith.constant 0.000000e+00 : f32
    %554 = vector.broadcast %cst_255 : f32 to vector<8x16xf32>
    %555 = arith.subf %554, %546 : vector<8x16xf32>
    %556 = math.exp %555 : vector<8x16xf32>
    %cst_256 = arith.constant 1.000000e+00 : f32
    %557 = vector.broadcast %cst_256 : f32 to vector<8x16xf32>
    %558 = arith.addf %557, %556 : vector<8x16xf32>
    %559 = tpu.reciprocal %558 {approx = true} : vector<8x16xf32> -> vector<8x16xf32>
    %560 = arith.mulf %546, %559 : vector<8x16xf32>
    %c1_257 = arith.constant 1 : index
    %c0_258 = arith.constant 0 : index
    %c0_259 = arith.constant 0 : index
    %561 = vector.load %arg29[%c1_257, %c0_258, %c0_259] : memref<2x16x32xf32, #tpu.memory_space<vmem>>, vector<1x16x32xf32>
    %562 = vector.shape_cast %561 : vector<1x16x32xf32> to vector<16x32xf32>
    %cst_260 = arith.constant dense<0.000000e+00> : vector<8x32xf32>
    %563 = tpu.matmul %560, %562, %cst_260 {dimension_numbers = #tpu.dot_dimension_numbers<[1], [0], [0], [1], [0, 0, 1, 1], [], []>} : vector<8x16xf32>, vector<16x32xf32>, vector<8x32xf32> -> vector<8x32xf32>
    %564 = arith.addf %480, %563 : vector<8x32xf32>
    %c1_261 = arith.constant 1 : index
    %c0_262 = arith.constant 0 : index
    %c0_263 = arith.constant 0 : index
    %565 = vector.load %arg30[%c1_261, %c0_262, %c0_263] : memref<2x16x32xf32, #tpu.memory_space<vmem>>, vector<1x16x32xf32>
    %566 = vector.shape_cast %565 : vector<1x16x32xf32> to vector<16x32xf32>
    %cst_264 = arith.constant dense<0.000000e+00> : vector<24x32xf32>
    %567 = tpu.matmul %553, %566, %cst_264 {dimension_numbers = #tpu.dot_dimension_numbers<[1], [0], [0], [1], [0, 0, 1, 1], [], []>} : vector<24x16xf32>, vector<16x32xf32>, vector<24x32xf32> -> vector<24x32xf32>
    %568 = arith.addf %481, %567 : vector<24x32xf32>
    %c1_265 = arith.constant 1 : index
    %c0_266 = arith.constant 0 : index
    %c0_267 = arith.constant 0 : index
    %569 = vector.load %arg31[%c1_265, %c0_266, %c0_267] : memref<2x32x16xf32, #tpu.memory_space<vmem>>, vector<1x32x16xf32>
    %570 = vector.shape_cast %569 : vector<1x32x16xf32> to vector<32x16xf32>
    %cst_268 = arith.constant dense<0.000000e+00> : vector<24x16xf32>
    %571 = tpu.matmul %539, %570, %cst_268 {dimension_numbers = #tpu.dot_dimension_numbers<[1], [0], [0], [1], [0, 0, 1, 1], [], []>} : vector<24x32xf32>, vector<32x16xf32>, vector<24x16xf32> -> vector<24x16xf32>
    %c1_269 = arith.constant 1 : index
    %c0_270 = arith.constant 0 : index
    %c0_271 = arith.constant 0 : index
    %572 = vector.load %arg32[%c1_269, %c0_270, %c0_271] : memref<2x32x16xf32, #tpu.memory_space<vmem>>, vector<1x32x16xf32>
    %573 = vector.shape_cast %572 : vector<1x32x16xf32> to vector<32x16xf32>
    %cst_272 = arith.constant dense<0.000000e+00> : vector<8x16xf32>
    %574 = tpu.matmul %564, %573, %cst_272 {dimension_numbers = #tpu.dot_dimension_numbers<[1], [0], [0], [1], [0, 0, 1, 1], [], []>} : vector<8x32xf32>, vector<32x16xf32>, vector<8x16xf32> -> vector<8x16xf32>
    %575 = vector.shape_cast %17 : vector<8x8xf32> to vector<8x8x1xf32>
    %576 = vector.extract_strided_slice %571 {offsets = [0, 0], sizes = [8, 16], strides = [1, 1]} : vector<24x16xf32> to vector<8x16xf32>
    %577 = vector.shape_cast %576 : vector<8x16xf32> to vector<1x8x16xf32>
    %578 = vector.broadcast %575 : vector<8x8x1xf32> to vector<8x8x16xf32>
    %579 = vector.broadcast %577 : vector<1x8x16xf32> to vector<8x8x16xf32>
    %580 = arith.mulf %578, %579 : vector<8x8x16xf32>
    %581 = vector.shape_cast %20 : vector<8x8xf32> to vector<8x8x1xf32>
    %582 = vector.extract_strided_slice %571 {offsets = [8, 0], sizes = [8, 16], strides = [1, 1]} : vector<24x16xf32> to vector<8x16xf32>
    %583 = vector.shape_cast %582 : vector<8x16xf32> to vector<1x8x16xf32>
    %584 = vector.broadcast %581 : vector<8x8x1xf32> to vector<8x8x16xf32>
    %585 = vector.broadcast %583 : vector<1x8x16xf32> to vector<8x8x16xf32>
    %586 = arith.mulf %584, %585 : vector<8x8x16xf32>
    %587 = arith.addf %580, %586 : vector<8x8x16xf32>
    %588 = vector.shape_cast %23 : vector<8x8xf32> to vector<8x8x1xf32>
    %589 = vector.extract_strided_slice %571 {offsets = [16, 0], sizes = [8, 16], strides = [1, 1]} : vector<24x16xf32> to vector<8x16xf32>
    %590 = vector.shape_cast %589 : vector<8x16xf32> to vector<1x8x16xf32>
    %591 = vector.broadcast %588 : vector<8x8x1xf32> to vector<8x8x16xf32>
    %592 = vector.broadcast %590 : vector<1x8x16xf32> to vector<8x8x16xf32>
    %593 = arith.mulf %591, %592 : vector<8x8x16xf32>
    %594 = arith.addf %587, %593 : vector<8x8x16xf32>
    %595 = arith.mulf %392, %594 : vector<8x8x16xf32>
    %cst_273 = arith.constant dense<0.000000e+00> : vector<8x16xf32>
    %596 = vector.multi_reduction <add>, %595, %cst_273 [1] : vector<8x8x16xf32> to vector<8x16xf32>
    %597 = vector.shape_cast %574 : vector<8x16xf32> to vector<1x8x16xf32>
    %598 = vector.broadcast %597 : vector<1x8x16xf32> to vector<8x8x16xf32>
    %599 = arith.mulf %392, %598 : vector<8x8x16xf32>
    %600 = vector.shape_cast %17 : vector<8x8xf32> to vector<8x8x1xf32>
    %601 = vector.broadcast %600 : vector<8x8x1xf32> to vector<8x8x16xf32>
    %602 = arith.mulf %599, %601 : vector<8x8x16xf32>
    %cst_274 = arith.constant dense<0.000000e+00> : vector<8x16xf32>
    %603 = vector.multi_reduction <add>, %602, %cst_274 [1] : vector<8x8x16xf32> to vector<8x16xf32>
    %604 = vector.shape_cast %20 : vector<8x8xf32> to vector<8x8x1xf32>
    %605 = vector.broadcast %604 : vector<8x8x1xf32> to vector<8x8x16xf32>
    %606 = arith.mulf %599, %605 : vector<8x8x16xf32>
    %cst_275 = arith.constant dense<0.000000e+00> : vector<8x16xf32>
    %607 = vector.multi_reduction <add>, %606, %cst_275 [1] : vector<8x8x16xf32> to vector<8x16xf32>
    %608 = vector.shape_cast %23 : vector<8x8xf32> to vector<8x8x1xf32>
    %609 = vector.broadcast %608 : vector<8x8x1xf32> to vector<8x8x16xf32>
    %610 = arith.mulf %599, %609 : vector<8x8x16xf32>
    %cst_276 = arith.constant dense<0.000000e+00> : vector<8x16xf32>
    %611 = vector.multi_reduction <add>, %610, %cst_276 [1] : vector<8x8x16xf32> to vector<8x16xf32>
    %612 = tpu.concatenate %603, %607, %611 in 0 : vector<8x16xf32>, vector<8x16xf32>, vector<8x16xf32> -> vector<24x16xf32>
    %cst_277 = arith.constant 0.000000e+00 : f32
    %613 = vector.broadcast %cst_277 : f32 to vector<8x16xf32>
    %614 = arith.subf %613, %596 : vector<8x16xf32>
    %615 = math.exp %614 : vector<8x16xf32>
    %cst_278 = arith.constant 1.000000e+00 : f32
    %616 = vector.broadcast %cst_278 : f32 to vector<8x16xf32>
    %617 = arith.addf %616, %615 : vector<8x16xf32>
    %618 = tpu.reciprocal %617 {approx = true} : vector<8x16xf32> -> vector<8x16xf32>
    %619 = arith.mulf %596, %618 : vector<8x16xf32>
    %c1_279 = arith.constant 1 : index
    %c0_280 = arith.constant 0 : index
    %c0_281 = arith.constant 0 : index
    %620 = vector.load %arg33[%c1_279, %c0_280, %c0_281] : memref<2x16x32xf32, #tpu.memory_space<vmem>>, vector<1x16x32xf32>
    %621 = vector.shape_cast %620 : vector<1x16x32xf32> to vector<16x32xf32>
    %cst_282 = arith.constant dense<0.000000e+00> : vector<8x32xf32>
    %622 = tpu.matmul %619, %621, %cst_282 {dimension_numbers = #tpu.dot_dimension_numbers<[1], [0], [0], [1], [0, 0, 1, 1], [], []>} : vector<8x16xf32>, vector<16x32xf32>, vector<8x32xf32> -> vector<8x32xf32>
    %623 = arith.addf %564, %622 : vector<8x32xf32>
    %c1_283 = arith.constant 1 : index
    %c0_284 = arith.constant 0 : index
    %c0_285 = arith.constant 0 : index
    %624 = vector.load %arg34[%c1_283, %c0_284, %c0_285] : memref<2x16x32xf32, #tpu.memory_space<vmem>>, vector<1x16x32xf32>
    %625 = vector.shape_cast %624 : vector<1x16x32xf32> to vector<16x32xf32>
    %cst_286 = arith.constant dense<0.000000e+00> : vector<24x32xf32>
    %626 = tpu.matmul %612, %625, %cst_286 {dimension_numbers = #tpu.dot_dimension_numbers<[1], [0], [0], [1], [0, 0, 1, 1], [], []>} : vector<24x16xf32>, vector<16x32xf32>, vector<24x32xf32> -> vector<24x32xf32>
    %627 = arith.addf %568, %626 : vector<24x32xf32>
    %c1_287 = arith.constant 1 : index
    %c0_288 = arith.constant 0 : index
    %c0_289 = arith.constant 0 : index
    %628 = vector.load %arg21[%c1_287, %c0_288, %c0_289] : memref<2x32x64xf32, #tpu.memory_space<vmem>>, vector<1x32x64xf32>
    %629 = vector.shape_cast %628 : vector<1x32x64xf32> to vector<32x64xf32>
    %cst_290 = arith.constant dense<0.000000e+00> : vector<24x64xf32>
    %630 = tpu.matmul %627, %629, %cst_290 {dimension_numbers = #tpu.dot_dimension_numbers<[1], [0], [0], [1], [0, 0, 1, 1], [], []>} : vector<24x32xf32>, vector<32x64xf32>, vector<24x64xf32> -> vector<24x64xf32>
    %631 = vector.extract_strided_slice %630 {offsets = [0, 0], sizes = [24, 32], strides = [1, 1]} : vector<24x64xf32> to vector<24x32xf32>
    %632 = vector.extract_strided_slice %630 {offsets = [0, 32], sizes = [24, 32], strides = [1, 1]} : vector<24x64xf32> to vector<24x32xf32>
    %633 = vector.extract_strided_slice %631 {offsets = [0, 0], sizes = [8, 32], strides = [1, 1]} : vector<24x32xf32> to vector<8x32xf32>
    %634 = vector.extract_strided_slice %631 {offsets = [8, 0], sizes = [8, 32], strides = [1, 1]} : vector<24x32xf32> to vector<8x32xf32>
    %635 = vector.extract_strided_slice %631 {offsets = [16, 0], sizes = [8, 32], strides = [1, 1]} : vector<24x32xf32> to vector<8x32xf32>
    %636 = vector.extract_strided_slice %632 {offsets = [0, 0], sizes = [8, 32], strides = [1, 1]} : vector<24x32xf32> to vector<8x32xf32>
    %637 = vector.extract_strided_slice %632 {offsets = [8, 0], sizes = [8, 32], strides = [1, 1]} : vector<24x32xf32> to vector<8x32xf32>
    %638 = vector.extract_strided_slice %632 {offsets = [16, 0], sizes = [8, 32], strides = [1, 1]} : vector<24x32xf32> to vector<8x32xf32>
    %639 = arith.mulf %636, %636 : vector<8x32xf32>
    %640 = arith.mulf %637, %637 : vector<8x32xf32>
    %641 = arith.addf %639, %640 : vector<8x32xf32>
    %642 = arith.mulf %638, %638 : vector<8x32xf32>
    %643 = arith.addf %641, %642 : vector<8x32xf32>
    %cst_291 = arith.constant 9.99999993E-9 : f32
    %644 = vector.broadcast %cst_291 : f32 to vector<8x32xf32>
    %645 = arith.addf %643, %644 : vector<8x32xf32>
    %646 = math.sqrt %645 : vector<8x32xf32>
    %c1_292 = arith.constant 1 : index
    %c0_293 = arith.constant 0 : index
    %c0_294 = arith.constant 0 : index
    %647 = vector.load %arg22[%c1_292, %c0_293, %c0_294] : memref<2x32x32xf32, #tpu.memory_space<vmem>>, vector<1x32x32xf32>
    %648 = vector.shape_cast %647 : vector<1x32x32xf32> to vector<32x32xf32>
    %cst_295 = arith.constant dense<0.000000e+00> : vector<8x32xf32>
    %649 = tpu.matmul %623, %648, %cst_295 {dimension_numbers = #tpu.dot_dimension_numbers<[1], [0], [0], [1], [0, 0, 1, 1], [], []>} : vector<8x32xf32>, vector<32x32xf32>, vector<8x32xf32> -> vector<8x32xf32>
    %c1_296 = arith.constant 1 : index
    %c0_297 = arith.constant 0 : index
    %c0_298 = arith.constant 0 : index
    %650 = vector.load %arg23[%c1_296, %c0_297, %c0_298] : memref<2x32x32xf32, #tpu.memory_space<vmem>>, vector<1x32x32xf32>
    %651 = vector.shape_cast %650 : vector<1x32x32xf32> to vector<32x32xf32>
    %cst_299 = arith.constant dense<0.000000e+00> : vector<8x32xf32>
    %652 = tpu.matmul %646, %651, %cst_299 {dimension_numbers = #tpu.dot_dimension_numbers<[1], [0], [0], [1], [0, 0, 1, 1], [], []>} : vector<8x32xf32>, vector<32x32xf32>, vector<8x32xf32> -> vector<8x32xf32>
    %653 = arith.addf %649, %652 : vector<8x32xf32>
    %c1_300 = arith.constant 1 : index
    %c0_301 = arith.constant 0 : index
    %c0_302 = arith.constant 0 : index
    %654 = vector.load %arg24[%c1_300, %c0_301, %c0_302] : memref<2x1x32xf32, #tpu.memory_space<vmem>>, vector<1x1x32xf32>
    %655 = vector.shape_cast %654 : vector<1x1x32xf32> to vector<1x32xf32>
    %656 = vector.broadcast %655 : vector<1x32xf32> to vector<8x32xf32>
    %657 = arith.addf %653, %656 : vector<8x32xf32>
    %cst_303 = arith.constant 0.000000e+00 : f32
    %658 = vector.broadcast %cst_303 : f32 to vector<8x32xf32>
    %659 = arith.subf %658, %657 : vector<8x32xf32>
    %660 = math.exp %659 : vector<8x32xf32>
    %cst_304 = arith.constant 1.000000e+00 : f32
    %661 = vector.broadcast %cst_304 : f32 to vector<8x32xf32>
    %662 = arith.addf %661, %660 : vector<8x32xf32>
    %663 = tpu.reciprocal %662 {approx = true} : vector<8x32xf32> -> vector<8x32xf32>
    %664 = arith.mulf %657, %663 : vector<8x32xf32>
    %c1_305 = arith.constant 1 : index
    %c0_306 = arith.constant 0 : index
    %c0_307 = arith.constant 0 : index
    %665 = vector.load %arg25[%c1_305, %c0_306, %c0_307] : memref<2x32x96xf32, #tpu.memory_space<vmem>>, vector<1x32x96xf32>
    %666 = vector.shape_cast %665 : vector<1x32x96xf32> to vector<32x96xf32>
    %cst_308 = arith.constant dense<0.000000e+00> : vector<8x96xf32>
    %667 = tpu.matmul %664, %666, %cst_308 {dimension_numbers = #tpu.dot_dimension_numbers<[1], [0], [0], [1], [0, 0, 1, 1], [], []>} : vector<8x32xf32>, vector<32x96xf32>, vector<8x96xf32> -> vector<8x96xf32>
    %c1_309 = arith.constant 1 : index
    %c0_310 = arith.constant 0 : index
    %c0_311 = arith.constant 0 : index
    %668 = vector.load %arg26[%c1_309, %c0_310, %c0_311] : memref<2x1x96xf32, #tpu.memory_space<vmem>>, vector<1x1x96xf32>
    %669 = vector.shape_cast %668 : vector<1x1x96xf32> to vector<1x96xf32>
    %670 = vector.broadcast %669 : vector<1x96xf32> to vector<8x96xf32>
    %671 = arith.addf %667, %670 : vector<8x96xf32>
    %672 = vector.extract_strided_slice %671 {offsets = [0, 0], sizes = [8, 32], strides = [1, 1]} : vector<8x96xf32> to vector<8x32xf32>
    %673 = vector.extract_strided_slice %671 {offsets = [0, 32], sizes = [8, 32], strides = [1, 1]} : vector<8x96xf32> to vector<8x32xf32>
    %674 = vector.extract_strided_slice %671 {offsets = [0, 64], sizes = [8, 32], strides = [1, 1]} : vector<8x96xf32> to vector<8x32xf32>
    %675 = arith.mulf %633, %636 : vector<8x32xf32>
    %676 = arith.mulf %634, %637 : vector<8x32xf32>
    %677 = arith.addf %675, %676 : vector<8x32xf32>
    %678 = arith.mulf %635, %638 : vector<8x32xf32>
    %679 = arith.addf %677, %678 : vector<8x32xf32>
    %680 = arith.mulf %673, %679 : vector<8x32xf32>
    %681 = arith.addf %672, %680 : vector<8x32xf32>
    %682 = arith.mulf %674, %633 : vector<8x32xf32>
    %683 = arith.mulf %674, %634 : vector<8x32xf32>
    %684 = arith.mulf %674, %635 : vector<8x32xf32>
    %685 = tpu.concatenate %682, %683, %684 in 0 : vector<8x32xf32>, vector<8x32xf32>, vector<8x32xf32> -> vector<24x32xf32>
    %686 = arith.addf %623, %681 : vector<8x32xf32>
    %687 = arith.addf %627, %685 : vector<24x32xf32>
    %688 = vector.extract_strided_slice %687 {offsets = [0, 0], sizes = [8, 32], strides = [1, 1]} : vector<24x32xf32> to vector<8x32xf32>
    %689 = vector.extract_strided_slice %687 {offsets = [8, 0], sizes = [8, 32], strides = [1, 1]} : vector<24x32xf32> to vector<8x32xf32>
    %690 = vector.extract_strided_slice %687 {offsets = [16, 0], sizes = [8, 32], strides = [1, 1]} : vector<24x32xf32> to vector<8x32xf32>
    %691 = tpu.concatenate %686, %688, %689, %690 in 1 : vector<8x32xf32>, vector<8x32xf32>, vector<8x32xf32>, vector<8x32xf32> -> vector<8x128xf32>
    %c0_312 = arith.constant 0 : index
    %c0_313 = arith.constant 0 : index
    %692 = vector.load %arg35[%c0_312, %c0_313] : memref<8x128xf32, #tpu.memory_space<vmem>>, vector<8x128xf32>
    tpu.vector_store %arg35[%c0_312, %c0_313], %691 {strides = array<i32>} : memref<8x128xf32, #tpu.memory_space<vmem>>, vector<8x128xf32>,
    return
  }
}

</mosaic_0001>

<llo_original>
// kernel: fieldnet_forward.1
$region0: #{fieldnet_forward.1}
  #allocation0 [shape = 'u32[]', space=smem, size = 0x4, offset = 0x4, fixed_abs, tag = 'smem constant byte address 0x4 - core index']
  #allocation1 [shape = 'u32[144,128]{1,0:T(1,128)}', space=vmem, size = 0x12000, scoped, tag = 'internal scratch']
  %s0 = inlined_call_operand.smem [shape: u32[36], index: -1, kind: input, shape index: {}]
  %s1 = sld [smem:[%s0]]
  %s2 = scalar_lea.smem %s0, 1
  %s3 = sld [smem:[%s2]]
  %s4 = scalar_lea.smem %s0, 2
  %s5 = sld [smem:[%s4]]
  %s6 = scalar_lea.smem %s0, 3
  %s7 = sld [smem:[%s6]]
  %s8 = scalar_lea.smem %s0, 4
  %s9 = sld [smem:[%s8]]
  %s10 = scalar_lea.smem %s0, 5
  %s11 = sld [smem:[%s10]]
  %s12 = scalar_lea.smem %s0, 6
  %s13 = sld [smem:[%s12]]
  %s14 = scalar_lea.smem %s0, 7
  %s15 = sld [smem:[%s14]]
  %s16 = scalar_lea.smem %s0, 8
  %s17 = sld [smem:[%s16]]
  %s18 = scalar_lea.smem %s0, 9
  %s19 = sld [smem:[%s18]]
  %s20 = scalar_lea.smem %s0, 10
  %s21 = sld [smem:[%s20]]
  %s22 = scalar_lea.smem %s0, 11
  %s23 = sld [smem:[%s22]]
  %s24 = scalar_lea.smem %s0, 12
  %s25 = sld [smem:[%s24]]
  %s26 = scalar_lea.smem %s0, 13
  %s27 = sld [smem:[%s26]]
  %s28 = scalar_lea.smem %s0, 14
  %s29 = sld [smem:[%s28]]
  %s30 = scalar_lea.smem %s0, 15
  %s31 = sld [smem:[%s30]]
  %s32 = scalar_lea.smem %s0, 16
  %s33 = sld [smem:[%s32]]
  %s34 = scalar_lea.smem %s0, 17
  %s35 = sld [smem:[%s34]]
  %s36 = scalar_lea.smem %s0, 18
  %s37 = sld [smem:[%s36]]
  %s38 = scalar_lea.smem %s0, 19
  %s39 = sld [smem:[%s38]]
  %s40 = scalar_lea.smem %s0, 20
  %s41 = sld [smem:[%s40]]
  %s42 = scalar_lea.smem %s0, 21
  %s43 = sld [smem:[%s42]]
  %s44 = scalar_lea.smem %s0, 22
  %s45 = sld [smem:[%s44]]
  %s46 = scalar_lea.smem %s0, 23
  %s47 = sld [smem:[%s46]]
  %s48 = scalar_lea.smem %s0, 24
  %s49 = sld [smem:[%s48]]
  %s50 = scalar_lea.smem %s0, 25
  %s51 = sld [smem:[%s50]]
  %s52 = scalar_lea.smem %s0, 26
  %s53 = sld [smem:[%s52]]
  %s54 = scalar_lea.smem %s0, 27
  %s55 = sld [smem:[%s54]]
  %s56 = scalar_lea.smem %s0, 28
  %s57 = sld [smem:[%s56]]
  %s58 = scalar_lea.smem %s0, 29
  %s59 = sld [smem:[%s58]]
  %s60 = scalar_lea.smem %s0, 30
  %s61 = sld [smem:[%s60]]
  %s62 = scalar_lea.smem %s0, 31
  %s63 = sld [smem:[%s62]]
  %s64 = scalar_lea.smem %s0, 32
  %s65 = sld [smem:[%s64]]
  %s66 = scalar_lea.smem %s0, 33
  %s67 = sld [smem:[%s66]]
  %s68 = scalar_lea.smem %s0, 34
  %s69 = sld [smem:[%s68]]
  %s70 = scalar_lea.smem %s0, 35
  %s71 = sld [smem:[%s70]]
  %s72 = sld [smem:[#allocation0]]
  $region150: #{fieldnet_forward.1} parent=0
    _
  %s74 = ssub.s32 1, %s72
  %s75 = scalar_select 0, %s74, %s72
  // Predicated region
  $region2: #{fieldnet_forward.1} parent=0 // pred_check
    _
  $region3: #{fieldnet_forward.1} parent=0 // pred_check_branch
    %77 = sbr.rel (0) target = $region5
  $region4: #{fieldnet_forward.1} parent=0 // pred_region
    _
  $region5: #{fieldnet_forward.1} parent=0 // pred_fallthru
    _
  // Predicated region
  $region6: #{fieldnet_forward.1} parent=0 // pred_check
    _
  $region7: #{fieldnet_forward.1} parent=0 // pred_check_branch
    %79 = sbr.rel (0) target = $region9
  $region8: #{fieldnet_forward.1} parent=0 // pred_region
    _
  $region9: #{fieldnet_forward.1} parent=0 // pred_fallthru
    _
  // Predicated region
  $region10: #{fieldnet_forward.1} parent=0 // pred_check
    _
  $region11: #{fieldnet_forward.1} parent=0 // pred_check_branch
    %81 = sbr.rel (0) target = $region13
  $region12: #{fieldnet_forward.1} parent=0 // pred_region
    _
  $region13: #{fieldnet_forward.1} parent=0 // pred_fallthru
    _
  // Predicated region
  $region14: #{fieldnet_forward.1} parent=0 // pred_check
    _
  $region15: #{fieldnet_forward.1} parent=0 // pred_check_branch
    %83 = sbr.rel (0) target = $region17
  $region16: #{fieldnet_forward.1} parent=0 // pred_region
    _
  $region17: #{fieldnet_forward.1} parent=0 // pred_fallthru
    _
  // Predicated region
  $region18: #{fieldnet_forward.1} parent=0 // pred_check
    _
  $region19: #{fieldnet_forward.1} parent=0 // pred_check_branch
    %85 = sbr.rel (0) target = $region21
  $region20: #{fieldnet_forward.1} parent=0 // pred_region
    _
  $region21: #{fieldnet_forward.1} parent=0 // pred_fallthru
    _
  // Predicated region
  $region22: #{fieldnet_forward.1} parent=0 // pred_check
    _
  $region23: #{fieldnet_forward.1} parent=0 // pred_check_branch
    %87 = sbr.rel (0) target = $region25
  $region24: #{fieldnet_forward.1} parent=0 // pred_region
    _
  $region25: #{fieldnet_forward.1} parent=0 // pred_fallthru
    _
  // Predicated region
  $region26: #{fieldnet_forward.1} parent=0 // pred_check
    _
  $region27: #{fieldnet_forward.1} parent=0 // pred_check_branch
    %89 = sbr.rel (0) target = $region29
  $region28: #{fieldnet_forward.1} parent=0 // pred_region
    _
  $region29: #{fieldnet_forward.1} parent=0 // pred_fallthru
    _
  // Predicated region
  $region30: #{fieldnet_forward.1} parent=0 // pred_check
    _
  $region31: #{fieldnet_forward.1} parent=0 // pred_check_branch
    %91 = sbr.rel (0) target = $region33
  $region32: #{fieldnet_forward.1} parent=0 // pred_region
    _
  $region33: #{fieldnet_forward.1} parent=0 // pred_fallthru
    _
  // Predicated region
  $region34: #{fieldnet_forward.1} parent=0 // pred_check
    _
  $region35: #{fieldnet_forward.1} parent=0 // pred_check_branch
    %93 = sbr.rel (0) target = $region37
  $region36: #{fieldnet_forward.1} parent=0 // pred_region
    _
  $region37: #{fieldnet_forward.1} parent=0 // pred_fallthru
    _
  // Predicated region
  $region38: #{fieldnet_forward.1} parent=0 // pred_check
    _
  $region39: #{fieldnet_forward.1} parent=0 // pred_check_branch
    %95 = sbr.rel (0) target = $region41
  $region40: #{fieldnet_forward.1} parent=0 // pred_region
    _
  $region41: #{fieldnet_forward.1} parent=0 // pred_fallthru
    _
  // Predicated region
  $region42: #{fieldnet_forward.1} parent=0 // pred_check
    _
  $region43: #{fieldnet_forward.1} parent=0 // pred_check_branch
    %97 = sbr.rel (0) target = $region45
  $region44: #{fieldnet_forward.1} parent=0 // pred_region
    _
  $region45: #{fieldnet_forward.1} parent=0 // pred_fallthru
    _
  // Predicated region
  $region46: #{fieldnet_forward.1} parent=0 // pred_check
    _
  $region47: #{fieldnet_forward.1} parent=0 // pred_check_branch
    %99 = sbr.rel (0) target = $region49
  $region48: #{fieldnet_forward.1} parent=0 // pred_region
    _
  $region49: #{fieldnet_forward.1} parent=0 // pred_fallthru
    _
  // Predicated region
  $region50: #{fieldnet_forward.1} parent=0 // pred_check
    _
  $region51: #{fieldnet_forward.1} parent=0 // pred_check_branch
    %101 = sbr.rel (0) target = $region53
  $region52: #{fieldnet_forward.1} parent=0 // pred_region
    _
  $region53: #{fieldnet_forward.1} parent=0 // pred_fallthru
    _
  // Predicated region
  $region54: #{fieldnet_forward.1} parent=0 // pred_check
    _
  $region55: #{fieldnet_forward.1} parent=0 // pred_check_branch
    %103 = sbr.rel (0) target = $region57
  $region56: #{fieldnet_forward.1} parent=0 // pred_region
    _
  $region57: #{fieldnet_forward.1} parent=0 // pred_fallthru
    _
  // Predicated region
  $region58: #{fieldnet_forward.1} parent=0 // pred_check
    _
  $region59: #{fieldnet_forward.1} parent=0 // pred_check_branch
    %105 = sbr.rel (0) target = $region61
  $region60: #{fieldnet_forward.1} parent=0 // pred_region
    _
  $region61: #{fieldnet_forward.1} parent=0 // pred_fallthru
    _
  // Predicated region
  $region62: #{fieldnet_forward.1} parent=0 // pred_check
    _
  $region63: #{fieldnet_forward.1} parent=0 // pred_check_branch
    %107 = sbr.rel (0) target = $region65
  $region64: #{fieldnet_forward.1} parent=0 // pred_region
    _
  $region65: #{fieldnet_forward.1} parent=0 // pred_fallthru
    _
  // Predicated region
  $region66: #{fieldnet_forward.1} parent=0 // pred_check
    _
  $region67: #{fieldnet_forward.1} parent=0 // pred_check_branch
    %109 = sbr.rel (0) target = $region69
  $region68: #{fieldnet_forward.1} parent=0 // pred_region
    _
  $region69: #{fieldnet_forward.1} parent=0 // pred_fallthru
    _
  // Predicated region
  $region70: #{fieldnet_forward.1} parent=0 // pred_check
    _
  $region71: #{fieldnet_forward.1} parent=0 // pred_check_branch
    %111 = sbr.rel (0) target = $region73
  $region72: #{fieldnet_forward.1} parent=0 // pred_region
    _
  $region73: #{fieldnet_forward.1} parent=0 // pred_fallthru
    _
  // Predicated region
  $region74: #{fieldnet_forward.1} parent=0 // pred_check
    _
  $region75: #{fieldnet_forward.1} parent=0 // pred_check_branch
    %113 = sbr.rel (0) target = $region77
  $region76: #{fieldnet_forward.1} parent=0 // pred_region
    _
  $region77: #{fieldnet_forward.1} parent=0 // pred_fallthru
    _
  // Predicated region
  $region78: #{fieldnet_forward.1} parent=0 // pred_check
    _
  $region79: #{fieldnet_forward.1} parent=0 // pred_check_branch
    %115 = sbr.rel (0) target = $region81
  $region80: #{fieldnet_forward.1} parent=0 // pred_region
    _
  $region81: #{fieldnet_forward.1} parent=0 // pred_fallthru
    _
  // Predicated region
  $region82: #{fieldnet_forward.1} parent=0 // pred_check
    _
  $region83: #{fieldnet_forward.1} parent=0 // pred_check_branch
    %117 = sbr.rel (0) target = $region85
  $region84: #{fieldnet_forward.1} parent=0 // pred_region
    _
  $region85: #{fieldnet_forward.1} parent=0 // pred_fallthru
    _
  // Predicated region
  $region86: #{fieldnet_forward.1} parent=0 // pred_check
    _
  $region87: #{fieldnet_forward.1} parent=0 // pred_check_branch
    %119 = sbr.rel (0) target = $region89
  $region88: #{fieldnet_forward.1} parent=0 // pred_region
    _
  $region89: #{fieldnet_forward.1} parent=0 // pred_fallthru
    _
  // Predicated region
  $region90: #{fieldnet_forward.1} parent=0 // pred_check
    _
  $region91: #{fieldnet_forward.1} parent=0 // pred_check_branch
    %121 = sbr.rel (0) target = $region93
  $region92: #{fieldnet_forward.1} parent=0 // pred_region
    _
  $region93: #{fieldnet_forward.1} parent=0 // pred_fallthru
    _
  // Predicated region
  $region94: #{fieldnet_forward.1} parent=0 // pred_check
    _
  $region95: #{fieldnet_forward.1} parent=0 // pred_check_branch
    %123 = sbr.rel (0) target = $region97
  $region96: #{fieldnet_forward.1} parent=0 // pred_region
    _
  $region97: #{fieldnet_forward.1} parent=0 // pred_fallthru
    _
  // Predicated region
  $region98: #{fieldnet_forward.1} parent=0 // pred_check
    _
  $region99: #{fieldnet_forward.1} parent=0 // pred_check_branch
    %125 = sbr.rel (0) target = $region101
  $region100: #{fieldnet_forward.1} parent=0 // pred_region
    _
  $region101: #{fieldnet_forward.1} parent=0 // pred_fallthru
    _
  // Predicated region
  $region102: #{fieldnet_forward.1} parent=0 // pred_check
    _
  $region103: #{fieldnet_forward.1} parent=0 // pred_check_branch
    %127 = sbr.rel (0) target = $region105
  $region104: #{fieldnet_forward.1} parent=0 // pred_region
    _
  $region105: #{fieldnet_forward.1} parent=0 // pred_fallthru
    _
  // Predicated region
  $region106: #{fieldnet_forward.1} parent=0 // pred_check
    _
  $region107: #{fieldnet_forward.1} parent=0 // pred_check_branch
    %129 = sbr.rel (0) target = $region109
  $region108: #{fieldnet_forward.1} parent=0 // pred_region
    _
  $region109: #{fieldnet_forward.1} parent=0 // pred_fallthru
    _
  // Predicated region
  $region110: #{fieldnet_forward.1} parent=0 // pred_check
    _
  $region111: #{fieldnet_forward.1} parent=0 // pred_check_branch
    %131 = sbr.rel (0) target = $region113
  $region112: #{fieldnet_forward.1} parent=0 // pred_region
    _
  $region113: #{fieldnet_forward.1} parent=0 // pred_fallthru
    _
  // Predicated region
  $region114: #{fieldnet_forward.1} parent=0 // pred_check
    _
  $region115: #{fieldnet_forward.1} parent=0 // pred_check_branch
    %133 = sbr.rel (0) target = $region117
  $region116: #{fieldnet_forward.1} parent=0 // pred_region
    _
  $region117: #{fieldnet_forward.1} parent=0 // pred_fallthru
    _
  // Predicated region
  $region118: #{fieldnet_forward.1} parent=0 // pred_check
    _
  $region119: #{fieldnet_forward.1} parent=0 // pred_check_branch
    %135 = sbr.rel (0) target = $region121
  $region120: #{fieldnet_forward.1} parent=0 // pred_region
    _
  $region121: #{fieldnet_forward.1} parent=0 // pred_fallthru
    _
  // Predicated region
  $region122: #{fieldnet_forward.1} parent=0 // pred_check
    _
  $region123: #{fieldnet_forward.1} parent=0 // pred_check_branch
    %137 = sbr.rel (0) target = $region125
  $region124: #{fieldnet_forward.1} parent=0 // pred_region
    _
  $region125: #{fieldnet_forward.1} parent=0 // pred_fallthru
    _
  // Predicated region
  $region126: #{fieldnet_forward.1} parent=0 // pred_check
    _
  $region127: #{fieldnet_forward.1} parent=0 // pred_check_branch
    %139 = sbr.rel (0) target = $region129
  $region128: #{fieldnet_forward.1} parent=0 // pred_region
    _
  $region129: #{fieldnet_forward.1} parent=0 // pred_fallthru
    _
  // Predicated region
  $region130: #{fieldnet_forward.1} parent=0 // pred_check
    _
  $region131: #{fieldnet_forward.1} parent=0 // pred_check_branch
    %141 = sbr.rel (0) target = $region133
  $region132: #{fieldnet_forward.1} parent=0 // pred_region
    _
  $region133: #{fieldnet_forward.1} parent=0 // pred_fallthru
    _
  // Predicated region
  $region134: #{fieldnet_forward.1} parent=0 // pred_check
    _
  $region135: #{fieldnet_forward.1} parent=0 // pred_check_branch
    %143 = sbr.rel (0) target = $region137
  $region136: #{fieldnet_forward.1} parent=0 // pred_region
    _
  $region137: #{fieldnet_forward.1} parent=0 // pred_fallthru
    _
  // Predicated region
  $region138: #{fieldnet_forward.1} parent=0 // pred_check
    _
  $region139: #{fieldnet_forward.1} parent=0 // pred_check_branch
    %145 = sbr.rel (0) target = $region141
  $region140: #{fieldnet_forward.1} parent=0 // pred_region
    _
  $region141: #{fieldnet_forward.1} parent=0 // pred_fallthru
    _
  %v146 = vld [vmem:[%s3] sm:$0xff]
  %v148 = vcombine.high %v146, %v146
  %v150 = vunpack.c.l.s4 1966171168
  %v151 = vunpack.c.0.s8 %v150
  %v152 = vlaneseq
  %v153 = vshrl.u32 %v152, 7
  %v154 = vsub.s32 %v151, %v153
  %v155 = vrot.slane %v146, %v154
  %v157 = vunpack.c.l.s4 1966171168
  %v158 = vunpack.c.0.s8 %v157
  %v159 = vlaneseq
  %v160 = vshrl.u32 %v159, 7
  %v161 = vsub.s32 %v158, %v160
  %v162 = vrot.slane %v148, %v161
  %v163 = vcombine.high %v155, %v155
  %v164 = vcombine.high %v162, %v162
  %v166 = vunpack.c.l.s4 1966171168
  %v167 = vunpack.c.0.s8 %v166
  %v168 = vlaneseq
  %v169 = vshrl.u32 %v168, 7
  %v170 = vsub.s32 %v167, %v169
  %v171 = vrot.slane %v155, %v170
  %v173 = vunpack.c.l.s4 1966171168
  %v174 = vunpack.c.0.s8 %v173
  %v175 = vlaneseq
  %v176 = vshrl.u32 %v175, 7
  %v177 = vsub.s32 %v174, %v176
  %v178 = vrot.slane %v162, %v177
  %v180 = vunpack.c.l.s4 1966171168
  %v181 = vunpack.c.0.s8 %v180
  %v182 = vlaneseq
  %v183 = vshrl.u32 %v182, 7
  %v184 = vsub.s32 %v181, %v183
  %v185 = vrot.slane %v163, %v184
  %v187 = vunpack.c.l.s4 1966171168
  %v188 = vunpack.c.0.s8 %v187
  %v189 = vlaneseq
  %v190 = vshrl.u32 %v189, 7
  %v191 = vsub.s32 %v188, %v190
  %v192 = vrot.slane %v164, %v191
  %v193 = vcombine.high %v171, %v171
  %v194 = vcombine.high %v178, %v178
  %v195 = vcombine.high %v185, %v185
  %v196 = vcombine.high %v192, %v192
  %v197 = vlaneseq
  %v198 = vshrl.u32 %v197, 7
  %v199 = vsub.s32 0, %v198
  %v200 = vrot.slane %v171, %v199
  %v201 = vlaneseq
  %v202 = vshrl.u32 %v201, 7
  %v203 = vsub.s32 0, %v202
  %v204 = vrot.slane %v185, %v203
  %v205 = vlaneseq
  %v206 = vshrl.u32 %v205, 7
  %v207 = vsub.s32 0, %v206
  %v208 = vrot.slane %v193, %v207
  %v209 = vlaneseq
  %v210 = vshrl.u32 %v209, 7
  %v211 = vsub.s32 0, %v210
  %v212 = vrot.slane %v195, %v211
  %v213 = vlaneseq
  %v214 = vshrl.u32 %v213, 7
  %v215 = vsub.s32 0, %v214
  %v216 = vrot.slane %v178, %v215
  %v217 = vlaneseq
  %v218 = vshrl.u32 %v217, 7
  %v219 = vsub.s32 0, %v218
  %v220 = vrot.slane %v192, %v219
  %v221 = vlaneseq
  %v222 = vshrl.u32 %v221, 7
  %v223 = vsub.s32 0, %v222
  %v224 = vrot.slane %v194, %v223
  %v225 = vlaneseq
  %v226 = vshrl.u32 %v225, 7
  %v227 = vsub.s32 0, %v226
  %v228 = vrot.slane %v196, %v227
  %v237 = vsub.f32 %v146, %v200
  %v238 = vsub.f32 %v146, %v204
  %v239 = vsub.f32 %v146, %v208
  %v240 = vsub.f32 %v146, %v212
  %v241 = vsub.f32 %v146, %v216
  %v242 = vsub.f32 %v146, %v220
  %v243 = vsub.f32 %v146, %v224
  %v244 = vsub.f32 %v146, %v228
  %v245 = vmul.f32 %v237, %v237
  %v246 = vmul.f32 %v238, %v238
  %v247 = vmul.f32 %v239, %v239
  %v248 = vmul.f32 %v240, %v240
  %v249 = vmul.f32 %v241, %v241
  %v250 = vmul.f32 %v242, %v242
  %v251 = vmul.f32 %v243, %v243
  %v252 = vmul.f32 %v244, %v244
  %vm253 = vcmask 23552
  %v254 = vsel %vm253, %v245, 0.0
  %255 = vadd.xlane.f32.xlu0 %v254
  %v256 = vpop.xlane.xlu0 %255
  %v257 = vsel %vm253, %v246, 0.0
  %258 = vadd.xlane.f32.xlu0 %v257
  %v259 = vpop.xlane.xlu0 %258
  %v260 = vsel %vm253, %v247, 0.0
  %261 = vadd.xlane.f32.xlu0 %v260
  %v262 = vpop.xlane.xlu0 %261
  %v263 = vsel %vm253, %v248, 0.0
  %264 = vadd.xlane.f32.xlu0 %v263
  %v265 = vpop.xlane.xlu0 %264
  %v266 = vsel %vm253, %v249, 0.0
  %267 = vadd.xlane.f32.xlu0 %v266
  %v268 = vpop.xlane.xlu0 %267
  %v269 = vsel %vm253, %v250, 0.0
  %270 = vadd.xlane.f32.xlu0 %v269
  %v271 = vpop.xlane.xlu0 %270
  %v272 = vsel %vm253, %v251, 0.0
  %273 = vadd.xlane.f32.xlu0 %v272
  %v274 = vpop.xlane.xlu0 %273
  %v275 = vsel %vm253, %v252, 0.0
  %276 = vadd.xlane.f32.xlu0 %v275
  %v277 = vpop.xlane.xlu0 %276
  %v278 = vadd.f32 %v256, 1e-12
  %v279 = vadd.f32 %v259, 1e-12
  %v280 = vadd.f32 %v262, 1e-12
  %v281 = vadd.f32 %v265, 1e-12
  %v282 = vadd.f32 %v268, 1e-12
  %v283 = vadd.f32 %v271, 1e-12
  %v284 = vadd.f32 %v274, 1e-12
  %v285 = vadd.f32 %v277, 1e-12
  %v286 = vrsqrt.pop %v278
  %v287 = vmul.f32 %v278, %v286
  %vm288 = vcmp.eq.f32.partialorder %v278, inf
  %v289 = vsel %vm288, %v278, %v287
  %vm290 = vcmp.eq.f32.partialorder %v278, 0.0
  %v291 = vand.u32 %v278, 2147483648
  %v292 = vsel %vm290, %v291, %v289
  %v293 = vrsqrt.pop %v279
  %v294 = vmul.f32 %v279, %v293
  %vm295 = vcmp.eq.f32.partialorder %v279, inf
  %v296 = vsel %vm295, %v279, %v294
  %vm297 = vcmp.eq.f32.partialorder %v279, 0.0
  %v298 = vand.u32 %v279, 2147483648
  %v299 = vsel %vm297, %v298, %v296
  %v300 = vrsqrt.pop %v280
  %v301 = vmul.f32 %v280, %v300
  %vm302 = vcmp.eq.f32.partialorder %v280, inf
  %v303 = vsel %vm302, %v280, %v301
  %vm304 = vcmp.eq.f32.partialorder %v280, 0.0
  %v305 = vand.u32 %v280, 2147483648
  %v306 = vsel %vm304, %v305, %v303
  %v307 = vrsqrt.pop %v281
  %v308 = vmul.f32 %v281, %v307
  %vm309 = vcmp.eq.f32.partialorder %v281, inf
  %v310 = vsel %vm309, %v281, %v308
  %vm311 = vcmp.eq.f32.partialorder %v281, 0.0
  %v312 = vand.u32 %v281, 2147483648
  %v313 = vsel %vm311, %v312, %v310
  %v314 = vrsqrt.pop %v282
  %v315 = vmul.f32 %v282, %v314
  %vm316 = vcmp.eq.f32.partialorder %v282, inf
  %v317 = vsel %vm316, %v282, %v315
  %vm318 = vcmp.eq.f32.partialorder %v282, 0.0
  %v319 = vand.u32 %v282, 2147483648
  %v320 = vsel %vm318, %v319, %v317
  %v321 = vrsqrt.pop %v283
  %v322 = vmul.f32 %v283, %v321
  %vm323 = vcmp.eq.f32.partialorder %v283, inf
  %v324 = vsel %vm323, %v283, %v322
  %vm325 = vcmp.eq.f32.partialorder %v283, 0.0
  %v326 = vand.u32 %v283, 2147483648
  %v327 = vsel %vm325, %v326, %v324
  %v328 = vrsqrt.pop %v284
  %v329 = vmul.f32 %v284, %v328
  %vm330 = vcmp.eq.f32.partialorder %v284, inf
  %v331 = vsel %vm330, %v284, %v329
  %vm332 = vcmp.eq.f32.partialorder %v284, 0.0
  %v333 = vand.u32 %v284, 2147483648
  %v334 = vsel %vm332, %v333, %v331
  %v335 = vrsqrt.pop %v285
  %v336 = vmul.f32 %v285, %v335
  %vm337 = vcmp.eq.f32.partialorder %v285, inf
  %v338 = vsel %vm337, %v285, %v336
  %vm339 = vcmp.eq.f32.partialorder %v285, 0.0
  %v340 = vand.u32 %v285, 2147483648
  %v341 = vsel %vm339, %v340, %v338
  %v342 = vadd.f32 %v292, 1.0
  %v343 = vadd.f32 %v299, 1.0
  %v344 = vadd.f32 %v306, 1.0
  %v345 = vadd.f32 %v313, 1.0
  %v346 = vadd.f32 %v320, 1.0
  %v347 = vadd.f32 %v327, 1.0
  %v348 = vadd.f32 %v334, 1.0
  %v349 = vadd.f32 %v341, 1.0
  %v350 = vrcp.pop %v342
  %v351 = vmul.f32 1.0, %v350
  %v352 = vrcp.pop %v343
  %v353 = vmul.f32 1.0, %v352
  %v354 = vrcp.pop %v344
  %v355 = vmul.f32 1.0, %v354
  %v356 = vrcp.pop %v345
  %v357 = vmul.f32 1.0, %v356
  %v358 = vrcp.pop %v346
  %v359 = vmul.f32 1.0, %v358
  %v360 = vrcp.pop %v347
  %v361 = vmul.f32 1.0, %v360
  %v362 = vrcp.pop %v348
  %v363 = vmul.f32 1.0, %v362
  %v364 = vrcp.pop %v349
  %v365 = vmul.f32 1.0, %v364
  %v366 = vmul.f32 %v237, %v351
  %v367 = vmul.f32 %v238, %v353
  %v368 = vmul.f32 %v239, %v355
  %v369 = vmul.f32 %v240, %v357
  %v370 = vmul.f32 %v241, %v359
  %v371 = vmul.f32 %v242, %v361
  %v372 = vmul.f32 %v243, %v363
  %v373 = vmul.f32 %v244, %v365
  %v374 = vld [vmem:[%s5] sm:$0x1]
  %v376 = vlaneseq
  %v377 = vshrl.u32 %v376, 7
  %v378 = vsub.s32 0, %v377
  %v379 = vrot.slane %v374, %v378
  %v381 = vsub.f32 %v292, %v379
  %v382 = vsub.f32 %v299, %v379
  %v383 = vsub.f32 %v306, %v379
  %v384 = vsub.f32 %v313, %v379
  %v385 = vsub.f32 %v320, %v379
  %v386 = vsub.f32 %v327, %v379
  %v387 = vsub.f32 %v334, %v379
  %v388 = vsub.f32 %v341, %v379
  %v389 = vmul.f32 %v381, %v381
  %v390 = vmul.f32 %v382, %v382
  %v391 = vmul.f32 %v383, %v383
  %v392 = vmul.f32 %v384, %v384
  %v393 = vmul.f32 %v385, %v385
  %v394 = vmul.f32 %v386, %v386
  %v395 = vmul.f32 %v387, %v387
  %v396 = vmul.f32 %v388, %v388
  %v397 = vmul.f32 %v389, -12.5
  %v398 = vmul.f32 %v390, -12.5
  %v399 = vmul.f32 %v391, -12.5
  %v400 = vmul.f32 %v392, -12.5
  %v401 = vmul.f32 %v393, -12.5
  %v402 = vmul.f32 %v394, -12.5
  %v403 = vmul.f32 %v395, -12.5
  %v404 = vmul.f32 %v396, -12.5
  %v405 = vmul.f32 %v397, 1.442695
  %v406 = vpow.pop %v405
  %v407 = vmul.f32 %v398, 1.442695
  %v408 = vpow.pop %v407
  %v409 = vmul.f32 %v399, 1.442695
  %v410 = vpow.pop %v409
  %v411 = vmul.f32 %v400, 1.442695
  %v412 = vpow.pop %v411
  %v413 = vmul.f32 %v401, 1.442695
  %v414 = vpow.pop %v413
  %v415 = vmul.f32 %v402, 1.442695
  %v416 = vpow.pop %v415
  %v417 = vmul.f32 %v403, 1.442695
  %v418 = vpow.pop %v417
  %v419 = vmul.f32 %v404, 1.442695
  %v420 = vpow.pop %v419
  %v421 = vlaneseq
  %v422 = vshrl.u32 %v421, 7
  %v423 = vlaneseq
  %v424 = vand.u32 %v423, 127
  %vm425 = vcmp.lt.f32.partialorder %v292, 3.0
  %vm426 = vcmp.lt.f32.partialorder %v299, 3.0
  %vm427 = vcmp.lt.f32.partialorder %v306, 3.0
  %vm428 = vcmp.lt.f32.partialorder %v313, 3.0
  %vm429 = vcmp.lt.f32.partialorder %v320, 3.0
  %vm430 = vcmp.lt.f32.partialorder %v327, 3.0
  %vm431 = vcmp.lt.f32.partialorder %v334, 3.0
  %vm432 = vcmp.lt.f32.partialorder %v341, 3.0
  %vm433 = vcmp.ne.s32.totalorder %v422, %v424
  %v434 = vsel %vm433, 1, 0
  %v435 = vlaneseq
  %v436 = vshrl.u32 %v435, 7
  %v437 = vsub.s32 0, %v436
  %v438 = vrot.slane %v434, %v437
  %440 = vbcast.lane.b32.xlu0 %v438, 256
  %v441 = vpop.permute.xlu0 %440
  %v442 = vlaneseq
  %v443 = vshrl.u32 %v442, 7
  %v444 = vsub.s32 1, %v443
  %v445 = vrot.slane %v434, %v444
  %447 = vbcast.lane.b32.xlu0 %v445, 256
  %v448 = vpop.permute.xlu0 %447
  %v449 = vlaneseq
  %v450 = vshrl.u32 %v449, 7
  %v451 = vsub.s32 2, %v450
  %v452 = vrot.slane %v434, %v451
  %454 = vbcast.lane.b32.xlu0 %v452, 256
  %v455 = vpop.permute.xlu0 %454
  %v456 = vlaneseq
  %v457 = vshrl.u32 %v456, 7
  %v458 = vsub.s32 3, %v457
  %v459 = vrot.slane %v434, %v458
  %461 = vbcast.lane.b32.xlu0 %v459, 256
  %v462 = vpop.permute.xlu0 %461
  %v463 = vlaneseq
  %v464 = vshrl.u32 %v463, 7
  %v465 = vsub.s32 4, %v464
  %v466 = vrot.slane %v434, %v465
  %468 = vbcast.lane.b32.xlu0 %v466, 256
  %v469 = vpop.permute.xlu0 %468
  %v470 = vlaneseq
  %v471 = vshrl.u32 %v470, 7
  %v472 = vsub.s32 5, %v471
  %v473 = vrot.slane %v434, %v472
  %475 = vbcast.lane.b32.xlu0 %v473, 256
  %v476 = vpop.permute.xlu0 %475
  %v477 = vlaneseq
  %v478 = vshrl.u32 %v477, 7
  %v479 = vsub.s32 6, %v478
  %v480 = vrot.slane %v434, %v479
  %482 = vbcast.lane.b32.xlu0 %v480, 256
  %v483 = vpop.permute.xlu0 %482
  %v484 = vlaneseq
  %v485 = vshrl.u32 %v484, 7
  %v486 = vsub.s32 7, %v485
  %v487 = vrot.slane %v434, %v486
  %489 = vbcast.lane.b32.xlu0 %v487, 256
  %v490 = vpop.permute.xlu0 %489
  %vm491 = vcmp.ne.s32.totalorder %v441, 0
  %vm492 = vcmp.ne.s32.totalorder %v448, 0
  %vm493 = vcmp.ne.s32.totalorder %v455, 0
  %vm494 = vcmp.ne.s32.totalorder %v462, 0
  %vm495 = vcmp.ne.s32.totalorder %v469, 0
  %vm496 = vcmp.ne.s32.totalorder %v476, 0
  %vm497 = vcmp.ne.s32.totalorder %v483, 0
  %vm498 = vcmp.ne.s32.totalorder %v490, 0
  %vm499 = vmand %vm425, %vm491
  %vm500 = vmand %vm426, %vm492
  %vm501 = vmand %vm427, %vm493
  %vm502 = vmand %vm428, %vm494
  %vm503 = vmand %vm429, %vm495
  %vm504 = vmand %vm430, %vm496
  %vm505 = vmand %vm431, %vm497
  %vm506 = vmand %vm432, %vm498
  %v507 = vrcp.pop 3.0
  %v508 = vmul.f32 %v292, %v507
  %v509 = vmul.f32 %v299, %v507
  %v510 = vmul.f32 %v306, %v507
  %v511 = vmul.f32 %v313, %v507
  %v512 = vmul.f32 %v320, %v507
  %v513 = vmul.f32 %v327, %v507
  %v514 = vmul.f32 %v334, %v507
  %v515 = vmul.f32 %v341, %v507
  %v516 = vmul.f32 %v508, %v508
  %v517 = vmul.f32 %v509, %v509
  %v518 = vmul.f32 %v510, %v510
  %v519 = vmul.f32 %v511, %v511
  %v520 = vmul.f32 %v512, %v512
  %v521 = vmul.f32 %v513, %v513
  %v522 = vmul.f32 %v514, %v514
  %v523 = vmul.f32 %v515, %v515
  %v524 = vmin.f32 %v516, 0.999999
  %v525 = vmin.f32 %v517, 0.999999
  %v526 = vmin.f32 %v518, 0.999999
  %v527 = vmin.f32 %v519, 0.999999
  %v528 = vmin.f32 %v520, 0.999999
  %v529 = vmin.f32 %v521, 0.999999
  %v530 = vmin.f32 %v522, 0.999999
  %v531 = vmin.f32 %v523, 0.999999
  %v532 = vsub.f32 1.0, %v524
  %v533 = vsub.f32 1.0, %v525
  %v534 = vsub.f32 1.0, %v526
  %v535 = vsub.f32 1.0, %v527
  %v536 = vsub.f32 1.0, %v528
  %v537 = vsub.f32 1.0, %v529
  %v538 = vsub.f32 1.0, %v530
  %v539 = vsub.f32 1.0, %v531
  %v540 = vrcp.pop %v532
  %v541 = vmul.f32 1.0, %v540
  %v542 = vrcp.pop %v533
  %v543 = vmul.f32 1.0, %v542
  %v544 = vrcp.pop %v534
  %v545 = vmul.f32 1.0, %v544
  %v546 = vrcp.pop %v535
  %v547 = vmul.f32 1.0, %v546
  %v548 = vrcp.pop %v536
  %v549 = vmul.f32 1.0, %v548
  %v550 = vrcp.pop %v537
  %v551 = vmul.f32 1.0, %v550
  %v552 = vrcp.pop %v538
  %v553 = vmul.f32 1.0, %v552
  %v554 = vrcp.pop %v539
  %v555 = vmul.f32 1.0, %v554
  %v556 = vsub.f32 1.0, %v541
  %v557 = vsub.f32 1.0, %v543
  %v558 = vsub.f32 1.0, %v545
  %v559 = vsub.f32 1.0, %v547
  %v560 = vsub.f32 1.0, %v549
  %v561 = vsub.f32 1.0, %v551
  %v562 = vsub.f32 1.0, %v553
  %v563 = vsub.f32 1.0, %v555
  %v564 = vmul.f32 %v556, 1.442695
  %v565 = vpow.pop %v564
  %v566 = vmul.f32 %v557, 1.442695
  %v567 = vpow.pop %v566
  %v568 = vmul.f32 %v558, 1.442695
  %v569 = vpow.pop %v568
  %v570 = vmul.f32 %v559, 1.442695
  %v571 = vpow.pop %v570
  %v572 = vmul.f32 %v560, 1.442695
  %v573 = vpow.pop %v572
  %v574 = vmul.f32 %v561, 1.442695
  %v575 = vpow.pop %v574
  %v576 = vmul.f32 %v562, 1.442695
  %v577 = vpow.pop %v576
  %v578 = vmul.f32 %v563, 1.442695
  %v579 = vpow.pop %v578
  %v580 = vsel %vm499, %v565, 0.0
  %v581 = vsel %vm500, %v567, 0.0
  %v582 = vsel %vm501, %v569, 0.0
  %v583 = vsel %vm502, %v571, 0.0
  %v584 = vsel %vm503, %v573, 0.0
  %v585 = vsel %vm504, %v575, 0.0
  %v586 = vsel %vm505, %v577, 0.0
  %v587 = vsel %vm506, %v579, 0.0
  %v588 = vld [vmem:[%s1] sm:$0xff]
  %v589 = vld [vmem:[%s27] sm:$0xff]
  %v590 = vld [vmem:[%s27 + $0x8] sm:$0xff]
  %v591 = vld [vmem:[%s29] sm:$0x1]
  %v593 = vlaneseq
  %v594 = vshrl.u32 %v593, 7
  %v595 = vsub.s32 0, %v594
  %v596 = vrot.slane %v591, %v595
  %vm598 = vcmask 130048
  %v600 = vsel %vm598, %v406, 0
  %v603 = vsel %vm598, %v408, 0
  %v606 = vsel %vm598, %v410, 0
  %v609 = vsel %vm598, %v412, 0
  %v612 = vsel %vm598, %v414, 0
  %v615 = vsel %vm598, %v416, 0
  %v618 = vsel %vm598, %v418, 0
  %v621 = vsel %vm598, %v420, 0
  %623 = vmatprep.subr.mxu0 0.0
  %624 = vmatpush1.msra.mxu0 %v589
  %625 = vmatprep.subr.mxu0 0.0
  %626 = vmatpush1.msra.mxu0 %v590
  %627 = vmatprep.subr.mxu0 0.0
  %628 = vmatpush1.msra.mxu0 0.0
  %629 = vmatprep.subr.mxu0 0.0
  %630 = vmatpush1.msra.mxu0 0.0
  %631 = vmatprep.subr.mxu0 0.0
  %632 = vmatpush1.msra.mxu0 0.0
  %633 = vmatprep.subr.mxu0 0.0
  %634 = vmatpush1.msra.mxu0 0.0
  %635 = vmatprep.subr.mxu0 0.0
  %636 = vmatpush1.msra.mxu0 0.0
  %637 = vmatprep.subr.mxu0 0.0
  %638 = vmatpush1.msra.mxu0 0.0
  %639 = vmatprep.subr.mxu0 0.0
  %640 = vmatpush1.msra.mxu0 0.0
  %641 = vmatprep.subr.mxu0 0.0
  %642 = vmatpush1.msra.mxu0 0.0
  %643 = vmatprep.subr.mxu0 0.0
  %644 = vmatpush1.msra.mxu0 0.0
  %645 = vmatprep.subr.mxu0 0.0
  %646 = vmatpush1.msra.mxu0 0.0
  %647 = vmatprep.subr.mxu0 0.0
  %648 = vmatpush1.msra.mxu0 0.0
  %649 = vmatprep.subr.mxu0 0.0
  %650 = vmatpush1.msra.mxu0 0.0
  %651 = vmatprep.subr.mxu0 0.0
  %652 = vmatpush1.msra.mxu0 0.0
  %653 = vmatprep.subr.mxu0 0.0
  %654 = vmatpush1.msra.mxu0 0.0
  %655 = vmatprep.subr.mxu0 0.0
  %656 = vmatpush1.msra.mxu0 0.0
  %657 = vmatprep.subr.mxu0 0.0
  %658 = vmatpush1.msra.mxu0 0.0
  %659 = vmatprep.subr.mxu0 0.0
  %660 = vmatpush1.msra.mxu0 0.0
  %661 = vmatprep.subr.mxu0 0.0
  %662 = vmatpush1.msra.mxu0 0.0
  %663 = vmatprep.subr.mxu0 0.0
  %664 = vmatpush1.msra.mxu0 0.0
  %665 = vmatprep.subr.mxu0 0.0
  %666 = vmatpush1.msra.mxu0 0.0
  %667 = vmatprep.subr.mxu0 0.0
  %668 = vmatpush1.msra.mxu0 0.0
  %669 = vmatprep.subr.mxu0 0.0
  %670 = vmatpush1.msra.mxu0 0.0
  %671 = vmatprep.subr.mxu0 0.0
  %672 = vmatpush1.msra.mxu0 0.0
  %673 = vmatprep.subr.mxu0 0.0
  %674 = vmatpush1.msra.mxu0 0.0
  %675 = vmatprep.subr.mxu0 0.0
  %676 = vmatpush1.msra.mxu0 0.0
  %677 = vmatprep.subr.mxu0 0.0
  %678 = vmatpush1.msra.mxu0 0.0
  %679 = vmatprep.subr.mxu0 0.0
  %680 = vmatpush1.msra.mxu0 0.0
  %681 = vmatprep.subr.mxu0 0.0
  %682 = vmatpush1.msra.mxu0 0.0
  %683 = vmatprep.subr.mxu0 0.0
  %684 = vmatpush1.msra.mxu0 0.0
  %685 = vmatprep.subr.mxu0 0.0
  %686 = vmatpush1.msra.mxu0 0.0
  %687 = vmatprep.mubr.f32.mxu0 0.0
  %688 = vmatmul.mubr.f32.gmra.mrb[0].mxu0 %v600
  %v689 = vpop.f32.mrb[0].mxu0
  %v690 = vadd.f32 %v596, %v689
  %v691 = vpop.f32.mrb[0].mxu0
  %692 = vmatprep.mubr.f32.mxu0 0.0
  %693 = vmatmul.mubr.f32.gmra.mrb[0].mxu0 %v603
  %v694 = vpop.f32.mrb[0].mxu0
  %v695 = vadd.f32 %v596, %v694
  %v696 = vpop.f32.mrb[0].mxu0
  %697 = vmatprep.mubr.f32.mxu0 0.0
  %698 = vmatmul.mubr.f32.gmra.mrb[0].mxu0 %v606
  %v699 = vpop.f32.mrb[0].mxu0
  %v700 = vadd.f32 %v596, %v699
  %v701 = vpop.f32.mrb[0].mxu0
  %702 = vmatprep.mubr.f32.mxu0 0.0
  %703 = vmatmul.mubr.f32.gmra.mrb[0].mxu0 %v609
  %v704 = vpop.f32.mrb[0].mxu0
  %v705 = vadd.f32 %v596, %v704
  %v706 = vpop.f32.mrb[0].mxu0
  %707 = vmatprep.mubr.f32.mxu0 0.0
  %708 = vmatmul.mubr.f32.gmra.mrb[0].mxu0 %v612
  %v709 = vpop.f32.mrb[0].mxu0
  %v710 = vadd.f32 %v596, %v709
  %v711 = vpop.f32.mrb[0].mxu0
  %712 = vmatprep.mubr.f32.mxu0 0.0
  %713 = vmatmul.mubr.f32.gmra.mrb[0].mxu0 %v615
  %v714 = vpop.f32.mrb[0].mxu0
  %v715 = vadd.f32 %v596, %v714
  %v716 = vpop.f32.mrb[0].mxu0
  %717 = vmatprep.mubr.f32.mxu0 0.0
  %718 = vmatmul.mubr.f32.gmra.mrb[0].mxu0 %v618
  %v719 = vpop.f32.mrb[0].mxu0
  %v720 = vadd.f32 %v596, %v719
  %v721 = vpop.f32.mrb[0].mxu0
  %722 = vmatprep.mubr.f32.mxu0 0.0
  %723 = vmatmul.mubr.f32.gmra.mrb[0].mxu0 %v621
  %v724 = vpop.f32.mrb[0].mxu0
  %v725 = vadd.f32 %v596, %v724
  %v726 = vpop.f32.mrb[0].mxu0
  %727 = vdwg.mxu0
  %v728 = vsub.f32 0.0, %v690
  %v729 = vsub.f32 0.0, %v695
  %v730 = vsub.f32 0.0, %v700
  %v731 = vsub.f32 0.0, %v705
  %v732 = vsub.f32 0.0, %v710
  %v733 = vsub.f32 0.0, %v715
  %v734 = vsub.f32 0.0, %v720
  %v735 = vsub.f32 0.0, %v725
  %v736 = vmul.f32 %v728, 1.442695
  %v737 = vpow.pop %v736
  %v738 = vmul.f32 %v729, 1.442695
  %v739 = vpow.pop %v738
  %v740 = vmul.f32 %v730, 1.442695
  %v741 = vpow.pop %v740
  %v742 = vmul.f32 %v731, 1.442695
  %v743 = vpow.pop %v742
  %v744 = vmul.f32 %v732, 1.442695
  %v745 = vpow.pop %v744
  %v746 = vmul.f32 %v733, 1.442695
  %v747 = vpow.pop %v746
  %v748 = vmul.f32 %v734, 1.442695
  %v749 = vpow.pop %v748
  %v750 = vmul.f32 %v735, 1.442695
  %v751 = vpow.pop %v750
  %v752 = vadd.f32 %v737, 1.0
  %v753 = vadd.f32 %v739, 1.0
  %v754 = vadd.f32 %v741, 1.0
  %v755 = vadd.f32 %v743, 1.0
  %v756 = vadd.f32 %v745, 1.0
  %v757 = vadd.f32 %v747, 1.0
  %v758 = vadd.f32 %v749, 1.0
  %v759 = vadd.f32 %v751, 1.0
  %v760 = vrcp.pop %v752
  %v761 = vrcp.pop %v753
  %v762 = vrcp.pop %v754
  %v763 = vrcp.pop %v755
  %v764 = vrcp.pop %v756
  %v765 = vrcp.pop %v757
  %v766 = vrcp.pop %v758
  %v767 = vrcp.pop %v759
  %v768 = vmul.f32 %v690, %v760
  %v769 = vmul.f32 %v695, %v761
  %v770 = vmul.f32 %v700, %v762
  %v771 = vmul.f32 %v705, %v763
  %v772 = vmul.f32 %v710, %v764
  %v773 = vmul.f32 %v715, %v765
  %v774 = vmul.f32 %v720, %v766
  %v775 = vmul.f32 %v725, %v767
  %777 = vset.pattern.permute.xlu0 0
  %778 = vperm.xlu0 %777, %v580
  %v779 = vpop.permute.xlu0 %778
  %782 = vset.pattern.permute.xlu0 0
  %783 = vperm.xlu0 %782, %v581
  %v784 = vpop.permute.xlu0 %783
  %787 = vset.pattern.permute.xlu0 0
  %788 = vperm.xlu0 %787, %v582
  %v789 = vpop.permute.xlu0 %788
  %792 = vset.pattern.permute.xlu0 0
  %793 = vperm.xlu0 %792, %v583
  %v794 = vpop.permute.xlu0 %793
  %797 = vset.pattern.permute.xlu0 0
  %798 = vperm.xlu0 %797, %v584
  %v799 = vpop.permute.xlu0 %798
  %802 = vset.pattern.permute.xlu0 0
  %803 = vperm.xlu0 %802, %v585
  %v804 = vpop.permute.xlu0 %803
  %807 = vset.pattern.permute.xlu0 0
  %808 = vperm.xlu0 %807, %v586
  %v809 = vpop.permute.xlu0 %808
  %812 = vset.pattern.permute.xlu0 0
  %813 = vperm.xlu0 %812, %v587
  %v814 = vpop.permute.xlu0 %813
  %v816 = vmul.f32 %v768, %v779
  %v817 = vmul.f32 %v769, %v784
  %v818 = vmul.f32 %v770, %v789
  %v819 = vmul.f32 %v771, %v794
  %v820 = vmul.f32 %v772, %v799
  %v821 = vmul.f32 %v773, %v804
  %v822 = vmul.f32 %v774, %v809
  %v823 = vmul.f32 %v775, %v814
  %v824 = vld [vmem:[%s7] sm:$0xff]
  %v825 = vld [vmem:[%s7 + $0x8] sm:$0xff]
  %v826 = vld [vmem:[%s7 + $0x10] sm:$0xff]
  %v827 = vld [vmem:[%s7 + $0x18] sm:$0xff]
  %vm828 = vcmask 261120
  %v830 = vsel %vm828, %v588, 0
  %832 = vmatprep.subr.mxu0 0.0
  %833 = vmatpush1.msra.mxu0 %v824
  %834 = vmatprep.subr.mxu0 0.0
  %835 = vmatpush1.msra.mxu0 %v825
  %836 = vmatprep.subr.mxu0 0.0
  %837 = vmatpush1.msra.mxu0 %v826
  %838 = vmatprep.subr.mxu0 0.0
  %839 = vmatpush1.msra.mxu0 %v827
  %840 = vmatprep.subr.mxu0 0.0
  %841 = vmatpush1.msra.mxu0 0.0
  %842 = vmatprep.subr.mxu0 0.0
  %843 = vmatpush1.msra.mxu0 0.0
  %844 = vmatprep.subr.mxu0 0.0
  %845 = vmatpush1.msra.mxu0 0.0
  %846 = vmatprep.subr.mxu0 0.0
  %847 = vmatpush1.msra.mxu0 0.0
  %848 = vmatprep.subr.mxu0 0.0
  %849 = vmatpush1.msra.mxu0 0.0
  %850 = vmatprep.subr.mxu0 0.0
  %851 = vmatpush1.msra.mxu0 0.0
  %852 = vmatprep.subr.mxu0 0.0
  %853 = vmatpush1.msra.mxu0 0.0
  %854 = vmatprep.subr.mxu0 0.0
  %855 = vmatpush1.msra.mxu0 0.0
  %856 = vmatprep.subr.mxu0 0.0
  %857 = vmatpush1.msra.mxu0 0.0
  %858 = vmatprep.subr.mxu0 0.0
  %859 = vmatpush1.msra.mxu0 0.0
  %860 = vmatprep.subr.mxu0 0.0
  %861 = vmatpush1.msra.mxu0 0.0
  %862 = vmatprep.subr.mxu0 0.0
  %863 = vmatpush1.msra.mxu0 0.0
  %864 = vmatprep.subr.mxu0 0.0
  %865 = vmatpush1.msra.mxu0 0.0
  %866 = vmatprep.subr.mxu0 0.0
  %867 = vmatpush1.msra.mxu0 0.0
  %868 = vmatprep.subr.mxu0 0.0
  %869 = vmatpush1.msra.mxu0 0.0
  %870 = vmatprep.subr.mxu0 0.0
  %871 = vmatpush1.msra.mxu0 0.0
  %872 = vmatprep.subr.mxu0 0.0
  %873 = vmatpush1.msra.mxu0 0.0
  %874 = vmatprep.subr.mxu0 0.0
  %875 = vmatpush1.msra.mxu0 0.0
  %876 = vmatprep.subr.mxu0 0.0
  %877 = vmatpush1.msra.mxu0 0.0
  %878 = vmatprep.subr.mxu0 0.0
  %879 = vmatpush1.msra.mxu0 0.0
  %880 = vmatprep.subr.mxu0 0.0
  %881 = vmatpush1.msra.mxu0 0.0
  %882 = vmatprep.subr.mxu0 0.0
  %883 = vmatpush1.msra.mxu0 0.0
  %884 = vmatprep.subr.mxu0 0.0
  %885 = vmatpush1.msra.mxu0 0.0
  %886 = vmatprep.subr.mxu0 0.0
  %887 = vmatpush1.msra.mxu0 0.0
  %888 = vmatprep.subr.mxu0 0.0
  %889 = vmatpush1.msra.mxu0 0.0
  %890 = vmatprep.subr.mxu0 0.0
  %891 = vmatpush1.msra.mxu0 0.0
  %892 = vmatprep.subr.mxu0 0.0
  %893 = vmatpush1.msra.mxu0 0.0
  %894 = vmatprep.subr.mxu0 0.0
  %895 = vmatpush1.msra.mxu0 0.0
  %896 = vmatprep.mubr.f32.mxu0 0.0
  %897 = vmatmul.mubr.f32.gmra.mrb[0].mxu0 %v830
  %v898 = vpop.f32.mrb[0].mxu0
  %v899 = vadd.f32 0.0, %v898
  %v900 = vpop.f32.mrb[0].mxu0
  %901 = vdwg.mxu0
  %v902 = vld [vmem:[%s9] sm:$0xff]
  %v903 = vld [vmem:[%s9 + $0x8] sm:$0xff]
  %v904 = vld [vmem:[%s9 + $0x10] sm:$0xff]
  %v905 = vld [vmem:[%s9 + $0x18] sm:$0xff]
  %v906 = vld [vmem:[%s11] sm:$0x1]
  %v908 = vlaneseq
  %v909 = vshrl.u32 %v908, 7
  %v910 = vsub.s32 0, %v909
  %v911 = vrot.slane %v906, %v910
  %v914 = vsel %vm828, %v768, 0
  %v917 = vsel %vm828, %v769, 0
  %v920 = vsel %vm828, %v770, 0
  %v923 = vsel %vm828, %v771, 0
  %v926 = vsel %vm828, %v772, 0
  %v929 = vsel %vm828, %v773, 0
  %v932 = vsel %vm828, %v774, 0
  %v935 = vsel %vm828, %v775, 0
  %937 = vmatprep.subr.mxu0 0.0
  %938 = vmatpush1.msra.mxu0 %v902
  %939 = vmatprep.subr.mxu0 0.0
  %940 = vmatpush1.msra.mxu0 %v903
  %941 = vmatprep.subr.mxu0 0.0
  %942 = vmatpush1.msra.mxu0 %v904
  %943 = vmatprep.subr.mxu0 0.0
  %944 = vmatpush1.msra.mxu0 %v905
  %945 = vmatprep.subr.mxu0 0.0
  %946 = vmatpush1.msra.mxu0 0.0
  %947 = vmatprep.subr.mxu0 0.0
  %948 = vmatpush1.msra.mxu0 0.0
  %949 = vmatprep.subr.mxu0 0.0
  %950 = vmatpush1.msra.mxu0 0.0
  %951 = vmatprep.subr.mxu0 0.0
  %952 = vmatpush1.msra.mxu0 0.0
  %953 = vmatprep.subr.mxu0 0.0
  %954 = vmatpush1.msra.mxu0 0.0
  %955 = vmatprep.subr.mxu0 0.0
  %956 = vmatpush1.msra.mxu0 0.0
  %957 = vmatprep.subr.mxu0 0.0
  %958 = vmatpush1.msra.mxu0 0.0
  %959 = vmatprep.subr.mxu0 0.0
  %960 = vmatpush1.msra.mxu0 0.0
  %961 = vmatprep.subr.mxu0 0.0
  %962 = vmatpush1.msra.mxu0 0.0
  %963 = vmatprep.subr.mxu0 0.0
  %964 = vmatpush1.msra.mxu0 0.0
  %965 = vmatprep.subr.mxu0 0.0
  %966 = vmatpush1.msra.mxu0 0.0
  %967 = vmatprep.subr.mxu0 0.0
  %968 = vmatpush1.msra.mxu0 0.0
  %969 = vmatprep.subr.mxu0 0.0
  %970 = vmatpush1.msra.mxu0 0.0
  %971 = vmatprep.subr.mxu0 0.0
  %972 = vmatpush1.msra.mxu0 0.0
  %973 = vmatprep.subr.mxu0 0.0
  %974 = vmatpush1.msra.mxu0 0.0
  %975 = vmatprep.subr.mxu0 0.0
  %976 = vmatpush1.msra.mxu0 0.0
  %977 = vmatprep.subr.mxu0 0.0
  %978 = vmatpush1.msra.mxu0 0.0
  %979 = vmatprep.subr.mxu0 0.0
  %980 = vmatpush1.msra.mxu0 0.0
  %981 = vmatprep.subr.mxu0 0.0
  %982 = vmatpush1.msra.mxu0 0.0
  %983 = vmatprep.subr.mxu0 0.0
  %984 = vmatpush1.msra.mxu0 0.0
  %985 = vmatprep.subr.mxu0 0.0
  %986 = vmatpush1.msra.mxu0 0.0
  %987 = vmatprep.subr.mxu0 0.0
  %988 = vmatpush1.msra.mxu0 0.0
  %989 = vmatprep.subr.mxu0 0.0
  %990 = vmatpush1.msra.mxu0 0.0
  %991 = vmatprep.subr.mxu0 0.0
  %992 = vmatpush1.msra.mxu0 0.0
  %993 = vmatprep.subr.mxu0 0.0
  %994 = vmatpush1.msra.mxu0 0.0
  %995 = vmatprep.subr.mxu0 0.0
  %996 = vmatpush1.msra.mxu0 0.0
  %997 = vmatprep.subr.mxu0 0.0
  %998 = vmatpush1.msra.mxu0 0.0
  %999 = vmatprep.subr.mxu0 0.0
  %1000 = vmatpush1.msra.mxu0 0.0
  %1001 = vmatprep.mubr.f32.mxu0 0.0
  %1002 = vmatmul.mubr.f32.gmra.mrb[0].mxu0 %v914
  %v1003 = vpop.f32.mrb[0].mxu0
  %v1004 = vadd.f32 %v911, %v1003
  %v1005 = vpop.f32.mrb[0].mxu0
  %1006 = vmatprep.mubr.f32.mxu0 0.0
  %1007 = vmatmul.mubr.f32.gmra.mrb[0].mxu0 %v917
  %v1008 = vpop.f32.mrb[0].mxu0
  %v1009 = vadd.f32 %v911, %v1008
  %v1010 = vpop.f32.mrb[0].mxu0
  %1011 = vmatprep.mubr.f32.mxu0 0.0
  %1012 = vmatmul.mubr.f32.gmra.mrb[0].mxu0 %v920
  %v1013 = vpop.f32.mrb[0].mxu0
  %v1014 = vadd.f32 %v911, %v1013
  %v1015 = vpop.f32.mrb[0].mxu0
  %1016 = vmatprep.mubr.f32.mxu0 0.0
  %1017 = vmatmul.mubr.f32.gmra.mrb[0].mxu0 %v923
  %v1018 = vpop.f32.mrb[0].mxu0
  %v1019 = vadd.f32 %v911, %v1018
  %v1020 = vpop.f32.mrb[0].mxu0
  %1021 = vmatprep.mubr.f32.mxu0 0.0
  %1022 = vmatmul.mubr.f32.gmra.mrb[0].mxu0 %v926
  %v1023 = vpop.f32.mrb[0].mxu0
  %v1024 = vadd.f32 %v911, %v1023
  %v1025 = vpop.f32.mrb[0].mxu0
  %1026 = vmatprep.mubr.f32.mxu0 0.0
  %1027 = vmatmul.mubr.f32.gmra.mrb[0].mxu0 %v929
  %v1028 = vpop.f32.mrb[0].mxu0
  %v1029 = vadd.f32 %v911, %v1028
  %v1030 = vpop.f32.mrb[0].mxu0
  %1031 = vmatprep.mubr.f32.mxu0 0.0
  %1032 = vmatmul.mubr.f32.gmra.mrb[0].mxu0 %v932
  %v1033 = vpop.f32.mrb[0].mxu0
  %v1034 = vadd.f32 %v911, %v1033
  %v1035 = vpop.f32.mrb[0].mxu0
  %1036 = vmatprep.mubr.f32.mxu0 0.0
  %1037 = vmatmul.mubr.f32.gmra.mrb[0].mxu0 %v935
  %v1038 = vpop.f32.mrb[0].mxu0
  %v1039 = vadd.f32 %v911, %v1038
  %v1040 = vpop.f32.mrb[0].mxu0
  %1041 = vdwg.mxu0
  %v1042 = vmul.f32 %v1004, %v779
  %v1043 = vmul.f32 %v1009, %v784
  %v1044 = vmul.f32 %v1014, %v789
  %v1045 = vmul.f32 %v1019, %v794
  %v1046 = vmul.f32 %v1024, %v799
  %v1047 = vmul.f32 %v1029, %v804
  %v1048 = vmul.f32 %v1034, %v809
  %v1049 = vmul.f32 %v1039, %v814
  %v1050 = vmul.f32 %v1042, %v899
  %v1051 = vmul.f32 %v1043, %v899
  %v1052 = vmul.f32 %v1044, %v899
  %v1053 = vmul.f32 %v1045, %v899
  %v1054 = vmul.f32 %v1046, %v899
  %v1055 = vmul.f32 %v1047, %v899
  %v1056 = vmul.f32 %v1048, %v899
  %v1057 = vmul.f32 %v1049, %v899
  %v1058 = vsel %vm828, %v1050, 0.0
  %v1059 = vrot.slane %v1058, 4
  %v1060 = vadd.f32 %v1058, %v1059
  %v1061 = vrot.slane %v1060, 2
  %v1062 = vadd.f32 %v1060, %v1061
  %v1063 = vrot.slane %v1062, 1
  %v1064 = vadd.f32 %v1062, %v1063
  %v1065 = vsel %vm828, %v1051, 0.0
  %v1066 = vrot.slane %v1065, 4
  %v1067 = vadd.f32 %v1065, %v1066
  %v1068 = vrot.slane %v1067, 2
  %v1069 = vadd.f32 %v1067, %v1068
  %v1070 = vrot.slane %v1069, 1
  %v1071 = vadd.f32 %v1069, %v1070
  %v1072 = vsel %vm828, %v1052, 0.0
  %v1073 = vrot.slane %v1072, 4
  %v1074 = vadd.f32 %v1072, %v1073
  %v1075 = vrot.slane %v1074, 2
  %v1076 = vadd.f32 %v1074, %v1075
  %v1077 = vrot.slane %v1076, 1
  %v1078 = vadd.f32 %v1076, %v1077
  %v1079 = vsel %vm828, %v1053, 0.0
  %v1080 = vrot.slane %v1079, 4
  %v1081 = vadd.f32 %v1079, %v1080
  %v1082 = vrot.slane %v1081, 2
  %v1083 = vadd.f32 %v1081, %v1082
  %v1084 = vrot.slane %v1083, 1
  %v1085 = vadd.f32 %v1083, %v1084
  %v1086 = vsel %vm828, %v1054, 0.0
  %v1087 = vrot.slane %v1086, 4
  %v1088 = vadd.f32 %v1086, %v1087
  %v1089 = vrot.slane %v1088, 2
  %v1090 = vadd.f32 %v1088, %v1089
  %v1091 = vrot.slane %v1090, 1
  %v1092 = vadd.f32 %v1090, %v1091
  %v1093 = vsel %vm828, %v1055, 0.0
  %v1094 = vrot.slane %v1093, 4
  %v1095 = vadd.f32 %v1093, %v1094
  %v1096 = vrot.slane %v1095, 2
  %v1097 = vadd.f32 %v1095, %v1096
  %v1098 = vrot.slane %v1097, 1
  %v1099 = vadd.f32 %v1097, %v1098
  %v1100 = vsel %vm828, %v1056, 0.0
  %v1101 = vrot.slane %v1100, 4
  %v1102 = vadd.f32 %v1100, %v1101
  %v1103 = vrot.slane %v1102, 2
  %v1104 = vadd.f32 %v1102, %v1103
  %v1105 = vrot.slane %v1104, 1
  %v1106 = vadd.f32 %v1104, %v1105
  %v1107 = vsel %vm828, %v1057, 0.0
  %v1108 = vrot.slane %v1107, 4
  %v1109 = vadd.f32 %v1107, %v1108
  %v1110 = vrot.slane %v1109, 2
  %v1111 = vadd.f32 %v1109, %v1110
  %v1112 = vrot.slane %v1111, 1
  %v1113 = vadd.f32 %v1111, %v1112
  %v1114 = vld [vmem:[%s13] sm:$0xff]
  %v1115 = vld [vmem:[%s13 + $0x8] sm:$0xff]
  %v1116 = vld [vmem:[%s13 + $0x10] sm:$0xff]
  %v1117 = vld [vmem:[%s13 + $0x18] sm:$0xff]
  %v1118 = vld [vmem:[%s15] sm:$0x1]
  %v1120 = vlaneseq
  %v1121 = vshrl.u32 %v1120, 7
  %v1122 = vsub.s32 0, %v1121
  %v1123 = vrot.slane %v1118, %v1122
  %vm1133 = vcmask 1041409
  %v1134 = vsel %vm1133, %v1071, %v1064
  %vm1135 = vcmask 1042434
  %v1136 = vsel %vm1135, %v1078, %v1134
  %vm1137 = vcmask 1043459
  %v1138 = vsel %vm1137, %v1085, %v1136
  %vm1139 = vcmask 1044484
  %v1140 = vsel %vm1139, %v1092, %v1138
  %vm1141 = vcmask 1045509
  %v1142 = vsel %vm1141, %v1099, %v1140
  %vm1143 = vcmask 1046534
  %v1144 = vsel %vm1143, %v1106, %v1142
  %vm1145 = vcmask 1047559
  %v1146 = vsel %vm1145, %v1113, %v1144
  %v1147 = vsel %vm828, %v1146, 0
  %1149 = vmatprep.subr.mxu0 0.0
  %1150 = vmatpush1.msra.mxu0 %v1114
  %1151 = vmatprep.subr.mxu0 0.0
  %1152 = vmatpush1.msra.mxu0 %v1115
  %1153 = vmatprep.subr.mxu0 0.0
  %1154 = vmatpush1.msra.mxu0 %v1116
  %1155 = vmatprep.subr.mxu0 0.0
  %1156 = vmatpush1.msra.mxu0 %v1117
  %1157 = vmatprep.subr.mxu0 0.0
  %1158 = vmatpush1.msra.mxu0 0.0
  %1159 = vmatprep.subr.mxu0 0.0
  %1160 = vmatpush1.msra.mxu0 0.0
  %1161 = vmatprep.subr.mxu0 0.0
  %1162 = vmatpush1.msra.mxu0 0.0
  %1163 = vmatprep.subr.mxu0 0.0
  %1164 = vmatpush1.msra.mxu0 0.0
  %1165 = vmatprep.subr.mxu0 0.0
  %1166 = vmatpush1.msra.mxu0 0.0
  %1167 = vmatprep.subr.mxu0 0.0
  %1168 = vmatpush1.msra.mxu0 0.0
  %1169 = vmatprep.subr.mxu0 0.0
  %1170 = vmatpush1.msra.mxu0 0.0
  %1171 = vmatprep.subr.mxu0 0.0
  %1172 = vmatpush1.msra.mxu0 0.0
  %1173 = vmatprep.subr.mxu0 0.0
  %1174 = vmatpush1.msra.mxu0 0.0
  %1175 = vmatprep.subr.mxu0 0.0
  %1176 = vmatpush1.msra.mxu0 0.0
  %1177 = vmatprep.subr.mxu0 0.0
  %1178 = vmatpush1.msra.mxu0 0.0
  %1179 = vmatprep.subr.mxu0 0.0
  %1180 = vmatpush1.msra.mxu0 0.0
  %1181 = vmatprep.subr.mxu0 0.0
  %1182 = vmatpush1.msra.mxu0 0.0
  %1183 = vmatprep.subr.mxu0 0.0
  %1184 = vmatpush1.msra.mxu0 0.0
  %1185 = vmatprep.subr.mxu0 0.0
  %1186 = vmatpush1.msra.mxu0 0.0
  %1187 = vmatprep.subr.mxu0 0.0
  %1188 = vmatpush1.msra.mxu0 0.0
  %1189 = vmatprep.subr.mxu0 0.0
  %1190 = vmatpush1.msra.mxu0 0.0
  %1191 = vmatprep.subr.mxu0 0.0
  %1192 = vmatpush1.msra.mxu0 0.0
  %1193 = vmatprep.subr.mxu0 0.0
  %1194 = vmatpush1.msra.mxu0 0.0
  %1195 = vmatprep.subr.mxu0 0.0
  %1196 = vmatpush1.msra.mxu0 0.0
  %1197 = vmatprep.subr.mxu0 0.0
  %1198 = vmatpush1.msra.mxu0 0.0
  %1199 = vmatprep.subr.mxu0 0.0
  %1200 = vmatpush1.msra.mxu0 0.0
  %1201 = vmatprep.subr.mxu0 0.0
  %1202 = vmatpush1.msra.mxu0 0.0
  %1203 = vmatprep.subr.mxu0 0.0
  %1204 = vmatpush1.msra.mxu0 0.0
  %1205 = vmatprep.subr.mxu0 0.0
  %1206 = vmatpush1.msra.mxu0 0.0
  %1207 = vmatprep.subr.mxu0 0.0
  %1208 = vmatpush1.msra.mxu0 0.0
  %1209 = vmatprep.subr.mxu0 0.0
  %1210 = vmatpush1.msra.mxu0 0.0
  %1211 = vmatprep.subr.mxu0 0.0
  %1212 = vmatpush1.msra.mxu0 0.0
  %1213 = vmatprep.mubr.f32.mxu0 0.0
  %1214 = vmatmul.mubr.f32.gmra.mrb[0].mxu0 %v1147
  %v1215 = vpop.f32.mrb[0].mxu0
  %v1216 = vadd.f32 %v1123, %v1215
  %v1217 = vpop.f32.mrb[0].mxu0
  %1218 = vdwg.mxu0
  %v1219 = vsub.f32 0.0, %v1216
  %v1220 = vmul.f32 %v1219, 1.442695
  %v1221 = vpow.pop %v1220
  %v1222 = vadd.f32 %v1221, 1.0
  %v1223 = vrcp.pop %v1222
  %v1224 = vmul.f32 %v1216, %v1223
  %v1225 = vld [vmem:[%s17] sm:$0xff]
  %v1226 = vld [vmem:[%s17 + $0x8] sm:$0xff]
  %v1227 = vld [vmem:[%s17 + $0x10] sm:$0xff]
  %v1228 = vld [vmem:[%s17 + $0x18] sm:$0xff]
  %v1229 = vld [vmem:[%s19] sm:$0x1]
  %v1231 = vlaneseq
  %v1232 = vshrl.u32 %v1231, 7
  %v1233 = vsub.s32 0, %v1232
  %v1234 = vrot.slane %v1229, %v1233
  %v1237 = vsel %vm828, %v1224, 0
  %1239 = vmatprep.subr.mxu0 0.0
  %1240 = vmatpush1.msra.mxu0 %v1225
  %1241 = vmatprep.subr.mxu0 0.0
  %1242 = vmatpush1.msra.mxu0 %v1226
  %1243 = vmatprep.subr.mxu0 0.0
  %1244 = vmatpush1.msra.mxu0 %v1227
  %1245 = vmatprep.subr.mxu0 0.0
  %1246 = vmatpush1.msra.mxu0 %v1228
  %1247 = vmatprep.subr.mxu0 0.0
  %1248 = vmatpush1.msra.mxu0 0.0
  %1249 = vmatprep.subr.mxu0 0.0
  %1250 = vmatpush1.msra.mxu0 0.0
  %1251 = vmatprep.subr.mxu0 0.0
  %1252 = vmatpush1.msra.mxu0 0.0
  %1253 = vmatprep.subr.mxu0 0.0
  %1254 = vmatpush1.msra.mxu0 0.0
  %1255 = vmatprep.subr.mxu0 0.0
  %1256 = vmatpush1.msra.mxu0 0.0
  %1257 = vmatprep.subr.mxu0 0.0
  %1258 = vmatpush1.msra.mxu0 0.0
  %1259 = vmatprep.subr.mxu0 0.0
  %1260 = vmatpush1.msra.mxu0 0.0
  %1261 = vmatprep.subr.mxu0 0.0
  %1262 = vmatpush1.msra.mxu0 0.0
  %1263 = vmatprep.subr.mxu0 0.0
  %1264 = vmatpush1.msra.mxu0 0.0
  %1265 = vmatprep.subr.mxu0 0.0
  %1266 = vmatpush1.msra.mxu0 0.0
  %1267 = vmatprep.subr.mxu0 0.0
  %1268 = vmatpush1.msra.mxu0 0.0
  %1269 = vmatprep.subr.mxu0 0.0
  %1270 = vmatpush1.msra.mxu0 0.0
  %1271 = vmatprep.subr.mxu0 0.0
  %1272 = vmatpush1.msra.mxu0 0.0
  %1273 = vmatprep.subr.mxu0 0.0
  %1274 = vmatpush1.msra.mxu0 0.0
  %1275 = vmatprep.subr.mxu0 0.0
  %1276 = vmatpush1.msra.mxu0 0.0
  %1277 = vmatprep.subr.mxu0 0.0
  %1278 = vmatpush1.msra.mxu0 0.0
  %1279 = vmatprep.subr.mxu0 0.0
  %1280 = vmatpush1.msra.mxu0 0.0
  %1281 = vmatprep.subr.mxu0 0.0
  %1282 = vmatpush1.msra.mxu0 0.0
  %1283 = vmatprep.subr.mxu0 0.0
  %1284 = vmatpush1.msra.mxu0 0.0
  %1285 = vmatprep.subr.mxu0 0.0
  %1286 = vmatpush1.msra.mxu0 0.0
  %1287 = vmatprep.subr.mxu0 0.0
  %1288 = vmatpush1.msra.mxu0 0.0
  %1289 = vmatprep.subr.mxu0 0.0
  %1290 = vmatpush1.msra.mxu0 0.0
  %1291 = vmatprep.subr.mxu0 0.0
  %1292 = vmatpush1.msra.mxu0 0.0
  %1293 = vmatprep.subr.mxu0 0.0
  %1294 = vmatpush1.msra.mxu0 0.0
  %1295 = vmatprep.subr.mxu0 0.0
  %1296 = vmatpush1.msra.mxu0 0.0
  %1297 = vmatprep.subr.mxu0 0.0
  %1298 = vmatpush1.msra.mxu0 0.0
  %1299 = vmatprep.subr.mxu0 0.0
  %1300 = vmatpush1.msra.mxu0 0.0
  %1301 = vmatprep.subr.mxu0 0.0
  %1302 = vmatpush1.msra.mxu0 0.0
  %1303 = vmatprep.mubr.f32.mxu0 0.0
  %1304 = vmatmul.mubr.f32.gmra.mrb[0].mxu0 %v1237
  %v1305 = vpop.f32.mrb[0].mxu0
  %v1306 = vadd.f32 %v1234, %v1305
  %v1307 = vpop.f32.mrb[0].mxu0
  %1308 = vdwg.mxu0
  %v1309 = vld [vmem:[%s21] sm:$0xff]
  %v1310 = vld [vmem:[%s21 + $0x8] sm:$0xff]
  %v1311 = vld [vmem:[%s21 + $0x10] sm:$0xff]
  %v1312 = vld [vmem:[%s21 + $0x18] sm:$0xff]
  %1313 = vmatprep.subr.mxu0 0.0
  %1314 = vmatpush1.msra.mxu0 %v1309
  %1315 = vmatprep.subr.mxu0 0.0
  %1316 = vmatpush1.msra.mxu0 %v1310
  %1317 = vmatprep.subr.mxu0 0.0
  %1318 = vmatpush1.msra.mxu0 %v1311
  %1319 = vmatprep.subr.mxu0 0.0
  %1320 = vmatpush1.msra.mxu0 %v1312
  %1321 = vmatprep.subr.mxu0 0.0
  %1322 = vmatpush1.msra.mxu0 0.0
  %1323 = vmatprep.subr.mxu0 0.0
  %1324 = vmatpush1.msra.mxu0 0.0
  %1325 = vmatprep.subr.mxu0 0.0
  %1326 = vmatpush1.msra.mxu0 0.0
  %1327 = vmatprep.subr.mxu0 0.0
  %1328 = vmatpush1.msra.mxu0 0.0
  %1329 = vmatprep.subr.mxu0 0.0
  %1330 = vmatpush1.msra.mxu0 0.0
  %1331 = vmatprep.subr.mxu0 0.0
  %1332 = vmatpush1.msra.mxu0 0.0
  %1333 = vmatprep.subr.mxu0 0.0
  %1334 = vmatpush1.msra.mxu0 0.0
  %1335 = vmatprep.subr.mxu0 0.0
  %1336 = vmatpush1.msra.mxu0 0.0
  %1337 = vmatprep.subr.mxu0 0.0
  %1338 = vmatpush1.msra.mxu0 0.0
  %1339 = vmatprep.subr.mxu0 0.0
  %1340 = vmatpush1.msra.mxu0 0.0
  %1341 = vmatprep.subr.mxu0 0.0
  %1342 = vmatpush1.msra.mxu0 0.0
  %1343 = vmatprep.subr.mxu0 0.0
  %1344 = vmatpush1.msra.mxu0 0.0
  %1345 = vmatprep.subr.mxu0 0.0
  %1346 = vmatpush1.msra.mxu0 0.0
  %1347 = vmatprep.subr.mxu0 0.0
  %1348 = vmatpush1.msra.mxu0 0.0
  %1349 = vmatprep.subr.mxu0 0.0
  %1350 = vmatpush1.msra.mxu0 0.0
  %1351 = vmatprep.subr.mxu0 0.0
  %1352 = vmatpush1.msra.mxu0 0.0
  %1353 = vmatprep.subr.mxu0 0.0
  %1354 = vmatpush1.msra.mxu0 0.0
  %1355 = vmatprep.subr.mxu0 0.0
  %1356 = vmatpush1.msra.mxu0 0.0
  %1357 = vmatprep.subr.mxu0 0.0
  %1358 = vmatpush1.msra.mxu0 0.0
  %1359 = vmatprep.subr.mxu0 0.0
  %1360 = vmatpush1.msra.mxu0 0.0
  %1361 = vmatprep.subr.mxu0 0.0
  %1362 = vmatpush1.msra.mxu0 0.0
  %1363 = vmatprep.subr.mxu0 0.0
  %1364 = vmatpush1.msra.mxu0 0.0
  %1365 = vmatprep.subr.mxu0 0.0
  %1366 = vmatpush1.msra.mxu0 0.0
  %1367 = vmatprep.subr.mxu0 0.0
  %1368 = vmatpush1.msra.mxu0 0.0
  %1369 = vmatprep.subr.mxu0 0.0
  %1370 = vmatpush1.msra.mxu0 0.0
  %1371 = vmatprep.subr.mxu0 0.0
  %1372 = vmatpush1.msra.mxu0 0.0
  %1373 = vmatprep.subr.mxu0 0.0
  %1374 = vmatpush1.msra.mxu0 0.0
  %1375 = vmatprep.subr.mxu0 0.0
  %1376 = vmatpush1.msra.mxu0 0.0
  %1377 = vmatprep.mubr.f32.mxu0 0.0
  %1378 = vmatmul.mubr.f32.gmra.mrb[0].mxu0 %v830
  %v1379 = vpop.f32.mrb[0].mxu0
  %v1380 = vadd.f32 0.0, %v1379
  %v1381 = vpop.f32.mrb[0].mxu0
  %1382 = vdwg.mxu0
  %v1383 = vld [vmem:[%s23] sm:$0xff]
  %v1384 = vld [vmem:[%s23 + $0x8] sm:$0xff]
  %v1385 = vld [vmem:[%s23 + $0x10] sm:$0xff]
  %v1386 = vld [vmem:[%s23 + $0x18] sm:$0xff]
  %v1387 = vld [vmem:[%s25] sm:$0x1]
  %v1389 = vlaneseq
  %v1390 = vshrl.u32 %v1389, 7
  %v1391 = vsub.s32 0, %v1390
  %v1392 = vrot.slane %v1387, %v1391
  %1394 = vrot.lane.b32.xlu0 %v768, 96
  %v1395 = vpop.permute.xlu0 %1394
  %1396 = vrot.lane.b32.xlu0 %v769, 96
  %v1397 = vpop.permute.xlu0 %1396
  %1398 = vrot.lane.b32.xlu0 %v770, 96
  %v1399 = vpop.permute.xlu0 %1398
  %1400 = vrot.lane.b32.xlu0 %v771, 96
  %v1401 = vpop.permute.xlu0 %1400
  %1402 = vrot.lane.b32.xlu0 %v772, 96
  %v1403 = vpop.permute.xlu0 %1402
  %1404 = vrot.lane.b32.xlu0 %v773, 96
  %v1405 = vpop.permute.xlu0 %1404
  %1406 = vrot.lane.b32.xlu0 %v774, 96
  %v1407 = vpop.permute.xlu0 %1406
  %1408 = vrot.lane.b32.xlu0 %v775, 96
  %v1409 = vpop.permute.xlu0 %1408
  %v1410 = vsel %vm828, %v1395, 0
  %v1412 = vsel %vm828, %v1397, 0
  %v1414 = vsel %vm828, %v1399, 0
  %v1416 = vsel %vm828, %v1401, 0
  %v1418 = vsel %vm828, %v1403, 0
  %v1420 = vsel %vm828, %v1405, 0
  %v1422 = vsel %vm828, %v1407, 0
  %v1424 = vsel %vm828, %v1409, 0
  %1426 = vmatprep.subr.mxu0 0.0
  %1427 = vmatpush1.msra.mxu0 %v1383
  %1428 = vmatprep.subr.mxu0 0.0
  %1429 = vmatpush1.msra.mxu0 %v1384
  %1430 = vmatprep.subr.mxu0 0.0
  %1431 = vmatpush1.msra.mxu0 %v1385
  %1432 = vmatprep.subr.mxu0 0.0
  %1433 = vmatpush1.msra.mxu0 %v1386
  %1434 = vmatprep.subr.mxu0 0.0
  %1435 = vmatpush1.msra.mxu0 0.0
  %1436 = vmatprep.subr.mxu0 0.0
  %1437 = vmatpush1.msra.mxu0 0.0
  %1438 = vmatprep.subr.mxu0 0.0
  %1439 = vmatpush1.msra.mxu0 0.0
  %1440 = vmatprep.subr.mxu0 0.0
  %1441 = vmatpush1.msra.mxu0 0.0
  %1442 = vmatprep.subr.mxu0 0.0
  %1443 = vmatpush1.msra.mxu0 0.0
  %1444 = vmatprep.subr.mxu0 0.0
  %1445 = vmatpush1.msra.mxu0 0.0
  %1446 = vmatprep.subr.mxu0 0.0
  %1447 = vmatpush1.msra.mxu0 0.0
  %1448 = vmatprep.subr.mxu0 0.0
  %1449 = vmatpush1.msra.mxu0 0.0
  %1450 = vmatprep.subr.mxu0 0.0
  %1451 = vmatpush1.msra.mxu0 0.0
  %1452 = vmatprep.subr.mxu0 0.0
  %1453 = vmatpush1.msra.mxu0 0.0
  %1454 = vmatprep.subr.mxu0 0.0
  %1455 = vmatpush1.msra.mxu0 0.0
  %1456 = vmatprep.subr.mxu0 0.0
  %1457 = vmatpush1.msra.mxu0 0.0
  %1458 = vmatprep.subr.mxu0 0.0
  %1459 = vmatpush1.msra.mxu0 0.0
  %1460 = vmatprep.subr.mxu0 0.0
  %1461 = vmatpush1.msra.mxu0 0.0
  %1462 = vmatprep.subr.mxu0 0.0
  %1463 = vmatpush1.msra.mxu0 0.0
  %1464 = vmatprep.subr.mxu0 0.0
  %1465 = vmatpush1.msra.mxu0 0.0
  %1466 = vmatprep.subr.mxu0 0.0
  %1467 = vmatpush1.msra.mxu0 0.0
  %1468 = vmatprep.subr.mxu0 0.0
  %1469 = vmatpush1.msra.mxu0 0.0
  %1470 = vmatprep.subr.mxu0 0.0
  %1471 = vmatpush1.msra.mxu0 0.0
  %1472 = vmatprep.subr.mxu0 0.0
  %1473 = vmatpush1.msra.mxu0 0.0
  %1474 = vmatprep.subr.mxu0 0.0
  %1475 = vmatpush1.msra.mxu0 0.0
  %1476 = vmatprep.subr.mxu0 0.0
  %1477 = vmatpush1.msra.mxu0 0.0
  %1478 = vmatprep.subr.mxu0 0.0
  %1479 = vmatpush1.msra.mxu0 0.0
  %1480 = vmatprep.subr.mxu0 0.0
  %1481 = vmatpush1.msra.mxu0 0.0
  %1482 = vmatprep.subr.mxu0 0.0
  %1483 = vmatpush1.msra.mxu0 0.0
  %1484 = vmatprep.subr.mxu0 0.0
  %1485 = vmatpush1.msra.mxu0 0.0
  %1486 = vmatprep.subr.mxu0 0.0
  %1487 = vmatpush1.msra.mxu0 0.0
  %1488 = vmatprep.subr.mxu0 0.0
  %1489 = vmatpush1.msra.mxu0 0.0
  %1490 = vmatprep.mubr.f32.mxu0 0.0
  %1491 = vmatmul.mubr.f32.gmra.mrb[0].mxu0 %v1410
  %v1492 = vpop.f32.mrb[0].mxu0
  %v1493 = vadd.f32 %v1392, %v1492
  %v1494 = vpop.f32.mrb[0].mxu0
  %1495 = vmatprep.mubr.f32.mxu0 0.0
  %1496 = vmatmul.mubr.f32.gmra.mrb[0].mxu0 %v1412
  %v1497 = vpop.f32.mrb[0].mxu0
  %v1498 = vadd.f32 %v1392, %v1497
  %v1499 = vpop.f32.mrb[0].mxu0
  %1500 = vmatprep.mubr.f32.mxu0 0.0
  %1501 = vmatmul.mubr.f32.gmra.mrb[0].mxu0 %v1414
  %v1502 = vpop.f32.mrb[0].mxu0
  %v1503 = vadd.f32 %v1392, %v1502
  %v1504 = vpop.f32.mrb[0].mxu0
  %1505 = vmatprep.mubr.f32.mxu0 0.0
  %1506 = vmatmul.mubr.f32.gmra.mrb[0].mxu0 %v1416
  %v1507 = vpop.f32.mrb[0].mxu0
  %v1508 = vadd.f32 %v1392, %v1507
  %v1509 = vpop.f32.mrb[0].mxu0
  %1510 = vmatprep.mubr.f32.mxu0 0.0
  %1511 = vmatmul.mubr.f32.gmra.mrb[0].mxu0 %v1418
  %v1512 = vpop.f32.mrb[0].mxu0
  %v1513 = vadd.f32 %v1392, %v1512
  %v1514 = vpop.f32.mrb[0].mxu0
  %1515 = vmatprep.mubr.f32.mxu0 0.0
  %1516 = vmatmul.mubr.f32.gmra.mrb[0].mxu0 %v1420
  %v1517 = vpop.f32.mrb[0].mxu0
  %v1518 = vadd.f32 %v1392, %v1517
  %v1519 = vpop.f32.mrb[0].mxu0
  %1520 = vmatprep.mubr.f32.mxu0 0.0
  %1521 = vmatmul.mubr.f32.gmra.mrb[0].mxu0 %v1422
  %v1522 = vpop.f32.mrb[0].mxu0
  %v1523 = vadd.f32 %v1392, %v1522
  %v1524 = vpop.f32.mrb[0].mxu0
  %1525 = vmatprep.mubr.f32.mxu0 0.0
  %1526 = vmatmul.mubr.f32.gmra.mrb[0].mxu0 %v1424
  %v1527 = vpop.f32.mrb[0].mxu0
  %v1528 = vadd.f32 %v1392, %v1527
  %v1529 = vpop.f32.mrb[0].mxu0
  %1530 = vdwg.mxu0
  %v1531 = vmul.f32 %v1493, %v779
  %v1532 = vmul.f32 %v1498, %v784
  %v1533 = vmul.f32 %v1503, %v789
  %v1534 = vmul.f32 %v1508, %v794
  %v1535 = vmul.f32 %v1513, %v799
  %v1536 = vmul.f32 %v1518, %v804
  %v1537 = vmul.f32 %v1523, %v809
  %v1538 = vmul.f32 %v1528, %v814
  %v1539 = vmul.f32 %v1531, %v1380
  %v1540 = vmul.f32 %v1532, %v1380
  %v1541 = vmul.f32 %v1533, %v1380
  %v1542 = vmul.f32 %v1534, %v1380
  %v1543 = vmul.f32 %v1535, %v1380
  %v1544 = vmul.f32 %v1536, %v1380
  %v1545 = vmul.f32 %v1537, %v1380
  %v1546 = vmul.f32 %v1538, %v1380
  %1548 = vset.pattern.permute.xlu0 0
  %1549 = vperm.xlu0 %1548, %v366
  %v1550 = vpop.permute.xlu0 %1549
  %1553 = vset.pattern.permute.xlu0 0
  %1554 = vperm.xlu0 %1553, %v367
  %v1555 = vpop.permute.xlu0 %1554
  %1558 = vset.pattern.permute.xlu0 0
  %1559 = vperm.xlu0 %1558, %v368
  %v1560 = vpop.permute.xlu0 %1559
  %1563 = vset.pattern.permute.xlu0 0
  %1564 = vperm.xlu0 %1563, %v369
  %v1565 = vpop.permute.xlu0 %1564
  %1568 = vset.pattern.permute.xlu0 0
  %1569 = vperm.xlu0 %1568, %v370
  %v1570 = vpop.permute.xlu0 %1569
  %1573 = vset.pattern.permute.xlu0 0
  %1574 = vperm.xlu0 %1573, %v371
  %v1575 = vpop.permute.xlu0 %1574
  %1578 = vset.pattern.permute.xlu0 0
  %1579 = vperm.xlu0 %1578, %v372
  %v1580 = vpop.permute.xlu0 %1579
  %1583 = vset.pattern.permute.xlu0 0
  %1584 = vperm.xlu0 %1583, %v373
  %v1585 = vpop.permute.xlu0 %1584
  %v1587 = vmul.f32 %v1550, %v1539
  %v1588 = vmul.f32 %v1555, %v1540
  %v1589 = vmul.f32 %v1560, %v1541
  %v1590 = vmul.f32 %v1565, %v1542
  %v1591 = vmul.f32 %v1570, %v1543
  %v1592 = vmul.f32 %v1575, %v1544
  %v1593 = vmul.f32 %v1580, %v1545
  %v1594 = vmul.f32 %v1585, %v1546
  %v1595 = vsel %vm828, %v1587, 0.0
  %v1596 = vrot.slane %v1595, 4
  %v1597 = vadd.f32 %v1595, %v1596
  %v1598 = vrot.slane %v1597, 2
  %v1599 = vadd.f32 %v1597, %v1598
  %v1600 = vrot.slane %v1599, 1
  %v1601 = vadd.f32 %v1599, %v1600
  %v1602 = vsel %vm828, %v1588, 0.0
  %v1603 = vrot.slane %v1602, 4
  %v1604 = vadd.f32 %v1602, %v1603
  %v1605 = vrot.slane %v1604, 2
  %v1606 = vadd.f32 %v1604, %v1605
  %v1607 = vrot.slane %v1606, 1
  %v1608 = vadd.f32 %v1606, %v1607
  %v1609 = vsel %vm828, %v1589, 0.0
  %v1610 = vrot.slane %v1609, 4
  %v1611 = vadd.f32 %v1609, %v1610
  %v1612 = vrot.slane %v1611, 2
  %v1613 = vadd.f32 %v1611, %v1612
  %v1614 = vrot.slane %v1613, 1
  %v1615 = vadd.f32 %v1613, %v1614
  %v1616 = vsel %vm828, %v1590, 0.0
  %v1617 = vrot.slane %v1616, 4
  %v1618 = vadd.f32 %v1616, %v1617
  %v1619 = vrot.slane %v1618, 2
  %v1620 = vadd.f32 %v1618, %v1619
  %v1621 = vrot.slane %v1620, 1
  %v1622 = vadd.f32 %v1620, %v1621
  %v1623 = vsel %vm828, %v1591, 0.0
  %v1624 = vrot.slane %v1623, 4
  %v1625 = vadd.f32 %v1623, %v1624
  %v1626 = vrot.slane %v1625, 2
  %v1627 = vadd.f32 %v1625, %v1626
  %v1628 = vrot.slane %v1627, 1
  %v1629 = vadd.f32 %v1627, %v1628
  %v1630 = vsel %vm828, %v1592, 0.0
  %v1631 = vrot.slane %v1630, 4
  %v1632 = vadd.f32 %v1630, %v1631
  %v1633 = vrot.slane %v1632, 2
  %v1634 = vadd.f32 %v1632, %v1633
  %v1635 = vrot.slane %v1634, 1
  %v1636 = vadd.f32 %v1634, %v1635
  %v1637 = vsel %vm828, %v1593, 0.0
  %v1638 = vrot.slane %v1637, 4
  %v1639 = vadd.f32 %v1637, %v1638
  %v1640 = vrot.slane %v1639, 2
  %v1641 = vadd.f32 %v1639, %v1640
  %v1642 = vrot.slane %v1641, 1
  %v1643 = vadd.f32 %v1641, %v1642
  %v1644 = vsel %vm828, %v1594, 0.0
  %v1645 = vrot.slane %v1644, 4
  %v1646 = vadd.f32 %v1644, %v1645
  %v1647 = vrot.slane %v1646, 2
  %v1648 = vadd.f32 %v1646, %v1647
  %v1649 = vrot.slane %v1648, 1
  %v1650 = vadd.f32 %v1648, %v1649
  %v1651 = vmul.f32 %v1531, 0.0
  %v1652 = vmul.f32 %v1532, 0.0
  %v1653 = vmul.f32 %v1533, 0.0
  %v1654 = vmul.f32 %v1534, 0.0
  %v1655 = vmul.f32 %v1535, 0.0
  %v1656 = vmul.f32 %v1536, 0.0
  %v1657 = vmul.f32 %v1537, 0.0
  %v1658 = vmul.f32 %v1538, 0.0
  %vm1659 = vcmask 523520
  %v1660 = vsel %vm1659, %v1651, 0.0
  %v1661 = vrot.slane %v1660, 4
  %v1662 = vadd.f32 %v1660, %v1661
  %v1663 = vrot.slane %v1662, 2
  %v1664 = vadd.f32 %v1662, %v1663
  %v1665 = vrot.slane %v1664, 1
  %v1666 = vadd.f32 %v1664, %v1665
  %v1667 = vsel %vm1659, %v1652, 0.0
  %v1668 = vrot.slane %v1667, 4
  %v1669 = vadd.f32 %v1667, %v1668
  %v1670 = vrot.slane %v1669, 2
  %v1671 = vadd.f32 %v1669, %v1670
  %v1672 = vrot.slane %v1671, 1
  %v1673 = vadd.f32 %v1671, %v1672
  %v1674 = vsel %vm1659, %v1653, 0.0
  %v1675 = vrot.slane %v1674, 4
  %v1676 = vadd.f32 %v1674, %v1675
  %v1677 = vrot.slane %v1676, 2
  %v1678 = vadd.f32 %v1676, %v1677
  %v1679 = vrot.slane %v1678, 1
  %v1680 = vadd.f32 %v1678, %v1679
  %v1681 = vsel %vm1659, %v1654, 0.0
  %v1682 = vrot.slane %v1681, 4
  %v1683 = vadd.f32 %v1681, %v1682
  %v1684 = vrot.slane %v1683, 2
  %v1685 = vadd.f32 %v1683, %v1684
  %v1686 = vrot.slane %v1685, 1
  %v1687 = vadd.f32 %v1685, %v1686
  %v1688 = vsel %vm1659, %v1655, 0.0
  %v1689 = vrot.slane %v1688, 4
  %v1690 = vadd.f32 %v1688, %v1689
  %v1691 = vrot.slane %v1690, 2
  %v1692 = vadd.f32 %v1690, %v1691
  %v1693 = vrot.slane %v1692, 1
  %v1694 = vadd.f32 %v1692, %v1693
  %v1695 = vsel %vm1659, %v1656, 0.0
  %v1696 = vrot.slane %v1695, 4
  %v1697 = vadd.f32 %v1695, %v1696
  %v1698 = vrot.slane %v1697, 2
  %v1699 = vadd.f32 %v1697, %v1698
  %v1700 = vrot.slane %v1699, 1
  %v1701 = vadd.f32 %v1699, %v1700
  %v1702 = vsel %vm1659, %v1657, 0.0
  %v1703 = vrot.slane %v1702, 4
  %v1704 = vadd.f32 %v1702, %v1703
  %v1705 = vrot.slane %v1704, 2
  %v1706 = vadd.f32 %v1704, %v1705
  %v1707 = vrot.slane %v1706, 1
  %v1708 = vadd.f32 %v1706, %v1707
  %v1709 = vsel %vm1659, %v1658, 0.0
  %v1710 = vrot.slane %v1709, 4
  %v1711 = vadd.f32 %v1709, %v1710
  %v1712 = vrot.slane %v1711, 2
  %v1713 = vadd.f32 %v1711, %v1712
  %v1714 = vrot.slane %v1713, 1
  %v1715 = vadd.f32 %v1713, %v1714
  %1724 = vrot.lane.b32.xlu0 %v1666, 96
  %v1725 = vpop.permute.xlu0 %1724
  %1726 = vrot.lane.b32.xlu0 %v1673, 96
  %v1727 = vpop.permute.xlu0 %1726
  %1728 = vrot.lane.b32.xlu0 %v1680, 96
  %v1729 = vpop.permute.xlu0 %1728
  %1730 = vrot.lane.b32.xlu0 %v1687, 96
  %v1731 = vpop.permute.xlu0 %1730
  %1732 = vrot.lane.b32.xlu0 %v1694, 96
  %v1733 = vpop.permute.xlu0 %1732
  %1734 = vrot.lane.b32.xlu0 %v1701, 96
  %v1735 = vpop.permute.xlu0 %1734
  %1736 = vrot.lane.b32.xlu0 %v1708, 96
  %v1737 = vpop.permute.xlu0 %1736
  %1738 = vrot.lane.b32.xlu0 %v1715, 96
  %v1739 = vpop.permute.xlu0 %1738
  %v1748 = vadd.f32 %v1601, %v1725
  %v1749 = vadd.f32 %v1608, %v1727
  %v1750 = vadd.f32 %v1615, %v1729
  %v1751 = vadd.f32 %v1622, %v1731
  %v1752 = vadd.f32 %v1629, %v1733
  %v1753 = vadd.f32 %v1636, %v1735
  %v1754 = vadd.f32 %v1643, %v1737
  %v1755 = vadd.f32 %v1650, %v1739
  %1756 = vset.pattern.permute.xlu0 1
  %1757 = vperm.xlu0 %1756, %v366
  %v1758 = vpop.permute.xlu0 %1757
  %1760 = vset.pattern.permute.xlu0 1
  %1761 = vperm.xlu0 %1760, %v367
  %v1762 = vpop.permute.xlu0 %1761
  %1764 = vset.pattern.permute.xlu0 1
  %1765 = vperm.xlu0 %1764, %v368
  %v1766 = vpop.permute.xlu0 %1765
  %1768 = vset.pattern.permute.xlu0 1
  %1769 = vperm.xlu0 %1768, %v369
  %v1770 = vpop.permute.xlu0 %1769
  %1772 = vset.pattern.permute.xlu0 1
  %1773 = vperm.xlu0 %1772, %v370
  %v1774 = vpop.permute.xlu0 %1773
  %1776 = vset.pattern.permute.xlu0 1
  %1777 = vperm.xlu0 %1776, %v371
  %v1778 = vpop.permute.xlu0 %1777
  %1780 = vset.pattern.permute.xlu0 1
  %1781 = vperm.xlu0 %1780, %v372
  %v1782 = vpop.permute.xlu0 %1781
  %1784 = vset.pattern.permute.xlu0 1
  %1785 = vperm.xlu0 %1784, %v373
  %v1786 = vpop.permute.xlu0 %1785
  %v1788 = vmul.f32 %v1758, %v1539
  %v1789 = vmul.f32 %v1762, %v1540
  %v1790 = vmul.f32 %v1766, %v1541
  %v1791 = vmul.f32 %v1770, %v1542
  %v1792 = vmul.f32 %v1774, %v1543
  %v1793 = vmul.f32 %v1778, %v1544
  %v1794 = vmul.f32 %v1782, %v1545
  %v1795 = vmul.f32 %v1786, %v1546
  %v1796 = vsel %vm828, %v1788, 0.0
  %v1797 = vrot.slane %v1796, 4
  %v1798 = vadd.f32 %v1796, %v1797
  %v1799 = vrot.slane %v1798, 2
  %v1800 = vadd.f32 %v1798, %v1799
  %v1801 = vrot.slane %v1800, 1
  %v1802 = vadd.f32 %v1800, %v1801
  %v1803 = vsel %vm828, %v1789, 0.0
  %v1804 = vrot.slane %v1803, 4
  %v1805 = vadd.f32 %v1803, %v1804
  %v1806 = vrot.slane %v1805, 2
  %v1807 = vadd.f32 %v1805, %v1806
  %v1808 = vrot.slane %v1807, 1
  %v1809 = vadd.f32 %v1807, %v1808
  %v1810 = vsel %vm828, %v1790, 0.0
  %v1811 = vrot.slane %v1810, 4
  %v1812 = vadd.f32 %v1810, %v1811
  %v1813 = vrot.slane %v1812, 2
  %v1814 = vadd.f32 %v1812, %v1813
  %v1815 = vrot.slane %v1814, 1
  %v1816 = vadd.f32 %v1814, %v1815
  %v1817 = vsel %vm828, %v1791, 0.0
  %v1818 = vrot.slane %v1817, 4
  %v1819 = vadd.f32 %v1817, %v1818
  %v1820 = vrot.slane %v1819, 2
  %v1821 = vadd.f32 %v1819, %v1820
  %v1822 = vrot.slane %v1821, 1
  %v1823 = vadd.f32 %v1821, %v1822
  %v1824 = vsel %vm828, %v1792, 0.0
  %v1825 = vrot.slane %v1824, 4
  %v1826 = vadd.f32 %v1824, %v1825
  %v1827 = vrot.slane %v1826, 2
  %v1828 = vadd.f32 %v1826, %v1827
  %v1829 = vrot.slane %v1828, 1
  %v1830 = vadd.f32 %v1828, %v1829
  %v1831 = vsel %vm828, %v1793, 0.0
  %v1832 = vrot.slane %v1831, 4
  %v1833 = vadd.f32 %v1831, %v1832
  %v1834 = vrot.slane %v1833, 2
  %v1835 = vadd.f32 %v1833, %v1834
  %v1836 = vrot.slane %v1835, 1
  %v1837 = vadd.f32 %v1835, %v1836
  %v1838 = vsel %vm828, %v1794, 0.0
  %v1839 = vrot.slane %v1838, 4
  %v1840 = vadd.f32 %v1838, %v1839
  %v1841 = vrot.slane %v1840, 2
  %v1842 = vadd.f32 %v1840, %v1841
  %v1843 = vrot.slane %v1842, 1
  %v1844 = vadd.f32 %v1842, %v1843
  %v1845 = vsel %vm828, %v1795, 0.0
  %v1846 = vrot.slane %v1845, 4
  %v1847 = vadd.f32 %v1845, %v1846
  %v1848 = vrot.slane %v1847, 2
  %v1849 = vadd.f32 %v1847, %v1848
  %v1850 = vrot.slane %v1849, 1
  %v1851 = vadd.f32 %v1849, %v1850
  %v1852 = vadd.f32 %v1802, %v1725
  %v1853 = vadd.f32 %v1809, %v1727
  %v1854 = vadd.f32 %v1816, %v1729
  %v1855 = vadd.f32 %v1823, %v1731
  %v1856 = vadd.f32 %v1830, %v1733
  %v1857 = vadd.f32 %v1837, %v1735
  %v1858 = vadd.f32 %v1844, %v1737
  %v1859 = vadd.f32 %v1851, %v1739
  %1860 = vset.pattern.permute.xlu0 2
  %1861 = vperm.xlu0 %1860, %v366
  %v1862 = vpop.permute.xlu0 %1861
  %1864 = vset.pattern.permute.xlu0 2
  %1865 = vperm.xlu0 %1864, %v367
  %v1866 = vpop.permute.xlu0 %1865
  %1868 = vset.pattern.permute.xlu0 2
  %1869 = vperm.xlu0 %1868, %v368
  %v1870 = vpop.permute.xlu0 %1869
  %1872 = vset.pattern.permute.xlu0 2
  %1873 = vperm.xlu0 %1872, %v369
  %v1874 = vpop.permute.xlu0 %1873
  %1876 = vset.pattern.permute.xlu0 2
  %1877 = vperm.xlu0 %1876, %v370
  %v1878 = vpop.permute.xlu0 %1877
  %1880 = vset.pattern.permute.xlu0 2
  %1881 = vperm.xlu0 %1880, %v371
  %v1882 = vpop.permute.xlu0 %1881
  %1884 = vset.pattern.permute.xlu0 2
  %1885 = vperm.xlu0 %1884, %v372
  %v1886 = vpop.permute.xlu0 %1885
  %1888 = vset.pattern.permute.xlu0 2
  %1889 = vperm.xlu0 %1888, %v373
  %v1890 = vpop.permute.xlu0 %1889
  %v1892 = vmul.f32 %v1862, %v1539
  %v1893 = vmul.f32 %v1866, %v1540
  %v1894 = vmul.f32 %v1870, %v1541
  %v1895 = vmul.f32 %v1874, %v1542
  %v1896 = vmul.f32 %v1878, %v1543
  %v1897 = vmul.f32 %v1882, %v1544
  %v1898 = vmul.f32 %v1886, %v1545
  %v1899 = vmul.f32 %v1890, %v1546
  %v1900 = vsel %vm828, %v1892, 0.0
  %v1901 = vrot.slane %v1900, 4
  %v1902 = vadd.f32 %v1900, %v1901
  %v1903 = vrot.slane %v1902, 2
  %v1904 = vadd.f32 %v1902, %v1903
  %v1905 = vrot.slane %v1904, 1
  %v1906 = vadd.f32 %v1904, %v1905
  %v1907 = vsel %vm828, %v1893, 0.0
  %v1908 = vrot.slane %v1907, 4
  %v1909 = vadd.f32 %v1907, %v1908
  %v1910 = vrot.slane %v1909, 2
  %v1911 = vadd.f32 %v1909, %v1910
  %v1912 = vrot.slane %v1911, 1
  %v1913 = vadd.f32 %v1911, %v1912
  %v1914 = vsel %vm828, %v1894, 0.0
  %v1915 = vrot.slane %v1914, 4
  %v1916 = vadd.f32 %v1914, %v1915
  %v1917 = vrot.slane %v1916, 2
  %v1918 = vadd.f32 %v1916, %v1917
  %v1919 = vrot.slane %v1918, 1
  %v1920 = vadd.f32 %v1918, %v1919
  %v1921 = vsel %vm828, %v1895, 0.0
  %v1922 = vrot.slane %v1921, 4
  %v1923 = vadd.f32 %v1921, %v1922
  %v1924 = vrot.slane %v1923, 2
  %v1925 = vadd.f32 %v1923, %v1924
  %v1926 = vrot.slane %v1925, 1
  %v1927 = vadd.f32 %v1925, %v1926
  %v1928 = vsel %vm828, %v1896, 0.0
  %v1929 = vrot.slane %v1928, 4
  %v1930 = vadd.f32 %v1928, %v1929
  %v1931 = vrot.slane %v1930, 2
  %v1932 = vadd.f32 %v1930, %v1931
  %v1933 = vrot.slane %v1932, 1
  %v1934 = vadd.f32 %v1932, %v1933
  %v1935 = vsel %vm828, %v1897, 0.0
  %v1936 = vrot.slane %v1935, 4
  %v1937 = vadd.f32 %v1935, %v1936
  %v1938 = vrot.slane %v1937, 2
  %v1939 = vadd.f32 %v1937, %v1938
  %v1940 = vrot.slane %v1939, 1
  %v1941 = vadd.f32 %v1939, %v1940
  %v1942 = vsel %vm828, %v1898, 0.0
  %v1943 = vrot.slane %v1942, 4
  %v1944 = vadd.f32 %v1942, %v1943
  %v1945 = vrot.slane %v1944, 2
  %v1946 = vadd.f32 %v1944, %v1945
  %v1947 = vrot.slane %v1946, 1
  %v1948 = vadd.f32 %v1946, %v1947
  %v1949 = vsel %vm828, %v1899, 0.0
  %v1950 = vrot.slane %v1949, 4
  %v1951 = vadd.f32 %v1949, %v1950
  %v1952 = vrot.slane %v1951, 2
  %v1953 = vadd.f32 %v1951, %v1952
  %v1954 = vrot.slane %v1953, 1
  %v1955 = vadd.f32 %v1953, %v1954
  %v1956 = vadd.f32 %v1906, %v1725
  %v1957 = vadd.f32 %v1913, %v1727
  %v1958 = vadd.f32 %v1920, %v1729
  %v1959 = vadd.f32 %v1927, %v1731
  %v1960 = vadd.f32 %v1934, %v1733
  %v1961 = vadd.f32 %v1941, %v1735
  %v1962 = vadd.f32 %v1948, %v1737
  %v1963 = vadd.f32 %v1955, %v1739
  %v1972 = vrot.slane %v1749, 7
  %v1973 = vsel %vm1133, %v1972, %v1748
  %v1974 = vrot.slane %v1750, 6
  %v1975 = vsel %vm1135, %v1974, %v1973
  %v1976 = vrot.slane %v1751, 5
  %v1977 = vsel %vm1137, %v1976, %v1975
  %v1978 = vrot.slane %v1752, 4
  %v1979 = vsel %vm1139, %v1978, %v1977
  %v1980 = vrot.slane %v1753, 3
  %v1981 = vsel %vm1141, %v1980, %v1979
  %v1982 = vrot.slane %v1754, 2
  %v1983 = vsel %vm1143, %v1982, %v1981
  %v1984 = vrot.slane %v1755, 1
  %v1985 = vsel %vm1145, %v1984, %v1983
  %v1995 = vrot.slane %v1853, 7
  %v1996 = vsel %vm1133, %v1995, %v1852
  %v1997 = vrot.slane %v1854, 6
  %v1998 = vsel %vm1135, %v1997, %v1996
  %v1999 = vrot.slane %v1855, 5
  %v2000 = vsel %vm1137, %v1999, %v1998
  %v2001 = vrot.slane %v1856, 4
  %v2002 = vsel %vm1139, %v2001, %v2000
  %v2003 = vrot.slane %v1857, 3
  %v2004 = vsel %vm1141, %v2003, %v2002
  %v2005 = vrot.slane %v1858, 2
  %v2006 = vsel %vm1143, %v2005, %v2004
  %v2007 = vrot.slane %v1859, 1
  %v2008 = vsel %vm1145, %v2007, %v2006
  %v2018 = vrot.slane %v1957, 7
  %v2019 = vsel %vm1133, %v2018, %v1956
  %v2020 = vrot.slane %v1958, 6
  %v2021 = vsel %vm1135, %v2020, %v2019
  %v2022 = vrot.slane %v1959, 5
  %v2023 = vsel %vm1137, %v2022, %v2021
  %v2024 = vrot.slane %v1960, 4
  %v2025 = vsel %vm1139, %v2024, %v2023
  %v2026 = vrot.slane %v1961, 3
  %v2027 = vsel %vm1141, %v2026, %v2025
  %v2028 = vrot.slane %v1962, 2
  %v2029 = vsel %vm1143, %v2028, %v2027
  %v2030 = vrot.slane %v1963, 1
  %v2031 = vsel %vm1145, %v2030, %v2029
  %v2033 = vadd.f32 %v588, %v1306
  %v2034 = vadd.f32 %v1985, 0.0
  %v2035 = vadd.f32 %v2008, 0.0
  %v2036 = vadd.f32 %v2031, 0.0
  %v2037 = vld [vmem:[%s31] sm:$0xff]
  %v2038 = vld [vmem:[%s31 + $0x8] sm:$0xff]
  %v2039 = vld [vmem:[%s31 + $0x10] sm:$0xff]
  %v2040 = vld [vmem:[%s31 + $0x18] sm:$0xff]
  %v2042 = vsel %vm828, %v2034, 0
  %v2045 = vsel %vm828, %v2035, 0
  %v2048 = vsel %vm828, %v2036, 0
  %2050 = vmatprep.subr.mxu0 0.0
  %2051 = vmatpush1.msra.mxu0 %v2037
  %2052 = vmatprep.subr.mxu0 0.0
  %2053 = vmatpush1.msra.mxu0 %v2038
  %2054 = vmatprep.subr.mxu0 0.0
  %2055 = vmatpush1.msra.mxu0 %v2039
  %2056 = vmatprep.subr.mxu0 0.0
  %2057 = vmatpush1.msra.mxu0 %v2040
  %2058 = vmatprep.subr.mxu0 0.0
  %2059 = vmatpush1.msra.mxu0 0.0
  %2060 = vmatprep.subr.mxu0 0.0
  %2061 = vmatpush1.msra.mxu0 0.0
  %2062 = vmatprep.subr.mxu0 0.0
  %2063 = vmatpush1.msra.mxu0 0.0
  %2064 = vmatprep.subr.mxu0 0.0
  %2065 = vmatpush1.msra.mxu0 0.0
  %2066 = vmatprep.subr.mxu0 0.0
  %2067 = vmatpush1.msra.mxu0 0.0
  %2068 = vmatprep.subr.mxu0 0.0
  %2069 = vmatpush1.msra.mxu0 0.0
  %2070 = vmatprep.subr.mxu0 0.0
  %2071 = vmatpush1.msra.mxu0 0.0
  %2072 = vmatprep.subr.mxu0 0.0
  %2073 = vmatpush1.msra.mxu0 0.0
  %2074 = vmatprep.subr.mxu0 0.0
  %2075 = vmatpush1.msra.mxu0 0.0
  %2076 = vmatprep.subr.mxu0 0.0
  %2077 = vmatpush1.msra.mxu0 0.0
  %2078 = vmatprep.subr.mxu0 0.0
  %2079 = vmatpush1.msra.mxu0 0.0
  %2080 = vmatprep.subr.mxu0 0.0
  %2081 = vmatpush1.msra.mxu0 0.0
  %2082 = vmatprep.subr.mxu0 0.0
  %2083 = vmatpush1.msra.mxu0 0.0
  %2084 = vmatprep.subr.mxu0 0.0
  %2085 = vmatpush1.msra.mxu0 0.0
  %2086 = vmatprep.subr.mxu0 0.0
  %2087 = vmatpush1.msra.mxu0 0.0
  %2088 = vmatprep.subr.mxu0 0.0
  %2089 = vmatpush1.msra.mxu0 0.0
  %2090 = vmatprep.subr.mxu0 0.0
  %2091 = vmatpush1.msra.mxu0 0.0
  %2092 = vmatprep.subr.mxu0 0.0
  %2093 = vmatpush1.msra.mxu0 0.0
  %2094 = vmatprep.subr.mxu0 0.0
  %2095 = vmatpush1.msra.mxu0 0.0
  %2096 = vmatprep.subr.mxu0 0.0
  %2097 = vmatpush1.msra.mxu0 0.0
  %2098 = vmatprep.subr.mxu0 0.0
  %2099 = vmatpush1.msra.mxu0 0.0
  %2100 = vmatprep.subr.mxu0 0.0
  %2101 = vmatpush1.msra.mxu0 0.0
  %2102 = vmatprep.subr.mxu0 0.0
  %2103 = vmatpush1.msra.mxu0 0.0
  %2104 = vmatprep.subr.mxu0 0.0
  %2105 = vmatpush1.msra.mxu0 0.0
  %2106 = vmatprep.subr.mxu0 0.0
  %2107 = vmatpush1.msra.mxu0 0.0
  %2108 = vmatprep.subr.mxu0 0.0
  %2109 = vmatpush1.msra.mxu0 0.0
  %2110 = vmatprep.subr.mxu0 0.0
  %2111 = vmatpush1.msra.mxu0 0.0
  %2112 = vmatprep.subr.mxu0 0.0
  %2113 = vmatpush1.msra.mxu0 0.0
  %2114 = vmatprep.mubr.f32.mxu0 0.0
  %2115 = vmatmul.mubr.f32.gmra.mrb[0].mxu0 %v2042
  %v2116 = vpop.f32.mrb[0].mxu0
  %v2117 = vadd.f32 0.0, %v2116
  %v2118 = vpop.f32.mrb[0].mxu0
  %2119 = vmatprep.mubr.f32.mxu0 0.0
  %2120 = vmatmul.mubr.f32.gmra.mrb[0].mxu0 %v2045
  %v2121 = vpop.f32.mrb[0].mxu0
  %v2122 = vadd.f32 0.0, %v2121
  %v2123 = vpop.f32.mrb[0].mxu0
  %2124 = vmatprep.mubr.f32.mxu0 0.0
  %2125 = vmatmul.mubr.f32.gmra.mrb[0].mxu0 %v2048
  %v2126 = vpop.f32.mrb[0].mxu0
  %v2127 = vadd.f32 0.0, %v2126
  %v2128 = vpop.f32.mrb[0].mxu0
  %2129 = vdwg.mxu0
  %v2130 = vmul.f32 %v2117, %v2117
  %v2131 = vmul.f32 %v2122, %v2122
  %v2132 = vadd.f32 %v2130, %v2131
  %v2133 = vmul.f32 %v2127, %v2127
  %v2134 = vadd.f32 %v2132, %v2133
  %v2135 = vadd.f32 %v2134, 1e-08
  %v2136 = vrsqrt.pop %v2135
  %v2137 = vmul.f32 %v2135, %v2136
  %vm2138 = vcmp.eq.f32.partialorder %v2135, inf
  %v2139 = vsel %vm2138, %v2135, %v2137
  %vm2140 = vcmp.eq.f32.partialorder %v2135, 0.0
  %v2141 = vand.u32 %v2135, 2147483648
  %v2142 = vsel %vm2140, %v2141, %v2139
  %v2143 = vld [vmem:[%s33] sm:$0xff]
  %v2144 = vld [vmem:[%s33 + $0x8] sm:$0xff]
  %v2145 = vld [vmem:[%s33 + $0x10] sm:$0xff]
  %v2146 = vld [vmem:[%s33 + $0x18] sm:$0xff]
  %v2147 = vld [vmem:[%s35] sm:$0xff]
  %v2148 = vld [vmem:[%s35 + $0x8] sm:$0xff]
  %v2149 = vld [vmem:[%s35 + $0x10] sm:$0xff]
  %v2150 = vld [vmem:[%s35 + $0x18] sm:$0xff]
  %2152 = vrot.lane.b32.xlu0 %v2142, 96
  %v2153 = vpop.permute.xlu0 %2152
  %v2154 = vsel %vm828, %v2153, 0
  %2156 = vmatprep.subr.mxu0 0.0
  %2157 = vmatpush1.msra.mxu0 %v2147
  %2158 = vmatprep.subr.mxu0 0.0
  %2159 = vmatpush1.msra.mxu0 %v2148
  %2160 = vmatprep.subr.mxu0 0.0
  %2161 = vmatpush1.msra.mxu0 %v2149
  %2162 = vmatprep.subr.mxu0 0.0
  %2163 = vmatpush1.msra.mxu0 %v2150
  %2164 = vmatprep.subr.mxu0 0.0
  %2165 = vmatpush1.msra.mxu0 0.0
  %2166 = vmatprep.subr.mxu0 0.0
  %2167 = vmatpush1.msra.mxu0 0.0
  %2168 = vmatprep.subr.mxu0 0.0
  %2169 = vmatpush1.msra.mxu0 0.0
  %2170 = vmatprep.subr.mxu0 0.0
  %2171 = vmatpush1.msra.mxu0 0.0
  %2172 = vmatprep.subr.mxu0 0.0
  %2173 = vmatpush1.msra.mxu0 0.0
  %2174 = vmatprep.subr.mxu0 0.0
  %2175 = vmatpush1.msra.mxu0 0.0
  %2176 = vmatprep.subr.mxu0 0.0
  %2177 = vmatpush1.msra.mxu0 0.0
  %2178 = vmatprep.subr.mxu0 0.0
  %2179 = vmatpush1.msra.mxu0 0.0
  %2180 = vmatprep.subr.mxu0 0.0
  %2181 = vmatpush1.msra.mxu0 0.0
  %2182 = vmatprep.subr.mxu0 0.0
  %2183 = vmatpush1.msra.mxu0 0.0
  %2184 = vmatprep.subr.mxu0 0.0
  %2185 = vmatpush1.msra.mxu0 0.0
  %2186 = vmatprep.subr.mxu0 0.0
  %2187 = vmatpush1.msra.mxu0 0.0
  %2188 = vmatprep.subr.mxu0 0.0
  %2189 = vmatpush1.msra.mxu0 0.0
  %2190 = vmatprep.subr.mxu0 0.0
  %2191 = vmatpush1.msra.mxu0 0.0
  %2192 = vmatprep.subr.mxu0 0.0
  %2193 = vmatpush1.msra.mxu0 0.0
  %2194 = vmatprep.subr.mxu0 0.0
  %2195 = vmatpush1.msra.mxu0 0.0
  %2196 = vmatprep.subr.mxu0 0.0
  %2197 = vmatpush1.msra.mxu0 0.0
  %2198 = vmatprep.subr.mxu0 0.0
  %2199 = vmatpush1.msra.mxu0 0.0
  %2200 = vmatprep.subr.mxu0 0.0
  %2201 = vmatpush1.msra.mxu0 0.0
  %2202 = vmatprep.subr.mxu0 0.0
  %2203 = vmatpush1.msra.mxu0 0.0
  %2204 = vmatprep.subr.mxu0 0.0
  %2205 = vmatpush1.msra.mxu0 0.0
  %2206 = vmatprep.subr.mxu0 0.0
  %2207 = vmatpush1.msra.mxu0 0.0
  %2208 = vmatprep.subr.mxu0 0.0
  %2209 = vmatpush1.msra.mxu0 0.0
  %2210 = vmatprep.subr.mxu0 0.0
  %2211 = vmatpush1.msra.mxu0 0.0
  %2212 = vmatprep.subr.mxu0 0.0
  %2213 = vmatpush1.msra.mxu0 0.0
  %2214 = vmatprep.subr.mxu0 0.0
  %2215 = vmatpush1.msra.mxu0 0.0
  %2216 = vmatprep.subr.mxu0 0.0
  %2217 = vmatpush1.msra.mxu0 0.0
  %2218 = vmatprep.subr.mxu0 0.0
  %2219 = vmatpush1.msra.mxu0 0.0
  %2220 = vmatprep.mubr.f32.mxu0 0.0
  %2221 = vmatmul.mubr.f32.gmra.mrb[0].mxu0 %v2154
  %v2222 = vpop.f32.mrb[0].mxu0
  %v2223 = vadd.f32 0.0, %v2222
  %v2224 = vpop.f32.mrb[0].mxu0
  %2225 = vdwg.mxu0
  %v2227 = vsel %vm828, %v2033, 0
  %2229 = vmatprep.subr.mxu0 0.0
  %2230 = vmatpush1.msra.mxu0 %v2143
  %2231 = vmatprep.subr.mxu0 0.0
  %2232 = vmatpush1.msra.mxu0 %v2144
  %2233 = vmatprep.subr.mxu0 0.0
  %2234 = vmatpush1.msra.mxu0 %v2145
  %2235 = vmatprep.subr.mxu0 0.0
  %2236 = vmatpush1.msra.mxu0 %v2146
  %2237 = vmatprep.subr.mxu0 0.0
  %2238 = vmatpush1.msra.mxu0 0.0
  %2239 = vmatprep.subr.mxu0 0.0
  %2240 = vmatpush1.msra.mxu0 0.0
  %2241 = vmatprep.subr.mxu0 0.0
  %2242 = vmatpush1.msra.mxu0 0.0
  %2243 = vmatprep.subr.mxu0 0.0
  %2244 = vmatpush1.msra.mxu0 0.0
  %2245 = vmatprep.subr.mxu0 0.0
  %2246 = vmatpush1.msra.mxu0 0.0
  %2247 = vmatprep.subr.mxu0 0.0
  %2248 = vmatpush1.msra.mxu0 0.0
  %2249 = vmatprep.subr.mxu0 0.0
  %2250 = vmatpush1.msra.mxu0 0.0
  %2251 = vmatprep.subr.mxu0 0.0
  %2252 = vmatpush1.msra.mxu0 0.0
  %2253 = vmatprep.subr.mxu0 0.0
  %2254 = vmatpush1.msra.mxu0 0.0
  %2255 = vmatprep.subr.mxu0 0.0
  %2256 = vmatpush1.msra.mxu0 0.0
  %2257 = vmatprep.subr.mxu0 0.0
  %2258 = vmatpush1.msra.mxu0 0.0
  %2259 = vmatprep.subr.mxu0 0.0
  %2260 = vmatpush1.msra.mxu0 0.0
  %2261 = vmatprep.subr.mxu0 0.0
  %2262 = vmatpush1.msra.mxu0 0.0
  %2263 = vmatprep.subr.mxu0 0.0
  %2264 = vmatpush1.msra.mxu0 0.0
  %2265 = vmatprep.subr.mxu0 0.0
  %2266 = vmatpush1.msra.mxu0 0.0
  %2267 = vmatprep.subr.mxu0 0.0
  %2268 = vmatpush1.msra.mxu0 0.0
  %2269 = vmatprep.subr.mxu0 0.0
  %2270 = vmatpush1.msra.mxu0 0.0
  %2271 = vmatprep.subr.mxu0 0.0
  %2272 = vmatpush1.msra.mxu0 0.0
  %2273 = vmatprep.subr.mxu0 0.0
  %2274 = vmatpush1.msra.mxu0 0.0
  %2275 = vmatprep.subr.mxu0 0.0
  %2276 = vmatpush1.msra.mxu0 0.0
  %2277 = vmatprep.subr.mxu0 0.0
  %2278 = vmatpush1.msra.mxu0 0.0
  %2279 = vmatprep.subr.mxu0 0.0
  %2280 = vmatpush1.msra.mxu0 0.0
  %2281 = vmatprep.subr.mxu0 0.0
  %2282 = vmatpush1.msra.mxu0 0.0
  %2283 = vmatprep.subr.mxu0 0.0
  %2284 = vmatpush1.msra.mxu0 0.0
  %2285 = vmatprep.subr.mxu0 0.0
  %2286 = vmatpush1.msra.mxu0 0.0
  %2287 = vmatprep.subr.mxu0 0.0
  %2288 = vmatpush1.msra.mxu0 0.0
  %2289 = vmatprep.subr.mxu0 0.0
  %2290 = vmatpush1.msra.mxu0 0.0
  %2291 = vmatprep.subr.mxu0 0.0
  %2292 = vmatpush1.msra.mxu0 0.0
  %2293 = vmatprep.mubr.f32.mxu0 0.0
  %2294 = vmatmul.mubr.f32.gmra.mrb[0].mxu0 %v2227
  %v2295 = vpop.f32.mrb[0].mxu0
  %v2296 = vadd.f32 %v2223, %v2295
  %v2297 = vpop.f32.mrb[0].mxu0
  %2298 = vdwg.mxu0
  %v2299 = vld [vmem:[%s37] sm:$0x1]
  %v2301 = vlaneseq
  %v2302 = vshrl.u32 %v2301, 7
  %v2303 = vsub.s32 0, %v2302
  %v2304 = vrot.slane %v2299, %v2303
  %v2306 = vadd.f32 %v2296, %v2304
  %v2307 = vsub.f32 0.0, %v2306
  %v2308 = vmul.f32 %v2307, 1.442695
  %v2309 = vpow.pop %v2308
  %v2310 = vadd.f32 %v2309, 1.0
  %v2311 = vrcp.pop %v2310
  %v2312 = vmul.f32 %v2306, %v2311
  %v2313 = vld [vmem:[%s39] sm:$0xff]
  %v2314 = vld [vmem:[%s39 + $0x8] sm:$0xff]
  %v2315 = vld [vmem:[%s39 + $0x10] sm:$0xff]
  %v2316 = vld [vmem:[%s39 + $0x18] sm:$0xff]
  %v2317 = vld [vmem:[%s41] sm:$0x1]
  %v2319 = vlaneseq
  %v2320 = vshrl.u32 %v2319, 7
  %v2321 = vsub.s32 0, %v2320
  %v2322 = vrot.slane %v2317, %v2321
  %v2325 = vsel %vm828, %v2312, 0
  %2327 = vmatprep.subr.mxu0 0.0
  %2328 = vmatpush1.msra.mxu0 %v2313
  %2329 = vmatprep.subr.mxu0 0.0
  %2330 = vmatpush1.msra.mxu0 %v2314
  %2331 = vmatprep.subr.mxu0 0.0
  %2332 = vmatpush1.msra.mxu0 %v2315
  %2333 = vmatprep.subr.mxu0 0.0
  %2334 = vmatpush1.msra.mxu0 %v2316
  %2335 = vmatprep.subr.mxu0 0.0
  %2336 = vmatpush1.msra.mxu0 0.0
  %2337 = vmatprep.subr.mxu0 0.0
  %2338 = vmatpush1.msra.mxu0 0.0
  %2339 = vmatprep.subr.mxu0 0.0
  %2340 = vmatpush1.msra.mxu0 0.0
  %2341 = vmatprep.subr.mxu0 0.0
  %2342 = vmatpush1.msra.mxu0 0.0
  %2343 = vmatprep.subr.mxu0 0.0
  %2344 = vmatpush1.msra.mxu0 0.0
  %2345 = vmatprep.subr.mxu0 0.0
  %2346 = vmatpush1.msra.mxu0 0.0
  %2347 = vmatprep.subr.mxu0 0.0
  %2348 = vmatpush1.msra.mxu0 0.0
  %2349 = vmatprep.subr.mxu0 0.0
  %2350 = vmatpush1.msra.mxu0 0.0
  %2351 = vmatprep.subr.mxu0 0.0
  %2352 = vmatpush1.msra.mxu0 0.0
  %2353 = vmatprep.subr.mxu0 0.0
  %2354 = vmatpush1.msra.mxu0 0.0
  %2355 = vmatprep.subr.mxu0 0.0
  %2356 = vmatpush1.msra.mxu0 0.0
  %2357 = vmatprep.subr.mxu0 0.0
  %2358 = vmatpush1.msra.mxu0 0.0
  %2359 = vmatprep.subr.mxu0 0.0
  %2360 = vmatpush1.msra.mxu0 0.0
  %2361 = vmatprep.subr.mxu0 0.0
  %2362 = vmatpush1.msra.mxu0 0.0
  %2363 = vmatprep.subr.mxu0 0.0
  %2364 = vmatpush1.msra.mxu0 0.0
  %2365 = vmatprep.subr.mxu0 0.0
  %2366 = vmatpush1.msra.mxu0 0.0
  %2367 = vmatprep.subr.mxu0 0.0
  %2368 = vmatpush1.msra.mxu0 0.0
  %2369 = vmatprep.subr.mxu0 0.0
  %2370 = vmatpush1.msra.mxu0 0.0
  %2371 = vmatprep.subr.mxu0 0.0
  %2372 = vmatpush1.msra.mxu0 0.0
  %2373 = vmatprep.subr.mxu0 0.0
  %2374 = vmatpush1.msra.mxu0 0.0
  %2375 = vmatprep.subr.mxu0 0.0
  %2376 = vmatpush1.msra.mxu0 0.0
  %2377 = vmatprep.subr.mxu0 0.0
  %2378 = vmatpush1.msra.mxu0 0.0
  %2379 = vmatprep.subr.mxu0 0.0
  %2380 = vmatpush1.msra.mxu0 0.0
  %2381 = vmatprep.subr.mxu0 0.0
  %2382 = vmatpush1.msra.mxu0 0.0
  %2383 = vmatprep.subr.mxu0 0.0
  %2384 = vmatpush1.msra.mxu0 0.0
  %2385 = vmatprep.subr.mxu0 0.0
  %2386 = vmatpush1.msra.mxu0 0.0
  %2387 = vmatprep.subr.mxu0 0.0
  %2388 = vmatpush1.msra.mxu0 0.0
  %2389 = vmatprep.subr.mxu0 0.0
  %2390 = vmatpush1.msra.mxu0 0.0
  %2391 = vmatprep.mubr.f32.mxu0 0.0
  %2392 = vmatmul.mubr.f32.gmra.mrb[0].mxu0 %v2325
  %v2393 = vpop.f32.mrb[0].mxu0
  %v2394 = vadd.f32 %v2322, %v2393
  %v2395 = vpop.f32.mrb[0].mxu0
  %2396 = vdwg.mxu0
  %2398 = vrot.lane.b32.xlu0 %v2117, 96
  %v2399 = vpop.permute.xlu0 %2398
  %v2401 = vmul.f32 %v2117, %v2399
  %2403 = vrot.lane.b32.xlu0 %v2122, 96
  %v2404 = vpop.permute.xlu0 %2403
  %v2406 = vmul.f32 %v2122, %v2404
  %v2407 = vadd.f32 %v2401, %v2406
  %2409 = vrot.lane.b32.xlu0 %v2127, 96
  %v2410 = vpop.permute.xlu0 %2409
  %v2412 = vmul.f32 %v2127, %v2410
  %v2413 = vadd.f32 %v2407, %v2412
  %2415 = vrot.lane.b32.xlu0 %v2413, 32
  %v2416 = vpop.permute.xlu0 %2415
  %v2418 = vmul.f32 %v2394, %v2416
  %2420 = vrot.lane.b32.xlu0 %v2418, 96
  %v2421 = vpop.permute.xlu0 %2420
  %v2423 = vadd.f32 %v2394, %v2421
  %2424 = vrot.lane.b32.xlu0 %v2117, 64
  %v2425 = vpop.permute.xlu0 %2424
  %v2427 = vmul.f32 %v2394, %v2425
  %2428 = vrot.lane.b32.xlu0 %v2122, 64
  %v2429 = vpop.permute.xlu0 %2428
  %v2431 = vmul.f32 %v2394, %v2429
  %2432 = vrot.lane.b32.xlu0 %v2127, 64
  %v2433 = vpop.permute.xlu0 %2432
  %v2435 = vmul.f32 %v2394, %v2433
  %v2436 = vld [vmem:[%s55] sm:$0xff]
  %v2437 = vld [vmem:[%s55 + $0x8] sm:$0xff]
  %v2438 = vld [vmem:[%s55 + $0x10] sm:$0xff]
  %v2439 = vld [vmem:[%s55 + $0x18] sm:$0xff]
  %v2441 = vsel %vm828, %v2423, 0
  %2443 = vmatprep.subr.mxu0 0.0
  %2444 = vmatpush1.msra.mxu0 %v2436
  %2445 = vmatprep.subr.mxu0 0.0
  %2446 = vmatpush1.msra.mxu0 %v2437
  %2447 = vmatprep.subr.mxu0 0.0
  %2448 = vmatpush1.msra.mxu0 %v2438
  %2449 = vmatprep.subr.mxu0 0.0
  %2450 = vmatpush1.msra.mxu0 %v2439
  %2451 = vmatprep.subr.mxu0 0.0
  %2452 = vmatpush1.msra.mxu0 0.0
  %2453 = vmatprep.subr.mxu0 0.0
  %2454 = vmatpush1.msra.mxu0 0.0
  %2455 = vmatprep.subr.mxu0 0.0
  %2456 = vmatpush1.msra.mxu0 0.0
  %2457 = vmatprep.subr.mxu0 0.0
  %2458 = vmatpush1.msra.mxu0 0.0
  %2459 = vmatprep.subr.mxu0 0.0
  %2460 = vmatpush1.msra.mxu0 0.0
  %2461 = vmatprep.subr.mxu0 0.0
  %2462 = vmatpush1.msra.mxu0 0.0
  %2463 = vmatprep.subr.mxu0 0.0
  %2464 = vmatpush1.msra.mxu0 0.0
  %2465 = vmatprep.subr.mxu0 0.0
  %2466 = vmatpush1.msra.mxu0 0.0
  %2467 = vmatprep.subr.mxu0 0.0
  %2468 = vmatpush1.msra.mxu0 0.0
  %2469 = vmatprep.subr.mxu0 0.0
  %2470 = vmatpush1.msra.mxu0 0.0
  %2471 = vmatprep.subr.mxu0 0.0
  %2472 = vmatpush1.msra.mxu0 0.0
  %2473 = vmatprep.subr.mxu0 0.0
  %2474 = vmatpush1.msra.mxu0 0.0
  %2475 = vmatprep.subr.mxu0 0.0
  %2476 = vmatpush1.msra.mxu0 0.0
  %2477 = vmatprep.subr.mxu0 0.0
  %2478 = vmatpush1.msra.mxu0 0.0
  %2479 = vmatprep.subr.mxu0 0.0
  %2480 = vmatpush1.msra.mxu0 0.0
  %2481 = vmatprep.subr.mxu0 0.0
  %2482 = vmatpush1.msra.mxu0 0.0
  %2483 = vmatprep.subr.mxu0 0.0
  %2484 = vmatpush1.msra.mxu0 0.0
  %2485 = vmatprep.subr.mxu0 0.0
  %2486 = vmatpush1.msra.mxu0 0.0
  %2487 = vmatprep.subr.mxu0 0.0
  %2488 = vmatpush1.msra.mxu0 0.0
  %2489 = vmatprep.subr.mxu0 0.0
  %2490 = vmatpush1.msra.mxu0 0.0
  %2491 = vmatprep.subr.mxu0 0.0
  %2492 = vmatpush1.msra.mxu0 0.0
  %2493 = vmatprep.subr.mxu0 0.0
  %2494 = vmatpush1.msra.mxu0 0.0
  %2495 = vmatprep.subr.mxu0 0.0
  %2496 = vmatpush1.msra.mxu0 0.0
  %2497 = vmatprep.subr.mxu0 0.0
  %2498 = vmatpush1.msra.mxu0 0.0
  %2499 = vmatprep.subr.mxu0 0.0
  %2500 = vmatpush1.msra.mxu0 0.0
  %2501 = vmatprep.subr.mxu0 0.0
  %2502 = vmatpush1.msra.mxu0 0.0
  %2503 = vmatprep.subr.mxu0 0.0
  %2504 = vmatpush1.msra.mxu0 0.0
  %2505 = vmatprep.subr.mxu0 0.0
  %2506 = vmatpush1.msra.mxu0 0.0
  %2507 = vmatprep.mubr.f32.mxu0 0.0
  %2508 = vmatmul.mubr.f32.gmra.mrb[0].mxu0 %v2441
  %v2509 = vpop.f32.mrb[0].mxu0
  %v2510 = vadd.f32 0.0, %v2509
  %v2511 = vpop.f32.mrb[0].mxu0
  %2512 = vdwg.mxu0
  %v2513 = vld [vmem:[%s57] sm:$0xff]
  %v2514 = vld [vmem:[%s57 + $0x8] sm:$0xff]
  %v2515 = vld [vmem:[%s57 + $0x10] sm:$0xff]
  %v2516 = vld [vmem:[%s57 + $0x18] sm:$0xff]
  %2520 = vrot.lane.b32.xlu0 %v2427, 64
  %v2521 = vpop.permute.xlu0 %2520
  %2522 = vrot.lane.b32.xlu0 %v2431, 64
  %v2523 = vpop.permute.xlu0 %2522
  %2524 = vrot.lane.b32.xlu0 %v2435, 64
  %v2525 = vpop.permute.xlu0 %2524
  %v2526 = vsel %vm828, %v2521, 0
  %v2528 = vsel %vm828, %v2523, 0
  %v2530 = vsel %vm828, %v2525, 0
  %2532 = vmatprep.subr.mxu0 0.0
  %2533 = vmatpush1.msra.mxu0 %v2513
  %2534 = vmatprep.subr.mxu0 0.0
  %2535 = vmatpush1.msra.mxu0 %v2514
  %2536 = vmatprep.subr.mxu0 0.0
  %2537 = vmatpush1.msra.mxu0 %v2515
  %2538 = vmatprep.subr.mxu0 0.0
  %2539 = vmatpush1.msra.mxu0 %v2516
  %2540 = vmatprep.subr.mxu0 0.0
  %2541 = vmatpush1.msra.mxu0 0.0
  %2542 = vmatprep.subr.mxu0 0.0
  %2543 = vmatpush1.msra.mxu0 0.0
  %2544 = vmatprep.subr.mxu0 0.0
  %2545 = vmatpush1.msra.mxu0 0.0
  %2546 = vmatprep.subr.mxu0 0.0
  %2547 = vmatpush1.msra.mxu0 0.0
  %2548 = vmatprep.subr.mxu0 0.0
  %2549 = vmatpush1.msra.mxu0 0.0
  %2550 = vmatprep.subr.mxu0 0.0
  %2551 = vmatpush1.msra.mxu0 0.0
  %2552 = vmatprep.subr.mxu0 0.0
  %2553 = vmatpush1.msra.mxu0 0.0
  %2554 = vmatprep.subr.mxu0 0.0
  %2555 = vmatpush1.msra.mxu0 0.0
  %2556 = vmatprep.subr.mxu0 0.0
  %2557 = vmatpush1.msra.mxu0 0.0
  %2558 = vmatprep.subr.mxu0 0.0
  %2559 = vmatpush1.msra.mxu0 0.0
  %2560 = vmatprep.subr.mxu0 0.0
  %2561 = vmatpush1.msra.mxu0 0.0
  %2562 = vmatprep.subr.mxu0 0.0
  %2563 = vmatpush1.msra.mxu0 0.0
  %2564 = vmatprep.subr.mxu0 0.0
  %2565 = vmatpush1.msra.mxu0 0.0
  %2566 = vmatprep.subr.mxu0 0.0
  %2567 = vmatpush1.msra.mxu0 0.0
  %2568 = vmatprep.subr.mxu0 0.0
  %2569 = vmatpush1.msra.mxu0 0.0
  %2570 = vmatprep.subr.mxu0 0.0
  %2571 = vmatpush1.msra.mxu0 0.0
  %2572 = vmatprep.subr.mxu0 0.0
  %2573 = vmatpush1.msra.mxu0 0.0
  %2574 = vmatprep.subr.mxu0 0.0
  %2575 = vmatpush1.msra.mxu0 0.0
  %2576 = vmatprep.subr.mxu0 0.0
  %2577 = vmatpush1.msra.mxu0 0.0
  %2578 = vmatprep.subr.mxu0 0.0
  %2579 = vmatpush1.msra.mxu0 0.0
  %2580 = vmatprep.subr.mxu0 0.0
  %2581 = vmatpush1.msra.mxu0 0.0
  %2582 = vmatprep.subr.mxu0 0.0
  %2583 = vmatpush1.msra.mxu0 0.0
  %2584 = vmatprep.subr.mxu0 0.0
  %2585 = vmatpush1.msra.mxu0 0.0
  %2586 = vmatprep.subr.mxu0 0.0
  %2587 = vmatpush1.msra.mxu0 0.0
  %2588 = vmatprep.subr.mxu0 0.0
  %2589 = vmatpush1.msra.mxu0 0.0
  %2590 = vmatprep.subr.mxu0 0.0
  %2591 = vmatpush1.msra.mxu0 0.0
  %2592 = vmatprep.subr.mxu0 0.0
  %2593 = vmatpush1.msra.mxu0 0.0
  %2594 = vmatprep.subr.mxu0 0.0
  %2595 = vmatpush1.msra.mxu0 0.0
  %2596 = vmatprep.mubr.f32.mxu0 0.0
  %2597 = vmatmul.mubr.f32.gmra.mrb[0].mxu0 %v2526
  %v2598 = vpop.f32.mrb[0].mxu0
  %v2599 = vadd.f32 0.0, %v2598
  %v2600 = vpop.f32.mrb[0].mxu0
  %2601 = vmatprep.mubr.f32.mxu0 0.0
  %2602 = vmatmul.mubr.f32.gmra.mrb[0].mxu0 %v2528
  %v2603 = vpop.f32.mrb[0].mxu0
  %v2604 = vadd.f32 0.0, %v2603
  %v2605 = vpop.f32.mrb[0].mxu0
  %2606 = vmatprep.mubr.f32.mxu0 0.0
  %2607 = vmatmul.mubr.f32.gmra.mrb[0].mxu0 %v2530
  %v2608 = vpop.f32.mrb[0].mxu0
  %v2609 = vadd.f32 0.0, %v2608
  %v2610 = vpop.f32.mrb[0].mxu0
  %2611 = vdwg.mxu0
  %v2612 = vlaneseq
  %v2613 = vshrl.u32 %v2612, 7
  %v2614 = vsub.s32 %v424, %v2613
  %v2615 = vrot.slane %v779, %v2614
  %v2616 = vlaneseq
  %v2617 = vshrl.u32 %v2616, 7
  %v2618 = vsub.s32 %v424, %v2617
  %v2619 = vrot.slane %v784, %v2618
  %v2620 = vlaneseq
  %v2621 = vshrl.u32 %v2620, 7
  %v2622 = vsub.s32 %v424, %v2621
  %v2623 = vrot.slane %v789, %v2622
  %v2624 = vlaneseq
  %v2625 = vshrl.u32 %v2624, 7
  %v2626 = vsub.s32 %v424, %v2625
  %v2627 = vrot.slane %v794, %v2626
  %v2628 = vlaneseq
  %v2629 = vshrl.u32 %v2628, 7
  %v2630 = vsub.s32 %v424, %v2629
  %v2631 = vrot.slane %v799, %v2630
  %v2632 = vlaneseq
  %v2633 = vshrl.u32 %v2632, 7
  %v2634 = vsub.s32 %v424, %v2633
  %v2635 = vrot.slane %v804, %v2634
  %v2636 = vlaneseq
  %v2637 = vshrl.u32 %v2636, 7
  %v2638 = vsub.s32 %v424, %v2637
  %v2639 = vrot.slane %v809, %v2638
  %v2640 = vlaneseq
  %v2641 = vshrl.u32 %v2640, 7
  %v2642 = vsub.s32 %v424, %v2641
  %v2643 = vrot.slane %v814, %v2642
  %v2644 = vsel %vm1133, %v2619, %v2615
  %v2645 = vsel %vm1135, %v2623, %v2644
  %v2646 = vsel %vm1137, %v2627, %v2645
  %v2647 = vsel %vm1139, %v2631, %v2646
  %v2648 = vsel %vm1141, %v2635, %v2647
  %v2649 = vsel %vm1143, %v2639, %v2648
  %v2650 = vsel %vm1145, %v2643, %v2649
  %vm2651 = vcmask 64512
  %v2652 = vsel %vm2651, %v2650, 0
  %2654 = vmatprep.subr.mxu0 0.0
  %2655 = vmatpush1.msra.mxu0 %v2510
  %2656 = vmatprep.subr.mxu0 0.0
  %2657 = vmatpush1.msra.mxu0 0.0
  %2658 = vmatprep.subr.mxu0 0.0
  %2659 = vmatpush1.msra.mxu0 0.0
  %2660 = vmatprep.subr.mxu0 0.0
  %2661 = vmatpush1.msra.mxu0 0.0
  %2662 = vmatprep.subr.mxu0 0.0
  %2663 = vmatpush1.msra.mxu0 0.0
  %2664 = vmatprep.subr.mxu0 0.0
  %2665 = vmatpush1.msra.mxu0 0.0
  %2666 = vmatprep.subr.mxu0 0.0
  %2667 = vmatpush1.msra.mxu0 0.0
  %2668 = vmatprep.subr.mxu0 0.0
  %2669 = vmatpush1.msra.mxu0 0.0
  %2670 = vmatprep.subr.mxu0 0.0
  %2671 = vmatpush1.msra.mxu0 0.0
  %2672 = vmatprep.subr.mxu0 0.0
  %2673 = vmatpush1.msra.mxu0 0.0
  %2674 = vmatprep.subr.mxu0 0.0
  %2675 = vmatpush1.msra.mxu0 0.0
  %2676 = vmatprep.subr.mxu0 0.0
  %2677 = vmatpush1.msra.mxu0 0.0
  %2678 = vmatprep.subr.mxu0 0.0
  %2679 = vmatpush1.msra.mxu0 0.0
  %2680 = vmatprep.subr.mxu0 0.0
  %2681 = vmatpush1.msra.mxu0 0.0
  %2682 = vmatprep.subr.mxu0 0.0
  %2683 = vmatpush1.msra.mxu0 0.0
  %2684 = vmatprep.subr.mxu0 0.0
  %2685 = vmatpush1.msra.mxu0 0.0
  %2686 = vmatprep.subr.mxu0 0.0
  %2687 = vmatpush1.msra.mxu0 0.0
  %2688 = vmatprep.subr.mxu0 0.0
  %2689 = vmatpush1.msra.mxu0 0.0
  %2690 = vmatprep.subr.mxu0 0.0
  %2691 = vmatpush1.msra.mxu0 0.0
  %2692 = vmatprep.subr.mxu0 0.0
  %2693 = vmatpush1.msra.mxu0 0.0
  %2694 = vmatprep.subr.mxu0 0.0
  %2695 = vmatpush1.msra.mxu0 0.0
  %2696 = vmatprep.subr.mxu0 0.0
  %2697 = vmatpush1.msra.mxu0 0.0
  %2698 = vmatprep.subr.mxu0 0.0
  %2699 = vmatpush1.msra.mxu0 0.0
  %2700 = vmatprep.subr.mxu0 0.0
  %2701 = vmatpush1.msra.mxu0 0.0
  %2702 = vmatprep.subr.mxu0 0.0
  %2703 = vmatpush1.msra.mxu0 0.0
  %2704 = vmatprep.subr.mxu0 0.0
  %2705 = vmatpush1.msra.mxu0 0.0
  %2706 = vmatprep.subr.mxu0 0.0
  %2707 = vmatpush1.msra.mxu0 0.0
  %2708 = vmatprep.subr.mxu0 0.0
  %2709 = vmatpush1.msra.mxu0 0.0
  %2710 = vmatprep.subr.mxu0 0.0
  %2711 = vmatpush1.msra.mxu0 0.0
  %2712 = vmatprep.subr.mxu0 0.0
  %2713 = vmatpush1.msra.mxu0 0.0
  %2714 = vmatprep.subr.mxu0 0.0
  %2715 = vmatpush1.msra.mxu0 0.0
  %2716 = vmatprep.subr.mxu0 0.0
  %2717 = vmatpush1.msra.mxu0 0.0
  %2718 = vmatprep.mubr.f32.mxu0 0.0
  %2719 = vmatmul.mubr.f32.gmra.mrb[0].mxu0 %v2652
  %v2720 = vpop.f32.mrb[0].mxu0
  %v2721 = vadd.f32 0.0, %v2720
  %v2722 = vpop.f32.mrb[0].mxu0
  %2723 = vdwg.mxu0
  %2724 = vmatprep.subr.mxu0 0.0
  %2725 = vmatpush1.msra.mxu0 %v2599
  %2726 = vmatprep.subr.mxu0 0.0
  %2727 = vmatpush1.msra.mxu0 0.0
  %2728 = vmatprep.subr.mxu0 0.0
  %2729 = vmatpush1.msra.mxu0 0.0
  %2730 = vmatprep.subr.mxu0 0.0
  %2731 = vmatpush1.msra.mxu0 0.0
  %2732 = vmatprep.subr.mxu0 0.0
  %2733 = vmatpush1.msra.mxu0 0.0
  %2734 = vmatprep.subr.mxu0 0.0
  %2735 = vmatpush1.msra.mxu0 0.0
  %2736 = vmatprep.subr.mxu0 0.0
  %2737 = vmatpush1.msra.mxu0 0.0
  %2738 = vmatprep.subr.mxu0 0.0
  %2739 = vmatpush1.msra.mxu0 0.0
  %2740 = vmatprep.subr.mxu0 0.0
  %2741 = vmatpush1.msra.mxu0 0.0
  %2742 = vmatprep.subr.mxu0 0.0
  %2743 = vmatpush1.msra.mxu0 0.0
  %2744 = vmatprep.subr.mxu0 0.0
  %2745 = vmatpush1.msra.mxu0 0.0
  %2746 = vmatprep.subr.mxu0 0.0
  %2747 = vmatpush1.msra.mxu0 0.0
  %2748 = vmatprep.subr.mxu0 0.0
  %2749 = vmatpush1.msra.mxu0 0.0
  %2750 = vmatprep.subr.mxu0 0.0
  %2751 = vmatpush1.msra.mxu0 0.0
  %2752 = vmatprep.subr.mxu0 0.0
  %2753 = vmatpush1.msra.mxu0 0.0
  %2754 = vmatprep.subr.mxu0 0.0
  %2755 = vmatpush1.msra.mxu0 0.0
  %2756 = vmatprep.subr.mxu0 0.0
  %2757 = vmatpush1.msra.mxu0 0.0
  %2758 = vmatprep.subr.mxu0 0.0
  %2759 = vmatpush1.msra.mxu0 0.0
  %2760 = vmatprep.subr.mxu0 0.0
  %2761 = vmatpush1.msra.mxu0 0.0
  %2762 = vmatprep.subr.mxu0 0.0
  %2763 = vmatpush1.msra.mxu0 0.0
  %2764 = vmatprep.subr.mxu0 0.0
  %2765 = vmatpush1.msra.mxu0 0.0
  %2766 = vmatprep.subr.mxu0 0.0
  %2767 = vmatpush1.msra.mxu0 0.0
  %2768 = vmatprep.subr.mxu0 0.0
  %2769 = vmatpush1.msra.mxu0 0.0
  %2770 = vmatprep.subr.mxu0 0.0
  %2771 = vmatpush1.msra.mxu0 0.0
  %2772 = vmatprep.subr.mxu0 0.0
  %2773 = vmatpush1.msra.mxu0 0.0
  %2774 = vmatprep.subr.mxu0 0.0
  %2775 = vmatpush1.msra.mxu0 0.0
  %2776 = vmatprep.subr.mxu0 0.0
  %2777 = vmatpush1.msra.mxu0 0.0
  %2778 = vmatprep.subr.mxu0 0.0
  %2779 = vmatpush1.msra.mxu0 0.0
  %2780 = vmatprep.subr.mxu0 0.0
  %2781 = vmatpush1.msra.mxu0 0.0
  %2782 = vmatprep.subr.mxu0 0.0
  %2783 = vmatpush1.msra.mxu0 0.0
  %2784 = vmatprep.subr.mxu0 0.0
  %2785 = vmatpush1.msra.mxu0 0.0
  %2786 = vmatprep.subr.mxu0 0.0
  %2787 = vmatpush1.msra.mxu0 0.0
  %2788 = vmatprep.mubr.f32.mxu0 0.0
  %2789 = vmatmul.mubr.f32.gmra.mrb[0].mxu0 %v2652
  %v2790 = vpop.f32.mrb[0].mxu0
  %v2791 = vadd.f32 0.0, %v2790
  %v2792 = vpop.f32.mrb[0].mxu0
  %2793 = vdwg.mxu0
  %2794 = vmatprep.subr.mxu0 0.0
  %2795 = vmatpush1.msra.mxu0 %v2604
  %2796 = vmatprep.subr.mxu0 0.0
  %2797 = vmatpush1.msra.mxu0 0.0
  %2798 = vmatprep.subr.mxu0 0.0
  %2799 = vmatpush1.msra.mxu0 0.0
  %2800 = vmatprep.subr.mxu0 0.0
  %2801 = vmatpush1.msra.mxu0 0.0
  %2802 = vmatprep.subr.mxu0 0.0
  %2803 = vmatpush1.msra.mxu0 0.0
  %2804 = vmatprep.subr.mxu0 0.0
  %2805 = vmatpush1.msra.mxu0 0.0
  %2806 = vmatprep.subr.mxu0 0.0
  %2807 = vmatpush1.msra.mxu0 0.0
  %2808 = vmatprep.subr.mxu0 0.0
  %2809 = vmatpush1.msra.mxu0 0.0
  %2810 = vmatprep.subr.mxu0 0.0
  %2811 = vmatpush1.msra.mxu0 0.0
  %2812 = vmatprep.subr.mxu0 0.0
  %2813 = vmatpush1.msra.mxu0 0.0
  %2814 = vmatprep.subr.mxu0 0.0
  %2815 = vmatpush1.msra.mxu0 0.0
  %2816 = vmatprep.subr.mxu0 0.0
  %2817 = vmatpush1.msra.mxu0 0.0
  %2818 = vmatprep.subr.mxu0 0.0
  %2819 = vmatpush1.msra.mxu0 0.0
  %2820 = vmatprep.subr.mxu0 0.0
  %2821 = vmatpush1.msra.mxu0 0.0
  %2822 = vmatprep.subr.mxu0 0.0
  %2823 = vmatpush1.msra.mxu0 0.0
  %2824 = vmatprep.subr.mxu0 0.0
  %2825 = vmatpush1.msra.mxu0 0.0
  %2826 = vmatprep.subr.mxu0 0.0
  %2827 = vmatpush1.msra.mxu0 0.0
  %2828 = vmatprep.subr.mxu0 0.0
  %2829 = vmatpush1.msra.mxu0 0.0
  %2830 = vmatprep.subr.mxu0 0.0
  %2831 = vmatpush1.msra.mxu0 0.0
  %2832 = vmatprep.subr.mxu0 0.0
  %2833 = vmatpush1.msra.mxu0 0.0
  %2834 = vmatprep.subr.mxu0 0.0
  %2835 = vmatpush1.msra.mxu0 0.0
  %2836 = vmatprep.subr.mxu0 0.0
  %2837 = vmatpush1.msra.mxu0 0.0
  %2838 = vmatprep.subr.mxu0 0.0
  %2839 = vmatpush1.msra.mxu0 0.0
  %2840 = vmatprep.subr.mxu0 0.0
  %2841 = vmatpush1.msra.mxu0 0.0
  %2842 = vmatprep.subr.mxu0 0.0
  %2843 = vmatpush1.msra.mxu0 0.0
  %2844 = vmatprep.subr.mxu0 0.0
  %2845 = vmatpush1.msra.mxu0 0.0
  %2846 = vmatprep.subr.mxu0 0.0
  %2847 = vmatpush1.msra.mxu0 0.0
  %2848 = vmatprep.subr.mxu0 0.0
  %2849 = vmatpush1.msra.mxu0 0.0
  %2850 = vmatprep.subr.mxu0 0.0
  %2851 = vmatpush1.msra.mxu0 0.0
  %2852 = vmatprep.subr.mxu0 0.0
  %2853 = vmatpush1.msra.mxu0 0.0
  %2854 = vmatprep.subr.mxu0 0.0
  %2855 = vmatpush1.msra.mxu0 0.0
  %2856 = vmatprep.subr.mxu0 0.0
  %2857 = vmatpush1.msra.mxu0 0.0
  %2858 = vmatprep.mubr.f32.mxu0 0.0
  %2859 = vmatmul.mubr.f32.gmra.mrb[0].mxu0 %v2652
  %v2860 = vpop.f32.mrb[0].mxu0
  %v2861 = vadd.f32 0.0, %v2860
  %v2862 = vpop.f32.mrb[0].mxu0
  %2863 = vdwg.mxu0
  %2864 = vmatprep.subr.mxu0 0.0
  %2865 = vmatpush1.msra.mxu0 %v2609
  %2866 = vmatprep.subr.mxu0 0.0
  %2867 = vmatpush1.msra.mxu0 0.0
  %2868 = vmatprep.subr.mxu0 0.0
  %2869 = vmatpush1.msra.mxu0 0.0
  %2870 = vmatprep.subr.mxu0 0.0
  %2871 = vmatpush1.msra.mxu0 0.0
  %2872 = vmatprep.subr.mxu0 0.0
  %2873 = vmatpush1.msra.mxu0 0.0
  %2874 = vmatprep.subr.mxu0 0.0
  %2875 = vmatpush1.msra.mxu0 0.0
  %2876 = vmatprep.subr.mxu0 0.0
  %2877 = vmatpush1.msra.mxu0 0.0
  %2878 = vmatprep.subr.mxu0 0.0
  %2879 = vmatpush1.msra.mxu0 0.0
  %2880 = vmatprep.subr.mxu0 0.0
  %2881 = vmatpush1.msra.mxu0 0.0
  %2882 = vmatprep.subr.mxu0 0.0
  %2883 = vmatpush1.msra.mxu0 0.0
  %2884 = vmatprep.subr.mxu0 0.0
  %2885 = vmatpush1.msra.mxu0 0.0
  %2886 = vmatprep.subr.mxu0 0.0
  %2887 = vmatpush1.msra.mxu0 0.0
  %2888 = vmatprep.subr.mxu0 0.0
  %2889 = vmatpush1.msra.mxu0 0.0
  %2890 = vmatprep.subr.mxu0 0.0
  %2891 = vmatpush1.msra.mxu0 0.0
  %2892 = vmatprep.subr.mxu0 0.0
  %2893 = vmatpush1.msra.mxu0 0.0
  %2894 = vmatprep.subr.mxu0 0.0
  %2895 = vmatpush1.msra.mxu0 0.0
  %2896 = vmatprep.subr.mxu0 0.0
  %2897 = vmatpush1.msra.mxu0 0.0
  %2898 = vmatprep.subr.mxu0 0.0
  %2899 = vmatpush1.msra.mxu0 0.0
  %2900 = vmatprep.subr.mxu0 0.0
  %2901 = vmatpush1.msra.mxu0 0.0
  %2902 = vmatprep.subr.mxu0 0.0
  %2903 = vmatpush1.msra.mxu0 0.0
  %2904 = vmatprep.subr.mxu0 0.0
  %2905 = vmatpush1.msra.mxu0 0.0
  %2906 = vmatprep.subr.mxu0 0.0
  %2907 = vmatpush1.msra.mxu0 0.0
  %2908 = vmatprep.subr.mxu0 0.0
  %2909 = vmatpush1.msra.mxu0 0.0
  %2910 = vmatprep.subr.mxu0 0.0
  %2911 = vmatpush1.msra.mxu0 0.0
  %2912 = vmatprep.subr.mxu0 0.0
  %2913 = vmatpush1.msra.mxu0 0.0
  %2914 = vmatprep.subr.mxu0 0.0
  %2915 = vmatpush1.msra.mxu0 0.0
  %2916 = vmatprep.subr.mxu0 0.0
  %2917 = vmatpush1.msra.mxu0 0.0
  %2918 = vmatprep.subr.mxu0 0.0
  %2919 = vmatpush1.msra.mxu0 0.0
  %2920 = vmatprep.subr.mxu0 0.0
  %2921 = vmatpush1.msra.mxu0 0.0
  %2922 = vmatprep.subr.mxu0 0.0
  %2923 = vmatpush1.msra.mxu0 0.0
  %2924 = vmatprep.subr.mxu0 0.0
  %2925 = vmatpush1.msra.mxu0 0.0
  %2926 = vmatprep.subr.mxu0 0.0
  %2927 = vmatpush1.msra.mxu0 0.0
  %2928 = vmatprep.mubr.f32.mxu0 0.0
  %2929 = vmatmul.mubr.f32.gmra.mrb[0].mxu0 %v2652
  %v2930 = vpop.f32.mrb[0].mxu0
  %v2931 = vadd.f32 0.0, %v2930
  %v2932 = vpop.f32.mrb[0].mxu0
  %2933 = vdwg.mxu0
  %v2934 = vsub.f32 0.0, %v2721
  %v2935 = vmul.f32 %v2934, 1.442695
  %v2936 = vpow.pop %v2935
  %v2937 = vadd.f32 %v2936, 1.0
  %v2938 = vrcp.pop %v2937
  %v2939 = vmul.f32 %v2721, %v2938
  %v2940 = vld [vmem:[%s59] sm:$0xff]
  %v2941 = vld [vmem:[%s59 + $0x8] sm:$0xff]
  %v2943 = vsel %vm598, %v2939, 0
  %2945 = vmatprep.subr.mxu0 0.0
  %2946 = vmatpush1.msra.mxu0 %v2940
  %2947 = vmatprep.subr.mxu0 0.0
  %2948 = vmatpush1.msra.mxu0 %v2941
  %2949 = vmatprep.subr.mxu0 0.0
  %2950 = vmatpush1.msra.mxu0 0.0
  %2951 = vmatprep.subr.mxu0 0.0
  %2952 = vmatpush1.msra.mxu0 0.0
  %2953 = vmatprep.subr.mxu0 0.0
  %2954 = vmatpush1.msra.mxu0 0.0
  %2955 = vmatprep.subr.mxu0 0.0
  %2956 = vmatpush1.msra.mxu0 0.0
  %2957 = vmatprep.subr.mxu0 0.0
  %2958 = vmatpush1.msra.mxu0 0.0
  %2959 = vmatprep.subr.mxu0 0.0
  %2960 = vmatpush1.msra.mxu0 0.0
  %2961 = vmatprep.subr.mxu0 0.0
  %2962 = vmatpush1.msra.mxu0 0.0
  %2963 = vmatprep.subr.mxu0 0.0
  %2964 = vmatpush1.msra.mxu0 0.0
  %2965 = vmatprep.subr.mxu0 0.0
  %2966 = vmatpush1.msra.mxu0 0.0
  %2967 = vmatprep.subr.mxu0 0.0
  %2968 = vmatpush1.msra.mxu0 0.0
  %2969 = vmatprep.subr.mxu0 0.0
  %2970 = vmatpush1.msra.mxu0 0.0
  %2971 = vmatprep.subr.mxu0 0.0
  %2972 = vmatpush1.msra.mxu0 0.0
  %2973 = vmatprep.subr.mxu0 0.0
  %2974 = vmatpush1.msra.mxu0 0.0
  %2975 = vmatprep.subr.mxu0 0.0
  %2976 = vmatpush1.msra.mxu0 0.0
  %2977 = vmatprep.subr.mxu0 0.0
  %2978 = vmatpush1.msra.mxu0 0.0
  %2979 = vmatprep.subr.mxu0 0.0
  %2980 = vmatpush1.msra.mxu0 0.0
  %2981 = vmatprep.subr.mxu0 0.0
  %2982 = vmatpush1.msra.mxu0 0.0
  %2983 = vmatprep.subr.mxu0 0.0
  %2984 = vmatpush1.msra.mxu0 0.0
  %2985 = vmatprep.subr.mxu0 0.0
  %2986 = vmatpush1.msra.mxu0 0.0
  %2987 = vmatprep.subr.mxu0 0.0
  %2988 = vmatpush1.msra.mxu0 0.0
  %2989 = vmatprep.subr.mxu0 0.0
  %2990 = vmatpush1.msra.mxu0 0.0
  %2991 = vmatprep.subr.mxu0 0.0
  %2992 = vmatpush1.msra.mxu0 0.0
  %2993 = vmatprep.subr.mxu0 0.0
  %2994 = vmatpush1.msra.mxu0 0.0
  %2995 = vmatprep.subr.mxu0 0.0
  %2996 = vmatpush1.msra.mxu0 0.0
  %2997 = vmatprep.subr.mxu0 0.0
  %2998 = vmatpush1.msra.mxu0 0.0
  %2999 = vmatprep.subr.mxu0 0.0
  %3000 = vmatpush1.msra.mxu0 0.0
  %3001 = vmatprep.subr.mxu0 0.0
  %3002 = vmatpush1.msra.mxu0 0.0
  %3003 = vmatprep.subr.mxu0 0.0
  %3004 = vmatpush1.msra.mxu0 0.0
  %3005 = vmatprep.subr.mxu0 0.0
  %3006 = vmatpush1.msra.mxu0 0.0
  %3007 = vmatprep.subr.mxu0 0.0
  %3008 = vmatpush1.msra.mxu0 0.0
  %3009 = vmatprep.mubr.f32.mxu0 0.0
  %3010 = vmatmul.mubr.f32.gmra.mrb[0].mxu0 %v2943
  %v3011 = vpop.f32.mrb[0].mxu0
  %v3012 = vadd.f32 0.0, %v3011
  %v3013 = vpop.f32.mrb[0].mxu0
  %3014 = vdwg.mxu0
  %v3015 = vadd.f32 %v2033, %v3012
  %v3016 = vld [vmem:[%s61] sm:$0xff]
  %v3017 = vld [vmem:[%s61 + $0x8] sm:$0xff]
  %v3019 = vsel %vm598, %v2791, 0
  %v3022 = vsel %vm598, %v2861, 0
  %v3025 = vsel %vm598, %v2931, 0
  %3027 = vmatprep.subr.mxu0 0.0
  %3028 = vmatpush1.msra.mxu0 %v3016
  %3029 = vmatprep.subr.mxu0 0.0
  %3030 = vmatpush1.msra.mxu0 %v3017
  %3031 = vmatprep.subr.mxu0 0.0
  %3032 = vmatpush1.msra.mxu0 0.0
  %3033 = vmatprep.subr.mxu0 0.0
  %3034 = vmatpush1.msra.mxu0 0.0
  %3035 = vmatprep.subr.mxu0 0.0
  %3036 = vmatpush1.msra.mxu0 0.0
  %3037 = vmatprep.subr.mxu0 0.0
  %3038 = vmatpush1.msra.mxu0 0.0
  %3039 = vmatprep.subr.mxu0 0.0
  %3040 = vmatpush1.msra.mxu0 0.0
  %3041 = vmatprep.subr.mxu0 0.0
  %3042 = vmatpush1.msra.mxu0 0.0
  %3043 = vmatprep.subr.mxu0 0.0
  %3044 = vmatpush1.msra.mxu0 0.0
  %3045 = vmatprep.subr.mxu0 0.0
  %3046 = vmatpush1.msra.mxu0 0.0
  %3047 = vmatprep.subr.mxu0 0.0
  %3048 = vmatpush1.msra.mxu0 0.0
  %3049 = vmatprep.subr.mxu0 0.0
  %3050 = vmatpush1.msra.mxu0 0.0
  %3051 = vmatprep.subr.mxu0 0.0
  %3052 = vmatpush1.msra.mxu0 0.0
  %3053 = vmatprep.subr.mxu0 0.0
  %3054 = vmatpush1.msra.mxu0 0.0
  %3055 = vmatprep.subr.mxu0 0.0
  %3056 = vmatpush1.msra.mxu0 0.0
  %3057 = vmatprep.subr.mxu0 0.0
  %3058 = vmatpush1.msra.mxu0 0.0
  %3059 = vmatprep.subr.mxu0 0.0
  %3060 = vmatpush1.msra.mxu0 0.0
  %3061 = vmatprep.subr.mxu0 0.0
  %3062 = vmatpush1.msra.mxu0 0.0
  %3063 = vmatprep.subr.mxu0 0.0
  %3064 = vmatpush1.msra.mxu0 0.0
  %3065 = vmatprep.subr.mxu0 0.0
  %3066 = vmatpush1.msra.mxu0 0.0
  %3067 = vmatprep.subr.mxu0 0.0
  %3068 = vmatpush1.msra.mxu0 0.0
  %3069 = vmatprep.subr.mxu0 0.0
  %3070 = vmatpush1.msra.mxu0 0.0
  %3071 = vmatprep.subr.mxu0 0.0
  %3072 = vmatpush1.msra.mxu0 0.0
  %3073 = vmatprep.subr.mxu0 0.0
  %3074 = vmatpush1.msra.mxu0 0.0
  %3075 = vmatprep.subr.mxu0 0.0
  %3076 = vmatpush1.msra.mxu0 0.0
  %3077 = vmatprep.subr.mxu0 0.0
  %3078 = vmatpush1.msra.mxu0 0.0
  %3079 = vmatprep.subr.mxu0 0.0
  %3080 = vmatpush1.msra.mxu0 0.0
  %3081 = vmatprep.subr.mxu0 0.0
  %3082 = vmatpush1.msra.mxu0 0.0
  %3083 = vmatprep.subr.mxu0 0.0
  %3084 = vmatpush1.msra.mxu0 0.0
  %3085 = vmatprep.subr.mxu0 0.0
  %3086 = vmatpush1.msra.mxu0 0.0
  %3087 = vmatprep.subr.mxu0 0.0
  %3088 = vmatpush1.msra.mxu0 0.0
  %3089 = vmatprep.subr.mxu0 0.0
  %3090 = vmatpush1.msra.mxu0 0.0
  %3091 = vmatprep.mubr.f32.mxu0 0.0
  %3092 = vmatmul.mubr.f32.gmra.mrb[0].mxu0 %v3019
  %v3093 = vpop.f32.mrb[0].mxu0
  %v3094 = vadd.f32 0.0, %v3093
  %v3095 = vpop.f32.mrb[0].mxu0
  %3096 = vmatprep.mubr.f32.mxu0 0.0
  %3097 = vmatmul.mubr.f32.gmra.mrb[0].mxu0 %v3022
  %v3098 = vpop.f32.mrb[0].mxu0
  %v3099 = vadd.f32 0.0, %v3098
  %v3100 = vpop.f32.mrb[0].mxu0
  %3101 = vmatprep.mubr.f32.mxu0 0.0
  %3102 = vmatmul.mubr.f32.gmra.mrb[0].mxu0 %v3025
  %v3103 = vpop.f32.mrb[0].mxu0
  %v3104 = vadd.f32 0.0, %v3103
  %v3105 = vpop.f32.mrb[0].mxu0
  %3106 = vdwg.mxu0
  %v3107 = vadd.f32 %v2034, %v3094
  %v3108 = vadd.f32 %v2035, %v3099
  %v3109 = vadd.f32 %v2036, %v3104
  %v3110 = vld [vmem:[%s63] sm:$0xff]
  %v3111 = vld [vmem:[%s63 + $0x8] sm:$0xff]
  %v3112 = vld [vmem:[%s63 + $0x10] sm:$0xff]
  %v3113 = vld [vmem:[%s63 + $0x18] sm:$0xff]
  %3114 = vmatprep.subr.mxu0 0.0
  %3115 = vmatpush1.msra.mxu0 %v3110
  %3116 = vmatprep.subr.mxu0 0.0
  %3117 = vmatpush1.msra.mxu0 %v3111
  %3118 = vmatprep.subr.mxu0 0.0
  %3119 = vmatpush1.msra.mxu0 %v3112
  %3120 = vmatprep.subr.mxu0 0.0
  %3121 = vmatpush1.msra.mxu0 %v3113
  %3122 = vmatprep.subr.mxu0 0.0
  %3123 = vmatpush1.msra.mxu0 0.0
  %3124 = vmatprep.subr.mxu0 0.0
  %3125 = vmatpush1.msra.mxu0 0.0
  %3126 = vmatprep.subr.mxu0 0.0
  %3127 = vmatpush1.msra.mxu0 0.0
  %3128 = vmatprep.subr.mxu0 0.0
  %3129 = vmatpush1.msra.mxu0 0.0
  %3130 = vmatprep.subr.mxu0 0.0
  %3131 = vmatpush1.msra.mxu0 0.0
  %3132 = vmatprep.subr.mxu0 0.0
  %3133 = vmatpush1.msra.mxu0 0.0
  %3134 = vmatprep.subr.mxu0 0.0
  %3135 = vmatpush1.msra.mxu0 0.0
  %3136 = vmatprep.subr.mxu0 0.0
  %3137 = vmatpush1.msra.mxu0 0.0
  %3138 = vmatprep.subr.mxu0 0.0
  %3139 = vmatpush1.msra.mxu0 0.0
  %3140 = vmatprep.subr.mxu0 0.0
  %3141 = vmatpush1.msra.mxu0 0.0
  %3142 = vmatprep.subr.mxu0 0.0
  %3143 = vmatpush1.msra.mxu0 0.0
  %3144 = vmatprep.subr.mxu0 0.0
  %3145 = vmatpush1.msra.mxu0 0.0
  %3146 = vmatprep.subr.mxu0 0.0
  %3147 = vmatpush1.msra.mxu0 0.0
  %3148 = vmatprep.subr.mxu0 0.0
  %3149 = vmatpush1.msra.mxu0 0.0
  %3150 = vmatprep.subr.mxu0 0.0
  %3151 = vmatpush1.msra.mxu0 0.0
  %3152 = vmatprep.subr.mxu0 0.0
  %3153 = vmatpush1.msra.mxu0 0.0
  %3154 = vmatprep.subr.mxu0 0.0
  %3155 = vmatpush1.msra.mxu0 0.0
  %3156 = vmatprep.subr.mxu0 0.0
  %3157 = vmatpush1.msra.mxu0 0.0
  %3158 = vmatprep.subr.mxu0 0.0
  %3159 = vmatpush1.msra.mxu0 0.0
  %3160 = vmatprep.subr.mxu0 0.0
  %3161 = vmatpush1.msra.mxu0 0.0
  %3162 = vmatprep.subr.mxu0 0.0
  %3163 = vmatpush1.msra.mxu0 0.0
  %3164 = vmatprep.subr.mxu0 0.0
  %3165 = vmatpush1.msra.mxu0 0.0
  %3166 = vmatprep.subr.mxu0 0.0
  %3167 = vmatpush1.msra.mxu0 0.0
  %3168 = vmatprep.subr.mxu0 0.0
  %3169 = vmatpush1.msra.mxu0 0.0
  %3170 = vmatprep.subr.mxu0 0.0
  %3171 = vmatpush1.msra.mxu0 0.0
  %3172 = vmatprep.subr.mxu0 0.0
  %3173 = vmatpush1.msra.mxu0 0.0
  %3174 = vmatprep.subr.mxu0 0.0
  %3175 = vmatpush1.msra.mxu0 0.0
  %3176 = vmatprep.subr.mxu0 0.0
  %3177 = vmatpush1.msra.mxu0 0.0
  %3178 = vmatprep.mubr.f32.mxu0 0.0
  %3179 = vmatmul.mubr.f32.gmra.mrb[0].mxu0 %v2526
  %v3180 = vpop.f32.mrb[0].mxu0
  %v3181 = vadd.f32 0.0, %v3180
  %v3182 = vpop.f32.mrb[0].mxu0
  %3183 = vmatprep.mubr.f32.mxu0 0.0
  %3184 = vmatmul.mubr.f32.gmra.mrb[0].mxu0 %v2528
  %v3185 = vpop.f32.mrb[0].mxu0
  %v3186 = vadd.f32 0.0, %v3185
  %v3187 = vpop.f32.mrb[0].mxu0
  %3188 = vmatprep.mubr.f32.mxu0 0.0
  %3189 = vmatmul.mubr.f32.gmra.mrb[0].mxu0 %v2530
  %v3190 = vpop.f32.mrb[0].mxu0
  %v3191 = vadd.f32 0.0, %v3190
  %v3192 = vpop.f32.mrb[0].mxu0
  %3193 = vdwg.mxu0
  %v3194 = vld [vmem:[%s65] sm:$0xff]
  %v3195 = vld [vmem:[%s65 + $0x8] sm:$0xff]
  %v3196 = vld [vmem:[%s65 + $0x10] sm:$0xff]
  %v3197 = vld [vmem:[%s65 + $0x18] sm:$0xff]
  %v3199 = vsel %vm828, %v3015, 0
  %3201 = vmatprep.subr.mxu0 0.0
  %3202 = vmatpush1.msra.mxu0 %v3194
  %3203 = vmatprep.subr.mxu0 0.0
  %3204 = vmatpush1.msra.mxu0 %v3195
  %3205 = vmatprep.subr.mxu0 0.0
  %3206 = vmatpush1.msra.mxu0 %v3196
  %3207 = vmatprep.subr.mxu0 0.0
  %3208 = vmatpush1.msra.mxu0 %v3197
  %3209 = vmatprep.subr.mxu0 0.0
  %3210 = vmatpush1.msra.mxu0 0.0
  %3211 = vmatprep.subr.mxu0 0.0
  %3212 = vmatpush1.msra.mxu0 0.0
  %3213 = vmatprep.subr.mxu0 0.0
  %3214 = vmatpush1.msra.mxu0 0.0
  %3215 = vmatprep.subr.mxu0 0.0
  %3216 = vmatpush1.msra.mxu0 0.0
  %3217 = vmatprep.subr.mxu0 0.0
  %3218 = vmatpush1.msra.mxu0 0.0
  %3219 = vmatprep.subr.mxu0 0.0
  %3220 = vmatpush1.msra.mxu0 0.0
  %3221 = vmatprep.subr.mxu0 0.0
  %3222 = vmatpush1.msra.mxu0 0.0
  %3223 = vmatprep.subr.mxu0 0.0
  %3224 = vmatpush1.msra.mxu0 0.0
  %3225 = vmatprep.subr.mxu0 0.0
  %3226 = vmatpush1.msra.mxu0 0.0
  %3227 = vmatprep.subr.mxu0 0.0
  %3228 = vmatpush1.msra.mxu0 0.0
  %3229 = vmatprep.subr.mxu0 0.0
  %3230 = vmatpush1.msra.mxu0 0.0
  %3231 = vmatprep.subr.mxu0 0.0
  %3232 = vmatpush1.msra.mxu0 0.0
  %3233 = vmatprep.subr.mxu0 0.0
  %3234 = vmatpush1.msra.mxu0 0.0
  %3235 = vmatprep.subr.mxu0 0.0
  %3236 = vmatpush1.msra.mxu0 0.0
  %3237 = vmatprep.subr.mxu0 0.0
  %3238 = vmatpush1.msra.mxu0 0.0
  %3239 = vmatprep.subr.mxu0 0.0
  %3240 = vmatpush1.msra.mxu0 0.0
  %3241 = vmatprep.subr.mxu0 0.0
  %3242 = vmatpush1.msra.mxu0 0.0
  %3243 = vmatprep.subr.mxu0 0.0
  %3244 = vmatpush1.msra.mxu0 0.0
  %3245 = vmatprep.subr.mxu0 0.0
  %3246 = vmatpush1.msra.mxu0 0.0
  %3247 = vmatprep.subr.mxu0 0.0
  %3248 = vmatpush1.msra.mxu0 0.0
  %3249 = vmatprep.subr.mxu0 0.0
  %3250 = vmatpush1.msra.mxu0 0.0
  %3251 = vmatprep.subr.mxu0 0.0
  %3252 = vmatpush1.msra.mxu0 0.0
  %3253 = vmatprep.subr.mxu0 0.0
  %3254 = vmatpush1.msra.mxu0 0.0
  %3255 = vmatprep.subr.mxu0 0.0
  %3256 = vmatpush1.msra.mxu0 0.0
  %3257 = vmatprep.subr.mxu0 0.0
  %3258 = vmatpush1.msra.mxu0 0.0
  %3259 = vmatprep.subr.mxu0 0.0
  %3260 = vmatpush1.msra.mxu0 0.0
  %3261 = vmatprep.subr.mxu0 0.0
  %3262 = vmatpush1.msra.mxu0 0.0
  %3263 = vmatprep.subr.mxu0 0.0
  %3264 = vmatpush1.msra.mxu0 0.0
  %3265 = vmatprep.mubr.f32.mxu0 0.0
  %3266 = vmatmul.mubr.f32.gmra.mrb[0].mxu0 %v3199
  %v3267 = vpop.f32.mrb[0].mxu0
  %v3268 = vadd.f32 0.0, %v3267
  %v3269 = vpop.f32.mrb[0].mxu0
  %3270 = vdwg.mxu0
  %v3271 = vmul.f32 %v1550, %v3181
  %v3272 = vmul.f32 %v1555, %v3181
  %v3273 = vmul.f32 %v1560, %v3181
  %v3274 = vmul.f32 %v1565, %v3181
  %v3275 = vmul.f32 %v1570, %v3181
  %v3276 = vmul.f32 %v1575, %v3181
  %v3277 = vmul.f32 %v1580, %v3181
  %v3278 = vmul.f32 %v1585, %v3181
  %v3279 = vmul.f32 %v1758, %v3186
  %v3280 = vmul.f32 %v1762, %v3186
  %v3281 = vmul.f32 %v1766, %v3186
  %v3282 = vmul.f32 %v1770, %v3186
  %v3283 = vmul.f32 %v1774, %v3186
  %v3284 = vmul.f32 %v1778, %v3186
  %v3285 = vmul.f32 %v1782, %v3186
  %v3286 = vmul.f32 %v1786, %v3186
  %v3287 = vadd.f32 %v3271, %v3279
  %v3288 = vadd.f32 %v3272, %v3280
  %v3289 = vadd.f32 %v3273, %v3281
  %v3290 = vadd.f32 %v3274, %v3282
  %v3291 = vadd.f32 %v3275, %v3283
  %v3292 = vadd.f32 %v3276, %v3284
  %v3293 = vadd.f32 %v3277, %v3285
  %v3294 = vadd.f32 %v3278, %v3286
  %v3295 = vmul.f32 %v1862, %v3191
  %v3296 = vmul.f32 %v1866, %v3191
  %v3297 = vmul.f32 %v1870, %v3191
  %v3298 = vmul.f32 %v1874, %v3191
  %v3299 = vmul.f32 %v1878, %v3191
  %v3300 = vmul.f32 %v1882, %v3191
  %v3301 = vmul.f32 %v1886, %v3191
  %v3302 = vmul.f32 %v1890, %v3191
  %v3303 = vadd.f32 %v3287, %v3295
  %v3304 = vadd.f32 %v3288, %v3296
  %v3305 = vadd.f32 %v3289, %v3297
  %v3306 = vadd.f32 %v3290, %v3298
  %v3307 = vadd.f32 %v3291, %v3299
  %v3308 = vadd.f32 %v3292, %v3300
  %v3309 = vadd.f32 %v3293, %v3301
  %v3310 = vadd.f32 %v3294, %v3302
  %3319 = vrot.lane.b32.xlu0 %v3303, 64
  %v3320 = vpop.permute.xlu0 %3319
  %3321 = vrot.lane.b32.xlu0 %v3304, 64
  %v3322 = vpop.permute.xlu0 %3321
  %3323 = vrot.lane.b32.xlu0 %v3305, 64
  %v3324 = vpop.permute.xlu0 %3323
  %3325 = vrot.lane.b32.xlu0 %v3306, 64
  %v3326 = vpop.permute.xlu0 %3325
  %3327 = vrot.lane.b32.xlu0 %v3307, 64
  %v3328 = vpop.permute.xlu0 %3327
  %3329 = vrot.lane.b32.xlu0 %v3308, 64
  %v3330 = vpop.permute.xlu0 %3329
  %3331 = vrot.lane.b32.xlu0 %v3309, 64
  %v3332 = vpop.permute.xlu0 %3331
  %3333 = vrot.lane.b32.xlu0 %v3310, 64
  %v3334 = vpop.permute.xlu0 %3333
  %v3343 = vmul.f32 %v816, %v3320
  %v3344 = vmul.f32 %v817, %v3322
  %v3345 = vmul.f32 %v818, %v3324
  %v3346 = vmul.f32 %v819, %v3326
  %v3347 = vmul.f32 %v820, %v3328
  %v3348 = vmul.f32 %v821, %v3330
  %v3349 = vmul.f32 %v822, %v3332
  %v3350 = vmul.f32 %v823, %v3334
  %vm3351 = vcmask 654848
  %v3352 = vsel %vm3351, %v3343, 0.0
  %v3353 = vrot.slane %v3352, 4
  %v3354 = vadd.f32 %v3352, %v3353
  %v3355 = vrot.slane %v3354, 2
  %v3356 = vadd.f32 %v3354, %v3355
  %v3357 = vrot.slane %v3356, 1
  %v3358 = vadd.f32 %v3356, %v3357
  %v3359 = vsel %vm3351, %v3344, 0.0
  %v3360 = vrot.slane %v3359, 4
  %v3361 = vadd.f32 %v3359, %v3360
  %v3362 = vrot.slane %v3361, 2
  %v3363 = vadd.f32 %v3361, %v3362
  %v3364 = vrot.slane %v3363, 1
  %v3365 = vadd.f32 %v3363, %v3364
  %v3366 = vsel %vm3351, %v3345, 0.0
  %v3367 = vrot.slane %v3366, 4
  %v3368 = vadd.f32 %v3366, %v3367
  %v3369 = vrot.slane %v3368, 2
  %v3370 = vadd.f32 %v3368, %v3369
  %v3371 = vrot.slane %v3370, 1
  %v3372 = vadd.f32 %v3370, %v3371
  %v3373 = vsel %vm3351, %v3346, 0.0
  %v3374 = vrot.slane %v3373, 4
  %v3375 = vadd.f32 %v3373, %v3374
  %v3376 = vrot.slane %v3375, 2
  %v3377 = vadd.f32 %v3375, %v3376
  %v3378 = vrot.slane %v3377, 1
  %v3379 = vadd.f32 %v3377, %v3378
  %v3380 = vsel %vm3351, %v3347, 0.0
  %v3381 = vrot.slane %v3380, 4
  %v3382 = vadd.f32 %v3380, %v3381
  %v3383 = vrot.slane %v3382, 2
  %v3384 = vadd.f32 %v3382, %v3383
  %v3385 = vrot.slane %v3384, 1
  %v3386 = vadd.f32 %v3384, %v3385
  %v3387 = vsel %vm3351, %v3348, 0.0
  %v3388 = vrot.slane %v3387, 4
  %v3389 = vadd.f32 %v3387, %v3388
  %v3390 = vrot.slane %v3389, 2
  %v3391 = vadd.f32 %v3389, %v3390
  %v3392 = vrot.slane %v3391, 1
  %v3393 = vadd.f32 %v3391, %v3392
  %v3394 = vsel %vm3351, %v3349, 0.0
  %v3395 = vrot.slane %v3394, 4
  %v3396 = vadd.f32 %v3394, %v3395
  %v3397 = vrot.slane %v3396, 2
  %v3398 = vadd.f32 %v3396, %v3397
  %v3399 = vrot.slane %v3398, 1
  %v3400 = vadd.f32 %v3398, %v3399
  %v3401 = vsel %vm3351, %v3350, 0.0
  %v3402 = vrot.slane %v3401, 4
  %v3403 = vadd.f32 %v3401, %v3402
  %v3404 = vrot.slane %v3403, 2
  %v3405 = vadd.f32 %v3403, %v3404
  %v3406 = vrot.slane %v3405, 1
  %v3407 = vadd.f32 %v3405, %v3406
  %3409 = vrot.lane.b32.xlu0 %v3268, 64
  %v3410 = vpop.permute.xlu0 %3409
  %v3412 = vmul.f32 %v816, %v3410
  %v3413 = vmul.f32 %v817, %v3410
  %v3414 = vmul.f32 %v818, %v3410
  %v3415 = vmul.f32 %v819, %v3410
  %v3416 = vmul.f32 %v820, %v3410
  %v3417 = vmul.f32 %v821, %v3410
  %v3418 = vmul.f32 %v822, %v3410
  %v3419 = vmul.f32 %v823, %v3410
  %v3420 = vmul.f32 %v3412, %v1550
  %v3421 = vmul.f32 %v3413, %v1555
  %v3422 = vmul.f32 %v3414, %v1560
  %v3423 = vmul.f32 %v3415, %v1565
  %v3424 = vmul.f32 %v3416, %v1570
  %v3425 = vmul.f32 %v3417, %v1575
  %v3426 = vmul.f32 %v3418, %v1580
  %v3427 = vmul.f32 %v3419, %v1585
  %v3428 = vsel %vm3351, %v3420, 0.0
  %v3429 = vrot.slane %v3428, 4
  %v3430 = vadd.f32 %v3428, %v3429
  %v3431 = vrot.slane %v3430, 2
  %v3432 = vadd.f32 %v3430, %v3431
  %v3433 = vrot.slane %v3432, 1
  %v3434 = vadd.f32 %v3432, %v3433
  %v3435 = vsel %vm3351, %v3421, 0.0
  %v3436 = vrot.slane %v3435, 4
  %v3437 = vadd.f32 %v3435, %v3436
  %v3438 = vrot.slane %v3437, 2
  %v3439 = vadd.f32 %v3437, %v3438
  %v3440 = vrot.slane %v3439, 1
  %v3441 = vadd.f32 %v3439, %v3440
  %v3442 = vsel %vm3351, %v3422, 0.0
  %v3443 = vrot.slane %v3442, 4
  %v3444 = vadd.f32 %v3442, %v3443
  %v3445 = vrot.slane %v3444, 2
  %v3446 = vadd.f32 %v3444, %v3445
  %v3447 = vrot.slane %v3446, 1
  %v3448 = vadd.f32 %v3446, %v3447
  %v3449 = vsel %vm3351, %v3423, 0.0
  %v3450 = vrot.slane %v3449, 4
  %v3451 = vadd.f32 %v3449, %v3450
  %v3452 = vrot.slane %v3451, 2
  %v3453 = vadd.f32 %v3451, %v3452
  %v3454 = vrot.slane %v3453, 1
  %v3455 = vadd.f32 %v3453, %v3454
  %v3456 = vsel %vm3351, %v3424, 0.0
  %v3457 = vrot.slane %v3456, 4
  %v3458 = vadd.f32 %v3456, %v3457
  %v3459 = vrot.slane %v3458, 2
  %v3460 = vadd.f32 %v3458, %v3459
  %v3461 = vrot.slane %v3460, 1
  %v3462 = vadd.f32 %v3460, %v3461
  %v3463 = vsel %vm3351, %v3425, 0.0
  %v3464 = vrot.slane %v3463, 4
  %v3465 = vadd.f32 %v3463, %v3464
  %v3466 = vrot.slane %v3465, 2
  %v3467 = vadd.f32 %v3465, %v3466
  %v3468 = vrot.slane %v3467, 1
  %v3469 = vadd.f32 %v3467, %v3468
  %v3470 = vsel %vm3351, %v3426, 0.0
  %v3471 = vrot.slane %v3470, 4
  %v3472 = vadd.f32 %v3470, %v3471
  %v3473 = vrot.slane %v3472, 2
  %v3474 = vadd.f32 %v3472, %v3473
  %v3475 = vrot.slane %v3474, 1
  %v3476 = vadd.f32 %v3474, %v3475
  %v3477 = vsel %vm3351, %v3427, 0.0
  %v3478 = vrot.slane %v3477, 4
  %v3479 = vadd.f32 %v3477, %v3478
  %v3480 = vrot.slane %v3479, 2
  %v3481 = vadd.f32 %v3479, %v3480
  %v3482 = vrot.slane %v3481, 1
  %v3483 = vadd.f32 %v3481, %v3482
  %v3484 = vmul.f32 %v3412, %v1758
  %v3485 = vmul.f32 %v3413, %v1762
  %v3486 = vmul.f32 %v3414, %v1766
  %v3487 = vmul.f32 %v3415, %v1770
  %v3488 = vmul.f32 %v3416, %v1774
  %v3489 = vmul.f32 %v3417, %v1778
  %v3490 = vmul.f32 %v3418, %v1782
  %v3491 = vmul.f32 %v3419, %v1786
  %v3492 = vsel %vm3351, %v3484, 0.0
  %v3493 = vrot.slane %v3492, 4
  %v3494 = vadd.f32 %v3492, %v3493
  %v3495 = vrot.slane %v3494, 2
  %v3496 = vadd.f32 %v3494, %v3495
  %v3497 = vrot.slane %v3496, 1
  %v3498 = vadd.f32 %v3496, %v3497
  %v3499 = vsel %vm3351, %v3485, 0.0
  %v3500 = vrot.slane %v3499, 4
  %v3501 = vadd.f32 %v3499, %v3500
  %v3502 = vrot.slane %v3501, 2
  %v3503 = vadd.f32 %v3501, %v3502
  %v3504 = vrot.slane %v3503, 1
  %v3505 = vadd.f32 %v3503, %v3504
  %v3506 = vsel %vm3351, %v3486, 0.0
  %v3507 = vrot.slane %v3506, 4
  %v3508 = vadd.f32 %v3506, %v3507
  %v3509 = vrot.slane %v3508, 2
  %v3510 = vadd.f32 %v3508, %v3509
  %v3511 = vrot.slane %v3510, 1
  %v3512 = vadd.f32 %v3510, %v3511
  %v3513 = vsel %vm3351, %v3487, 0.0
  %v3514 = vrot.slane %v3513, 4
  %v3515 = vadd.f32 %v3513, %v3514
  %v3516 = vrot.slane %v3515, 2
  %v3517 = vadd.f32 %v3515, %v3516
  %v3518 = vrot.slane %v3517, 1
  %v3519 = vadd.f32 %v3517, %v3518
  %v3520 = vsel %vm3351, %v3488, 0.0
  %v3521 = vrot.slane %v3520, 4
  %v3522 = vadd.f32 %v3520, %v3521
  %v3523 = vrot.slane %v3522, 2
  %v3524 = vadd.f32 %v3522, %v3523
  %v3525 = vrot.slane %v3524, 1
  %v3526 = vadd.f32 %v3524, %v3525
  %v3527 = vsel %vm3351, %v3489, 0.0
  %v3528 = vrot.slane %v3527, 4
  %v3529 = vadd.f32 %v3527, %v3528
  %v3530 = vrot.slane %v3529, 2
  %v3531 = vadd.f32 %v3529, %v3530
  %v3532 = vrot.slane %v3531, 1
  %v3533 = vadd.f32 %v3531, %v3532
  %v3534 = vsel %vm3351, %v3490, 0.0
  %v3535 = vrot.slane %v3534, 4
  %v3536 = vadd.f32 %v3534, %v3535
  %v3537 = vrot.slane %v3536, 2
  %v3538 = vadd.f32 %v3536, %v3537
  %v3539 = vrot.slane %v3538, 1
  %v3540 = vadd.f32 %v3538, %v3539
  %v3541 = vsel %vm3351, %v3491, 0.0
  %v3542 = vrot.slane %v3541, 4
  %v3543 = vadd.f32 %v3541, %v3542
  %v3544 = vrot.slane %v3543, 2
  %v3545 = vadd.f32 %v3543, %v3544
  %v3546 = vrot.slane %v3545, 1
  %v3547 = vadd.f32 %v3545, %v3546
  %v3548 = vmul.f32 %v3412, %v1862
  %v3549 = vmul.f32 %v3413, %v1866
  %v3550 = vmul.f32 %v3414, %v1870
  %v3551 = vmul.f32 %v3415, %v1874
  %v3552 = vmul.f32 %v3416, %v1878
  %v3553 = vmul.f32 %v3417, %v1882
  %v3554 = vmul.f32 %v3418, %v1886
  %v3555 = vmul.f32 %v3419, %v1890
  %v3556 = vsel %vm3351, %v3548, 0.0
  %v3557 = vrot.slane %v3556, 4
  %v3558 = vadd.f32 %v3556, %v3557
  %v3559 = vrot.slane %v3558, 2
  %v3560 = vadd.f32 %v3558, %v3559
  %v3561 = vrot.slane %v3560, 1
  %v3562 = vadd.f32 %v3560, %v3561
  %v3563 = vsel %vm3351, %v3549, 0.0
  %v3564 = vrot.slane %v3563, 4
  %v3565 = vadd.f32 %v3563, %v3564
  %v3566 = vrot.slane %v3565, 2
  %v3567 = vadd.f32 %v3565, %v3566
  %v3568 = vrot.slane %v3567, 1
  %v3569 = vadd.f32 %v3567, %v3568
  %v3570 = vsel %vm3351, %v3550, 0.0
  %v3571 = vrot.slane %v3570, 4
  %v3572 = vadd.f32 %v3570, %v3571
  %v3573 = vrot.slane %v3572, 2
  %v3574 = vadd.f32 %v3572, %v3573
  %v3575 = vrot.slane %v3574, 1
  %v3576 = vadd.f32 %v3574, %v3575
  %v3577 = vsel %vm3351, %v3551, 0.0
  %v3578 = vrot.slane %v3577, 4
  %v3579 = vadd.f32 %v3577, %v3578
  %v3580 = vrot.slane %v3579, 2
  %v3581 = vadd.f32 %v3579, %v3580
  %v3582 = vrot.slane %v3581, 1
  %v3583 = vadd.f32 %v3581, %v3582
  %v3584 = vsel %vm3351, %v3552, 0.0
  %v3585 = vrot.slane %v3584, 4
  %v3586 = vadd.f32 %v3584, %v3585
  %v3587 = vrot.slane %v3586, 2
  %v3588 = vadd.f32 %v3586, %v3587
  %v3589 = vrot.slane %v3588, 1
  %v3590 = vadd.f32 %v3588, %v3589
  %v3591 = vsel %vm3351, %v3553, 0.0
  %v3592 = vrot.slane %v3591, 4
  %v3593 = vadd.f32 %v3591, %v3592
  %v3594 = vrot.slane %v3593, 2
  %v3595 = vadd.f32 %v3593, %v3594
  %v3596 = vrot.slane %v3595, 1
  %v3597 = vadd.f32 %v3595, %v3596
  %v3598 = vsel %vm3351, %v3554, 0.0
  %v3599 = vrot.slane %v3598, 4
  %v3600 = vadd.f32 %v3598, %v3599
  %v3601 = vrot.slane %v3600, 2
  %v3602 = vadd.f32 %v3600, %v3601
  %v3603 = vrot.slane %v3602, 1
  %v3604 = vadd.f32 %v3602, %v3603
  %v3605 = vsel %vm3351, %v3555, 0.0
  %v3606 = vrot.slane %v3605, 4
  %v3607 = vadd.f32 %v3605, %v3606
  %v3608 = vrot.slane %v3607, 2
  %v3609 = vadd.f32 %v3607, %v3608
  %v3610 = vrot.slane %v3609, 1
  %v3611 = vadd.f32 %v3609, %v3610
  %v3620 = vsel %vm1133, %v3441, %v3434
  %v3621 = vsel %vm1135, %v3448, %v3620
  %v3622 = vsel %vm1137, %v3455, %v3621
  %v3623 = vsel %vm1139, %v3462, %v3622
  %v3624 = vsel %vm1141, %v3469, %v3623
  %v3625 = vsel %vm1143, %v3476, %v3624
  %v3626 = vsel %vm1145, %v3483, %v3625
  %v3635 = vsel %vm1133, %v3505, %v3498
  %v3636 = vsel %vm1135, %v3512, %v3635
  %v3637 = vsel %vm1137, %v3519, %v3636
  %v3638 = vsel %vm1139, %v3526, %v3637
  %v3639 = vsel %vm1141, %v3533, %v3638
  %v3640 = vsel %vm1143, %v3540, %v3639
  %v3641 = vsel %vm1145, %v3547, %v3640
  %v3650 = vsel %vm1133, %v3569, %v3562
  %v3651 = vsel %vm1135, %v3576, %v3650
  %v3652 = vsel %vm1137, %v3583, %v3651
  %v3653 = vsel %vm1139, %v3590, %v3652
  %v3654 = vsel %vm1141, %v3597, %v3653
  %v3655 = vsel %vm1143, %v3604, %v3654
  %v3656 = vsel %vm1145, %v3611, %v3655
  %v3657 = vsub.f32 0.0, %v3358
  %v3658 = vsub.f32 0.0, %v3365
  %v3659 = vsub.f32 0.0, %v3372
  %v3660 = vsub.f32 0.0, %v3379
  %v3661 = vsub.f32 0.0, %v3386
  %v3662 = vsub.f32 0.0, %v3393
  %v3663 = vsub.f32 0.0, %v3400
  %v3664 = vsub.f32 0.0, %v3407
  %v3665 = vmul.f32 %v3657, 1.442695
  %v3666 = vpow.pop %v3665
  %v3667 = vmul.f32 %v3658, 1.442695
  %v3668 = vpow.pop %v3667
  %v3669 = vmul.f32 %v3659, 1.442695
  %v3670 = vpow.pop %v3669
  %v3671 = vmul.f32 %v3660, 1.442695
  %v3672 = vpow.pop %v3671
  %v3673 = vmul.f32 %v3661, 1.442695
  %v3674 = vpow.pop %v3673
  %v3675 = vmul.f32 %v3662, 1.442695
  %v3676 = vpow.pop %v3675
  %v3677 = vmul.f32 %v3663, 1.442695
  %v3678 = vpow.pop %v3677
  %v3679 = vmul.f32 %v3664, 1.442695
  %v3680 = vpow.pop %v3679
  %v3681 = vadd.f32 %v3666, 1.0
  %v3682 = vadd.f32 %v3668, 1.0
  %v3683 = vadd.f32 %v3670, 1.0
  %v3684 = vadd.f32 %v3672, 1.0
  %v3685 = vadd.f32 %v3674, 1.0
  %v3686 = vadd.f32 %v3676, 1.0
  %v3687 = vadd.f32 %v3678, 1.0
  %v3688 = vadd.f32 %v3680, 1.0
  %v3689 = vrcp.pop %v3681
  %v3690 = vrcp.pop %v3682
  %v3691 = vrcp.pop %v3683
  %v3692 = vrcp.pop %v3684
  %v3693 = vrcp.pop %v3685
  %v3694 = vrcp.pop %v3686
  %v3695 = vrcp.pop %v3687
  %v3696 = vrcp.pop %v3688
  %v3697 = vmul.f32 %v3358, %v3689
  %v3698 = vmul.f32 %v3365, %v3690
  %v3699 = vmul.f32 %v3372, %v3691
  %v3700 = vmul.f32 %v3379, %v3692
  %v3701 = vmul.f32 %v3386, %v3693
  %v3702 = vmul.f32 %v3393, %v3694
  %v3703 = vmul.f32 %v3400, %v3695
  %v3704 = vmul.f32 %v3407, %v3696
  %v3705 = vld [vmem:[%s67] sm:$0xff]
  %v3706 = vld [vmem:[%s67 + $0x8] sm:$0xff]
  %v3715 = vsel %vm1133, %v3698, %v3697
  %v3716 = vsel %vm1135, %v3699, %v3715
  %v3717 = vsel %vm1137, %v3700, %v3716
  %v3718 = vsel %vm1139, %v3701, %v3717
  %v3719 = vsel %vm1141, %v3702, %v3718
  %v3720 = vsel %vm1143, %v3703, %v3719
  %v3721 = vsel %vm1145, %v3704, %v3720
  %3722 = vrot.lane.b32.xlu0 %v3721, 64
  %v3723 = vpop.permute.xlu0 %3722
  %v3724 = vsel %vm598, %v3723, 0
  %3726 = vmatprep.subr.mxu0 0.0
  %3727 = vmatpush1.msra.mxu0 %v3705
  %3728 = vmatprep.subr.mxu0 0.0
  %3729 = vmatpush1.msra.mxu0 %v3706
  %3730 = vmatprep.subr.mxu0 0.0
  %3731 = vmatpush1.msra.mxu0 0.0
  %3732 = vmatprep.subr.mxu0 0.0
  %3733 = vmatpush1.msra.mxu0 0.0
  %3734 = vmatprep.subr.mxu0 0.0
  %3735 = vmatpush1.msra.mxu0 0.0
  %3736 = vmatprep.subr.mxu0 0.0
  %3737 = vmatpush1.msra.mxu0 0.0
  %3738 = vmatprep.subr.mxu0 0.0
  %3739 = vmatpush1.msra.mxu0 0.0
  %3740 = vmatprep.subr.mxu0 0.0
  %3741 = vmatpush1.msra.mxu0 0.0
  %3742 = vmatprep.subr.mxu0 0.0
  %3743 = vmatpush1.msra.mxu0 0.0
  %3744 = vmatprep.subr.mxu0 0.0
  %3745 = vmatpush1.msra.mxu0 0.0
  %3746 = vmatprep.subr.mxu0 0.0
  %3747 = vmatpush1.msra.mxu0 0.0
  %3748 = vmatprep.subr.mxu0 0.0
  %3749 = vmatpush1.msra.mxu0 0.0
  %3750 = vmatprep.subr.mxu0 0.0
  %3751 = vmatpush1.msra.mxu0 0.0
  %3752 = vmatprep.subr.mxu0 0.0
  %3753 = vmatpush1.msra.mxu0 0.0
  %3754 = vmatprep.subr.mxu0 0.0
  %3755 = vmatpush1.msra.mxu0 0.0
  %3756 = vmatprep.subr.mxu0 0.0
  %3757 = vmatpush1.msra.mxu0 0.0
  %3758 = vmatprep.subr.mxu0 0.0
  %3759 = vmatpush1.msra.mxu0 0.0
  %3760 = vmatprep.subr.mxu0 0.0
  %3761 = vmatpush1.msra.mxu0 0.0
  %3762 = vmatprep.subr.mxu0 0.0
  %3763 = vmatpush1.msra.mxu0 0.0
  %3764 = vmatprep.subr.mxu0 0.0
  %3765 = vmatpush1.msra.mxu0 0.0
  %3766 = vmatprep.subr.mxu0 0.0
  %3767 = vmatpush1.msra.mxu0 0.0
  %3768 = vmatprep.subr.mxu0 0.0
  %3769 = vmatpush1.msra.mxu0 0.0
  %3770 = vmatprep.subr.mxu0 0.0
  %3771 = vmatpush1.msra.mxu0 0.0
  %3772 = vmatprep.subr.mxu0 0.0
  %3773 = vmatpush1.msra.mxu0 0.0
  %3774 = vmatprep.subr.mxu0 0.0
  %3775 = vmatpush1.msra.mxu0 0.0
  %3776 = vmatprep.subr.mxu0 0.0
  %3777 = vmatpush1.msra.mxu0 0.0
  %3778 = vmatprep.subr.mxu0 0.0
  %3779 = vmatpush1.msra.mxu0 0.0
  %3780 = vmatprep.subr.mxu0 0.0
  %3781 = vmatpush1.msra.mxu0 0.0
  %3782 = vmatprep.subr.mxu0 0.0
  %3783 = vmatpush1.msra.mxu0 0.0
  %3784 = vmatprep.subr.mxu0 0.0
  %3785 = vmatpush1.msra.mxu0 0.0
  %3786 = vmatprep.subr.mxu0 0.0
  %3787 = vmatpush1.msra.mxu0 0.0
  %3788 = vmatprep.subr.mxu0 0.0
  %3789 = vmatpush1.msra.mxu0 0.0
  %3790 = vmatprep.mubr.f32.mxu0 0.0
  %3791 = vmatmul.mubr.f32.gmra.mrb[0].mxu0 %v3724
  %v3792 = vpop.f32.mrb[0].mxu0
  %v3793 = vadd.f32 0.0, %v3792
  %v3794 = vpop.f32.mrb[0].mxu0
  %3795 = vdwg.mxu0
  %v3796 = vadd.f32 %v3015, %v3793
  %v3797 = vld [vmem:[%s69] sm:$0xff]
  %v3798 = vld [vmem:[%s69 + $0x8] sm:$0xff]
  %3799 = vrot.lane.b32.xlu0 %v3626, 64
  %v3800 = vpop.permute.xlu0 %3799
  %3801 = vrot.lane.b32.xlu0 %v3641, 64
  %v3802 = vpop.permute.xlu0 %3801
  %3803 = vrot.lane.b32.xlu0 %v3656, 64
  %v3804 = vpop.permute.xlu0 %3803
  %v3805 = vsel %vm598, %v3800, 0
  %v3807 = vsel %vm598, %v3802, 0
  %v3809 = vsel %vm598, %v3804, 0
  %3811 = vmatprep.subr.mxu0 0.0
  %3812 = vmatpush1.msra.mxu0 %v3797
  %3813 = vmatprep.subr.mxu0 0.0
  %3814 = vmatpush1.msra.mxu0 %v3798
  %3815 = vmatprep.subr.mxu0 0.0
  %3816 = vmatpush1.msra.mxu0 0.0
  %3817 = vmatprep.subr.mxu0 0.0
  %3818 = vmatpush1.msra.mxu0 0.0
  %3819 = vmatprep.subr.mxu0 0.0
  %3820 = vmatpush1.msra.mxu0 0.0
  %3821 = vmatprep.subr.mxu0 0.0
  %3822 = vmatpush1.msra.mxu0 0.0
  %3823 = vmatprep.subr.mxu0 0.0
  %3824 = vmatpush1.msra.mxu0 0.0
  %3825 = vmatprep.subr.mxu0 0.0
  %3826 = vmatpush1.msra.mxu0 0.0
  %3827 = vmatprep.subr.mxu0 0.0
  %3828 = vmatpush1.msra.mxu0 0.0
  %3829 = vmatprep.subr.mxu0 0.0
  %3830 = vmatpush1.msra.mxu0 0.0
  %3831 = vmatprep.subr.mxu0 0.0
  %3832 = vmatpush1.msra.mxu0 0.0
  %3833 = vmatprep.subr.mxu0 0.0
  %3834 = vmatpush1.msra.mxu0 0.0
  %3835 = vmatprep.subr.mxu0 0.0
  %3836 = vmatpush1.msra.mxu0 0.0
  %3837 = vmatprep.subr.mxu0 0.0
  %3838 = vmatpush1.msra.mxu0 0.0
  %3839 = vmatprep.subr.mxu0 0.0
  %3840 = vmatpush1.msra.mxu0 0.0
  %3841 = vmatprep.subr.mxu0 0.0
  %3842 = vmatpush1.msra.mxu0 0.0
  %3843 = vmatprep.subr.mxu0 0.0
  %3844 = vmatpush1.msra.mxu0 0.0
  %3845 = vmatprep.subr.mxu0 0.0
  %3846 = vmatpush1.msra.mxu0 0.0
  %3847 = vmatprep.subr.mxu0 0.0
  %3848 = vmatpush1.msra.mxu0 0.0
  %3849 = vmatprep.subr.mxu0 0.0
  %3850 = vmatpush1.msra.mxu0 0.0
  %3851 = vmatprep.subr.mxu0 0.0
  %3852 = vmatpush1.msra.mxu0 0.0
  %3853 = vmatprep.subr.mxu0 0.0
  %3854 = vmatpush1.msra.mxu0 0.0
  %3855 = vmatprep.subr.mxu0 0.0
  %3856 = vmatpush1.msra.mxu0 0.0
  %3857 = vmatprep.subr.mxu0 0.0
  %3858 = vmatpush1.msra.mxu0 0.0
  %3859 = vmatprep.subr.mxu0 0.0
  %3860 = vmatpush1.msra.mxu0 0.0
  %3861 = vmatprep.subr.mxu0 0.0
  %3862 = vmatpush1.msra.mxu0 0.0
  %3863 = vmatprep.subr.mxu0 0.0
  %3864 = vmatpush1.msra.mxu0 0.0
  %3865 = vmatprep.subr.mxu0 0.0
  %3866 = vmatpush1.msra.mxu0 0.0
  %3867 = vmatprep.subr.mxu0 0.0
  %3868 = vmatpush1.msra.mxu0 0.0
  %3869 = vmatprep.subr.mxu0 0.0
  %3870 = vmatpush1.msra.mxu0 0.0
  %3871 = vmatprep.subr.mxu0 0.0
  %3872 = vmatpush1.msra.mxu0 0.0
  %3873 = vmatprep.subr.mxu0 0.0
  %3874 = vmatpush1.msra.mxu0 0.0
  %3875 = vmatprep.mubr.f32.mxu0 0.0
  %3876 = vmatmul.mubr.f32.gmra.mrb[0].mxu0 %v3805
  %v3877 = vpop.f32.mrb[0].mxu0
  %v3878 = vadd.f32 0.0, %v3877
  %v3879 = vpop.f32.mrb[0].mxu0
  %3880 = vmatprep.mubr.f32.mxu0 0.0
  %3881 = vmatmul.mubr.f32.gmra.mrb[0].mxu0 %v3807
  %v3882 = vpop.f32.mrb[0].mxu0
  %v3883 = vadd.f32 0.0, %v3882
  %v3884 = vpop.f32.mrb[0].mxu0
  %3885 = vmatprep.mubr.f32.mxu0 0.0
  %3886 = vmatmul.mubr.f32.gmra.mrb[0].mxu0 %v3809
  %v3887 = vpop.f32.mrb[0].mxu0
  %v3888 = vadd.f32 0.0, %v3887
  %v3889 = vpop.f32.mrb[0].mxu0
  %3890 = vdwg.mxu0
  %v3891 = vadd.f32 %v3107, %v3878
  %v3892 = vadd.f32 %v3108, %v3883
  %v3893 = vadd.f32 %v3109, %v3888
  %v3894 = vld [vmem:[%s43] sm:$0xff]
  %v3895 = vld [vmem:[%s43 + $0x8] sm:$0xff]
  %v3896 = vld [vmem:[%s43 + $0x10] sm:$0xff]
  %v3897 = vld [vmem:[%s43 + $0x18] sm:$0xff]
  %v3899 = vsel %vm828, %v3891, 0
  %v3902 = vsel %vm828, %v3892, 0
  %v3905 = vsel %vm828, %v3893, 0
  %3907 = vmatprep.subr.mxu0 0.0
  %3908 = vmatpush1.msra.mxu0 %v3894
  %3909 = vmatprep.subr.mxu0 0.0
  %3910 = vmatpush1.msra.mxu0 %v3895
  %3911 = vmatprep.subr.mxu0 0.0
  %3912 = vmatpush1.msra.mxu0 %v3896
  %3913 = vmatprep.subr.mxu0 0.0
  %3914 = vmatpush1.msra.mxu0 %v3897
  %3915 = vmatprep.subr.mxu0 0.0
  %3916 = vmatpush1.msra.mxu0 0.0
  %3917 = vmatprep.subr.mxu0 0.0
  %3918 = vmatpush1.msra.mxu0 0.0
  %3919 = vmatprep.subr.mxu0 0.0
  %3920 = vmatpush1.msra.mxu0 0.0
  %3921 = vmatprep.subr.mxu0 0.0
  %3922 = vmatpush1.msra.mxu0 0.0
  %3923 = vmatprep.subr.mxu0 0.0
  %3924 = vmatpush1.msra.mxu0 0.0
  %3925 = vmatprep.subr.mxu0 0.0
  %3926 = vmatpush1.msra.mxu0 0.0
  %3927 = vmatprep.subr.mxu0 0.0
  %3928 = vmatpush1.msra.mxu0 0.0
  %3929 = vmatprep.subr.mxu0 0.0
  %3930 = vmatpush1.msra.mxu0 0.0
  %3931 = vmatprep.subr.mxu0 0.0
  %3932 = vmatpush1.msra.mxu0 0.0
  %3933 = vmatprep.subr.mxu0 0.0
  %3934 = vmatpush1.msra.mxu0 0.0
  %3935 = vmatprep.subr.mxu0 0.0
  %3936 = vmatpush1.msra.mxu0 0.0
  %3937 = vmatprep.subr.mxu0 0.0
  %3938 = vmatpush1.msra.mxu0 0.0
  %3939 = vmatprep.subr.mxu0 0.0
  %3940 = vmatpush1.msra.mxu0 0.0
  %3941 = vmatprep.subr.mxu0 0.0
  %3942 = vmatpush1.msra.mxu0 0.0
  %3943 = vmatprep.subr.mxu0 0.0
  %3944 = vmatpush1.msra.mxu0 0.0
  %3945 = vmatprep.subr.mxu0 0.0
  %3946 = vmatpush1.msra.mxu0 0.0
  %3947 = vmatprep.subr.mxu0 0.0
  %3948 = vmatpush1.msra.mxu0 0.0
  %3949 = vmatprep.subr.mxu0 0.0
  %3950 = vmatpush1.msra.mxu0 0.0
  %3951 = vmatprep.subr.mxu0 0.0
  %3952 = vmatpush1.msra.mxu0 0.0
  %3953 = vmatprep.subr.mxu0 0.0
  %3954 = vmatpush1.msra.mxu0 0.0
  %3955 = vmatprep.subr.mxu0 0.0
  %3956 = vmatpush1.msra.mxu0 0.0
  %3957 = vmatprep.subr.mxu0 0.0
  %3958 = vmatpush1.msra.mxu0 0.0
  %3959 = vmatprep.subr.mxu0 0.0
  %3960 = vmatpush1.msra.mxu0 0.0
  %3961 = vmatprep.subr.mxu0 0.0
  %3962 = vmatpush1.msra.mxu0 0.0
  %3963 = vmatprep.subr.mxu0 0.0
  %3964 = vmatpush1.msra.mxu0 0.0
  %3965 = vmatprep.subr.mxu0 0.0
  %3966 = vmatpush1.msra.mxu0 0.0
  %3967 = vmatprep.subr.mxu0 0.0
  %3968 = vmatpush1.msra.mxu0 0.0
  %3969 = vmatprep.subr.mxu0 0.0
  %3970 = vmatpush1.msra.mxu0 0.0
  %3971 = vmatprep.mubr.f32.mxu0 0.0
  %3972 = vmatmul.mubr.f32.gmra.mrb[0].mxu0 %v3899
  %v3973 = vpop.f32.mrb[0].mxu0
  %v3974 = vadd.f32 0.0, %v3973
  %v3975 = vpop.f32.mrb[0].mxu0
  %3976 = vmatprep.mubr.f32.mxu0 0.0
  %3977 = vmatmul.mubr.f32.gmra.mrb[0].mxu0 %v3902
  %v3978 = vpop.f32.mrb[0].mxu0
  %v3979 = vadd.f32 0.0, %v3978
  %v3980 = vpop.f32.mrb[0].mxu0
  %3981 = vmatprep.mubr.f32.mxu0 0.0
  %3982 = vmatmul.mubr.f32.gmra.mrb[0].mxu0 %v3905
  %v3983 = vpop.f32.mrb[0].mxu0
  %v3984 = vadd.f32 0.0, %v3983
  %v3985 = vpop.f32.mrb[0].mxu0
  %3986 = vdwg.mxu0
  %v3987 = vmul.f32 %v3974, %v3974
  %v3988 = vmul.f32 %v3979, %v3979
  %v3989 = vadd.f32 %v3987, %v3988
  %v3990 = vmul.f32 %v3984, %v3984
  %v3991 = vadd.f32 %v3989, %v3990
  %v3992 = vadd.f32 %v3991, 1e-08
  %v3993 = vrsqrt.pop %v3992
  %v3994 = vmul.f32 %v3992, %v3993
  %vm3995 = vcmp.eq.f32.partialorder %v3992, inf
  %v3996 = vsel %vm3995, %v3992, %v3994
  %vm3997 = vcmp.eq.f32.partialorder %v3992, 0.0
  %v3998 = vand.u32 %v3992, 2147483648
  %v3999 = vsel %vm3997, %v3998, %v3996
  %v4000 = vld [vmem:[%s45] sm:$0xff]
  %v4001 = vld [vmem:[%s45 + $0x8] sm:$0xff]
  %v4002 = vld [vmem:[%s45 + $0x10] sm:$0xff]
  %v4003 = vld [vmem:[%s45 + $0x18] sm:$0xff]
  %v4004 = vld [vmem:[%s47] sm:$0xff]
  %v4005 = vld [vmem:[%s47 + $0x8] sm:$0xff]
  %v4006 = vld [vmem:[%s47 + $0x10] sm:$0xff]
  %v4007 = vld [vmem:[%s47 + $0x18] sm:$0xff]
  %4009 = vrot.lane.b32.xlu0 %v3999, 96
  %v4010 = vpop.permute.xlu0 %4009
  %v4011 = vsel %vm828, %v4010, 0
  %4013 = vmatprep.subr.mxu0 0.0
  %4014 = vmatpush1.msra.mxu0 %v4004
  %4015 = vmatprep.subr.mxu0 0.0
  %4016 = vmatpush1.msra.mxu0 %v4005
  %4017 = vmatprep.subr.mxu0 0.0
  %4018 = vmatpush1.msra.mxu0 %v4006
  %4019 = vmatprep.subr.mxu0 0.0
  %4020 = vmatpush1.msra.mxu0 %v4007
  %4021 = vmatprep.subr.mxu0 0.0
  %4022 = vmatpush1.msra.mxu0 0.0
  %4023 = vmatprep.subr.mxu0 0.0
  %4024 = vmatpush1.msra.mxu0 0.0
  %4025 = vmatprep.subr.mxu0 0.0
  %4026 = vmatpush1.msra.mxu0 0.0
  %4027 = vmatprep.subr.mxu0 0.0
  %4028 = vmatpush1.msra.mxu0 0.0
  %4029 = vmatprep.subr.mxu0 0.0
  %4030 = vmatpush1.msra.mxu0 0.0
  %4031 = vmatprep.subr.mxu0 0.0
  %4032 = vmatpush1.msra.mxu0 0.0
  %4033 = vmatprep.subr.mxu0 0.0
  %4034 = vmatpush1.msra.mxu0 0.0
  %4035 = vmatprep.subr.mxu0 0.0
  %4036 = vmatpush1.msra.mxu0 0.0
  %4037 = vmatprep.subr.mxu0 0.0
  %4038 = vmatpush1.msra.mxu0 0.0
  %4039 = vmatprep.subr.mxu0 0.0
  %4040 = vmatpush1.msra.mxu0 0.0
  %4041 = vmatprep.subr.mxu0 0.0
  %4042 = vmatpush1.msra.mxu0 0.0
  %4043 = vmatprep.subr.mxu0 0.0
  %4044 = vmatpush1.msra.mxu0 0.0
  %4045 = vmatprep.subr.mxu0 0.0
  %4046 = vmatpush1.msra.mxu0 0.0
  %4047 = vmatprep.subr.mxu0 0.0
  %4048 = vmatpush1.msra.mxu0 0.0
  %4049 = vmatprep.subr.mxu0 0.0
  %4050 = vmatpush1.msra.mxu0 0.0
  %4051 = vmatprep.subr.mxu0 0.0
  %4052 = vmatpush1.msra.mxu0 0.0
  %4053 = vmatprep.subr.mxu0 0.0
  %4054 = vmatpush1.msra.mxu0 0.0
  %4055 = vmatprep.subr.mxu0 0.0
  %4056 = vmatpush1.msra.mxu0 0.0
  %4057 = vmatprep.subr.mxu0 0.0
  %4058 = vmatpush1.msra.mxu0 0.0
  %4059 = vmatprep.subr.mxu0 0.0
  %4060 = vmatpush1.msra.mxu0 0.0
  %4061 = vmatprep.subr.mxu0 0.0
  %4062 = vmatpush1.msra.mxu0 0.0
  %4063 = vmatprep.subr.mxu0 0.0
  %4064 = vmatpush1.msra.mxu0 0.0
  %4065 = vmatprep.subr.mxu0 0.0
  %4066 = vmatpush1.msra.mxu0 0.0
  %4067 = vmatprep.subr.mxu0 0.0
  %4068 = vmatpush1.msra.mxu0 0.0
  %4069 = vmatprep.subr.mxu0 0.0
  %4070 = vmatpush1.msra.mxu0 0.0
  %4071 = vmatprep.subr.mxu0 0.0
  %4072 = vmatpush1.msra.mxu0 0.0
  %4073 = vmatprep.subr.mxu0 0.0
  %4074 = vmatpush1.msra.mxu0 0.0
  %4075 = vmatprep.subr.mxu0 0.0
  %4076 = vmatpush1.msra.mxu0 0.0
  %4077 = vmatprep.mubr.f32.mxu0 0.0
  %4078 = vmatmul.mubr.f32.gmra.mrb[0].mxu0 %v4011
  %v4079 = vpop.f32.mrb[0].mxu0
  %v4080 = vadd.f32 0.0, %v4079
  %v4081 = vpop.f32.mrb[0].mxu0
  %4082 = vdwg.mxu0
  %v4084 = vsel %vm828, %v3796, 0
  %4086 = vmatprep.subr.mxu0 0.0
  %4087 = vmatpush1.msra.mxu0 %v4000
  %4088 = vmatprep.subr.mxu0 0.0
  %4089 = vmatpush1.msra.mxu0 %v4001
  %4090 = vmatprep.subr.mxu0 0.0
  %4091 = vmatpush1.msra.mxu0 %v4002
  %4092 = vmatprep.subr.mxu0 0.0
  %4093 = vmatpush1.msra.mxu0 %v4003
  %4094 = vmatprep.subr.mxu0 0.0
  %4095 = vmatpush1.msra.mxu0 0.0
  %4096 = vmatprep.subr.mxu0 0.0
  %4097 = vmatpush1.msra.mxu0 0.0
  %4098 = vmatprep.subr.mxu0 0.0
  %4099 = vmatpush1.msra.mxu0 0.0
  %4100 = vmatprep.subr.mxu0 0.0
  %4101 = vmatpush1.msra.mxu0 0.0
  %4102 = vmatprep.subr.mxu0 0.0
  %4103 = vmatpush1.msra.mxu0 0.0
  %4104 = vmatprep.subr.mxu0 0.0
  %4105 = vmatpush1.msra.mxu0 0.0
  %4106 = vmatprep.subr.mxu0 0.0
  %4107 = vmatpush1.msra.mxu0 0.0
  %4108 = vmatprep.subr.mxu0 0.0
  %4109 = vmatpush1.msra.mxu0 0.0
  %4110 = vmatprep.subr.mxu0 0.0
  %4111 = vmatpush1.msra.mxu0 0.0
  %4112 = vmatprep.subr.mxu0 0.0
  %4113 = vmatpush1.msra.mxu0 0.0
  %4114 = vmatprep.subr.mxu0 0.0
  %4115 = vmatpush1.msra.mxu0 0.0
  %4116 = vmatprep.subr.mxu0 0.0
  %4117 = vmatpush1.msra.mxu0 0.0
  %4118 = vmatprep.subr.mxu0 0.0
  %4119 = vmatpush1.msra.mxu0 0.0
  %4120 = vmatprep.subr.mxu0 0.0
  %4121 = vmatpush1.msra.mxu0 0.0
  %4122 = vmatprep.subr.mxu0 0.0
  %4123 = vmatpush1.msra.mxu0 0.0
  %4124 = vmatprep.subr.mxu0 0.0
  %4125 = vmatpush1.msra.mxu0 0.0
  %4126 = vmatprep.subr.mxu0 0.0
  %4127 = vmatpush1.msra.mxu0 0.0
  %4128 = vmatprep.subr.mxu0 0.0
  %4129 = vmatpush1.msra.mxu0 0.0
  %4130 = vmatprep.subr.mxu0 0.0
  %4131 = vmatpush1.msra.mxu0 0.0
  %4132 = vmatprep.subr.mxu0 0.0
  %4133 = vmatpush1.msra.mxu0 0.0
  %4134 = vmatprep.subr.mxu0 0.0
  %4135 = vmatpush1.msra.mxu0 0.0
  %4136 = vmatprep.subr.mxu0 0.0
  %4137 = vmatpush1.msra.mxu0 0.0
  %4138 = vmatprep.subr.mxu0 0.0
  %4139 = vmatpush1.msra.mxu0 0.0
  %4140 = vmatprep.subr.mxu0 0.0
  %4141 = vmatpush1.msra.mxu0 0.0
  %4142 = vmatprep.subr.mxu0 0.0
  %4143 = vmatpush1.msra.mxu0 0.0
  %4144 = vmatprep.subr.mxu0 0.0
  %4145 = vmatpush1.msra.mxu0 0.0
  %4146 = vmatprep.subr.mxu0 0.0
  %4147 = vmatpush1.msra.mxu0 0.0
  %4148 = vmatprep.subr.mxu0 0.0
  %4149 = vmatpush1.msra.mxu0 0.0
  %4150 = vmatprep.mubr.f32.mxu0 0.0
  %4151 = vmatmul.mubr.f32.gmra.mrb[0].mxu0 %v4084
  %v4152 = vpop.f32.mrb[0].mxu0
  %v4153 = vadd.f32 %v4080, %v4152
  %v4154 = vpop.f32.mrb[0].mxu0
  %4155 = vdwg.mxu0
  %v4156 = vld [vmem:[%s49] sm:$0x1]
  %v4158 = vlaneseq
  %v4159 = vshrl.u32 %v4158, 7
  %v4160 = vsub.s32 0, %v4159
  %v4161 = vrot.slane %v4156, %v4160
  %v4163 = vadd.f32 %v4153, %v4161
  %v4164 = vsub.f32 0.0, %v4163
  %v4165 = vmul.f32 %v4164, 1.442695
  %v4166 = vpow.pop %v4165
  %v4167 = vadd.f32 %v4166, 1.0
  %v4168 = vrcp.pop %v4167
  %v4169 = vmul.f32 %v4163, %v4168
  %v4170 = vld [vmem:[%s51] sm:$0xff]
  %v4171 = vld [vmem:[%s51 + $0x8] sm:$0xff]
  %v4172 = vld [vmem:[%s51 + $0x10] sm:$0xff]
  %v4173 = vld [vmem:[%s51 + $0x18] sm:$0xff]
  %v4174 = vld [vmem:[%s53] sm:$0x1]
  %v4176 = vlaneseq
  %v4177 = vshrl.u32 %v4176, 7
  %v4178 = vsub.s32 0, %v4177
  %v4179 = vrot.slane %v4174, %v4178
  %v4182 = vsel %vm828, %v4169, 0
  %4184 = vmatprep.subr.mxu0 0.0
  %4185 = vmatpush1.msra.mxu0 %v4170
  %4186 = vmatprep.subr.mxu0 0.0
  %4187 = vmatpush1.msra.mxu0 %v4171
  %4188 = vmatprep.subr.mxu0 0.0
  %4189 = vmatpush1.msra.mxu0 %v4172
  %4190 = vmatprep.subr.mxu0 0.0
  %4191 = vmatpush1.msra.mxu0 %v4173
  %4192 = vmatprep.subr.mxu0 0.0
  %4193 = vmatpush1.msra.mxu0 0.0
  %4194 = vmatprep.subr.mxu0 0.0
  %4195 = vmatpush1.msra.mxu0 0.0
  %4196 = vmatprep.subr.mxu0 0.0
  %4197 = vmatpush1.msra.mxu0 0.0
  %4198 = vmatprep.subr.mxu0 0.0
  %4199 = vmatpush1.msra.mxu0 0.0
  %4200 = vmatprep.subr.mxu0 0.0
  %4201 = vmatpush1.msra.mxu0 0.0
  %4202 = vmatprep.subr.mxu0 0.0
  %4203 = vmatpush1.msra.mxu0 0.0
  %4204 = vmatprep.subr.mxu0 0.0
  %4205 = vmatpush1.msra.mxu0 0.0
  %4206 = vmatprep.subr.mxu0 0.0
  %4207 = vmatpush1.msra.mxu0 0.0
  %4208 = vmatprep.subr.mxu0 0.0
  %4209 = vmatpush1.msra.mxu0 0.0
  %4210 = vmatprep.subr.mxu0 0.0
  %4211 = vmatpush1.msra.mxu0 0.0
  %4212 = vmatprep.subr.mxu0 0.0
  %4213 = vmatpush1.msra.mxu0 0.0
  %4214 = vmatprep.subr.mxu0 0.0
  %4215 = vmatpush1.msra.mxu0 0.0
  %4216 = vmatprep.subr.mxu0 0.0
  %4217 = vmatpush1.msra.mxu0 0.0
  %4218 = vmatprep.subr.mxu0 0.0
  %4219 = vmatpush1.msra.mxu0 0.0
  %4220 = vmatprep.subr.mxu0 0.0
  %4221 = vmatpush1.msra.mxu0 0.0
  %4222 = vmatprep.subr.mxu0 0.0
  %4223 = vmatpush1.msra.mxu0 0.0
  %4224 = vmatprep.subr.mxu0 0.0
  %4225 = vmatpush1.msra.mxu0 0.0
  %4226 = vmatprep.subr.mxu0 0.0
  %4227 = vmatpush1.msra.mxu0 0.0
  %4228 = vmatprep.subr.mxu0 0.0
  %4229 = vmatpush1.msra.mxu0 0.0
  %4230 = vmatprep.subr.mxu0 0.0
  %4231 = vmatpush1.msra.mxu0 0.0
  %4232 = vmatprep.subr.mxu0 0.0
  %4233 = vmatpush1.msra.mxu0 0.0
  %4234 = vmatprep.subr.mxu0 0.0
  %4235 = vmatpush1.msra.mxu0 0.0
  %4236 = vmatprep.subr.mxu0 0.0
  %4237 = vmatpush1.msra.mxu0 0.0
  %4238 = vmatprep.subr.mxu0 0.0
  %4239 = vmatpush1.msra.mxu0 0.0
  %4240 = vmatprep.subr.mxu0 0.0
  %4241 = vmatpush1.msra.mxu0 0.0
  %4242 = vmatprep.subr.mxu0 0.0
  %4243 = vmatpush1.msra.mxu0 0.0
  %4244 = vmatprep.subr.mxu0 0.0
  %4245 = vmatpush1.msra.mxu0 0.0
  %4246 = vmatprep.subr.mxu0 0.0
  %4247 = vmatpush1.msra.mxu0 0.0
  %4248 = vmatprep.mubr.f32.mxu0 0.0
  %4249 = vmatmul.mubr.f32.gmra.mrb[0].mxu0 %v4182
  %v4250 = vpop.f32.mrb[0].mxu0
  %v4251 = vadd.f32 %v4179, %v4250
  %v4252 = vpop.f32.mrb[0].mxu0
  %4253 = vdwg.mxu0
  %4255 = vrot.lane.b32.xlu0 %v3974, 96
  %v4256 = vpop.permute.xlu0 %4255
  %v4258 = vmul.f32 %v3974, %v4256
  %4260 = vrot.lane.b32.xlu0 %v3979, 96
  %v4261 = vpop.permute.xlu0 %4260
  %v4263 = vmul.f32 %v3979, %v4261
  %v4264 = vadd.f32 %v4258, %v4263
  %4266 = vrot.lane.b32.xlu0 %v3984, 96
  %v4267 = vpop.permute.xlu0 %4266
  %v4269 = vmul.f32 %v3984, %v4267
  %v4270 = vadd.f32 %v4264, %v4269
  %4272 = vrot.lane.b32.xlu0 %v4270, 32
  %v4273 = vpop.permute.xlu0 %4272
  %v4275 = vmul.f32 %v4251, %v4273
  %4277 = vrot.lane.b32.xlu0 %v4275, 96
  %v4278 = vpop.permute.xlu0 %4277
  %v4280 = vadd.f32 %v4251, %v4278
  %4281 = vrot.lane.b32.xlu0 %v3974, 64
  %v4282 = vpop.permute.xlu0 %4281
  %v4284 = vmul.f32 %v4251, %v4282
  %4285 = vrot.lane.b32.xlu0 %v3979, 64
  %v4286 = vpop.permute.xlu0 %4285
  %v4288 = vmul.f32 %v4251, %v4286
  %4289 = vrot.lane.b32.xlu0 %v3984, 64
  %v4290 = vpop.permute.xlu0 %4289
  %v4292 = vmul.f32 %v4251, %v4290
  %v4293 = vadd.f32 %v3796, %v4280
  %4297 = vrot.lane.b32.xlu0 %v4284, 64
  %v4298 = vpop.permute.xlu0 %4297
  %4299 = vrot.lane.b32.xlu0 %v4288, 64
  %v4300 = vpop.permute.xlu0 %4299
  %4301 = vrot.lane.b32.xlu0 %v4292, 64
  %v4302 = vpop.permute.xlu0 %4301
  %v4306 = vadd.f32 %v3891, %v4298
  %v4307 = vadd.f32 %v3892, %v4300
  %v4308 = vadd.f32 %v3893, %v4302
  %s4309 = scalar_lea.vmem %s27, 16
  %v4310 = vld [vmem:[%s4309] sm:$0xff]
  %v4311 = vld [vmem:[%s4309 + $0x8] sm:$0xff]
  %s4312 = scalar_lea.vmem %s29, 1
  %v4313 = vld [vmem:[%s4312] sm:$0x1]
  %v4315 = vlaneseq
  %v4316 = vshrl.u32 %v4315, 7
  %v4317 = vsub.s32 0, %v4316
  %v4318 = vrot.slane %v4313, %v4317
  %4320 = vmatprep.subr.mxu0 0.0
  %4321 = vmatpush1.msra.mxu0 %v4310
  %4322 = vmatprep.subr.mxu0 0.0
  %4323 = vmatpush1.msra.mxu0 %v4311
  %4324 = vmatprep.subr.mxu0 0.0
  %4325 = vmatpush1.msra.mxu0 0.0
  %4326 = vmatprep.subr.mxu0 0.0
  %4327 = vmatpush1.msra.mxu0 0.0
  %4328 = vmatprep.subr.mxu0 0.0
  %4329 = vmatpush1.msra.mxu0 0.0
  %4330 = vmatprep.subr.mxu0 0.0
  %4331 = vmatpush1.msra.mxu0 0.0
  %4332 = vmatprep.subr.mxu0 0.0
  %4333 = vmatpush1.msra.mxu0 0.0
  %4334 = vmatprep.subr.mxu0 0.0
  %4335 = vmatpush1.msra.mxu0 0.0
  %4336 = vmatprep.subr.mxu0 0.0
  %4337 = vmatpush1.msra.mxu0 0.0
  %4338 = vmatprep.subr.mxu0 0.0
  %4339 = vmatpush1.msra.mxu0 0.0
  %4340 = vmatprep.subr.mxu0 0.0
  %4341 = vmatpush1.msra.mxu0 0.0
  %4342 = vmatprep.subr.mxu0 0.0
  %4343 = vmatpush1.msra.mxu0 0.0
  %4344 = vmatprep.subr.mxu0 0.0
  %4345 = vmatpush1.msra.mxu0 0.0
  %4346 = vmatprep.subr.mxu0 0.0
  %4347 = vmatpush1.msra.mxu0 0.0
  %4348 = vmatprep.subr.mxu0 0.0
  %4349 = vmatpush1.msra.mxu0 0.0
  %4350 = vmatprep.subr.mxu0 0.0
  %4351 = vmatpush1.msra.mxu0 0.0
  %4352 = vmatprep.subr.mxu0 0.0
  %4353 = vmatpush1.msra.mxu0 0.0
  %4354 = vmatprep.subr.mxu0 0.0
  %4355 = vmatpush1.msra.mxu0 0.0
  %4356 = vmatprep.subr.mxu0 0.0
  %4357 = vmatpush1.msra.mxu0 0.0
  %4358 = vmatprep.subr.mxu0 0.0
  %4359 = vmatpush1.msra.mxu0 0.0
  %4360 = vmatprep.subr.mxu0 0.0
  %4361 = vmatpush1.msra.mxu0 0.0
  %4362 = vmatprep.subr.mxu0 0.0
  %4363 = vmatpush1.msra.mxu0 0.0
  %4364 = vmatprep.subr.mxu0 0.0
  %4365 = vmatpush1.msra.mxu0 0.0
  %4366 = vmatprep.subr.mxu0 0.0
  %4367 = vmatpush1.msra.mxu0 0.0
  %4368 = vmatprep.subr.mxu0 0.0
  %4369 = vmatpush1.msra.mxu0 0.0
  %4370 = vmatprep.subr.mxu0 0.0
  %4371 = vmatpush1.msra.mxu0 0.0
  %4372 = vmatprep.subr.mxu0 0.0
  %4373 = vmatpush1.msra.mxu0 0.0
  %4374 = vmatprep.subr.mxu0 0.0
  %4375 = vmatpush1.msra.mxu0 0.0
  %4376 = vmatprep.subr.mxu0 0.0
  %4377 = vmatpush1.msra.mxu0 0.0
  %4378 = vmatprep.subr.mxu0 0.0
  %4379 = vmatpush1.msra.mxu0 0.0
  %4380 = vmatprep.subr.mxu0 0.0
  %4381 = vmatpush1.msra.mxu0 0.0
  %4382 = vmatprep.subr.mxu0 0.0
  %4383 = vmatpush1.msra.mxu0 0.0
  %4384 = vmatprep.mubr.f32.mxu0 0.0
  %4385 = vmatmul.mubr.f32.gmra.mrb[0].mxu0 %v600
  %v4386 = vpop.f32.mrb[0].mxu0
  %v4387 = vadd.f32 %v4318, %v4386
  %v4388 = vpop.f32.mrb[0].mxu0
  %4389 = vmatprep.mubr.f32.mxu0 0.0
  %4390 = vmatmul.mubr.f32.gmra.mrb[0].mxu0 %v603
  %v4391 = vpop.f32.mrb[0].mxu0
  %v4392 = vadd.f32 %v4318, %v4391
  %v4393 = vpop.f32.mrb[0].mxu0
  %4394 = vmatprep.mubr.f32.mxu0 0.0
  %4395 = vmatmul.mubr.f32.gmra.mrb[0].mxu0 %v606
  %v4396 = vpop.f32.mrb[0].mxu0
  %v4397 = vadd.f32 %v4318, %v4396
  %v4398 = vpop.f32.mrb[0].mxu0
  %4399 = vmatprep.mubr.f32.mxu0 0.0
  %4400 = vmatmul.mubr.f32.gmra.mrb[0].mxu0 %v609
  %v4401 = vpop.f32.mrb[0].mxu0
  %v4402 = vadd.f32 %v4318, %v4401
  %v4403 = vpop.f32.mrb[0].mxu0
  %4404 = vmatprep.mubr.f32.mxu0 0.0
  %4405 = vmatmul.mubr.f32.gmra.mrb[0].mxu0 %v612
  %v4406 = vpop.f32.mrb[0].mxu0
  %v4407 = vadd.f32 %v4318, %v4406
  %v4408 = vpop.f32.mrb[0].mxu0
  %4409 = vmatprep.mubr.f32.mxu0 0.0
  %4410 = vmatmul.mubr.f32.gmra.mrb[0].mxu0 %v615
  %v4411 = vpop.f32.mrb[0].mxu0
  %v4412 = vadd.f32 %v4318, %v4411
  %v4413 = vpop.f32.mrb[0].mxu0
  %4414 = vmatprep.mubr.f32.mxu0 0.0
  %4415 = vmatmul.mubr.f32.gmra.mrb[0].mxu0 %v618
  %v4416 = vpop.f32.mrb[0].mxu0
  %v4417 = vadd.f32 %v4318, %v4416
  %v4418 = vpop.f32.mrb[0].mxu0
  %4419 = vmatprep.mubr.f32.mxu0 0.0
  %4420 = vmatmul.mubr.f32.gmra.mrb[0].mxu0 %v621
  %v4421 = vpop.f32.mrb[0].mxu0
  %v4422 = vadd.f32 %v4318, %v4421
  %v4423 = vpop.f32.mrb[0].mxu0
  %4424 = vdwg.mxu0
  %v4425 = vsub.f32 0.0, %v4387
  %v4426 = vsub.f32 0.0, %v4392
  %v4427 = vsub.f32 0.0, %v4397
  %v4428 = vsub.f32 0.0, %v4402
  %v4429 = vsub.f32 0.0, %v4407
  %v4430 = vsub.f32 0.0, %v4412
  %v4431 = vsub.f32 0.0, %v4417
  %v4432 = vsub.f32 0.0, %v4422
  %v4433 = vmul.f32 %v4425, 1.442695
  %v4434 = vpow.pop %v4433
  %v4435 = vmul.f32 %v4426, 1.442695
  %v4436 = vpow.pop %v4435
  %v4437 = vmul.f32 %v4427, 1.442695
  %v4438 = vpow.pop %v4437
  %v4439 = vmul.f32 %v4428, 1.442695
  %v4440 = vpow.pop %v4439
  %v4441 = vmul.f32 %v4429, 1.442695
  %v4442 = vpow.pop %v4441
  %v4443 = vmul.f32 %v4430, 1.442695
  %v4444 = vpow.pop %v4443
  %v4445 = vmul.f32 %v4431, 1.442695
  %v4446 = vpow.pop %v4445
  %v4447 = vmul.f32 %v4432, 1.442695
  %v4448 = vpow.pop %v4447
  %v4449 = vadd.f32 %v4434, 1.0
  %v4450 = vadd.f32 %v4436, 1.0
  %v4451 = vadd.f32 %v4438, 1.0
  %v4452 = vadd.f32 %v4440, 1.0
  %v4453 = vadd.f32 %v4442, 1.0
  %v4454 = vadd.f32 %v4444, 1.0
  %v4455 = vadd.f32 %v4446, 1.0
  %v4456 = vadd.f32 %v4448, 1.0
  %v4457 = vrcp.pop %v4449
  %v4458 = vrcp.pop %v4450
  %v4459 = vrcp.pop %v4451
  %v4460 = vrcp.pop %v4452
  %v4461 = vrcp.pop %v4453
  %v4462 = vrcp.pop %v4454
  %v4463 = vrcp.pop %v4455
  %v4464 = vrcp.pop %v4456
  %v4465 = vmul.f32 %v4387, %v4457
  %v4466 = vmul.f32 %v4392, %v4458
  %v4467 = vmul.f32 %v4397, %v4459
  %v4468 = vmul.f32 %v4402, %v4460
  %v4469 = vmul.f32 %v4407, %v4461
  %v4470 = vmul.f32 %v4412, %v4462
  %v4471 = vmul.f32 %v4417, %v4463
  %v4472 = vmul.f32 %v4422, %v4464
  %v4473 = vmul.f32 %v4465, %v779
  %v4474 = vmul.f32 %v4466, %v784
  %v4475 = vmul.f32 %v4467, %v789
  %v4476 = vmul.f32 %v4468, %v794
  %v4477 = vmul.f32 %v4469, %v799
  %v4478 = vmul.f32 %v4470, %v804
  %v4479 = vmul.f32 %v4471, %v809
  %v4480 = vmul.f32 %v4472, %v814
  %s4481 = scalar_lea.vmem %s7, 32
  %v4482 = vld [vmem:[%s4481] sm:$0xff]
  %v4483 = vld [vmem:[%s4481 + $0x8] sm:$0xff]
  %v4484 = vld [vmem:[%s4481 + $0x10] sm:$0xff]
  %v4485 = vld [vmem:[%s4481 + $0x18] sm:$0xff]
  %v4487 = vsel %vm828, %v4293, 0
  %4489 = vmatprep.subr.mxu0 0.0
  %4490 = vmatpush1.msra.mxu0 %v4482
  %4491 = vmatprep.subr.mxu0 0.0
  %4492 = vmatpush1.msra.mxu0 %v4483
  %4493 = vmatprep.subr.mxu0 0.0
  %4494 = vmatpush1.msra.mxu0 %v4484
  %4495 = vmatprep.subr.mxu0 0.0
  %4496 = vmatpush1.msra.mxu0 %v4485
  %4497 = vmatprep.subr.mxu0 0.0
  %4498 = vmatpush1.msra.mxu0 0.0
  %4499 = vmatprep.subr.mxu0 0.0
  %4500 = vmatpush1.msra.mxu0 0.0
  %4501 = vmatprep.subr.mxu0 0.0
  %4502 = vmatpush1.msra.mxu0 0.0
  %4503 = vmatprep.subr.mxu0 0.0
  %4504 = vmatpush1.msra.mxu0 0.0
  %4505 = vmatprep.subr.mxu0 0.0
  %4506 = vmatpush1.msra.mxu0 0.0
  %4507 = vmatprep.subr.mxu0 0.0
  %4508 = vmatpush1.msra.mxu0 0.0
  %4509 = vmatprep.subr.mxu0 0.0
  %4510 = vmatpush1.msra.mxu0 0.0
  %4511 = vmatprep.subr.mxu0 0.0
  %4512 = vmatpush1.msra.mxu0 0.0
  %4513 = vmatprep.subr.mxu0 0.0
  %4514 = vmatpush1.msra.mxu0 0.0
  %4515 = vmatprep.subr.mxu0 0.0
  %4516 = vmatpush1.msra.mxu0 0.0
  %4517 = vmatprep.subr.mxu0 0.0
  %4518 = vmatpush1.msra.mxu0 0.0
  %4519 = vmatprep.subr.mxu0 0.0
  %4520 = vmatpush1.msra.mxu0 0.0
  %4521 = vmatprep.subr.mxu0 0.0
  %4522 = vmatpush1.msra.mxu0 0.0
  %4523 = vmatprep.subr.mxu0 0.0
  %4524 = vmatpush1.msra.mxu0 0.0
  %4525 = vmatprep.subr.mxu0 0.0
  %4526 = vmatpush1.msra.mxu0 0.0
  %4527 = vmatprep.subr.mxu0 0.0
  %4528 = vmatpush1.msra.mxu0 0.0
  %4529 = vmatprep.subr.mxu0 0.0
  %4530 = vmatpush1.msra.mxu0 0.0
  %4531 = vmatprep.subr.mxu0 0.0
  %4532 = vmatpush1.msra.mxu0 0.0
  %4533 = vmatprep.subr.mxu0 0.0
  %4534 = vmatpush1.msra.mxu0 0.0
  %4535 = vmatprep.subr.mxu0 0.0
  %4536 = vmatpush1.msra.mxu0 0.0
  %4537 = vmatprep.subr.mxu0 0.0
  %4538 = vmatpush1.msra.mxu0 0.0
  %4539 = vmatprep.subr.mxu0 0.0
  %4540 = vmatpush1.msra.mxu0 0.0
  %4541 = vmatprep.subr.mxu0 0.0
  %4542 = vmatpush1.msra.mxu0 0.0
  %4543 = vmatprep.subr.mxu0 0.0
  %4544 = vmatpush1.msra.mxu0 0.0
  %4545 = vmatprep.subr.mxu0 0.0
  %4546 = vmatpush1.msra.mxu0 0.0
  %4547 = vmatprep.subr.mxu0 0.0
  %4548 = vmatpush1.msra.mxu0 0.0
  %4549 = vmatprep.subr.mxu0 0.0
  %4550 = vmatpush1.msra.mxu0 0.0
  %4551 = vmatprep.subr.mxu0 0.0
  %4552 = vmatpush1.msra.mxu0 0.0
  %4553 = vmatprep.mubr.f32.mxu0 0.0
  %4554 = vmatmul.mubr.f32.gmra.mrb[0].mxu0 %v4487
  %v4555 = vpop.f32.mrb[0].mxu0
  %v4556 = vadd.f32 0.0, %v4555
  %v4557 = vpop.f32.mrb[0].mxu0
  %4558 = vdwg.mxu0
  %s4559 = scalar_lea.vmem %s9, 32
  %v4560 = vld [vmem:[%s4559] sm:$0xff]
  %v4561 = vld [vmem:[%s4559 + $0x8] sm:$0xff]
  %v4562 = vld [vmem:[%s4559 + $0x10] sm:$0xff]
  %v4563 = vld [vmem:[%s4559 + $0x18] sm:$0xff]
  %s4564 = scalar_lea.vmem %s11, 1
  %v4565 = vld [vmem:[%s4564] sm:$0x1]
  %v4567 = vlaneseq
  %v4568 = vshrl.u32 %v4567, 7
  %v4569 = vsub.s32 0, %v4568
  %v4570 = vrot.slane %v4565, %v4569
  %v4573 = vsel %vm828, %v4465, 0
  %v4576 = vsel %vm828, %v4466, 0
  %v4579 = vsel %vm828, %v4467, 0
  %v4582 = vsel %vm828, %v4468, 0
  %v4585 = vsel %vm828, %v4469, 0
  %v4588 = vsel %vm828, %v4470, 0
  %v4591 = vsel %vm828, %v4471, 0
  %v4594 = vsel %vm828, %v4472, 0
  %4596 = vmatprep.subr.mxu0 0.0
  %4597 = vmatpush1.msra.mxu0 %v4560
  %4598 = vmatprep.subr.mxu0 0.0
  %4599 = vmatpush1.msra.mxu0 %v4561
  %4600 = vmatprep.subr.mxu0 0.0
  %4601 = vmatpush1.msra.mxu0 %v4562
  %4602 = vmatprep.subr.mxu0 0.0
  %4603 = vmatpush1.msra.mxu0 %v4563
  %4604 = vmatprep.subr.mxu0 0.0
  %4605 = vmatpush1.msra.mxu0 0.0
  %4606 = vmatprep.subr.mxu0 0.0
  %4607 = vmatpush1.msra.mxu0 0.0
  %4608 = vmatprep.subr.mxu0 0.0
  %4609 = vmatpush1.msra.mxu0 0.0
  %4610 = vmatprep.subr.mxu0 0.0
  %4611 = vmatpush1.msra.mxu0 0.0
  %4612 = vmatprep.subr.mxu0 0.0
  %4613 = vmatpush1.msra.mxu0 0.0
  %4614 = vmatprep.subr.mxu0 0.0
  %4615 = vmatpush1.msra.mxu0 0.0
  %4616 = vmatprep.subr.mxu0 0.0
  %4617 = vmatpush1.msra.mxu0 0.0
  %4618 = vmatprep.subr.mxu0 0.0
  %4619 = vmatpush1.msra.mxu0 0.0
  %4620 = vmatprep.subr.mxu0 0.0
  %4621 = vmatpush1.msra.mxu0 0.0
  %4622 = vmatprep.subr.mxu0 0.0
  %4623 = vmatpush1.msra.mxu0 0.0
  %4624 = vmatprep.subr.mxu0 0.0
  %4625 = vmatpush1.msra.mxu0 0.0
  %4626 = vmatprep.subr.mxu0 0.0
  %4627 = vmatpush1.msra.mxu0 0.0
  %4628 = vmatprep.subr.mxu0 0.0
  %4629 = vmatpush1.msra.mxu0 0.0
  %4630 = vmatprep.subr.mxu0 0.0
  %4631 = vmatpush1.msra.mxu0 0.0
  %4632 = vmatprep.subr.mxu0 0.0
  %4633 = vmatpush1.msra.mxu0 0.0
  %4634 = vmatprep.subr.mxu0 0.0
  %4635 = vmatpush1.msra.mxu0 0.0
  %4636 = vmatprep.subr.mxu0 0.0
  %4637 = vmatpush1.msra.mxu0 0.0
  %4638 = vmatprep.subr.mxu0 0.0
  %4639 = vmatpush1.msra.mxu0 0.0
  %4640 = vmatprep.subr.mxu0 0.0
  %4641 = vmatpush1.msra.mxu0 0.0
  %4642 = vmatprep.subr.mxu0 0.0
  %4643 = vmatpush1.msra.mxu0 0.0
  %4644 = vmatprep.subr.mxu0 0.0
  %4645 = vmatpush1.msra.mxu0 0.0
  %4646 = vmatprep.subr.mxu0 0.0
  %4647 = vmatpush1.msra.mxu0 0.0
  %4648 = vmatprep.subr.mxu0 0.0
  %4649 = vmatpush1.msra.mxu0 0.0
  %4650 = vmatprep.subr.mxu0 0.0
  %4651 = vmatpush1.msra.mxu0 0.0
  %4652 = vmatprep.subr.mxu0 0.0
  %4653 = vmatpush1.msra.mxu0 0.0
  %4654 = vmatprep.subr.mxu0 0.0
  %4655 = vmatpush1.msra.mxu0 0.0
  %4656 = vmatprep.subr.mxu0 0.0
  %4657 = vmatpush1.msra.mxu0 0.0
  %4658 = vmatprep.subr.mxu0 0.0
  %4659 = vmatpush1.msra.mxu0 0.0
  %4660 = vmatprep.mubr.f32.mxu0 0.0
  %4661 = vmatmul.mubr.f32.gmra.mrb[0].mxu0 %v4573
  %v4662 = vpop.f32.mrb[0].mxu0
  %v4663 = vadd.f32 %v4570, %v4662
  %v4664 = vpop.f32.mrb[0].mxu0
  %4665 = vmatprep.mubr.f32.mxu0 0.0
  %4666 = vmatmul.mubr.f32.gmra.mrb[0].mxu0 %v4576
  %v4667 = vpop.f32.mrb[0].mxu0
  %v4668 = vadd.f32 %v4570, %v4667
  %v4669 = vpop.f32.mrb[0].mxu0
  %4670 = vmatprep.mubr.f32.mxu0 0.0
  %4671 = vmatmul.mubr.f32.gmra.mrb[0].mxu0 %v4579
  %v4672 = vpop.f32.mrb[0].mxu0
  %v4673 = vadd.f32 %v4570, %v4672
  %v4674 = vpop.f32.mrb[0].mxu0
  %4675 = vmatprep.mubr.f32.mxu0 0.0
  %4676 = vmatmul.mubr.f32.gmra.mrb[0].mxu0 %v4582
  %v4677 = vpop.f32.mrb[0].mxu0
  %v4678 = vadd.f32 %v4570, %v4677
  %v4679 = vpop.f32.mrb[0].mxu0
  %4680 = vmatprep.mubr.f32.mxu0 0.0
  %4681 = vmatmul.mubr.f32.gmra.mrb[0].mxu0 %v4585
  %v4682 = vpop.f32.mrb[0].mxu0
  %v4683 = vadd.f32 %v4570, %v4682
  %v4684 = vpop.f32.mrb[0].mxu0
  %4685 = vmatprep.mubr.f32.mxu0 0.0
  %4686 = vmatmul.mubr.f32.gmra.mrb[0].mxu0 %v4588
  %v4687 = vpop.f32.mrb[0].mxu0
  %v4688 = vadd.f32 %v4570, %v4687
  %v4689 = vpop.f32.mrb[0].mxu0
  %4690 = vmatprep.mubr.f32.mxu0 0.0
  %4691 = vmatmul.mubr.f32.gmra.mrb[0].mxu0 %v4591
  %v4692 = vpop.f32.mrb[0].mxu0
  %v4693 = vadd.f32 %v4570, %v4692
  %v4694 = vpop.f32.mrb[0].mxu0
  %4695 = vmatprep.mubr.f32.mxu0 0.0
  %4696 = vmatmul.mubr.f32.gmra.mrb[0].mxu0 %v4594
  %v4697 = vpop.f32.mrb[0].mxu0
  %v4698 = vadd.f32 %v4570, %v4697
  %v4699 = vpop.f32.mrb[0].mxu0
  %4700 = vdwg.mxu0
  %v4701 = vmul.f32 %v4663, %v779
  %v4702 = vmul.f32 %v4668, %v784
  %v4703 = vmul.f32 %v4673, %v789
  %v4704 = vmul.f32 %v4678, %v794
  %v4705 = vmul.f32 %v4683, %v799
  %v4706 = vmul.f32 %v4688, %v804
  %v4707 = vmul.f32 %v4693, %v809
  %v4708 = vmul.f32 %v4698, %v814
  %v4709 = vmul.f32 %v4701, %v4556
  %v4710 = vmul.f32 %v4702, %v4556
  %v4711 = vmul.f32 %v4703, %v4556
  %v4712 = vmul.f32 %v4704, %v4556
  %v4713 = vmul.f32 %v4705, %v4556
  %v4714 = vmul.f32 %v4706, %v4556
  %v4715 = vmul.f32 %v4707, %v4556
  %v4716 = vmul.f32 %v4708, %v4556
  %v4717 = vsel %vm828, %v4709, 0.0
  %v4718 = vrot.slane %v4717, 4
  %v4719 = vadd.f32 %v4717, %v4718
  %v4720 = vrot.slane %v4719, 2
  %v4721 = vadd.f32 %v4719, %v4720
  %v4722 = vrot.slane %v4721, 1
  %v4723 = vadd.f32 %v4721, %v4722
  %v4724 = vsel %vm828, %v4710, 0.0
  %v4725 = vrot.slane %v4724, 4
  %v4726 = vadd.f32 %v4724, %v4725
  %v4727 = vrot.slane %v4726, 2
  %v4728 = vadd.f32 %v4726, %v4727
  %v4729 = vrot.slane %v4728, 1
  %v4730 = vadd.f32 %v4728, %v4729
  %v4731 = vsel %vm828, %v4711, 0.0
  %v4732 = vrot.slane %v4731, 4
  %v4733 = vadd.f32 %v4731, %v4732
  %v4734 = vrot.slane %v4733, 2
  %v4735 = vadd.f32 %v4733, %v4734
  %v4736 = vrot.slane %v4735, 1
  %v4737 = vadd.f32 %v4735, %v4736
  %v4738 = vsel %vm828, %v4712, 0.0
  %v4739 = vrot.slane %v4738, 4
  %v4740 = vadd.f32 %v4738, %v4739
  %v4741 = vrot.slane %v4740, 2
  %v4742 = vadd.f32 %v4740, %v4741
  %v4743 = vrot.slane %v4742, 1
  %v4744 = vadd.f32 %v4742, %v4743
  %v4745 = vsel %vm828, %v4713, 0.0
  %v4746 = vrot.slane %v4745, 4
  %v4747 = vadd.f32 %v4745, %v4746
  %v4748 = vrot.slane %v4747, 2
  %v4749 = vadd.f32 %v4747, %v4748
  %v4750 = vrot.slane %v4749, 1
  %v4751 = vadd.f32 %v4749, %v4750
  %v4752 = vsel %vm828, %v4714, 0.0
  %v4753 = vrot.slane %v4752, 4
  %v4754 = vadd.f32 %v4752, %v4753
  %v4755 = vrot.slane %v4754, 2
  %v4756 = vadd.f32 %v4754, %v4755
  %v4757 = vrot.slane %v4756, 1
  %v4758 = vadd.f32 %v4756, %v4757
  %v4759 = vsel %vm828, %v4715, 0.0
  %v4760 = vrot.slane %v4759, 4
  %v4761 = vadd.f32 %v4759, %v4760
  %v4762 = vrot.slane %v4761, 2
  %v4763 = vadd.f32 %v4761, %v4762
  %v4764 = vrot.slane %v4763, 1
  %v4765 = vadd.f32 %v4763, %v4764
  %v4766 = vsel %vm828, %v4716, 0.0
  %v4767 = vrot.slane %v4766, 4
  %v4768 = vadd.f32 %v4766, %v4767
  %v4769 = vrot.slane %v4768, 2
  %v4770 = vadd.f32 %v4768, %v4769
  %v4771 = vrot.slane %v4770, 1
  %v4772 = vadd.f32 %v4770, %v4771
  %s4773 = scalar_lea.vmem %s13, 32
  %v4774 = vld [vmem:[%s4773] sm:$0xff]
  %v4775 = vld [vmem:[%s4773 + $0x8] sm:$0xff]
  %v4776 = vld [vmem:[%s4773 + $0x10] sm:$0xff]
  %v4777 = vld [vmem:[%s4773 + $0x18] sm:$0xff]
  %s4778 = scalar_lea.vmem %s15, 1
  %v4779 = vld [vmem:[%s4778] sm:$0x1]
  %v4781 = vlaneseq
  %v4782 = vshrl.u32 %v4781, 7
  %v4783 = vsub.s32 0, %v4782
  %v4784 = vrot.slane %v4779, %v4783
  %v4794 = vsel %vm1133, %v4730, %v4723
  %v4795 = vsel %vm1135, %v4737, %v4794
  %v4796 = vsel %vm1137, %v4744, %v4795
  %v4797 = vsel %vm1139, %v4751, %v4796
  %v4798 = vsel %vm1141, %v4758, %v4797
  %v4799 = vsel %vm1143, %v4765, %v4798
  %v4800 = vsel %vm1145, %v4772, %v4799
  %v4801 = vsel %vm828, %v4800, 0
  %4803 = vmatprep.subr.mxu0 0.0
  %4804 = vmatpush1.msra.mxu0 %v4774
  %4805 = vmatprep.subr.mxu0 0.0
  %4806 = vmatpush1.msra.mxu0 %v4775
  %4807 = vmatprep.subr.mxu0 0.0
  %4808 = vmatpush1.msra.mxu0 %v4776
  %4809 = vmatprep.subr.mxu0 0.0
  %4810 = vmatpush1.msra.mxu0 %v4777
  %4811 = vmatprep.subr.mxu0 0.0
  %4812 = vmatpush1.msra.mxu0 0.0
  %4813 = vmatprep.subr.mxu0 0.0
  %4814 = vmatpush1.msra.mxu0 0.0
  %4815 = vmatprep.subr.mxu0 0.0
  %4816 = vmatpush1.msra.mxu0 0.0
  %4817 = vmatprep.subr.mxu0 0.0
  %4818 = vmatpush1.msra.mxu0 0.0
  %4819 = vmatprep.subr.mxu0 0.0
  %4820 = vmatpush1.msra.mxu0 0.0
  %4821 = vmatprep.subr.mxu0 0.0
  %4822 = vmatpush1.msra.mxu0 0.0
  %4823 = vmatprep.subr.mxu0 0.0
  %4824 = vmatpush1.msra.mxu0 0.0
  %4825 = vmatprep.subr.mxu0 0.0
  %4826 = vmatpush1.msra.mxu0 0.0
  %4827 = vmatprep.subr.mxu0 0.0
  %4828 = vmatpush1.msra.mxu0 0.0
  %4829 = vmatprep.subr.mxu0 0.0
  %4830 = vmatpush1.msra.mxu0 0.0
  %4831 = vmatprep.subr.mxu0 0.0
  %4832 = vmatpush1.msra.mxu0 0.0
  %4833 = vmatprep.subr.mxu0 0.0
  %4834 = vmatpush1.msra.mxu0 0.0
  %4835 = vmatprep.subr.mxu0 0.0
  %4836 = vmatpush1.msra.mxu0 0.0
  %4837 = vmatprep.subr.mxu0 0.0
  %4838 = vmatpush1.msra.mxu0 0.0
  %4839 = vmatprep.subr.mxu0 0.0
  %4840 = vmatpush1.msra.mxu0 0.0
  %4841 = vmatprep.subr.mxu0 0.0
  %4842 = vmatpush1.msra.mxu0 0.0
  %4843 = vmatprep.subr.mxu0 0.0
  %4844 = vmatpush1.msra.mxu0 0.0
  %4845 = vmatprep.subr.mxu0 0.0
  %4846 = vmatpush1.msra.mxu0 0.0
  %4847 = vmatprep.subr.mxu0 0.0
  %4848 = vmatpush1.msra.mxu0 0.0
  %4849 = vmatprep.subr.mxu0 0.0
  %4850 = vmatpush1.msra.mxu0 0.0
  %4851 = vmatprep.subr.mxu0 0.0
  %4852 = vmatpush1.msra.mxu0 0.0
  %4853 = vmatprep.subr.mxu0 0.0
  %4854 = vmatpush1.msra.mxu0 0.0
  %4855 = vmatprep.subr.mxu0 0.0
  %4856 = vmatpush1.msra.mxu0 0.0
  %4857 = vmatprep.subr.mxu0 0.0
  %4858 = vmatpush1.msra.mxu0 0.0
  %4859 = vmatprep.subr.mxu0 0.0
  %4860 = vmatpush1.msra.mxu0 0.0
  %4861 = vmatprep.subr.mxu0 0.0
  %4862 = vmatpush1.msra.mxu0 0.0
  %4863 = vmatprep.subr.mxu0 0.0
  %4864 = vmatpush1.msra.mxu0 0.0
  %4865 = vmatprep.subr.mxu0 0.0
  %4866 = vmatpush1.msra.mxu0 0.0
  %4867 = vmatprep.mubr.f32.mxu0 0.0
  %4868 = vmatmul.mubr.f32.gmra.mrb[0].mxu0 %v4801
  %v4869 = vpop.f32.mrb[0].mxu0
  %v4870 = vadd.f32 %v4784, %v4869
  %v4871 = vpop.f32.mrb[0].mxu0
  %4872 = vdwg.mxu0
  %v4873 = vsub.f32 0.0, %v4870
  %v4874 = vmul.f32 %v4873, 1.442695
  %v4875 = vpow.pop %v4874
  %v4876 = vadd.f32 %v4875, 1.0
  %v4877 = vrcp.pop %v4876
  %v4878 = vmul.f32 %v4870, %v4877
  %s4879 = scalar_lea.vmem %s17, 32
  %v4880 = vld [vmem:[%s4879] sm:$0xff]
  %v4881 = vld [vmem:[%s4879 + $0x8] sm:$0xff]
  %v4882 = vld [vmem:[%s4879 + $0x10] sm:$0xff]
  %v4883 = vld [vmem:[%s4879 + $0x18] sm:$0xff]
  %s4884 = scalar_lea.vmem %s19, 1
  %v4885 = vld [vmem:[%s4884] sm:$0x1]
  %v4887 = vlaneseq
  %v4888 = vshrl.u32 %v4887, 7
  %v4889 = vsub.s32 0, %v4888
  %v4890 = vrot.slane %v4885, %v4889
  %v4893 = vsel %vm828, %v4878, 0
  %4895 = vmatprep.subr.mxu0 0.0
  %4896 = vmatpush1.msra.mxu0 %v4880
  %4897 = vmatprep.subr.mxu0 0.0
  %4898 = vmatpush1.msra.mxu0 %v4881
  %4899 = vmatprep.subr.mxu0 0.0
  %4900 = vmatpush1.msra.mxu0 %v4882
  %4901 = vmatprep.subr.mxu0 0.0
  %4902 = vmatpush1.msra.mxu0 %v4883
  %4903 = vmatprep.subr.mxu0 0.0
  %4904 = vmatpush1.msra.mxu0 0.0
  %4905 = vmatprep.subr.mxu0 0.0
  %4906 = vmatpush1.msra.mxu0 0.0
  %4907 = vmatprep.subr.mxu0 0.0
  %4908 = vmatpush1.msra.mxu0 0.0
  %4909 = vmatprep.subr.mxu0 0.0
  %4910 = vmatpush1.msra.mxu0 0.0
  %4911 = vmatprep.subr.mxu0 0.0
  %4912 = vmatpush1.msra.mxu0 0.0
  %4913 = vmatprep.subr.mxu0 0.0
  %4914 = vmatpush1.msra.mxu0 0.0
  %4915 = vmatprep.subr.mxu0 0.0
  %4916 = vmatpush1.msra.mxu0 0.0
  %4917 = vmatprep.subr.mxu0 0.0
  %4918 = vmatpush1.msra.mxu0 0.0
  %4919 = vmatprep.subr.mxu0 0.0
  %4920 = vmatpush1.msra.mxu0 0.0
  %4921 = vmatprep.subr.mxu0 0.0
  %4922 = vmatpush1.msra.mxu0 0.0
  %4923 = vmatprep.subr.mxu0 0.0
  %4924 = vmatpush1.msra.mxu0 0.0
  %4925 = vmatprep.subr.mxu0 0.0
  %4926 = vmatpush1.msra.mxu0 0.0
  %4927 = vmatprep.subr.mxu0 0.0
  %4928 = vmatpush1.msra.mxu0 0.0
  %4929 = vmatprep.subr.mxu0 0.0
  %4930 = vmatpush1.msra.mxu0 0.0
  %4931 = vmatprep.subr.mxu0 0.0
  %4932 = vmatpush1.msra.mxu0 0.0
  %4933 = vmatprep.subr.mxu0 0.0
  %4934 = vmatpush1.msra.mxu0 0.0
  %4935 = vmatprep.subr.mxu0 0.0
  %4936 = vmatpush1.msra.mxu0 0.0
  %4937 = vmatprep.subr.mxu0 0.0
  %4938 = vmatpush1.msra.mxu0 0.0
  %4939 = vmatprep.subr.mxu0 0.0
  %4940 = vmatpush1.msra.mxu0 0.0
  %4941 = vmatprep.subr.mxu0 0.0
  %4942 = vmatpush1.msra.mxu0 0.0
  %4943 = vmatprep.subr.mxu0 0.0
  %4944 = vmatpush1.msra.mxu0 0.0
  %4945 = vmatprep.subr.mxu0 0.0
  %4946 = vmatpush1.msra.mxu0 0.0
  %4947 = vmatprep.subr.mxu0 0.0
  %4948 = vmatpush1.msra.mxu0 0.0
  %4949 = vmatprep.subr.mxu0 0.0
  %4950 = vmatpush1.msra.mxu0 0.0
  %4951 = vmatprep.subr.mxu0 0.0
  %4952 = vmatpush1.msra.mxu0 0.0
  %4953 = vmatprep.subr.mxu0 0.0
  %4954 = vmatpush1.msra.mxu0 0.0
  %4955 = vmatprep.subr.mxu0 0.0
  %4956 = vmatpush1.msra.mxu0 0.0
  %4957 = vmatprep.subr.mxu0 0.0
  %4958 = vmatpush1.msra.mxu0 0.0
  %4959 = vmatprep.mubr.f32.mxu0 0.0
  %4960 = vmatmul.mubr.f32.gmra.mrb[0].mxu0 %v4893
  %v4961 = vpop.f32.mrb[0].mxu0
  %v4962 = vadd.f32 %v4890, %v4961
  %v4963 = vpop.f32.mrb[0].mxu0
  %4964 = vdwg.mxu0
  %s4965 = scalar_lea.vmem %s21, 32
  %v4966 = vld [vmem:[%s4965] sm:$0xff]
  %v4967 = vld [vmem:[%s4965 + $0x8] sm:$0xff]
  %v4968 = vld [vmem:[%s4965 + $0x10] sm:$0xff]
  %v4969 = vld [vmem:[%s4965 + $0x18] sm:$0xff]
  %4970 = vmatprep.subr.mxu0 0.0
  %4971 = vmatpush1.msra.mxu0 %v4966
  %4972 = vmatprep.subr.mxu0 0.0
  %4973 = vmatpush1.msra.mxu0 %v4967
  %4974 = vmatprep.subr.mxu0 0.0
  %4975 = vmatpush1.msra.mxu0 %v4968
  %4976 = vmatprep.subr.mxu0 0.0
  %4977 = vmatpush1.msra.mxu0 %v4969
  %4978 = vmatprep.subr.mxu0 0.0
  %4979 = vmatpush1.msra.mxu0 0.0
  %4980 = vmatprep.subr.mxu0 0.0
  %4981 = vmatpush1.msra.mxu0 0.0
  %4982 = vmatprep.subr.mxu0 0.0
  %4983 = vmatpush1.msra.mxu0 0.0
  %4984 = vmatprep.subr.mxu0 0.0
  %4985 = vmatpush1.msra.mxu0 0.0
  %4986 = vmatprep.subr.mxu0 0.0
  %4987 = vmatpush1.msra.mxu0 0.0
  %4988 = vmatprep.subr.mxu0 0.0
  %4989 = vmatpush1.msra.mxu0 0.0
  %4990 = vmatprep.subr.mxu0 0.0
  %4991 = vmatpush1.msra.mxu0 0.0
  %4992 = vmatprep.subr.mxu0 0.0
  %4993 = vmatpush1.msra.mxu0 0.0
  %4994 = vmatprep.subr.mxu0 0.0
  %4995 = vmatpush1.msra.mxu0 0.0
  %4996 = vmatprep.subr.mxu0 0.0
  %4997 = vmatpush1.msra.mxu0 0.0
  %4998 = vmatprep.subr.mxu0 0.0
  %4999 = vmatpush1.msra.mxu0 0.0
  %5000 = vmatprep.subr.mxu0 0.0
  %5001 = vmatpush1.msra.mxu0 0.0
  %5002 = vmatprep.subr.mxu0 0.0
  %5003 = vmatpush1.msra.mxu0 0.0
  %5004 = vmatprep.subr.mxu0 0.0
  %5005 = vmatpush1.msra.mxu0 0.0
  %5006 = vmatprep.subr.mxu0 0.0
  %5007 = vmatpush1.msra.mxu0 0.0
  %5008 = vmatprep.subr.mxu0 0.0
  %5009 = vmatpush1.msra.mxu0 0.0
  %5010 = vmatprep.subr.mxu0 0.0
  %5011 = vmatpush1.msra.mxu0 0.0
  %5012 = vmatprep.subr.mxu0 0.0
  %5013 = vmatpush1.msra.mxu0 0.0
  %5014 = vmatprep.subr.mxu0 0.0
  %5015 = vmatpush1.msra.mxu0 0.0
  %5016 = vmatprep.subr.mxu0 0.0
  %5017 = vmatpush1.msra.mxu0 0.0
  %5018 = vmatprep.subr.mxu0 0.0
  %5019 = vmatpush1.msra.mxu0 0.0
  %5020 = vmatprep.subr.mxu0 0.0
  %5021 = vmatpush1.msra.mxu0 0.0
  %5022 = vmatprep.subr.mxu0 0.0
  %5023 = vmatpush1.msra.mxu0 0.0
  %5024 = vmatprep.subr.mxu0 0.0
  %5025 = vmatpush1.msra.mxu0 0.0
  %5026 = vmatprep.subr.mxu0 0.0
  %5027 = vmatpush1.msra.mxu0 0.0
  %5028 = vmatprep.subr.mxu0 0.0
  %5029 = vmatpush1.msra.mxu0 0.0
  %5030 = vmatprep.subr.mxu0 0.0
  %5031 = vmatpush1.msra.mxu0 0.0
  %5032 = vmatprep.subr.mxu0 0.0
  %5033 = vmatpush1.msra.mxu0 0.0
  %5034 = vmatprep.mubr.f32.mxu0 0.0
  %5035 = vmatmul.mubr.f32.gmra.mrb[0].mxu0 %v4487
  %v5036 = vpop.f32.mrb[0].mxu0
  %v5037 = vadd.f32 0.0, %v5036
  %v5038 = vpop.f32.mrb[0].mxu0
  %5039 = vdwg.mxu0
  %s5040 = scalar_lea.vmem %s23, 32
  %v5041 = vld [vmem:[%s5040] sm:$0xff]
  %v5042 = vld [vmem:[%s5040 + $0x8] sm:$0xff]
  %v5043 = vld [vmem:[%s5040 + $0x10] sm:$0xff]
  %v5044 = vld [vmem:[%s5040 + $0x18] sm:$0xff]
  %s5045 = scalar_lea.vmem %s25, 1
  %v5046 = vld [vmem:[%s5045] sm:$0x1]
  %v5048 = vlaneseq
  %v5049 = vshrl.u32 %v5048, 7
  %v5050 = vsub.s32 0, %v5049
  %v5051 = vrot.slane %v5046, %v5050
  %5053 = vrot.lane.b32.xlu0 %v4465, 96
  %v5054 = vpop.permute.xlu0 %5053
  %5055 = vrot.lane.b32.xlu0 %v4466, 96
  %v5056 = vpop.permute.xlu0 %5055
  %5057 = vrot.lane.b32.xlu0 %v4467, 96
  %v5058 = vpop.permute.xlu0 %5057
  %5059 = vrot.lane.b32.xlu0 %v4468, 96
  %v5060 = vpop.permute.xlu0 %5059
  %5061 = vrot.lane.b32.xlu0 %v4469, 96
  %v5062 = vpop.permute.xlu0 %5061
  %5063 = vrot.lane.b32.xlu0 %v4470, 96
  %v5064 = vpop.permute.xlu0 %5063
  %5065 = vrot.lane.b32.xlu0 %v4471, 96
  %v5066 = vpop.permute.xlu0 %5065
  %5067 = vrot.lane.b32.xlu0 %v4472, 96
  %v5068 = vpop.permute.xlu0 %5067
  %v5069 = vsel %vm828, %v5054, 0
  %v5071 = vsel %vm828, %v5056, 0
  %v5073 = vsel %vm828, %v5058, 0
  %v5075 = vsel %vm828, %v5060, 0
  %v5077 = vsel %vm828, %v5062, 0
  %v5079 = vsel %vm828, %v5064, 0
  %v5081 = vsel %vm828, %v5066, 0
  %v5083 = vsel %vm828, %v5068, 0
  %5085 = vmatprep.subr.mxu0 0.0
  %5086 = vmatpush1.msra.mxu0 %v5041
  %5087 = vmatprep.subr.mxu0 0.0
  %5088 = vmatpush1.msra.mxu0 %v5042
  %5089 = vmatprep.subr.mxu0 0.0
  %5090 = vmatpush1.msra.mxu0 %v5043
  %5091 = vmatprep.subr.mxu0 0.0
  %5092 = vmatpush1.msra.mxu0 %v5044
  %5093 = vmatprep.subr.mxu0 0.0
  %5094 = vmatpush1.msra.mxu0 0.0
  %5095 = vmatprep.subr.mxu0 0.0
  %5096 = vmatpush1.msra.mxu0 0.0
  %5097 = vmatprep.subr.mxu0 0.0
  %5098 = vmatpush1.msra.mxu0 0.0
  %5099 = vmatprep.subr.mxu0 0.0
  %5100 = vmatpush1.msra.mxu0 0.0
  %5101 = vmatprep.subr.mxu0 0.0
  %5102 = vmatpush1.msra.mxu0 0.0
  %5103 = vmatprep.subr.mxu0 0.0
  %5104 = vmatpush1.msra.mxu0 0.0
  %5105 = vmatprep.subr.mxu0 0.0
  %5106 = vmatpush1.msra.mxu0 0.0
  %5107 = vmatprep.subr.mxu0 0.0
  %5108 = vmatpush1.msra.mxu0 0.0
  %5109 = vmatprep.subr.mxu0 0.0
  %5110 = vmatpush1.msra.mxu0 0.0
  %5111 = vmatprep.subr.mxu0 0.0
  %5112 = vmatpush1.msra.mxu0 0.0
  %5113 = vmatprep.subr.mxu0 0.0
  %5114 = vmatpush1.msra.mxu0 0.0
  %5115 = vmatprep.subr.mxu0 0.0
  %5116 = vmatpush1.msra.mxu0 0.0
  %5117 = vmatprep.subr.mxu0 0.0
  %5118 = vmatpush1.msra.mxu0 0.0
  %5119 = vmatprep.subr.mxu0 0.0
  %5120 = vmatpush1.msra.mxu0 0.0
  %5121 = vmatprep.subr.mxu0 0.0
  %5122 = vmatpush1.msra.mxu0 0.0
  %5123 = vmatprep.subr.mxu0 0.0
  %5124 = vmatpush1.msra.mxu0 0.0
  %5125 = vmatprep.subr.mxu0 0.0
  %5126 = vmatpush1.msra.mxu0 0.0
  %5127 = vmatprep.subr.mxu0 0.0
  %5128 = vmatpush1.msra.mxu0 0.0
  %5129 = vmatprep.subr.mxu0 0.0
  %5130 = vmatpush1.msra.mxu0 0.0
  %5131 = vmatprep.subr.mxu0 0.0
  %5132 = vmatpush1.msra.mxu0 0.0
  %5133 = vmatprep.subr.mxu0 0.0
  %5134 = vmatpush1.msra.mxu0 0.0
  %5135 = vmatprep.subr.mxu0 0.0
  %5136 = vmatpush1.msra.mxu0 0.0
  %5137 = vmatprep.subr.mxu0 0.0
  %5138 = vmatpush1.msra.mxu0 0.0
  %5139 = vmatprep.subr.mxu0 0.0
  %5140 = vmatpush1.msra.mxu0 0.0
  %5141 = vmatprep.subr.mxu0 0.0
  %5142 = vmatpush1.msra.mxu0 0.0
  %5143 = vmatprep.subr.mxu0 0.0
  %5144 = vmatpush1.msra.mxu0 0.0
  %5145 = vmatprep.subr.mxu0 0.0
  %5146 = vmatpush1.msra.mxu0 0.0
  %5147 = vmatprep.subr.mxu0 0.0
  %5148 = vmatpush1.msra.mxu0 0.0
  %5149 = vmatprep.mubr.f32.mxu0 0.0
  %5150 = vmatmul.mubr.f32.gmra.mrb[0].mxu0 %v5069
  %v5151 = vpop.f32.mrb[0].mxu0
  %v5152 = vadd.f32 %v5051, %v5151
  %v5153 = vpop.f32.mrb[0].mxu0
  %5154 = vmatprep.mubr.f32.mxu0 0.0
  %5155 = vmatmul.mubr.f32.gmra.mrb[0].mxu0 %v5071
  %v5156 = vpop.f32.mrb[0].mxu0
  %v5157 = vadd.f32 %v5051, %v5156
  %v5158 = vpop.f32.mrb[0].mxu0
  %5159 = vmatprep.mubr.f32.mxu0 0.0
  %5160 = vmatmul.mubr.f32.gmra.mrb[0].mxu0 %v5073
  %v5161 = vpop.f32.mrb[0].mxu0
  %v5162 = vadd.f32 %v5051, %v5161
  %v5163 = vpop.f32.mrb[0].mxu0
  %5164 = vmatprep.mubr.f32.mxu0 0.0
  %5165 = vmatmul.mubr.f32.gmra.mrb[0].mxu0 %v5075
  %v5166 = vpop.f32.mrb[0].mxu0
  %v5167 = vadd.f32 %v5051, %v5166
  %v5168 = vpop.f32.mrb[0].mxu0
  %5169 = vmatprep.mubr.f32.mxu0 0.0
  %5170 = vmatmul.mubr.f32.gmra.mrb[0].mxu0 %v5077
  %v5171 = vpop.f32.mrb[0].mxu0
  %v5172 = vadd.f32 %v5051, %v5171
  %v5173 = vpop.f32.mrb[0].mxu0
  %5174 = vmatprep.mubr.f32.mxu0 0.0
  %5175 = vmatmul.mubr.f32.gmra.mrb[0].mxu0 %v5079
  %v5176 = vpop.f32.mrb[0].mxu0
  %v5177 = vadd.f32 %v5051, %v5176
  %v5178 = vpop.f32.mrb[0].mxu0
  %5179 = vmatprep.mubr.f32.mxu0 0.0
  %5180 = vmatmul.mubr.f32.gmra.mrb[0].mxu0 %v5081
  %v5181 = vpop.f32.mrb[0].mxu0
  %v5182 = vadd.f32 %v5051, %v5181
  %v5183 = vpop.f32.mrb[0].mxu0
  %5184 = vmatprep.mubr.f32.mxu0 0.0
  %5185 = vmatmul.mubr.f32.gmra.mrb[0].mxu0 %v5083
  %v5186 = vpop.f32.mrb[0].mxu0
  %v5187 = vadd.f32 %v5051, %v5186
  %v5188 = vpop.f32.mrb[0].mxu0
  %5189 = vdwg.mxu0
  %v5190 = vmul.f32 %v5152, %v779
  %v5191 = vmul.f32 %v5157, %v784
  %v5192 = vmul.f32 %v5162, %v789
  %v5193 = vmul.f32 %v5167, %v794
  %v5194 = vmul.f32 %v5172, %v799
  %v5195 = vmul.f32 %v5177, %v804
  %v5196 = vmul.f32 %v5182, %v809
  %v5197 = vmul.f32 %v5187, %v814
  %v5198 = vmul.f32 %v5190, %v5037
  %v5199 = vmul.f32 %v5191, %v5037
  %v5200 = vmul.f32 %v5192, %v5037
  %v5201 = vmul.f32 %v5193, %v5037
  %v5202 = vmul.f32 %v5194, %v5037
  %v5203 = vmul.f32 %v5195, %v5037
  %v5204 = vmul.f32 %v5196, %v5037
  %v5205 = vmul.f32 %v5197, %v5037
  %v5206 = vmul.f32 %v1550, %v5198
  %v5207 = vmul.f32 %v1555, %v5199
  %v5208 = vmul.f32 %v1560, %v5200
  %v5209 = vmul.f32 %v1565, %v5201
  %v5210 = vmul.f32 %v1570, %v5202
  %v5211 = vmul.f32 %v1575, %v5203
  %v5212 = vmul.f32 %v1580, %v5204
  %v5213 = vmul.f32 %v1585, %v5205
  %v5214 = vsel %vm828, %v5206, 0.0
  %v5215 = vrot.slane %v5214, 4
  %v5216 = vadd.f32 %v5214, %v5215
  %v5217 = vrot.slane %v5216, 2
  %v5218 = vadd.f32 %v5216, %v5217
  %v5219 = vrot.slane %v5218, 1
  %v5220 = vadd.f32 %v5218, %v5219
  %v5221 = vsel %vm828, %v5207, 0.0
  %v5222 = vrot.slane %v5221, 4
  %v5223 = vadd.f32 %v5221, %v5222
  %v5224 = vrot.slane %v5223, 2
  %v5225 = vadd.f32 %v5223, %v5224
  %v5226 = vrot.slane %v5225, 1
  %v5227 = vadd.f32 %v5225, %v5226
  %v5228 = vsel %vm828, %v5208, 0.0
  %v5229 = vrot.slane %v5228, 4
  %v5230 = vadd.f32 %v5228, %v5229
  %v5231 = vrot.slane %v5230, 2
  %v5232 = vadd.f32 %v5230, %v5231
  %v5233 = vrot.slane %v5232, 1
  %v5234 = vadd.f32 %v5232, %v5233
  %v5235 = vsel %vm828, %v5209, 0.0
  %v5236 = vrot.slane %v5235, 4
  %v5237 = vadd.f32 %v5235, %v5236
  %v5238 = vrot.slane %v5237, 2
  %v5239 = vadd.f32 %v5237, %v5238
  %v5240 = vrot.slane %v5239, 1
  %v5241 = vadd.f32 %v5239, %v5240
  %v5242 = vsel %vm828, %v5210, 0.0
  %v5243 = vrot.slane %v5242, 4
  %v5244 = vadd.f32 %v5242, %v5243
  %v5245 = vrot.slane %v5244, 2
  %v5246 = vadd.f32 %v5244, %v5245
  %v5247 = vrot.slane %v5246, 1
  %v5248 = vadd.f32 %v5246, %v5247
  %v5249 = vsel %vm828, %v5211, 0.0
  %v5250 = vrot.slane %v5249, 4
  %v5251 = vadd.f32 %v5249, %v5250
  %v5252 = vrot.slane %v5251, 2
  %v5253 = vadd.f32 %v5251, %v5252
  %v5254 = vrot.slane %v5253, 1
  %v5255 = vadd.f32 %v5253, %v5254
  %v5256 = vsel %vm828, %v5212, 0.0
  %v5257 = vrot.slane %v5256, 4
  %v5258 = vadd.f32 %v5256, %v5257
  %v5259 = vrot.slane %v5258, 2
  %v5260 = vadd.f32 %v5258, %v5259
  %v5261 = vrot.slane %v5260, 1
  %v5262 = vadd.f32 %v5260, %v5261
  %v5263 = vsel %vm828, %v5213, 0.0
  %v5264 = vrot.slane %v5263, 4
  %v5265 = vadd.f32 %v5263, %v5264
  %v5266 = vrot.slane %v5265, 2
  %v5267 = vadd.f32 %v5265, %v5266
  %v5268 = vrot.slane %v5267, 1
  %v5269 = vadd.f32 %v5267, %v5268
  %5271 = vrot.lane.b32.xlu0 %v4306, 32
  %v5272 = vpop.permute.xlu0 %5271
  %v5274 = vmul.f32 %v5190, %v5272
  %v5275 = vmul.f32 %v5191, %v5272
  %v5276 = vmul.f32 %v5192, %v5272
  %v5277 = vmul.f32 %v5193, %v5272
  %v5278 = vmul.f32 %v5194, %v5272
  %v5279 = vmul.f32 %v5195, %v5272
  %v5280 = vmul.f32 %v5196, %v5272
  %v5281 = vmul.f32 %v5197, %v5272
  %v5282 = vsel %vm1659, %v5274, 0.0
  %v5283 = vrot.slane %v5282, 4
  %v5284 = vadd.f32 %v5282, %v5283
  %v5285 = vrot.slane %v5284, 2
  %v5286 = vadd.f32 %v5284, %v5285
  %v5287 = vrot.slane %v5286, 1
  %v5288 = vadd.f32 %v5286, %v5287
  %v5289 = vsel %vm1659, %v5275, 0.0
  %v5290 = vrot.slane %v5289, 4
  %v5291 = vadd.f32 %v5289, %v5290
  %v5292 = vrot.slane %v5291, 2
  %v5293 = vadd.f32 %v5291, %v5292
  %v5294 = vrot.slane %v5293, 1
  %v5295 = vadd.f32 %v5293, %v5294
  %v5296 = vsel %vm1659, %v5276, 0.0
  %v5297 = vrot.slane %v5296, 4
  %v5298 = vadd.f32 %v5296, %v5297
  %v5299 = vrot.slane %v5298, 2
  %v5300 = vadd.f32 %v5298, %v5299
  %v5301 = vrot.slane %v5300, 1
  %v5302 = vadd.f32 %v5300, %v5301
  %v5303 = vsel %vm1659, %v5277, 0.0
  %v5304 = vrot.slane %v5303, 4
  %v5305 = vadd.f32 %v5303, %v5304
  %v5306 = vrot.slane %v5305, 2
  %v5307 = vadd.f32 %v5305, %v5306
  %v5308 = vrot.slane %v5307, 1
  %v5309 = vadd.f32 %v5307, %v5308
  %v5310 = vsel %vm1659, %v5278, 0.0
  %v5311 = vrot.slane %v5310, 4
  %v5312 = vadd.f32 %v5310, %v5311
  %v5313 = vrot.slane %v5312, 2
  %v5314 = vadd.f32 %v5312, %v5313
  %v5315 = vrot.slane %v5314, 1
  %v5316 = vadd.f32 %v5314, %v5315
  %v5317 = vsel %vm1659, %v5279, 0.0
  %v5318 = vrot.slane %v5317, 4
  %v5319 = vadd.f32 %v5317, %v5318
  %v5320 = vrot.slane %v5319, 2
  %v5321 = vadd.f32 %v5319, %v5320
  %v5322 = vrot.slane %v5321, 1
  %v5323 = vadd.f32 %v5321, %v5322
  %v5324 = vsel %vm1659, %v5280, 0.0
  %v5325 = vrot.slane %v5324, 4
  %v5326 = vadd.f32 %v5324, %v5325
  %v5327 = vrot.slane %v5326, 2
  %v5328 = vadd.f32 %v5326, %v5327
  %v5329 = vrot.slane %v5328, 1
  %v5330 = vadd.f32 %v5328, %v5329
  %v5331 = vsel %vm1659, %v5281, 0.0
  %v5332 = vrot.slane %v5331, 4
  %v5333 = vadd.f32 %v5331, %v5332
  %v5334 = vrot.slane %v5333, 2
  %v5335 = vadd.f32 %v5333, %v5334
  %v5336 = vrot.slane %v5335, 1
  %v5337 = vadd.f32 %v5335, %v5336
  %5346 = vrot.lane.b32.xlu0 %v5288, 96
  %v5347 = vpop.permute.xlu0 %5346
  %5348 = vrot.lane.b32.xlu0 %v5295, 96
  %v5349 = vpop.permute.xlu0 %5348
  %5350 = vrot.lane.b32.xlu0 %v5302, 96
  %v5351 = vpop.permute.xlu0 %5350
  %5352 = vrot.lane.b32.xlu0 %v5309, 96
  %v5353 = vpop.permute.xlu0 %5352
  %5354 = vrot.lane.b32.xlu0 %v5316, 96
  %v5355 = vpop.permute.xlu0 %5354
  %5356 = vrot.lane.b32.xlu0 %v5323, 96
  %v5357 = vpop.permute.xlu0 %5356
  %5358 = vrot.lane.b32.xlu0 %v5330, 96
  %v5359 = vpop.permute.xlu0 %5358
  %5360 = vrot.lane.b32.xlu0 %v5337, 96
  %v5361 = vpop.permute.xlu0 %5360
  %v5370 = vadd.f32 %v5220, %v5347
  %v5371 = vadd.f32 %v5227, %v5349
  %v5372 = vadd.f32 %v5234, %v5351
  %v5373 = vadd.f32 %v5241, %v5353
  %v5374 = vadd.f32 %v5248, %v5355
  %v5375 = vadd.f32 %v5255, %v5357
  %v5376 = vadd.f32 %v5262, %v5359
  %v5377 = vadd.f32 %v5269, %v5361
  %v5378 = vmul.f32 %v1758, %v5198
  %v5379 = vmul.f32 %v1762, %v5199
  %v5380 = vmul.f32 %v1766, %v5200
  %v5381 = vmul.f32 %v1770, %v5201
  %v5382 = vmul.f32 %v1774, %v5202
  %v5383 = vmul.f32 %v1778, %v5203
  %v5384 = vmul.f32 %v1782, %v5204
  %v5385 = vmul.f32 %v1786, %v5205
  %v5386 = vsel %vm828, %v5378, 0.0
  %v5387 = vrot.slane %v5386, 4
  %v5388 = vadd.f32 %v5386, %v5387
  %v5389 = vrot.slane %v5388, 2
  %v5390 = vadd.f32 %v5388, %v5389
  %v5391 = vrot.slane %v5390, 1
  %v5392 = vadd.f32 %v5390, %v5391
  %v5393 = vsel %vm828, %v5379, 0.0
  %v5394 = vrot.slane %v5393, 4
  %v5395 = vadd.f32 %v5393, %v5394
  %v5396 = vrot.slane %v5395, 2
  %v5397 = vadd.f32 %v5395, %v5396
  %v5398 = vrot.slane %v5397, 1
  %v5399 = vadd.f32 %v5397, %v5398
  %v5400 = vsel %vm828, %v5380, 0.0
  %v5401 = vrot.slane %v5400, 4
  %v5402 = vadd.f32 %v5400, %v5401
  %v5403 = vrot.slane %v5402, 2
  %v5404 = vadd.f32 %v5402, %v5403
  %v5405 = vrot.slane %v5404, 1
  %v5406 = vadd.f32 %v5404, %v5405
  %v5407 = vsel %vm828, %v5381, 0.0
  %v5408 = vrot.slane %v5407, 4
  %v5409 = vadd.f32 %v5407, %v5408
  %v5410 = vrot.slane %v5409, 2
  %v5411 = vadd.f32 %v5409, %v5410
  %v5412 = vrot.slane %v5411, 1
  %v5413 = vadd.f32 %v5411, %v5412
  %v5414 = vsel %vm828, %v5382, 0.0
  %v5415 = vrot.slane %v5414, 4
  %v5416 = vadd.f32 %v5414, %v5415
  %v5417 = vrot.slane %v5416, 2
  %v5418 = vadd.f32 %v5416, %v5417
  %v5419 = vrot.slane %v5418, 1
  %v5420 = vadd.f32 %v5418, %v5419
  %v5421 = vsel %vm828, %v5383, 0.0
  %v5422 = vrot.slane %v5421, 4
  %v5423 = vadd.f32 %v5421, %v5422
  %v5424 = vrot.slane %v5423, 2
  %v5425 = vadd.f32 %v5423, %v5424
  %v5426 = vrot.slane %v5425, 1
  %v5427 = vadd.f32 %v5425, %v5426
  %v5428 = vsel %vm828, %v5384, 0.0
  %v5429 = vrot.slane %v5428, 4
  %v5430 = vadd.f32 %v5428, %v5429
  %v5431 = vrot.slane %v5430, 2
  %v5432 = vadd.f32 %v5430, %v5431
  %v5433 = vrot.slane %v5432, 1
  %v5434 = vadd.f32 %v5432, %v5433
  %v5435 = vsel %vm828, %v5385, 0.0
  %v5436 = vrot.slane %v5435, 4
  %v5437 = vadd.f32 %v5435, %v5436
  %v5438 = vrot.slane %v5437, 2
  %v5439 = vadd.f32 %v5437, %v5438
  %v5440 = vrot.slane %v5439, 1
  %v5441 = vadd.f32 %v5439, %v5440
  %5443 = vrot.lane.b32.xlu0 %v4307, 32
  %v5444 = vpop.permute.xlu0 %5443
  %v5446 = vmul.f32 %v5190, %v5444
  %v5447 = vmul.f32 %v5191, %v5444
  %v5448 = vmul.f32 %v5192, %v5444
  %v5449 = vmul.f32 %v5193, %v5444
  %v5450 = vmul.f32 %v5194, %v5444
  %v5451 = vmul.f32 %v5195, %v5444
  %v5452 = vmul.f32 %v5196, %v5444
  %v5453 = vmul.f32 %v5197, %v5444
  %v5454 = vsel %vm1659, %v5446, 0.0
  %v5455 = vrot.slane %v5454, 4
  %v5456 = vadd.f32 %v5454, %v5455
  %v5457 = vrot.slane %v5456, 2
  %v5458 = vadd.f32 %v5456, %v5457
  %v5459 = vrot.slane %v5458, 1
  %v5460 = vadd.f32 %v5458, %v5459
  %v5461 = vsel %vm1659, %v5447, 0.0
  %v5462 = vrot.slane %v5461, 4
  %v5463 = vadd.f32 %v5461, %v5462
  %v5464 = vrot.slane %v5463, 2
  %v5465 = vadd.f32 %v5463, %v5464
  %v5466 = vrot.slane %v5465, 1
  %v5467 = vadd.f32 %v5465, %v5466
  %v5468 = vsel %vm1659, %v5448, 0.0
  %v5469 = vrot.slane %v5468, 4
  %v5470 = vadd.f32 %v5468, %v5469
  %v5471 = vrot.slane %v5470, 2
  %v5472 = vadd.f32 %v5470, %v5471
  %v5473 = vrot.slane %v5472, 1
  %v5474 = vadd.f32 %v5472, %v5473
  %v5475 = vsel %vm1659, %v5449, 0.0
  %v5476 = vrot.slane %v5475, 4
  %v5477 = vadd.f32 %v5475, %v5476
  %v5478 = vrot.slane %v5477, 2
  %v5479 = vadd.f32 %v5477, %v5478
  %v5480 = vrot.slane %v5479, 1
  %v5481 = vadd.f32 %v5479, %v5480
  %v5482 = vsel %vm1659, %v5450, 0.0
  %v5483 = vrot.slane %v5482, 4
  %v5484 = vadd.f32 %v5482, %v5483
  %v5485 = vrot.slane %v5484, 2
  %v5486 = vadd.f32 %v5484, %v5485
  %v5487 = vrot.slane %v5486, 1
  %v5488 = vadd.f32 %v5486, %v5487
  %v5489 = vsel %vm1659, %v5451, 0.0
  %v5490 = vrot.slane %v5489, 4
  %v5491 = vadd.f32 %v5489, %v5490
  %v5492 = vrot.slane %v5491, 2
  %v5493 = vadd.f32 %v5491, %v5492
  %v5494 = vrot.slane %v5493, 1
  %v5495 = vadd.f32 %v5493, %v5494
  %v5496 = vsel %vm1659, %v5452, 0.0
  %v5497 = vrot.slane %v5496, 4
  %v5498 = vadd.f32 %v5496, %v5497
  %v5499 = vrot.slane %v5498, 2
  %v5500 = vadd.f32 %v5498, %v5499
  %v5501 = vrot.slane %v5500, 1
  %v5502 = vadd.f32 %v5500, %v5501
  %v5503 = vsel %vm1659, %v5453, 0.0
  %v5504 = vrot.slane %v5503, 4
  %v5505 = vadd.f32 %v5503, %v5504
  %v5506 = vrot.slane %v5505, 2
  %v5507 = vadd.f32 %v5505, %v5506
  %v5508 = vrot.slane %v5507, 1
  %v5509 = vadd.f32 %v5507, %v5508
  %5518 = vrot.lane.b32.xlu0 %v5460, 96
  %v5519 = vpop.permute.xlu0 %5518
  %5520 = vrot.lane.b32.xlu0 %v5467, 96
  %v5521 = vpop.permute.xlu0 %5520
  %5522 = vrot.lane.b32.xlu0 %v5474, 96
  %v5523 = vpop.permute.xlu0 %5522
  %5524 = vrot.lane.b32.xlu0 %v5481, 96
  %v5525 = vpop.permute.xlu0 %5524
  %5526 = vrot.lane.b32.xlu0 %v5488, 96
  %v5527 = vpop.permute.xlu0 %5526
  %5528 = vrot.lane.b32.xlu0 %v5495, 96
  %v5529 = vpop.permute.xlu0 %5528
  %5530 = vrot.lane.b32.xlu0 %v5502, 96
  %v5531 = vpop.permute.xlu0 %5530
  %5532 = vrot.lane.b32.xlu0 %v5509, 96
  %v5533 = vpop.permute.xlu0 %5532
  %v5542 = vadd.f32 %v5392, %v5519
  %v5543 = vadd.f32 %v5399, %v5521
  %v5544 = vadd.f32 %v5406, %v5523
  %v5545 = vadd.f32 %v5413, %v5525
  %v5546 = vadd.f32 %v5420, %v5527
  %v5547 = vadd.f32 %v5427, %v5529
  %v5548 = vadd.f32 %v5434, %v5531
  %v5549 = vadd.f32 %v5441, %v5533
  %v5550 = vmul.f32 %v1862, %v5198
  %v5551 = vmul.f32 %v1866, %v5199
  %v5552 = vmul.f32 %v1870, %v5200
  %v5553 = vmul.f32 %v1874, %v5201
  %v5554 = vmul.f32 %v1878, %v5202
  %v5555 = vmul.f32 %v1882, %v5203
  %v5556 = vmul.f32 %v1886, %v5204
  %v5557 = vmul.f32 %v1890, %v5205
  %v5558 = vsel %vm828, %v5550, 0.0
  %v5559 = vrot.slane %v5558, 4
  %v5560 = vadd.f32 %v5558, %v5559
  %v5561 = vrot.slane %v5560, 2
  %v5562 = vadd.f32 %v5560, %v5561
  %v5563 = vrot.slane %v5562, 1
  %v5564 = vadd.f32 %v5562, %v5563
  %v5565 = vsel %vm828, %v5551, 0.0
  %v5566 = vrot.slane %v5565, 4
  %v5567 = vadd.f32 %v5565, %v5566
  %v5568 = vrot.slane %v5567, 2
  %v5569 = vadd.f32 %v5567, %v5568
  %v5570 = vrot.slane %v5569, 1
  %v5571 = vadd.f32 %v5569, %v5570
  %v5572 = vsel %vm828, %v5552, 0.0
  %v5573 = vrot.slane %v5572, 4
  %v5574 = vadd.f32 %v5572, %v5573
  %v5575 = vrot.slane %v5574, 2
  %v5576 = vadd.f32 %v5574, %v5575
  %v5577 = vrot.slane %v5576, 1
  %v5578 = vadd.f32 %v5576, %v5577
  %v5579 = vsel %vm828, %v5553, 0.0
  %v5580 = vrot.slane %v5579, 4
  %v5581 = vadd.f32 %v5579, %v5580
  %v5582 = vrot.slane %v5581, 2
  %v5583 = vadd.f32 %v5581, %v5582
  %v5584 = vrot.slane %v5583, 1
  %v5585 = vadd.f32 %v5583, %v5584
  %v5586 = vsel %vm828, %v5554, 0.0
  %v5587 = vrot.slane %v5586, 4
  %v5588 = vadd.f32 %v5586, %v5587
  %v5589 = vrot.slane %v5588, 2
  %v5590 = vadd.f32 %v5588, %v5589
  %v5591 = vrot.slane %v5590, 1
  %v5592 = vadd.f32 %v5590, %v5591
  %v5593 = vsel %vm828, %v5555, 0.0
  %v5594 = vrot.slane %v5593, 4
  %v5595 = vadd.f32 %v5593, %v5594
  %v5596 = vrot.slane %v5595, 2
  %v5597 = vadd.f32 %v5595, %v5596
  %v5598 = vrot.slane %v5597, 1
  %v5599 = vadd.f32 %v5597, %v5598
  %v5600 = vsel %vm828, %v5556, 0.0
  %v5601 = vrot.slane %v5600, 4
  %v5602 = vadd.f32 %v5600, %v5601
  %v5603 = vrot.slane %v5602, 2
  %v5604 = vadd.f32 %v5602, %v5603
  %v5605 = vrot.slane %v5604, 1
  %v5606 = vadd.f32 %v5604, %v5605
  %v5607 = vsel %vm828, %v5557, 0.0
  %v5608 = vrot.slane %v5607, 4
  %v5609 = vadd.f32 %v5607, %v5608
  %v5610 = vrot.slane %v5609, 2
  %v5611 = vadd.f32 %v5609, %v5610
  %v5612 = vrot.slane %v5611, 1
  %v5613 = vadd.f32 %v5611, %v5612
  %5615 = vrot.lane.b32.xlu0 %v4308, 32
  %v5616 = vpop.permute.xlu0 %5615
  %v5618 = vmul.f32 %v5190, %v5616
  %v5619 = vmul.f32 %v5191, %v5616
  %v5620 = vmul.f32 %v5192, %v5616
  %v5621 = vmul.f32 %v5193, %v5616
  %v5622 = vmul.f32 %v5194, %v5616
  %v5623 = vmul.f32 %v5195, %v5616
  %v5624 = vmul.f32 %v5196, %v5616
  %v5625 = vmul.f32 %v5197, %v5616
  %v5626 = vsel %vm1659, %v5618, 0.0
  %v5627 = vrot.slane %v5626, 4
  %v5628 = vadd.f32 %v5626, %v5627
  %v5629 = vrot.slane %v5628, 2
  %v5630 = vadd.f32 %v5628, %v5629
  %v5631 = vrot.slane %v5630, 1
  %v5632 = vadd.f32 %v5630, %v5631
  %v5633 = vsel %vm1659, %v5619, 0.0
  %v5634 = vrot.slane %v5633, 4
  %v5635 = vadd.f32 %v5633, %v5634
  %v5636 = vrot.slane %v5635, 2
  %v5637 = vadd.f32 %v5635, %v5636
  %v5638 = vrot.slane %v5637, 1
  %v5639 = vadd.f32 %v5637, %v5638
  %v5640 = vsel %vm1659, %v5620, 0.0
  %v5641 = vrot.slane %v5640, 4
  %v5642 = vadd.f32 %v5640, %v5641
  %v5643 = vrot.slane %v5642, 2
  %v5644 = vadd.f32 %v5642, %v5643
  %v5645 = vrot.slane %v5644, 1
  %v5646 = vadd.f32 %v5644, %v5645
  %v5647 = vsel %vm1659, %v5621, 0.0
  %v5648 = vrot.slane %v5647, 4
  %v5649 = vadd.f32 %v5647, %v5648
  %v5650 = vrot.slane %v5649, 2
  %v5651 = vadd.f32 %v5649, %v5650
  %v5652 = vrot.slane %v5651, 1
  %v5653 = vadd.f32 %v5651, %v5652
  %v5654 = vsel %vm1659, %v5622, 0.0
  %v5655 = vrot.slane %v5654, 4
  %v5656 = vadd.f32 %v5654, %v5655
  %v5657 = vrot.slane %v5656, 2
  %v5658 = vadd.f32 %v5656, %v5657
  %v5659 = vrot.slane %v5658, 1
  %v5660 = vadd.f32 %v5658, %v5659
  %v5661 = vsel %vm1659, %v5623, 0.0
  %v5662 = vrot.slane %v5661, 4
  %v5663 = vadd.f32 %v5661, %v5662
  %v5664 = vrot.slane %v5663, 2
  %v5665 = vadd.f32 %v5663, %v5664
  %v5666 = vrot.slane %v5665, 1
  %v5667 = vadd.f32 %v5665, %v5666
  %v5668 = vsel %vm1659, %v5624, 0.0
  %v5669 = vrot.slane %v5668, 4
  %v5670 = vadd.f32 %v5668, %v5669
  %v5671 = vrot.slane %v5670, 2
  %v5672 = vadd.f32 %v5670, %v5671
  %v5673 = vrot.slane %v5672, 1
  %v5674 = vadd.f32 %v5672, %v5673
  %v5675 = vsel %vm1659, %v5625, 0.0
  %v5676 = vrot.slane %v5675, 4
  %v5677 = vadd.f32 %v5675, %v5676
  %v5678 = vrot.slane %v5677, 2
  %v5679 = vadd.f32 %v5677, %v5678
  %v5680 = vrot.slane %v5679, 1
  %v5681 = vadd.f32 %v5679, %v5680
  %5690 = vrot.lane.b32.xlu0 %v5632, 96
  %v5691 = vpop.permute.xlu0 %5690
  %5692 = vrot.lane.b32.xlu0 %v5639, 96
  %v5693 = vpop.permute.xlu0 %5692
  %5694 = vrot.lane.b32.xlu0 %v5646, 96
  %v5695 = vpop.permute.xlu0 %5694
  %5696 = vrot.lane.b32.xlu0 %v5653, 96
  %v5697 = vpop.permute.xlu0 %5696
  %5698 = vrot.lane.b32.xlu0 %v5660, 96
  %v5699 = vpop.permute.xlu0 %5698
  %5700 = vrot.lane.b32.xlu0 %v5667, 96
  %v5701 = vpop.permute.xlu0 %5700
  %5702 = vrot.lane.b32.xlu0 %v5674, 96
  %v5703 = vpop.permute.xlu0 %5702
  %5704 = vrot.lane.b32.xlu0 %v5681, 96
  %v5705 = vpop.permute.xlu0 %5704
  %v5714 = vadd.f32 %v5564, %v5691
  %v5715 = vadd.f32 %v5571, %v5693
  %v5716 = vadd.f32 %v5578, %v5695
  %v5717 = vadd.f32 %v5585, %v5697
  %v5718 = vadd.f32 %v5592, %v5699
  %v5719 = vadd.f32 %v5599, %v5701
  %v5720 = vadd.f32 %v5606, %v5703
  %v5721 = vadd.f32 %v5613, %v5705
  %v5730 = vrot.slane %v5371, 7
  %v5731 = vsel %vm1133, %v5730, %v5370
  %v5732 = vrot.slane %v5372, 6
  %v5733 = vsel %vm1135, %v5732, %v5731
  %v5734 = vrot.slane %v5373, 5
  %v5735 = vsel %vm1137, %v5734, %v5733
  %v5736 = vrot.slane %v5374, 4
  %v5737 = vsel %vm1139, %v5736, %v5735
  %v5738 = vrot.slane %v5375, 3
  %v5739 = vsel %vm1141, %v5738, %v5737
  %v5740 = vrot.slane %v5376, 2
  %v5741 = vsel %vm1143, %v5740, %v5739
  %v5742 = vrot.slane %v5377, 1
  %v5743 = vsel %vm1145, %v5742, %v5741
  %v5753 = vrot.slane %v5543, 7
  %v5754 = vsel %vm1133, %v5753, %v5542
  %v5755 = vrot.slane %v5544, 6
  %v5756 = vsel %vm1135, %v5755, %v5754
  %v5757 = vrot.slane %v5545, 5
  %v5758 = vsel %vm1137, %v5757, %v5756
  %v5759 = vrot.slane %v5546, 4
  %v5760 = vsel %vm1139, %v5759, %v5758
  %v5761 = vrot.slane %v5547, 3
  %v5762 = vsel %vm1141, %v5761, %v5760
  %v5763 = vrot.slane %v5548, 2
  %v5764 = vsel %vm1143, %v5763, %v5762
  %v5765 = vrot.slane %v5549, 1
  %v5766 = vsel %vm1145, %v5765, %v5764
  %v5776 = vrot.slane %v5715, 7
  %v5777 = vsel %vm1133, %v5776, %v5714
  %v5778 = vrot.slane %v5716, 6
  %v5779 = vsel %vm1135, %v5778, %v5777
  %v5780 = vrot.slane %v5717, 5
  %v5781 = vsel %vm1137, %v5780, %v5779
  %v5782 = vrot.slane %v5718, 4
  %v5783 = vsel %vm1139, %v5782, %v5781
  %v5784 = vrot.slane %v5719, 3
  %v5785 = vsel %vm1141, %v5784, %v5783
  %v5786 = vrot.slane %v5720, 2
  %v5787 = vsel %vm1143, %v5786, %v5785
  %v5788 = vrot.slane %v5721, 1
  %v5789 = vsel %vm1145, %v5788, %v5787
  %v5791 = vadd.f32 %v4293, %v4962
  %v5792 = vadd.f32 %v4306, %v5743
  %v5793 = vadd.f32 %v4307, %v5766
  %v5794 = vadd.f32 %v4308, %v5789
  %s5795 = scalar_lea.vmem %s31, 32
  %v5796 = vld [vmem:[%s5795] sm:$0xff]
  %v5797 = vld [vmem:[%s5795 + $0x8] sm:$0xff]
  %v5798 = vld [vmem:[%s5795 + $0x10] sm:$0xff]
  %v5799 = vld [vmem:[%s5795 + $0x18] sm:$0xff]
  %v5801 = vsel %vm828, %v5792, 0
  %v5804 = vsel %vm828, %v5793, 0
  %v5807 = vsel %vm828, %v5794, 0
  %5809 = vmatprep.subr.mxu0 0.0
  %5810 = vmatpush1.msra.mxu0 %v5796
  %5811 = vmatprep.subr.mxu0 0.0
  %5812 = vmatpush1.msra.mxu0 %v5797
  %5813 = vmatprep.subr.mxu0 0.0
  %5814 = vmatpush1.msra.mxu0 %v5798
  %5815 = vmatprep.subr.mxu0 0.0
  %5816 = vmatpush1.msra.mxu0 %v5799
  %5817 = vmatprep.subr.mxu0 0.0
  %5818 = vmatpush1.msra.mxu0 0.0
  %5819 = vmatprep.subr.mxu0 0.0
  %5820 = vmatpush1.msra.mxu0 0.0
  %5821 = vmatprep.subr.mxu0 0.0
  %5822 = vmatpush1.msra.mxu0 0.0
  %5823 = vmatprep.subr.mxu0 0.0
  %5824 = vmatpush1.msra.mxu0 0.0
  %5825 = vmatprep.subr.mxu0 0.0
  %5826 = vmatpush1.msra.mxu0 0.0
  %5827 = vmatprep.subr.mxu0 0.0
  %5828 = vmatpush1.msra.mxu0 0.0
  %5829 = vmatprep.subr.mxu0 0.0
  %5830 = vmatpush1.msra.mxu0 0.0
  %5831 = vmatprep.subr.mxu0 0.0
  %5832 = vmatpush1.msra.mxu0 0.0
  %5833 = vmatprep.subr.mxu0 0.0
  %5834 = vmatpush1.msra.mxu0 0.0
  %5835 = vmatprep.subr.mxu0 0.0
  %5836 = vmatpush1.msra.mxu0 0.0
  %5837 = vmatprep.subr.mxu0 0.0
  %5838 = vmatpush1.msra.mxu0 0.0
  %5839 = vmatprep.subr.mxu0 0.0
  %5840 = vmatpush1.msra.mxu0 0.0
  %5841 = vmatprep.subr.mxu0 0.0
  %5842 = vmatpush1.msra.mxu0 0.0
  %5843 = vmatprep.subr.mxu0 0.0
  %5844 = vmatpush1.msra.mxu0 0.0
  %5845 = vmatprep.subr.mxu0 0.0
  %5846 = vmatpush1.msra.mxu0 0.0
  %5847 = vmatprep.subr.mxu0 0.0
  %5848 = vmatpush1.msra.mxu0 0.0
  %5849 = vmatprep.subr.mxu0 0.0
  %5850 = vmatpush1.msra.mxu0 0.0
  %5851 = vmatprep.subr.mxu0 0.0
  %5852 = vmatpush1.msra.mxu0 0.0
  %5853 = vmatprep.subr.mxu0 0.0
  %5854 = vmatpush1.msra.mxu0 0.0
  %5855 = vmatprep.subr.mxu0 0.0
  %5856 = vmatpush1.msra.mxu0 0.0
  %5857 = vmatprep.subr.mxu0 0.0
  %5858 = vmatpush1.msra.mxu0 0.0
  %5859 = vmatprep.subr.mxu0 0.0
  %5860 = vmatpush1.msra.mxu0 0.0
  %5861 = vmatprep.subr.mxu0 0.0
  %5862 = vmatpush1.msra.mxu0 0.0
  %5863 = vmatprep.subr.mxu0 0.0
  %5864 = vmatpush1.msra.mxu0 0.0
  %5865 = vmatprep.subr.mxu0 0.0
  %5866 = vmatpush1.msra.mxu0 0.0
  %5867 = vmatprep.subr.mxu0 0.0
  %5868 = vmatpush1.msra.mxu0 0.0
  %5869 = vmatprep.subr.mxu0 0.0
  %5870 = vmatpush1.msra.mxu0 0.0
  %5871 = vmatprep.subr.mxu0 0.0
  %5872 = vmatpush1.msra.mxu0 0.0
  %5873 = vmatprep.mubr.f32.mxu0 0.0
  %5874 = vmatmul.mubr.f32.gmra.mrb[0].mxu0 %v5801
  %v5875 = vpop.f32.mrb[0].mxu0
  %v5876 = vadd.f32 0.0, %v5875
  %v5877 = vpop.f32.mrb[0].mxu0
  %5878 = vmatprep.mubr.f32.mxu0 0.0
  %5879 = vmatmul.mubr.f32.gmra.mrb[0].mxu0 %v5804
  %v5880 = vpop.f32.mrb[0].mxu0
  %v5881 = vadd.f32 0.0, %v5880
  %v5882 = vpop.f32.mrb[0].mxu0
  %5883 = vmatprep.mubr.f32.mxu0 0.0
  %5884 = vmatmul.mubr.f32.gmra.mrb[0].mxu0 %v5807
  %v5885 = vpop.f32.mrb[0].mxu0
  %v5886 = vadd.f32 0.0, %v5885
  %v5887 = vpop.f32.mrb[0].mxu0
  %5888 = vdwg.mxu0
  %v5889 = vmul.f32 %v5876, %v5876
  %v5890 = vmul.f32 %v5881, %v5881
  %v5891 = vadd.f32 %v5889, %v5890
  %v5892 = vmul.f32 %v5886, %v5886
  %v5893 = vadd.f32 %v5891, %v5892
  %v5894 = vadd.f32 %v5893, 1e-08
  %v5895 = vrsqrt.pop %v5894
  %v5896 = vmul.f32 %v5894, %v5895
  %vm5897 = vcmp.eq.f32.partialorder %v5894, inf
  %v5898 = vsel %vm5897, %v5894, %v5896
  %vm5899 = vcmp.eq.f32.partialorder %v5894, 0.0
  %v5900 = vand.u32 %v5894, 2147483648
  %v5901 = vsel %vm5899, %v5900, %v5898
  %s5902 = scalar_lea.vmem %s33, 32
  %v5903 = vld [vmem:[%s5902] sm:$0xff]
  %v5904 = vld [vmem:[%s5902 + $0x8] sm:$0xff]
  %v5905 = vld [vmem:[%s5902 + $0x10] sm:$0xff]
  %v5906 = vld [vmem:[%s5902 + $0x18] sm:$0xff]
  %s5907 = scalar_lea.vmem %s35, 32
  %v5908 = vld [vmem:[%s5907] sm:$0xff]
  %v5909 = vld [vmem:[%s5907 + $0x8] sm:$0xff]
  %v5910 = vld [vmem:[%s5907 + $0x10] sm:$0xff]
  %v5911 = vld [vmem:[%s5907 + $0x18] sm:$0xff]
  %5913 = vrot.lane.b32.xlu0 %v5901, 96
  %v5914 = vpop.permute.xlu0 %5913
  %v5915 = vsel %vm828, %v5914, 0
  %5917 = vmatprep.subr.mxu0 0.0
  %5918 = vmatpush1.msra.mxu0 %v5908
  %5919 = vmatprep.subr.mxu0 0.0
  %5920 = vmatpush1.msra.mxu0 %v5909
  %5921 = vmatprep.subr.mxu0 0.0
  %5922 = vmatpush1.msra.mxu0 %v5910
  %5923 = vmatprep.subr.mxu0 0.0
  %5924 = vmatpush1.msra.mxu0 %v5911
  %5925 = vmatprep.subr.mxu0 0.0
  %5926 = vmatpush1.msra.mxu0 0.0
  %5927 = vmatprep.subr.mxu0 0.0
  %5928 = vmatpush1.msra.mxu0 0.0
  %5929 = vmatprep.subr.mxu0 0.0
  %5930 = vmatpush1.msra.mxu0 0.0
  %5931 = vmatprep.subr.mxu0 0.0
  %5932 = vmatpush1.msra.mxu0 0.0
  %5933 = vmatprep.subr.mxu0 0.0
  %5934 = vmatpush1.msra.mxu0 0.0
  %5935 = vmatprep.subr.mxu0 0.0
  %5936 = vmatpush1.msra.mxu0 0.0
  %5937 = vmatprep.subr.mxu0 0.0
  %5938 = vmatpush1.msra.mxu0 0.0
  %5939 = vmatprep.subr.mxu0 0.0
  %5940 = vmatpush1.msra.mxu0 0.0
  %5941 = vmatprep.subr.mxu0 0.0
  %5942 = vmatpush1.msra.mxu0 0.0
  %5943 = vmatprep.subr.mxu0 0.0
  %5944 = vmatpush1.msra.mxu0 0.0
  %5945 = vmatprep.subr.mxu0 0.0
  %5946 = vmatpush1.msra.mxu0 0.0
  %5947 = vmatprep.subr.mxu0 0.0
  %5948 = vmatpush1.msra.mxu0 0.0
  %5949 = vmatprep.subr.mxu0 0.0
  %5950 = vmatpush1.msra.mxu0 0.0
  %5951 = vmatprep.subr.mxu0 0.0
  %5952 = vmatpush1.msra.mxu0 0.0
  %5953 = vmatprep.subr.mxu0 0.0
  %5954 = vmatpush1.msra.mxu0 0.0
  %5955 = vmatprep.subr.mxu0 0.0
  %5956 = vmatpush1.msra.mxu0 0.0
  %5957 = vmatprep.subr.mxu0 0.0
  %5958 = vmatpush1.msra.mxu0 0.0
  %5959 = vmatprep.subr.mxu0 0.0
  %5960 = vmatpush1.msra.mxu0 0.0
  %5961 = vmatprep.subr.mxu0 0.0
  %5962 = vmatpush1.msra.mxu0 0.0
  %5963 = vmatprep.subr.mxu0 0.0
  %5964 = vmatpush1.msra.mxu0 0.0
  %5965 = vmatprep.subr.mxu0 0.0
  %5966 = vmatpush1.msra.mxu0 0.0
  %5967 = vmatprep.subr.mxu0 0.0
  %5968 = vmatpush1.msra.mxu0 0.0
  %5969 = vmatprep.subr.mxu0 0.0
  %5970 = vmatpush1.msra.mxu0 0.0
  %5971 = vmatprep.subr.mxu0 0.0
  %5972 = vmatpush1.msra.mxu0 0.0
  %5973 = vmatprep.subr.mxu0 0.0
  %5974 = vmatpush1.msra.mxu0 0.0
  %5975 = vmatprep.subr.mxu0 0.0
  %5976 = vmatpush1.msra.mxu0 0.0
  %5977 = vmatprep.subr.mxu0 0.0
  %5978 = vmatpush1.msra.mxu0 0.0
  %5979 = vmatprep.subr.mxu0 0.0
  %5980 = vmatpush1.msra.mxu0 0.0
  %5981 = vmatprep.mubr.f32.mxu0 0.0
  %5982 = vmatmul.mubr.f32.gmra.mrb[0].mxu0 %v5915
  %v5983 = vpop.f32.mrb[0].mxu0
  %v5984 = vadd.f32 0.0, %v5983
  %v5985 = vpop.f32.mrb[0].mxu0
  %5986 = vdwg.mxu0
  %v5988 = vsel %vm828, %v5791, 0
  %5990 = vmatprep.subr.mxu0 0.0
  %5991 = vmatpush1.msra.mxu0 %v5903
  %5992 = vmatprep.subr.mxu0 0.0
  %5993 = vmatpush1.msra.mxu0 %v5904
  %5994 = vmatprep.subr.mxu0 0.0
  %5995 = vmatpush1.msra.mxu0 %v5905
  %5996 = vmatprep.subr.mxu0 0.0
  %5997 = vmatpush1.msra.mxu0 %v5906
  %5998 = vmatprep.subr.mxu0 0.0
  %5999 = vmatpush1.msra.mxu0 0.0
  %6000 = vmatprep.subr.mxu0 0.0
  %6001 = vmatpush1.msra.mxu0 0.0
  %6002 = vmatprep.subr.mxu0 0.0
  %6003 = vmatpush1.msra.mxu0 0.0
  %6004 = vmatprep.subr.mxu0 0.0
  %6005 = vmatpush1.msra.mxu0 0.0
  %6006 = vmatprep.subr.mxu0 0.0
  %6007 = vmatpush1.msra.mxu0 0.0
  %6008 = vmatprep.subr.mxu0 0.0
  %6009 = vmatpush1.msra.mxu0 0.0
  %6010 = vmatprep.subr.mxu0 0.0
  %6011 = vmatpush1.msra.mxu0 0.0
  %6012 = vmatprep.subr.mxu0 0.0
  %6013 = vmatpush1.msra.mxu0 0.0
  %6014 = vmatprep.subr.mxu0 0.0
  %6015 = vmatpush1.msra.mxu0 0.0
  %6016 = vmatprep.subr.mxu0 0.0
  %6017 = vmatpush1.msra.mxu0 0.0
  %6018 = vmatprep.subr.mxu0 0.0
  %6019 = vmatpush1.msra.mxu0 0.0
  %6020 = vmatprep.subr.mxu0 0.0
  %6021 = vmatpush1.msra.mxu0 0.0
  %6022 = vmatprep.subr.mxu0 0.0
  %6023 = vmatpush1.msra.mxu0 0.0
  %6024 = vmatprep.subr.mxu0 0.0
  %6025 = vmatpush1.msra.mxu0 0.0
  %6026 = vmatprep.subr.mxu0 0.0
  %6027 = vmatpush1.msra.mxu0 0.0
  %6028 = vmatprep.subr.mxu0 0.0
  %6029 = vmatpush1.msra.mxu0 0.0
  %6030 = vmatprep.subr.mxu0 0.0
  %6031 = vmatpush1.msra.mxu0 0.0
  %6032 = vmatprep.subr.mxu0 0.0
  %6033 = vmatpush1.msra.mxu0 0.0
  %6034 = vmatprep.subr.mxu0 0.0
  %6035 = vmatpush1.msra.mxu0 0.0
  %6036 = vmatprep.subr.mxu0 0.0
  %6037 = vmatpush1.msra.mxu0 0.0
  %6038 = vmatprep.subr.mxu0 0.0
  %6039 = vmatpush1.msra.mxu0 0.0
  %6040 = vmatprep.subr.mxu0 0.0
  %6041 = vmatpush1.msra.mxu0 0.0
  %6042 = vmatprep.subr.mxu0 0.0
  %6043 = vmatpush1.msra.mxu0 0.0
  %6044 = vmatprep.subr.mxu0 0.0
  %6045 = vmatpush1.msra.mxu0 0.0
  %6046 = vmatprep.subr.mxu0 0.0
  %6047 = vmatpush1.msra.mxu0 0.0
  %6048 = vmatprep.subr.mxu0 0.0
  %6049 = vmatpush1.msra.mxu0 0.0
  %6050 = vmatprep.subr.mxu0 0.0
  %6051 = vmatpush1.msra.mxu0 0.0
  %6052 = vmatprep.subr.mxu0 0.0
  %6053 = vmatpush1.msra.mxu0 0.0
  %6054 = vmatprep.mubr.f32.mxu0 0.0
  %6055 = vmatmul.mubr.f32.gmra.mrb[0].mxu0 %v5988
  %v6056 = vpop.f32.mrb[0].mxu0
  %v6057 = vadd.f32 %v5984, %v6056
  %v6058 = vpop.f32.mrb[0].mxu0
  %6059 = vdwg.mxu0
  %s6060 = scalar_lea.vmem %s37, 1
  %v6061 = vld [vmem:[%s6060] sm:$0x1]
  %v6063 = vlaneseq
  %v6064 = vshrl.u32 %v6063, 7
  %v6065 = vsub.s32 0, %v6064
  %v6066 = vrot.slane %v6061, %v6065
  %v6068 = vadd.f32 %v6057, %v6066
  %v6069 = vsub.f32 0.0, %v6068
  %v6070 = vmul.f32 %v6069, 1.442695
  %v6071 = vpow.pop %v6070
  %v6072 = vadd.f32 %v6071, 1.0
  %v6073 = vrcp.pop %v6072
  %v6074 = vmul.f32 %v6068, %v6073
  %s6075 = scalar_lea.vmem %s39, 32
  %v6076 = vld [vmem:[%s6075] sm:$0xff]
  %v6077 = vld [vmem:[%s6075 + $0x8] sm:$0xff]
  %v6078 = vld [vmem:[%s6075 + $0x10] sm:$0xff]
  %v6079 = vld [vmem:[%s6075 + $0x18] sm:$0xff]
  %s6080 = scalar_lea.vmem %s41, 1
  %v6081 = vld [vmem:[%s6080] sm:$0x1]
  %v6083 = vlaneseq
  %v6084 = vshrl.u32 %v6083, 7
  %v6085 = vsub.s32 0, %v6084
  %v6086 = vrot.slane %v6081, %v6085
  %v6089 = vsel %vm828, %v6074, 0
  %6091 = vmatprep.subr.mxu0 0.0
  %6092 = vmatpush1.msra.mxu0 %v6076
  %6093 = vmatprep.subr.mxu0 0.0
  %6094 = vmatpush1.msra.mxu0 %v6077
  %6095 = vmatprep.subr.mxu0 0.0
  %6096 = vmatpush1.msra.mxu0 %v6078
  %6097 = vmatprep.subr.mxu0 0.0
  %6098 = vmatpush1.msra.mxu0 %v6079
  %6099 = vmatprep.subr.mxu0 0.0
  %6100 = vmatpush1.msra.mxu0 0.0
  %6101 = vmatprep.subr.mxu0 0.0
  %6102 = vmatpush1.msra.mxu0 0.0
  %6103 = vmatprep.subr.mxu0 0.0
  %6104 = vmatpush1.msra.mxu0 0.0
  %6105 = vmatprep.subr.mxu0 0.0
  %6106 = vmatpush1.msra.mxu0 0.0
  %6107 = vmatprep.subr.mxu0 0.0
  %6108 = vmatpush1.msra.mxu0 0.0
  %6109 = vmatprep.subr.mxu0 0.0
  %6110 = vmatpush1.msra.mxu0 0.0
  %6111 = vmatprep.subr.mxu0 0.0
  %6112 = vmatpush1.msra.mxu0 0.0
  %6113 = vmatprep.subr.mxu0 0.0
  %6114 = vmatpush1.msra.mxu0 0.0
  %6115 = vmatprep.subr.mxu0 0.0
  %6116 = vmatpush1.msra.mxu0 0.0
  %6117 = vmatprep.subr.mxu0 0.0
  %6118 = vmatpush1.msra.mxu0 0.0
  %6119 = vmatprep.subr.mxu0 0.0
  %6120 = vmatpush1.msra.mxu0 0.0
  %6121 = vmatprep.subr.mxu0 0.0
  %6122 = vmatpush1.msra.mxu0 0.0
  %6123 = vmatprep.subr.mxu0 0.0
  %6124 = vmatpush1.msra.mxu0 0.0
  %6125 = vmatprep.subr.mxu0 0.0
  %6126 = vmatpush1.msra.mxu0 0.0
  %6127 = vmatprep.subr.mxu0 0.0
  %6128 = vmatpush1.msra.mxu0 0.0
  %6129 = vmatprep.subr.mxu0 0.0
  %6130 = vmatpush1.msra.mxu0 0.0
  %6131 = vmatprep.subr.mxu0 0.0
  %6132 = vmatpush1.msra.mxu0 0.0
  %6133 = vmatprep.subr.mxu0 0.0
  %6134 = vmatpush1.msra.mxu0 0.0
  %6135 = vmatprep.subr.mxu0 0.0
  %6136 = vmatpush1.msra.mxu0 0.0
  %6137 = vmatprep.subr.mxu0 0.0
  %6138 = vmatpush1.msra.mxu0 0.0
  %6139 = vmatprep.subr.mxu0 0.0
  %6140 = vmatpush1.msra.mxu0 0.0
  %6141 = vmatprep.subr.mxu0 0.0
  %6142 = vmatpush1.msra.mxu0 0.0
  %6143 = vmatprep.subr.mxu0 0.0
  %6144 = vmatpush1.msra.mxu0 0.0
  %6145 = vmatprep.subr.mxu0 0.0
  %6146 = vmatpush1.msra.mxu0 0.0
  %6147 = vmatprep.subr.mxu0 0.0
  %6148 = vmatpush1.msra.mxu0 0.0
  %6149 = vmatprep.subr.mxu0 0.0
  %6150 = vmatpush1.msra.mxu0 0.0
  %6151 = vmatprep.subr.mxu0 0.0
  %6152 = vmatpush1.msra.mxu0 0.0
  %6153 = vmatprep.subr.mxu0 0.0
  %6154 = vmatpush1.msra.mxu0 0.0
  %6155 = vmatprep.mubr.f32.mxu0 0.0
  %6156 = vmatmul.mubr.f32.gmra.mrb[0].mxu0 %v6089
  %v6157 = vpop.f32.mrb[0].mxu0
  %v6158 = vadd.f32 %v6086, %v6157
  %v6159 = vpop.f32.mrb[0].mxu0
  %6160 = vdwg.mxu0
  %6162 = vrot.lane.b32.xlu0 %v5876, 96
  %v6163 = vpop.permute.xlu0 %6162
  %v6165 = vmul.f32 %v5876, %v6163
  %6167 = vrot.lane.b32.xlu0 %v5881, 96
  %v6168 = vpop.permute.xlu0 %6167
  %v6170 = vmul.f32 %v5881, %v6168
  %v6171 = vadd.f32 %v6165, %v6170
  %6173 = vrot.lane.b32.xlu0 %v5886, 96
  %v6174 = vpop.permute.xlu0 %6173
  %v6176 = vmul.f32 %v5886, %v6174
  %v6177 = vadd.f32 %v6171, %v6176
  %6179 = vrot.lane.b32.xlu0 %v6177, 32
  %v6180 = vpop.permute.xlu0 %6179
  %v6182 = vmul.f32 %v6158, %v6180
  %6184 = vrot.lane.b32.xlu0 %v6182, 96
  %v6185 = vpop.permute.xlu0 %6184
  %v6187 = vadd.f32 %v6158, %v6185
  %6188 = vrot.lane.b32.xlu0 %v5876, 64
  %v6189 = vpop.permute.xlu0 %6188
  %v6191 = vmul.f32 %v6158, %v6189
  %6192 = vrot.lane.b32.xlu0 %v5881, 64
  %v6193 = vpop.permute.xlu0 %6192
  %v6195 = vmul.f32 %v6158, %v6193
  %6196 = vrot.lane.b32.xlu0 %v5886, 64
  %v6197 = vpop.permute.xlu0 %6196
  %v6199 = vmul.f32 %v6158, %v6197
  %s6200 = scalar_lea.vmem %s55, 32
  %v6201 = vld [vmem:[%s6200] sm:$0xff]
  %v6202 = vld [vmem:[%s6200 + $0x8] sm:$0xff]
  %v6203 = vld [vmem:[%s6200 + $0x10] sm:$0xff]
  %v6204 = vld [vmem:[%s6200 + $0x18] sm:$0xff]
  %v6206 = vsel %vm828, %v6187, 0
  %6208 = vmatprep.subr.mxu0 0.0
  %6209 = vmatpush1.msra.mxu0 %v6201
  %6210 = vmatprep.subr.mxu0 0.0
  %6211 = vmatpush1.msra.mxu0 %v6202
  %6212 = vmatprep.subr.mxu0 0.0
  %6213 = vmatpush1.msra.mxu0 %v6203
  %6214 = vmatprep.subr.mxu0 0.0
  %6215 = vmatpush1.msra.mxu0 %v6204
  %6216 = vmatprep.subr.mxu0 0.0
  %6217 = vmatpush1.msra.mxu0 0.0
  %6218 = vmatprep.subr.mxu0 0.0
  %6219 = vmatpush1.msra.mxu0 0.0
  %6220 = vmatprep.subr.mxu0 0.0
  %6221 = vmatpush1.msra.mxu0 0.0
  %6222 = vmatprep.subr.mxu0 0.0
  %6223 = vmatpush1.msra.mxu0 0.0
  %6224 = vmatprep.subr.mxu0 0.0
  %6225 = vmatpush1.msra.mxu0 0.0
  %6226 = vmatprep.subr.mxu0 0.0
  %6227 = vmatpush1.msra.mxu0 0.0
  %6228 = vmatprep.subr.mxu0 0.0
  %6229 = vmatpush1.msra.mxu0 0.0
  %6230 = vmatprep.subr.mxu0 0.0
  %6231 = vmatpush1.msra.mxu0 0.0
  %6232 = vmatprep.subr.mxu0 0.0
  %6233 = vmatpush1.msra.mxu0 0.0
  %6234 = vmatprep.subr.mxu0 0.0
  %6235 = vmatpush1.msra.mxu0 0.0
  %6236 = vmatprep.subr.mxu0 0.0
  %6237 = vmatpush1.msra.mxu0 0.0
  %6238 = vmatprep.subr.mxu0 0.0
  %6239 = vmatpush1.msra.mxu0 0.0
  %6240 = vmatprep.subr.mxu0 0.0
  %6241 = vmatpush1.msra.mxu0 0.0
  %6242 = vmatprep.subr.mxu0 0.0
  %6243 = vmatpush1.msra.mxu0 0.0
  %6244 = vmatprep.subr.mxu0 0.0
  %6245 = vmatpush1.msra.mxu0 0.0
  %6246 = vmatprep.subr.mxu0 0.0
  %6247 = vmatpush1.msra.mxu0 0.0
  %6248 = vmatprep.subr.mxu0 0.0
  %6249 = vmatpush1.msra.mxu0 0.0
  %6250 = vmatprep.subr.mxu0 0.0
  %6251 = vmatpush1.msra.mxu0 0.0
  %6252 = vmatprep.subr.mxu0 0.0
  %6253 = vmatpush1.msra.mxu0 0.0
  %6254 = vmatprep.subr.mxu0 0.0
  %6255 = vmatpush1.msra.mxu0 0.0
  %6256 = vmatprep.subr.mxu0 0.0
  %6257 = vmatpush1.msra.mxu0 0.0
  %6258 = vmatprep.subr.mxu0 0.0
  %6259 = vmatpush1.msra.mxu0 0.0
  %6260 = vmatprep.subr.mxu0 0.0
  %6261 = vmatpush1.msra.mxu0 0.0
  %6262 = vmatprep.subr.mxu0 0.0
  %6263 = vmatpush1.msra.mxu0 0.0
  %6264 = vmatprep.subr.mxu0 0.0
  %6265 = vmatpush1.msra.mxu0 0.0
  %6266 = vmatprep.subr.mxu0 0.0
  %6267 = vmatpush1.msra.mxu0 0.0
  %6268 = vmatprep.subr.mxu0 0.0
  %6269 = vmatpush1.msra.mxu0 0.0
  %6270 = vmatprep.subr.mxu0 0.0
  %6271 = vmatpush1.msra.mxu0 0.0
  %6272 = vmatprep.mubr.f32.mxu0 0.0
  %6273 = vmatmul.mubr.f32.gmra.mrb[0].mxu0 %v6206
  %v6274 = vpop.f32.mrb[0].mxu0
  %v6275 = vadd.f32 0.0, %v6274
  %v6276 = vpop.f32.mrb[0].mxu0
  %6277 = vdwg.mxu0
  %s6278 = scalar_lea.vmem %s57, 32
  %v6279 = vld [vmem:[%s6278] sm:$0xff]
  %v6280 = vld [vmem:[%s6278 + $0x8] sm:$0xff]
  %v6281 = vld [vmem:[%s6278 + $0x10] sm:$0xff]
  %v6282 = vld [vmem:[%s6278 + $0x18] sm:$0xff]
  %6286 = vrot.lane.b32.xlu0 %v6191, 64
  %v6287 = vpop.permute.xlu0 %6286
  %6288 = vrot.lane.b32.xlu0 %v6195, 64
  %v6289 = vpop.permute.xlu0 %6288
  %6290 = vrot.lane.b32.xlu0 %v6199, 64
  %v6291 = vpop.permute.xlu0 %6290
  %v6292 = vsel %vm828, %v6287, 0
  %v6294 = vsel %vm828, %v6289, 0
  %v6296 = vsel %vm828, %v6291, 0
  %6298 = vmatprep.subr.mxu0 0.0
  %6299 = vmatpush1.msra.mxu0 %v6279
  %6300 = vmatprep.subr.mxu0 0.0
  %6301 = vmatpush1.msra.mxu0 %v6280
  %6302 = vmatprep.subr.mxu0 0.0
  %6303 = vmatpush1.msra.mxu0 %v6281
  %6304 = vmatprep.subr.mxu0 0.0
  %6305 = vmatpush1.msra.mxu0 %v6282
  %6306 = vmatprep.subr.mxu0 0.0
  %6307 = vmatpush1.msra.mxu0 0.0
  %6308 = vmatprep.subr.mxu0 0.0
  %6309 = vmatpush1.msra.mxu0 0.0
  %6310 = vmatprep.subr.mxu0 0.0
  %6311 = vmatpush1.msra.mxu0 0.0
  %6312 = vmatprep.subr.mxu0 0.0
  %6313 = vmatpush1.msra.mxu0 0.0
  %6314 = vmatprep.subr.mxu0 0.0
  %6315 = vmatpush1.msra.mxu0 0.0
  %6316 = vmatprep.subr.mxu0 0.0
  %6317 = vmatpush1.msra.mxu0 0.0
  %6318 = vmatprep.subr.mxu0 0.0
  %6319 = vmatpush1.msra.mxu0 0.0
  %6320 = vmatprep.subr.mxu0 0.0
  %6321 = vmatpush1.msra.mxu0 0.0
  %6322 = vmatprep.subr.mxu0 0.0
  %6323 = vmatpush1.msra.mxu0 0.0
  %6324 = vmatprep.subr.mxu0 0.0
  %6325 = vmatpush1.msra.mxu0 0.0
  %6326 = vmatprep.subr.mxu0 0.0
  %6327 = vmatpush1.msra.mxu0 0.0
  %6328 = vmatprep.subr.mxu0 0.0
  %6329 = vmatpush1.msra.mxu0 0.0
  %6330 = vmatprep.subr.mxu0 0.0
  %6331 = vmatpush1.msra.mxu0 0.0
  %6332 = vmatprep.subr.mxu0 0.0
  %6333 = vmatpush1.msra.mxu0 0.0
  %6334 = vmatprep.subr.mxu0 0.0
  %6335 = vmatpush1.msra.mxu0 0.0
  %6336 = vmatprep.subr.mxu0 0.0
  %6337 = vmatpush1.msra.mxu0 0.0
  %6338 = vmatprep.subr.mxu0 0.0
  %6339 = vmatpush1.msra.mxu0 0.0
  %6340 = vmatprep.subr.mxu0 0.0
  %6341 = vmatpush1.msra.mxu0 0.0
  %6342 = vmatprep.subr.mxu0 0.0
  %6343 = vmatpush1.msra.mxu0 0.0
  %6344 = vmatprep.subr.mxu0 0.0
  %6345 = vmatpush1.msra.mxu0 0.0
  %6346 = vmatprep.subr.mxu0 0.0
  %6347 = vmatpush1.msra.mxu0 0.0
  %6348 = vmatprep.subr.mxu0 0.0
  %6349 = vmatpush1.msra.mxu0 0.0
  %6350 = vmatprep.subr.mxu0 0.0
  %6351 = vmatpush1.msra.mxu0 0.0
  %6352 = vmatprep.subr.mxu0 0.0
  %6353 = vmatpush1.msra.mxu0 0.0
  %6354 = vmatprep.subr.mxu0 0.0
  %6355 = vmatpush1.msra.mxu0 0.0
  %6356 = vmatprep.subr.mxu0 0.0
  %6357 = vmatpush1.msra.mxu0 0.0
  %6358 = vmatprep.subr.mxu0 0.0
  %6359 = vmatpush1.msra.mxu0 0.0
  %6360 = vmatprep.subr.mxu0 0.0
  %6361 = vmatpush1.msra.mxu0 0.0
  %6362 = vmatprep.mubr.f32.mxu0 0.0
  %6363 = vmatmul.mubr.f32.gmra.mrb[0].mxu0 %v6292
  %v6364 = vpop.f32.mrb[0].mxu0
  %v6365 = vadd.f32 0.0, %v6364
  %v6366 = vpop.f32.mrb[0].mxu0
  %6367 = vmatprep.mubr.f32.mxu0 0.0
  %6368 = vmatmul.mubr.f32.gmra.mrb[0].mxu0 %v6294
  %v6369 = vpop.f32.mrb[0].mxu0
  %v6370 = vadd.f32 0.0, %v6369
  %v6371 = vpop.f32.mrb[0].mxu0
  %6372 = vmatprep.mubr.f32.mxu0 0.0
  %6373 = vmatmul.mubr.f32.gmra.mrb[0].mxu0 %v6296
  %v6374 = vpop.f32.mrb[0].mxu0
  %v6375 = vadd.f32 0.0, %v6374
  %v6376 = vpop.f32.mrb[0].mxu0
  %6377 = vdwg.mxu0
  %6378 = vmatprep.subr.mxu0 0.0
  %6379 = vmatpush1.msra.mxu0 %v6275
  %6380 = vmatprep.subr.mxu0 0.0
  %6381 = vmatpush1.msra.mxu0 0.0
  %6382 = vmatprep.subr.mxu0 0.0
  %6383 = vmatpush1.msra.mxu0 0.0
  %6384 = vmatprep.subr.mxu0 0.0
  %6385 = vmatpush1.msra.mxu0 0.0
  %6386 = vmatprep.subr.mxu0 0.0
  %6387 = vmatpush1.msra.mxu0 0.0
  %6388 = vmatprep.subr.mxu0 0.0
  %6389 = vmatpush1.msra.mxu0 0.0
  %6390 = vmatprep.subr.mxu0 0.0
  %6391 = vmatpush1.msra.mxu0 0.0
  %6392 = vmatprep.subr.mxu0 0.0
  %6393 = vmatpush1.msra.mxu0 0.0
  %6394 = vmatprep.subr.mxu0 0.0
  %6395 = vmatpush1.msra.mxu0 0.0
  %6396 = vmatprep.subr.mxu0 0.0
  %6397 = vmatpush1.msra.mxu0 0.0
  %6398 = vmatprep.subr.mxu0 0.0
  %6399 = vmatpush1.msra.mxu0 0.0
  %6400 = vmatprep.subr.mxu0 0.0
  %6401 = vmatpush1.msra.mxu0 0.0
  %6402 = vmatprep.subr.mxu0 0.0
  %6403 = vmatpush1.msra.mxu0 0.0
  %6404 = vmatprep.subr.mxu0 0.0
  %6405 = vmatpush1.msra.mxu0 0.0
  %6406 = vmatprep.subr.mxu0 0.0
  %6407 = vmatpush1.msra.mxu0 0.0
  %6408 = vmatprep.subr.mxu0 0.0
  %6409 = vmatpush1.msra.mxu0 0.0
  %6410 = vmatprep.subr.mxu0 0.0
  %6411 = vmatpush1.msra.mxu0 0.0
  %6412 = vmatprep.subr.mxu0 0.0
  %6413 = vmatpush1.msra.mxu0 0.0
  %6414 = vmatprep.subr.mxu0 0.0
  %6415 = vmatpush1.msra.mxu0 0.0
  %6416 = vmatprep.subr.mxu0 0.0
  %6417 = vmatpush1.msra.mxu0 0.0
  %6418 = vmatprep.subr.mxu0 0.0
  %6419 = vmatpush1.msra.mxu0 0.0
  %6420 = vmatprep.subr.mxu0 0.0
  %6421 = vmatpush1.msra.mxu0 0.0
  %6422 = vmatprep.subr.mxu0 0.0
  %6423 = vmatpush1.msra.mxu0 0.0
  %6424 = vmatprep.subr.mxu0 0.0
  %6425 = vmatpush1.msra.mxu0 0.0
  %6426 = vmatprep.subr.mxu0 0.0
  %6427 = vmatpush1.msra.mxu0 0.0
  %6428 = vmatprep.subr.mxu0 0.0
  %6429 = vmatpush1.msra.mxu0 0.0
  %6430 = vmatprep.subr.mxu0 0.0
  %6431 = vmatpush1.msra.mxu0 0.0
  %6432 = vmatprep.subr.mxu0 0.0
  %6433 = vmatpush1.msra.mxu0 0.0
  %6434 = vmatprep.subr.mxu0 0.0
  %6435 = vmatpush1.msra.mxu0 0.0
  %6436 = vmatprep.subr.mxu0 0.0
  %6437 = vmatpush1.msra.mxu0 0.0
  %6438 = vmatprep.subr.mxu0 0.0
  %6439 = vmatpush1.msra.mxu0 0.0
  %6440 = vmatprep.subr.mxu0 0.0
  %6441 = vmatpush1.msra.mxu0 0.0
  %6442 = vmatprep.mubr.f32.mxu0 0.0
  %6443 = vmatmul.mubr.f32.gmra.mrb[0].mxu0 %v2652
  %v6444 = vpop.f32.mrb[0].mxu0
  %v6445 = vadd.f32 0.0, %v6444
  %v6446 = vpop.f32.mrb[0].mxu0
  %6447 = vdwg.mxu0
  %6448 = vmatprep.subr.mxu0 0.0
  %6449 = vmatpush1.msra.mxu0 %v6365
  %6450 = vmatprep.subr.mxu0 0.0
  %6451 = vmatpush1.msra.mxu0 0.0
  %6452 = vmatprep.subr.mxu0 0.0
  %6453 = vmatpush1.msra.mxu0 0.0
  %6454 = vmatprep.subr.mxu0 0.0
  %6455 = vmatpush1.msra.mxu0 0.0
  %6456 = vmatprep.subr.mxu0 0.0
  %6457 = vmatpush1.msra.mxu0 0.0
  %6458 = vmatprep.subr.mxu0 0.0
  %6459 = vmatpush1.msra.mxu0 0.0
  %6460 = vmatprep.subr.mxu0 0.0
  %6461 = vmatpush1.msra.mxu0 0.0
  %6462 = vmatprep.subr.mxu0 0.0
  %6463 = vmatpush1.msra.mxu0 0.0
  %6464 = vmatprep.subr.mxu0 0.0
  %6465 = vmatpush1.msra.mxu0 0.0
  %6466 = vmatprep.subr.mxu0 0.0
  %6467 = vmatpush1.msra.mxu0 0.0
  %6468 = vmatprep.subr.mxu0 0.0
  %6469 = vmatpush1.msra.mxu0 0.0
  %6470 = vmatprep.subr.mxu0 0.0
  %6471 = vmatpush1.msra.mxu0 0.0
  %6472 = vmatprep.subr.mxu0 0.0
  %6473 = vmatpush1.msra.mxu0 0.0
  %6474 = vmatprep.subr.mxu0 0.0
  %6475 = vmatpush1.msra.mxu0 0.0
  %6476 = vmatprep.subr.mxu0 0.0
  %6477 = vmatpush1.msra.mxu0 0.0
  %6478 = vmatprep.subr.mxu0 0.0
  %6479 = vmatpush1.msra.mxu0 0.0
  %6480 = vmatprep.subr.mxu0 0.0
  %6481 = vmatpush1.msra.mxu0 0.0
  %6482 = vmatprep.subr.mxu0 0.0
  %6483 = vmatpush1.msra.mxu0 0.0
  %6484 = vmatprep.subr.mxu0 0.0
  %6485 = vmatpush1.msra.mxu0 0.0
  %6486 = vmatprep.subr.mxu0 0.0
  %6487 = vmatpush1.msra.mxu0 0.0
  %6488 = vmatprep.subr.mxu0 0.0
  %6489 = vmatpush1.msra.mxu0 0.0
  %6490 = vmatprep.subr.mxu0 0.0
  %6491 = vmatpush1.msra.mxu0 0.0
  %6492 = vmatprep.subr.mxu0 0.0
  %6493 = vmatpush1.msra.mxu0 0.0
  %6494 = vmatprep.subr.mxu0 0.0
  %6495 = vmatpush1.msra.mxu0 0.0
  %6496 = vmatprep.subr.mxu0 0.0
  %6497 = vmatpush1.msra.mxu0 0.0
  %6498 = vmatprep.subr.mxu0 0.0
  %6499 = vmatpush1.msra.mxu0 0.0
  %6500 = vmatprep.subr.mxu0 0.0
  %6501 = vmatpush1.msra.mxu0 0.0
  %6502 = vmatprep.subr.mxu0 0.0
  %6503 = vmatpush1.msra.mxu0 0.0
  %6504 = vmatprep.subr.mxu0 0.0
  %6505 = vmatpush1.msra.mxu0 0.0
  %6506 = vmatprep.subr.mxu0 0.0
  %6507 = vmatpush1.msra.mxu0 0.0
  %6508 = vmatprep.subr.mxu0 0.0
  %6509 = vmatpush1.msra.mxu0 0.0
  %6510 = vmatprep.subr.mxu0 0.0
  %6511 = vmatpush1.msra.mxu0 0.0
  %6512 = vmatprep.mubr.f32.mxu0 0.0
  %6513 = vmatmul.mubr.f32.gmra.mrb[0].mxu0 %v2652
  %v6514 = vpop.f32.mrb[0].mxu0
  %v6515 = vadd.f32 0.0, %v6514
  %v6516 = vpop.f32.mrb[0].mxu0
  %6517 = vdwg.mxu0
  %6518 = vmatprep.subr.mxu0 0.0
  %6519 = vmatpush1.msra.mxu0 %v6370
  %6520 = vmatprep.subr.mxu0 0.0
  %6521 = vmatpush1.msra.mxu0 0.0
  %6522 = vmatprep.subr.mxu0 0.0
  %6523 = vmatpush1.msra.mxu0 0.0
  %6524 = vmatprep.subr.mxu0 0.0
  %6525 = vmatpush1.msra.mxu0 0.0
  %6526 = vmatprep.subr.mxu0 0.0
  %6527 = vmatpush1.msra.mxu0 0.0
  %6528 = vmatprep.subr.mxu0 0.0
  %6529 = vmatpush1.msra.mxu0 0.0
  %6530 = vmatprep.subr.mxu0 0.0
  %6531 = vmatpush1.msra.mxu0 0.0
  %6532 = vmatprep.subr.mxu0 0.0
  %6533 = vmatpush1.msra.mxu0 0.0
  %6534 = vmatprep.subr.mxu0 0.0
  %6535 = vmatpush1.msra.mxu0 0.0
  %6536 = vmatprep.subr.mxu0 0.0
  %6537 = vmatpush1.msra.mxu0 0.0
  %6538 = vmatprep.subr.mxu0 0.0
  %6539 = vmatpush1.msra.mxu0 0.0
  %6540 = vmatprep.subr.mxu0 0.0
  %6541 = vmatpush1.msra.mxu0 0.0
  %6542 = vmatprep.subr.mxu0 0.0
  %6543 = vmatpush1.msra.mxu0 0.0
  %6544 = vmatprep.subr.mxu0 0.0
  %6545 = vmatpush1.msra.mxu0 0.0
  %6546 = vmatprep.subr.mxu0 0.0
  %6547 = vmatpush1.msra.mxu0 0.0
  %6548 = vmatprep.subr.mxu0 0.0
  %6549 = vmatpush1.msra.mxu0 0.0
  %6550 = vmatprep.subr.mxu0 0.0
  %6551 = vmatpush1.msra.mxu0 0.0
  %6552 = vmatprep.subr.mxu0 0.0
  %6553 = vmatpush1.msra.mxu0 0.0
  %6554 = vmatprep.subr.mxu0 0.0
  %6555 = vmatpush1.msra.mxu0 0.0
  %6556 = vmatprep.subr.mxu0 0.0
  %6557 = vmatpush1.msra.mxu0 0.0
  %6558 = vmatprep.subr.mxu0 0.0
  %6559 = vmatpush1.msra.mxu0 0.0
  %6560 = vmatprep.subr.mxu0 0.0
  %6561 = vmatpush1.msra.mxu0 0.0
  %6562 = vmatprep.subr.mxu0 0.0
  %6563 = vmatpush1.msra.mxu0 0.0
  %6564 = vmatprep.subr.mxu0 0.0
  %6565 = vmatpush1.msra.mxu0 0.0
  %6566 = vmatprep.subr.mxu0 0.0
  %6567 = vmatpush1.msra.mxu0 0.0
  %6568 = vmatprep.subr.mxu0 0.0
  %6569 = vmatpush1.msra.mxu0 0.0
  %6570 = vmatprep.subr.mxu0 0.0
  %6571 = vmatpush1.msra.mxu0 0.0
  %6572 = vmatprep.subr.mxu0 0.0
  %6573 = vmatpush1.msra.mxu0 0.0
  %6574 = vmatprep.subr.mxu0 0.0
  %6575 = vmatpush1.msra.mxu0 0.0
  %6576 = vmatprep.subr.mxu0 0.0
  %6577 = vmatpush1.msra.mxu0 0.0
  %6578 = vmatprep.subr.mxu0 0.0
  %6579 = vmatpush1.msra.mxu0 0.0
  %6580 = vmatprep.subr.mxu0 0.0
  %6581 = vmatpush1.msra.mxu0 0.0
  %6582 = vmatprep.mubr.f32.mxu0 0.0
  %6583 = vmatmul.mubr.f32.gmra.mrb[0].mxu0 %v2652
  %v6584 = vpop.f32.mrb[0].mxu0
  %v6585 = vadd.f32 0.0, %v6584
  %v6586 = vpop.f32.mrb[0].mxu0
  %6587 = vdwg.mxu0
  %6588 = vmatprep.subr.mxu0 0.0
  %6589 = vmatpush1.msra.mxu0 %v6375
  %6590 = vmatprep.subr.mxu0 0.0
  %6591 = vmatpush1.msra.mxu0 0.0
  %6592 = vmatprep.subr.mxu0 0.0
  %6593 = vmatpush1.msra.mxu0 0.0
  %6594 = vmatprep.subr.mxu0 0.0
  %6595 = vmatpush1.msra.mxu0 0.0
  %6596 = vmatprep.subr.mxu0 0.0
  %6597 = vmatpush1.msra.mxu0 0.0
  %6598 = vmatprep.subr.mxu0 0.0
  %6599 = vmatpush1.msra.mxu0 0.0
  %6600 = vmatprep.subr.mxu0 0.0
  %6601 = vmatpush1.msra.mxu0 0.0
  %6602 = vmatprep.subr.mxu0 0.0
  %6603 = vmatpush1.msra.mxu0 0.0
  %6604 = vmatprep.subr.mxu0 0.0
  %6605 = vmatpush1.msra.mxu0 0.0
  %6606 = vmatprep.subr.mxu0 0.0
  %6607 = vmatpush1.msra.mxu0 0.0
  %6608 = vmatprep.subr.mxu0 0.0
  %6609 = vmatpush1.msra.mxu0 0.0
  %6610 = vmatprep.subr.mxu0 0.0
  %6611 = vmatpush1.msra.mxu0 0.0
  %6612 = vmatprep.subr.mxu0 0.0
  %6613 = vmatpush1.msra.mxu0 0.0
  %6614 = vmatprep.subr.mxu0 0.0
  %6615 = vmatpush1.msra.mxu0 0.0
  %6616 = vmatprep.subr.mxu0 0.0
  %6617 = vmatpush1.msra.mxu0 0.0
  %6618 = vmatprep.subr.mxu0 0.0
  %6619 = vmatpush1.msra.mxu0 0.0
  %6620 = vmatprep.subr.mxu0 0.0
  %6621 = vmatpush1.msra.mxu0 0.0
  %6622 = vmatprep.subr.mxu0 0.0
  %6623 = vmatpush1.msra.mxu0 0.0
  %6624 = vmatprep.subr.mxu0 0.0
  %6625 = vmatpush1.msra.mxu0 0.0
  %6626 = vmatprep.subr.mxu0 0.0
  %6627 = vmatpush1.msra.mxu0 0.0
  %6628 = vmatprep.subr.mxu0 0.0
  %6629 = vmatpush1.msra.mxu0 0.0
  %6630 = vmatprep.subr.mxu0 0.0
  %6631 = vmatpush1.msra.mxu0 0.0
  %6632 = vmatprep.subr.mxu0 0.0
  %6633 = vmatpush1.msra.mxu0 0.0
  %6634 = vmatprep.subr.mxu0 0.0
  %6635 = vmatpush1.msra.mxu0 0.0
  %6636 = vmatprep.subr.mxu0 0.0
  %6637 = vmatpush1.msra.mxu0 0.0
  %6638 = vmatprep.subr.mxu0 0.0
  %6639 = vmatpush1.msra.mxu0 0.0
  %6640 = vmatprep.subr.mxu0 0.0
  %6641 = vmatpush1.msra.mxu0 0.0
  %6642 = vmatprep.subr.mxu0 0.0
  %6643 = vmatpush1.msra.mxu0 0.0
  %6644 = vmatprep.subr.mxu0 0.0
  %6645 = vmatpush1.msra.mxu0 0.0
  %6646 = vmatprep.subr.mxu0 0.0
  %6647 = vmatpush1.msra.mxu0 0.0
  %6648 = vmatprep.subr.mxu0 0.0
  %6649 = vmatpush1.msra.mxu0 0.0
  %6650 = vmatprep.subr.mxu0 0.0
  %6651 = vmatpush1.msra.mxu0 0.0
  %6652 = vmatprep.mubr.f32.mxu0 0.0
  %6653 = vmatmul.mubr.f32.gmra.mrb[0].mxu0 %v2652
  %v6654 = vpop.f32.mrb[0].mxu0
  %v6655 = vadd.f32 0.0, %v6654
  %v6656 = vpop.f32.mrb[0].mxu0
  %6657 = vdwg.mxu0
  %v6658 = vsub.f32 0.0, %v6445
  %v6659 = vmul.f32 %v6658, 1.442695
  %v6660 = vpow.pop %v6659
  %v6661 = vadd.f32 %v6660, 1.0
  %v6662 = vrcp.pop %v6661
  %v6663 = vmul.f32 %v6445, %v6662
  %s6664 = scalar_lea.vmem %s59, 16
  %v6665 = vld [vmem:[%s6664] sm:$0xff]
  %v6666 = vld [vmem:[%s6664 + $0x8] sm:$0xff]
  %v6668 = vsel %vm598, %v6663, 0
  %6670 = vmatprep.subr.mxu0 0.0
  %6671 = vmatpush1.msra.mxu0 %v6665
  %6672 = vmatprep.subr.mxu0 0.0
  %6673 = vmatpush1.msra.mxu0 %v6666
  %6674 = vmatprep.subr.mxu0 0.0
  %6675 = vmatpush1.msra.mxu0 0.0
  %6676 = vmatprep.subr.mxu0 0.0
  %6677 = vmatpush1.msra.mxu0 0.0
  %6678 = vmatprep.subr.mxu0 0.0
  %6679 = vmatpush1.msra.mxu0 0.0
  %6680 = vmatprep.subr.mxu0 0.0
  %6681 = vmatpush1.msra.mxu0 0.0
  %6682 = vmatprep.subr.mxu0 0.0
  %6683 = vmatpush1.msra.mxu0 0.0
  %6684 = vmatprep.subr.mxu0 0.0
  %6685 = vmatpush1.msra.mxu0 0.0
  %6686 = vmatprep.subr.mxu0 0.0
  %6687 = vmatpush1.msra.mxu0 0.0
  %6688 = vmatprep.subr.mxu0 0.0
  %6689 = vmatpush1.msra.mxu0 0.0
  %6690 = vmatprep.subr.mxu0 0.0
  %6691 = vmatpush1.msra.mxu0 0.0
  %6692 = vmatprep.subr.mxu0 0.0
  %6693 = vmatpush1.msra.mxu0 0.0
  %6694 = vmatprep.subr.mxu0 0.0
  %6695 = vmatpush1.msra.mxu0 0.0
  %6696 = vmatprep.subr.mxu0 0.0
  %6697 = vmatpush1.msra.mxu0 0.0
  %6698 = vmatprep.subr.mxu0 0.0
  %6699 = vmatpush1.msra.mxu0 0.0
  %6700 = vmatprep.subr.mxu0 0.0
  %6701 = vmatpush1.msra.mxu0 0.0
  %6702 = vmatprep.subr.mxu0 0.0
  %6703 = vmatpush1.msra.mxu0 0.0
  %6704 = vmatprep.subr.mxu0 0.0
  %6705 = vmatpush1.msra.mxu0 0.0
  %6706 = vmatprep.subr.mxu0 0.0
  %6707 = vmatpush1.msra.mxu0 0.0
  %6708 = vmatprep.subr.mxu0 0.0
  %6709 = vmatpush1.msra.mxu0 0.0
  %6710 = vmatprep.subr.mxu0 0.0
  %6711 = vmatpush1.msra.mxu0 0.0
  %6712 = vmatprep.subr.mxu0 0.0
  %6713 = vmatpush1.msra.mxu0 0.0
  %6714 = vmatprep.subr.mxu0 0.0
  %6715 = vmatpush1.msra.mxu0 0.0
  %6716 = vmatprep.subr.mxu0 0.0
  %6717 = vmatpush1.msra.mxu0 0.0
  %6718 = vmatprep.subr.mxu0 0.0
  %6719 = vmatpush1.msra.mxu0 0.0
  %6720 = vmatprep.subr.mxu0 0.0
  %6721 = vmatpush1.msra.mxu0 0.0
  %6722 = vmatprep.subr.mxu0 0.0
  %6723 = vmatpush1.msra.mxu0 0.0
  %6724 = vmatprep.subr.mxu0 0.0
  %6725 = vmatpush1.msra.mxu0 0.0
  %6726 = vmatprep.subr.mxu0 0.0
  %6727 = vmatpush1.msra.mxu0 0.0
  %6728 = vmatprep.subr.mxu0 0.0
  %6729 = vmatpush1.msra.mxu0 0.0
  %6730 = vmatprep.subr.mxu0 0.0
  %6731 = vmatpush1.msra.mxu0 0.0
  %6732 = vmatprep.subr.mxu0 0.0
  %6733 = vmatpush1.msra.mxu0 0.0
  %6734 = vmatprep.mubr.f32.mxu0 0.0
  %6735 = vmatmul.mubr.f32.gmra.mrb[0].mxu0 %v6668
  %v6736 = vpop.f32.mrb[0].mxu0
  %v6737 = vadd.f32 0.0, %v6736
  %v6738 = vpop.f32.mrb[0].mxu0
  %6739 = vdwg.mxu0
  %v6740 = vadd.f32 %v5791, %v6737
  %s6741 = scalar_lea.vmem %s61, 16
  %v6742 = vld [vmem:[%s6741] sm:$0xff]
  %v6743 = vld [vmem:[%s6741 + $0x8] sm:$0xff]
  %v6745 = vsel %vm598, %v6515, 0
  %v6748 = vsel %vm598, %v6585, 0
  %v6751 = vsel %vm598, %v6655, 0
  %6753 = vmatprep.subr.mxu0 0.0
  %6754 = vmatpush1.msra.mxu0 %v6742
  %6755 = vmatprep.subr.mxu0 0.0
  %6756 = vmatpush1.msra.mxu0 %v6743
  %6757 = vmatprep.subr.mxu0 0.0
  %6758 = vmatpush1.msra.mxu0 0.0
  %6759 = vmatprep.subr.mxu0 0.0
  %6760 = vmatpush1.msra.mxu0 0.0
  %6761 = vmatprep.subr.mxu0 0.0
  %6762 = vmatpush1.msra.mxu0 0.0
  %6763 = vmatprep.subr.mxu0 0.0
  %6764 = vmatpush1.msra.mxu0 0.0
  %6765 = vmatprep.subr.mxu0 0.0
  %6766 = vmatpush1.msra.mxu0 0.0
  %6767 = vmatprep.subr.mxu0 0.0
  %6768 = vmatpush1.msra.mxu0 0.0
  %6769 = vmatprep.subr.mxu0 0.0
  %6770 = vmatpush1.msra.mxu0 0.0
  %6771 = vmatprep.subr.mxu0 0.0
  %6772 = vmatpush1.msra.mxu0 0.0
  %6773 = vmatprep.subr.mxu0 0.0
  %6774 = vmatpush1.msra.mxu0 0.0
  %6775 = vmatprep.subr.mxu0 0.0
  %6776 = vmatpush1.msra.mxu0 0.0
  %6777 = vmatprep.subr.mxu0 0.0
  %6778 = vmatpush1.msra.mxu0 0.0
  %6779 = vmatprep.subr.mxu0 0.0
  %6780 = vmatpush1.msra.mxu0 0.0
  %6781 = vmatprep.subr.mxu0 0.0
  %6782 = vmatpush1.msra.mxu0 0.0
  %6783 = vmatprep.subr.mxu0 0.0
  %6784 = vmatpush1.msra.mxu0 0.0
  %6785 = vmatprep.subr.mxu0 0.0
  %6786 = vmatpush1.msra.mxu0 0.0
  %6787 = vmatprep.subr.mxu0 0.0
  %6788 = vmatpush1.msra.mxu0 0.0
  %6789 = vmatprep.subr.mxu0 0.0
  %6790 = vmatpush1.msra.mxu0 0.0
  %6791 = vmatprep.subr.mxu0 0.0
  %6792 = vmatpush1.msra.mxu0 0.0
  %6793 = vmatprep.subr.mxu0 0.0
  %6794 = vmatpush1.msra.mxu0 0.0
  %6795 = vmatprep.subr.mxu0 0.0
  %6796 = vmatpush1.msra.mxu0 0.0
  %6797 = vmatprep.subr.mxu0 0.0
  %6798 = vmatpush1.msra.mxu0 0.0
  %6799 = vmatprep.subr.mxu0 0.0
  %6800 = vmatpush1.msra.mxu0 0.0
  %6801 = vmatprep.subr.mxu0 0.0
  %6802 = vmatpush1.msra.mxu0 0.0
  %6803 = vmatprep.subr.mxu0 0.0
  %6804 = vmatpush1.msra.mxu0 0.0
  %6805 = vmatprep.subr.mxu0 0.0
  %6806 = vmatpush1.msra.mxu0 0.0
  %6807 = vmatprep.subr.mxu0 0.0
  %6808 = vmatpush1.msra.mxu0 0.0
  %6809 = vmatprep.subr.mxu0 0.0
  %6810 = vmatpush1.msra.mxu0 0.0
  %6811 = vmatprep.subr.mxu0 0.0
  %6812 = vmatpush1.msra.mxu0 0.0
  %6813 = vmatprep.subr.mxu0 0.0
  %6814 = vmatpush1.msra.mxu0 0.0
  %6815 = vmatprep.subr.mxu0 0.0
  %6816 = vmatpush1.msra.mxu0 0.0
  %6817 = vmatprep.mubr.f32.mxu0 0.0
  %6818 = vmatmul.mubr.f32.gmra.mrb[0].mxu0 %v6745
  %v6819 = vpop.f32.mrb[0].mxu0
  %v6820 = vadd.f32 0.0, %v6819
  %v6821 = vpop.f32.mrb[0].mxu0
  %6822 = vmatprep.mubr.f32.mxu0 0.0
  %6823 = vmatmul.mubr.f32.gmra.mrb[0].mxu0 %v6748
  %v6824 = vpop.f32.mrb[0].mxu0
  %v6825 = vadd.f32 0.0, %v6824
  %v6826 = vpop.f32.mrb[0].mxu0
  %6827 = vmatprep.mubr.f32.mxu0 0.0
  %6828 = vmatmul.mubr.f32.gmra.mrb[0].mxu0 %v6751
  %v6829 = vpop.f32.mrb[0].mxu0
  %v6830 = vadd.f32 0.0, %v6829
  %v6831 = vpop.f32.mrb[0].mxu0
  %6832 = vdwg.mxu0
  %v6833 = vadd.f32 %v5792, %v6820
  %v6834 = vadd.f32 %v5793, %v6825
  %v6835 = vadd.f32 %v5794, %v6830
  %s6836 = scalar_lea.vmem %s63, 32
  %v6837 = vld [vmem:[%s6836] sm:$0xff]
  %v6838 = vld [vmem:[%s6836 + $0x8] sm:$0xff]
  %v6839 = vld [vmem:[%s6836 + $0x10] sm:$0xff]
  %v6840 = vld [vmem:[%s6836 + $0x18] sm:$0xff]
  %6841 = vmatprep.subr.mxu0 0.0
  %6842 = vmatpush1.msra.mxu0 %v6837
  %6843 = vmatprep.subr.mxu0 0.0
  %6844 = vmatpush1.msra.mxu0 %v6838
  %6845 = vmatprep.subr.mxu0 0.0
  %6846 = vmatpush1.msra.mxu0 %v6839
  %6847 = vmatprep.subr.mxu0 0.0
  %6848 = vmatpush1.msra.mxu0 %v6840
  %6849 = vmatprep.subr.mxu0 0.0
  %6850 = vmatpush1.msra.mxu0 0.0
  %6851 = vmatprep.subr.mxu0 0.0
  %6852 = vmatpush1.msra.mxu0 0.0
  %6853 = vmatprep.subr.mxu0 0.0
  %6854 = vmatpush1.msra.mxu0 0.0
  %6855 = vmatprep.subr.mxu0 0.0
  %6856 = vmatpush1.msra.mxu0 0.0
  %6857 = vmatprep.subr.mxu0 0.0
  %6858 = vmatpush1.msra.mxu0 0.0
  %6859 = vmatprep.subr.mxu0 0.0
  %6860 = vmatpush1.msra.mxu0 0.0
  %6861 = vmatprep.subr.mxu0 0.0
  %6862 = vmatpush1.msra.mxu0 0.0
  %6863 = vmatprep.subr.mxu0 0.0
  %6864 = vmatpush1.msra.mxu0 0.0
  %6865 = vmatprep.subr.mxu0 0.0
  %6866 = vmatpush1.msra.mxu0 0.0
  %6867 = vmatprep.subr.mxu0 0.0
  %6868 = vmatpush1.msra.mxu0 0.0
  %6869 = vmatprep.subr.mxu0 0.0
  %6870 = vmatpush1.msra.mxu0 0.0
  %6871 = vmatprep.subr.mxu0 0.0
  %6872 = vmatpush1.msra.mxu0 0.0
  %6873 = vmatprep.subr.mxu0 0.0
  %6874 = vmatpush1.msra.mxu0 0.0
  %6875 = vmatprep.subr.mxu0 0.0
  %6876 = vmatpush1.msra.mxu0 0.0
  %6877 = vmatprep.subr.mxu0 0.0
  %6878 = vmatpush1.msra.mxu0 0.0
  %6879 = vmatprep.subr.mxu0 0.0
  %6880 = vmatpush1.msra.mxu0 0.0
  %6881 = vmatprep.subr.mxu0 0.0
  %6882 = vmatpush1.msra.mxu0 0.0
  %6883 = vmatprep.subr.mxu0 0.0
  %6884 = vmatpush1.msra.mxu0 0.0
  %6885 = vmatprep.subr.mxu0 0.0
  %6886 = vmatpush1.msra.mxu0 0.0
  %6887 = vmatprep.subr.mxu0 0.0
  %6888 = vmatpush1.msra.mxu0 0.0
  %6889 = vmatprep.subr.mxu0 0.0
  %6890 = vmatpush1.msra.mxu0 0.0
  %6891 = vmatprep.subr.mxu0 0.0
  %6892 = vmatpush1.msra.mxu0 0.0
  %6893 = vmatprep.subr.mxu0 0.0
  %6894 = vmatpush1.msra.mxu0 0.0
  %6895 = vmatprep.subr.mxu0 0.0
  %6896 = vmatpush1.msra.mxu0 0.0
  %6897 = vmatprep.subr.mxu0 0.0
  %6898 = vmatpush1.msra.mxu0 0.0
  %6899 = vmatprep.subr.mxu0 0.0
  %6900 = vmatpush1.msra.mxu0 0.0
  %6901 = vmatprep.subr.mxu0 0.0
  %6902 = vmatpush1.msra.mxu0 0.0
  %6903 = vmatprep.subr.mxu0 0.0
  %6904 = vmatpush1.msra.mxu0 0.0
  %6905 = vmatprep.mubr.f32.mxu0 0.0
  %6906 = vmatmul.mubr.f32.gmra.mrb[0].mxu0 %v6292
  %v6907 = vpop.f32.mrb[0].mxu0
  %v6908 = vadd.f32 0.0, %v6907
  %v6909 = vpop.f32.mrb[0].mxu0
  %6910 = vmatprep.mubr.f32.mxu0 0.0
  %6911 = vmatmul.mubr.f32.gmra.mrb[0].mxu0 %v6294
  %v6912 = vpop.f32.mrb[0].mxu0
  %v6913 = vadd.f32 0.0, %v6912
  %v6914 = vpop.f32.mrb[0].mxu0
  %6915 = vmatprep.mubr.f32.mxu0 0.0
  %6916 = vmatmul.mubr.f32.gmra.mrb[0].mxu0 %v6296
  %v6917 = vpop.f32.mrb[0].mxu0
  %v6918 = vadd.f32 0.0, %v6917
  %v6919 = vpop.f32.mrb[0].mxu0
  %6920 = vdwg.mxu0
  %s6921 = scalar_lea.vmem %s65, 32
  %v6922 = vld [vmem:[%s6921] sm:$0xff]
  %v6923 = vld [vmem:[%s6921 + $0x8] sm:$0xff]
  %v6924 = vld [vmem:[%s6921 + $0x10] sm:$0xff]
  %v6925 = vld [vmem:[%s6921 + $0x18] sm:$0xff]
  %v6927 = vsel %vm828, %v6740, 0
  %6929 = vmatprep.subr.mxu0 0.0
  %6930 = vmatpush1.msra.mxu0 %v6922
  %6931 = vmatprep.subr.mxu0 0.0
  %6932 = vmatpush1.msra.mxu0 %v6923
  %6933 = vmatprep.subr.mxu0 0.0
  %6934 = vmatpush1.msra.mxu0 %v6924
  %6935 = vmatprep.subr.mxu0 0.0
  %6936 = vmatpush1.msra.mxu0 %v6925
  %6937 = vmatprep.subr.mxu0 0.0
  %6938 = vmatpush1.msra.mxu0 0.0
  %6939 = vmatprep.subr.mxu0 0.0
  %6940 = vmatpush1.msra.mxu0 0.0
  %6941 = vmatprep.subr.mxu0 0.0
  %6942 = vmatpush1.msra.mxu0 0.0
  %6943 = vmatprep.subr.mxu0 0.0
  %6944 = vmatpush1.msra.mxu0 0.0
  %6945 = vmatprep.subr.mxu0 0.0
  %6946 = vmatpush1.msra.mxu0 0.0
  %6947 = vmatprep.subr.mxu0 0.0
  %6948 = vmatpush1.msra.mxu0 0.0
  %6949 = vmatprep.subr.mxu0 0.0
  %6950 = vmatpush1.msra.mxu0 0.0
  %6951 = vmatprep.subr.mxu0 0.0
  %6952 = vmatpush1.msra.mxu0 0.0
  %6953 = vmatprep.subr.mxu0 0.0
  %6954 = vmatpush1.msra.mxu0 0.0
  %6955 = vmatprep.subr.mxu0 0.0
  %6956 = vmatpush1.msra.mxu0 0.0
  %6957 = vmatprep.subr.mxu0 0.0
  %6958 = vmatpush1.msra.mxu0 0.0
  %6959 = vmatprep.subr.mxu0 0.0
  %6960 = vmatpush1.msra.mxu0 0.0
  %6961 = vmatprep.subr.mxu0 0.0
  %6962 = vmatpush1.msra.mxu0 0.0
  %6963 = vmatprep.subr.mxu0 0.0
  %6964 = vmatpush1.msra.mxu0 0.0
  %6965 = vmatprep.subr.mxu0 0.0
  %6966 = vmatpush1.msra.mxu0 0.0
  %6967 = vmatprep.subr.mxu0 0.0
  %6968 = vmatpush1.msra.mxu0 0.0
  %6969 = vmatprep.subr.mxu0 0.0
  %6970 = vmatpush1.msra.mxu0 0.0
  %6971 = vmatprep.subr.mxu0 0.0
  %6972 = vmatpush1.msra.mxu0 0.0
  %6973 = vmatprep.subr.mxu0 0.0
  %6974 = vmatpush1.msra.mxu0 0.0
  %6975 = vmatprep.subr.mxu0 0.0
  %6976 = vmatpush1.msra.mxu0 0.0
  %6977 = vmatprep.subr.mxu0 0.0
  %6978 = vmatpush1.msra.mxu0 0.0
  %6979 = vmatprep.subr.mxu0 0.0
  %6980 = vmatpush1.msra.mxu0 0.0
  %6981 = vmatprep.subr.mxu0 0.0
  %6982 = vmatpush1.msra.mxu0 0.0
  %6983 = vmatprep.subr.mxu0 0.0
  %6984 = vmatpush1.msra.mxu0 0.0
  %6985 = vmatprep.subr.mxu0 0.0
  %6986 = vmatpush1.msra.mxu0 0.0
  %6987 = vmatprep.subr.mxu0 0.0
  %6988 = vmatpush1.msra.mxu0 0.0
  %6989 = vmatprep.subr.mxu0 0.0
  %6990 = vmatpush1.msra.mxu0 0.0
  %6991 = vmatprep.subr.mxu0 0.0
  %6992 = vmatpush1.msra.mxu0 0.0
  %6993 = vmatprep.mubr.f32.mxu0 0.0
  %6994 = vmatmul.mubr.f32.gmra.mrb[0].mxu0 %v6927
  %v6995 = vpop.f32.mrb[0].mxu0
  %v6996 = vadd.f32 0.0, %v6995
  %v6997 = vpop.f32.mrb[0].mxu0
  %6998 = vdwg.mxu0
  %v6999 = vmul.f32 %v1550, %v6908
  %v7000 = vmul.f32 %v1555, %v6908
  %v7001 = vmul.f32 %v1560, %v6908
  %v7002 = vmul.f32 %v1565, %v6908
  %v7003 = vmul.f32 %v1570, %v6908
  %v7004 = vmul.f32 %v1575, %v6908
  %v7005 = vmul.f32 %v1580, %v6908
  %v7006 = vmul.f32 %v1585, %v6908
  %v7007 = vmul.f32 %v1758, %v6913
  %v7008 = vmul.f32 %v1762, %v6913
  %v7009 = vmul.f32 %v1766, %v6913
  %v7010 = vmul.f32 %v1770, %v6913
  %v7011 = vmul.f32 %v1774, %v6913
  %v7012 = vmul.f32 %v1778, %v6913
  %v7013 = vmul.f32 %v1782, %v6913
  %v7014 = vmul.f32 %v1786, %v6913
  %v7015 = vadd.f32 %v6999, %v7007
  %v7016 = vadd.f32 %v7000, %v7008
  %v7017 = vadd.f32 %v7001, %v7009
  %v7018 = vadd.f32 %v7002, %v7010
  %v7019 = vadd.f32 %v7003, %v7011
  %v7020 = vadd.f32 %v7004, %v7012
  %v7021 = vadd.f32 %v7005, %v7013
  %v7022 = vadd.f32 %v7006, %v7014
  %v7023 = vmul.f32 %v1862, %v6918
  %v7024 = vmul.f32 %v1866, %v6918
  %v7025 = vmul.f32 %v1870, %v6918
  %v7026 = vmul.f32 %v1874, %v6918
  %v7027 = vmul.f32 %v1878, %v6918
  %v7028 = vmul.f32 %v1882, %v6918
  %v7029 = vmul.f32 %v1886, %v6918
  %v7030 = vmul.f32 %v1890, %v6918
  %v7031 = vadd.f32 %v7015, %v7023
  %v7032 = vadd.f32 %v7016, %v7024
  %v7033 = vadd.f32 %v7017, %v7025
  %v7034 = vadd.f32 %v7018, %v7026
  %v7035 = vadd.f32 %v7019, %v7027
  %v7036 = vadd.f32 %v7020, %v7028
  %v7037 = vadd.f32 %v7021, %v7029
  %v7038 = vadd.f32 %v7022, %v7030
  %7047 = vrot.lane.b32.xlu0 %v7031, 64
  %v7048 = vpop.permute.xlu0 %7047
  %7049 = vrot.lane.b32.xlu0 %v7032, 64
  %v7050 = vpop.permute.xlu0 %7049
  %7051 = vrot.lane.b32.xlu0 %v7033, 64
  %v7052 = vpop.permute.xlu0 %7051
  %7053 = vrot.lane.b32.xlu0 %v7034, 64
  %v7054 = vpop.permute.xlu0 %7053
  %7055 = vrot.lane.b32.xlu0 %v7035, 64
  %v7056 = vpop.permute.xlu0 %7055
  %7057 = vrot.lane.b32.xlu0 %v7036, 64
  %v7058 = vpop.permute.xlu0 %7057
  %7059 = vrot.lane.b32.xlu0 %v7037, 64
  %v7060 = vpop.permute.xlu0 %7059
  %7061 = vrot.lane.b32.xlu0 %v7038, 64
  %v7062 = vpop.permute.xlu0 %7061
  %v7071 = vmul.f32 %v4473, %v7048
  %v7072 = vmul.f32 %v4474, %v7050
  %v7073 = vmul.f32 %v4475, %v7052
  %v7074 = vmul.f32 %v4476, %v7054
  %v7075 = vmul.f32 %v4477, %v7056
  %v7076 = vmul.f32 %v4478, %v7058
  %v7077 = vmul.f32 %v4479, %v7060
  %v7078 = vmul.f32 %v4480, %v7062
  %v7079 = vsel %vm3351, %v7071, 0.0
  %v7080 = vrot.slane %v7079, 4
  %v7081 = vadd.f32 %v7079, %v7080
  %v7082 = vrot.slane %v7081, 2
  %v7083 = vadd.f32 %v7081, %v7082
  %v7084 = vrot.slane %v7083, 1
  %v7085 = vadd.f32 %v7083, %v7084
  %v7086 = vsel %vm3351, %v7072, 0.0
  %v7087 = vrot.slane %v7086, 4
  %v7088 = vadd.f32 %v7086, %v7087
  %v7089 = vrot.slane %v7088, 2
  %v7090 = vadd.f32 %v7088, %v7089
  %v7091 = vrot.slane %v7090, 1
  %v7092 = vadd.f32 %v7090, %v7091
  %v7093 = vsel %vm3351, %v7073, 0.0
  %v7094 = vrot.slane %v7093, 4
  %v7095 = vadd.f32 %v7093, %v7094
  %v7096 = vrot.slane %v7095, 2
  %v7097 = vadd.f32 %v7095, %v7096
  %v7098 = vrot.slane %v7097, 1
  %v7099 = vadd.f32 %v7097, %v7098
  %v7100 = vsel %vm3351, %v7074, 0.0
  %v7101 = vrot.slane %v7100, 4
  %v7102 = vadd.f32 %v7100, %v7101
  %v7103 = vrot.slane %v7102, 2
  %v7104 = vadd.f32 %v7102, %v7103
  %v7105 = vrot.slane %v7104, 1
  %v7106 = vadd.f32 %v7104, %v7105
  %v7107 = vsel %vm3351, %v7075, 0.0
  %v7108 = vrot.slane %v7107, 4
  %v7109 = vadd.f32 %v7107, %v7108
  %v7110 = vrot.slane %v7109, 2
  %v7111 = vadd.f32 %v7109, %v7110
  %v7112 = vrot.slane %v7111, 1
  %v7113 = vadd.f32 %v7111, %v7112
  %v7114 = vsel %vm3351, %v7076, 0.0
  %v7115 = vrot.slane %v7114, 4
  %v7116 = vadd.f32 %v7114, %v7115
  %v7117 = vrot.slane %v7116, 2
  %v7118 = vadd.f32 %v7116, %v7117
  %v7119 = vrot.slane %v7118, 1
  %v7120 = vadd.f32 %v7118, %v7119
  %v7121 = vsel %vm3351, %v7077, 0.0
  %v7122 = vrot.slane %v7121, 4
  %v7123 = vadd.f32 %v7121, %v7122
  %v7124 = vrot.slane %v7123, 2
  %v7125 = vadd.f32 %v7123, %v7124
  %v7126 = vrot.slane %v7125, 1
  %v7127 = vadd.f32 %v7125, %v7126
  %v7128 = vsel %vm3351, %v7078, 0.0
  %v7129 = vrot.slane %v7128, 4
  %v7130 = vadd.f32 %v7128, %v7129
  %v7131 = vrot.slane %v7130, 2
  %v7132 = vadd.f32 %v7130, %v7131
  %v7133 = vrot.slane %v7132, 1
  %v7134 = vadd.f32 %v7132, %v7133
  %7136 = vrot.lane.b32.xlu0 %v6996, 64
  %v7137 = vpop.permute.xlu0 %7136
  %v7139 = vmul.f32 %v4473, %v7137
  %v7140 = vmul.f32 %v4474, %v7137
  %v7141 = vmul.f32 %v4475, %v7137
  %v7142 = vmul.f32 %v4476, %v7137
  %v7143 = vmul.f32 %v4477, %v7137
  %v7144 = vmul.f32 %v4478, %v7137
  %v7145 = vmul.f32 %v4479, %v7137
  %v7146 = vmul.f32 %v4480, %v7137
  %v7147 = vmul.f32 %v7139, %v1550
  %v7148 = vmul.f32 %v7140, %v1555
  %v7149 = vmul.f32 %v7141, %v1560
  %v7150 = vmul.f32 %v7142, %v1565
  %v7151 = vmul.f32 %v7143, %v1570
  %v7152 = vmul.f32 %v7144, %v1575
  %v7153 = vmul.f32 %v7145, %v1580
  %v7154 = vmul.f32 %v7146, %v1585
  %v7155 = vsel %vm3351, %v7147, 0.0
  %v7156 = vrot.slane %v7155, 4
  %v7157 = vadd.f32 %v7155, %v7156
  %v7158 = vrot.slane %v7157, 2
  %v7159 = vadd.f32 %v7157, %v7158
  %v7160 = vrot.slane %v7159, 1
  %v7161 = vadd.f32 %v7159, %v7160
  %v7162 = vsel %vm3351, %v7148, 0.0
  %v7163 = vrot.slane %v7162, 4
  %v7164 = vadd.f32 %v7162, %v7163
  %v7165 = vrot.slane %v7164, 2
  %v7166 = vadd.f32 %v7164, %v7165
  %v7167 = vrot.slane %v7166, 1
  %v7168 = vadd.f32 %v7166, %v7167
  %v7169 = vsel %vm3351, %v7149, 0.0
  %v7170 = vrot.slane %v7169, 4
  %v7171 = vadd.f32 %v7169, %v7170
  %v7172 = vrot.slane %v7171, 2
  %v7173 = vadd.f32 %v7171, %v7172
  %v7174 = vrot.slane %v7173, 1
  %v7175 = vadd.f32 %v7173, %v7174
  %v7176 = vsel %vm3351, %v7150, 0.0
  %v7177 = vrot.slane %v7176, 4
  %v7178 = vadd.f32 %v7176, %v7177
  %v7179 = vrot.slane %v7178, 2
  %v7180 = vadd.f32 %v7178, %v7179
  %v7181 = vrot.slane %v7180, 1
  %v7182 = vadd.f32 %v7180, %v7181
  %v7183 = vsel %vm3351, %v7151, 0.0
  %v7184 = vrot.slane %v7183, 4
  %v7185 = vadd.f32 %v7183, %v7184
  %v7186 = vrot.slane %v7185, 2
  %v7187 = vadd.f32 %v7185, %v7186
  %v7188 = vrot.slane %v7187, 1
  %v7189 = vadd.f32 %v7187, %v7188
  %v7190 = vsel %vm3351, %v7152, 0.0
  %v7191 = vrot.slane %v7190, 4
  %v7192 = vadd.f32 %v7190, %v7191
  %v7193 = vrot.slane %v7192, 2
  %v7194 = vadd.f32 %v7192, %v7193
  %v7195 = vrot.slane %v7194, 1
  %v7196 = vadd.f32 %v7194, %v7195
  %v7197 = vsel %vm3351, %v7153, 0.0
  %v7198 = vrot.slane %v7197, 4
  %v7199 = vadd.f32 %v7197, %v7198
  %v7200 = vrot.slane %v7199, 2
  %v7201 = vadd.f32 %v7199, %v7200
  %v7202 = vrot.slane %v7201, 1
  %v7203 = vadd.f32 %v7201, %v7202
  %v7204 = vsel %vm3351, %v7154, 0.0
  %v7205 = vrot.slane %v7204, 4
  %v7206 = vadd.f32 %v7204, %v7205
  %v7207 = vrot.slane %v7206, 2
  %v7208 = vadd.f32 %v7206, %v7207
  %v7209 = vrot.slane %v7208, 1
  %v7210 = vadd.f32 %v7208, %v7209
  %v7211 = vmul.f32 %v7139, %v1758
  %v7212 = vmul.f32 %v7140, %v1762
  %v7213 = vmul.f32 %v7141, %v1766
  %v7214 = vmul.f32 %v7142, %v1770
  %v7215 = vmul.f32 %v7143, %v1774
  %v7216 = vmul.f32 %v7144, %v1778
  %v7217 = vmul.f32 %v7145, %v1782
  %v7218 = vmul.f32 %v7146, %v1786
  %v7219 = vsel %vm3351, %v7211, 0.0
  %v7220 = vrot.slane %v7219, 4
  %v7221 = vadd.f32 %v7219, %v7220
  %v7222 = vrot.slane %v7221, 2
  %v7223 = vadd.f32 %v7221, %v7222
  %v7224 = vrot.slane %v7223, 1
  %v7225 = vadd.f32 %v7223, %v7224
  %v7226 = vsel %vm3351, %v7212, 0.0
  %v7227 = vrot.slane %v7226, 4
  %v7228 = vadd.f32 %v7226, %v7227
  %v7229 = vrot.slane %v7228, 2
  %v7230 = vadd.f32 %v7228, %v7229
  %v7231 = vrot.slane %v7230, 1
  %v7232 = vadd.f32 %v7230, %v7231
  %v7233 = vsel %vm3351, %v7213, 0.0
  %v7234 = vrot.slane %v7233, 4
  %v7235 = vadd.f32 %v7233, %v7234
  %v7236 = vrot.slane %v7235, 2
  %v7237 = vadd.f32 %v7235, %v7236
  %v7238 = vrot.slane %v7237, 1
  %v7239 = vadd.f32 %v7237, %v7238
  %v7240 = vsel %vm3351, %v7214, 0.0
  %v7241 = vrot.slane %v7240, 4
  %v7242 = vadd.f32 %v7240, %v7241
  %v7243 = vrot.slane %v7242, 2
  %v7244 = vadd.f32 %v7242, %v7243
  %v7245 = vrot.slane %v7244, 1
  %v7246 = vadd.f32 %v7244, %v7245
  %v7247 = vsel %vm3351, %v7215, 0.0
  %v7248 = vrot.slane %v7247, 4
  %v7249 = vadd.f32 %v7247, %v7248
  %v7250 = vrot.slane %v7249, 2
  %v7251 = vadd.f32 %v7249, %v7250
  %v7252 = vrot.slane %v7251, 1
  %v7253 = vadd.f32 %v7251, %v7252
  %v7254 = vsel %vm3351, %v7216, 0.0
  %v7255 = vrot.slane %v7254, 4
  %v7256 = vadd.f32 %v7254, %v7255
  %v7257 = vrot.slane %v7256, 2
  %v7258 = vadd.f32 %v7256, %v7257
  %v7259 = vrot.slane %v7258, 1
  %v7260 = vadd.f32 %v7258, %v7259
  %v7261 = vsel %vm3351, %v7217, 0.0
  %v7262 = vrot.slane %v7261, 4
  %v7263 = vadd.f32 %v7261, %v7262
  %v7264 = vrot.slane %v7263, 2
  %v7265 = vadd.f32 %v7263, %v7264
  %v7266 = vrot.slane %v7265, 1
  %v7267 = vadd.f32 %v7265, %v7266
  %v7268 = vsel %vm3351, %v7218, 0.0
  %v7269 = vrot.slane %v7268, 4
  %v7270 = vadd.f32 %v7268, %v7269
  %v7271 = vrot.slane %v7270, 2
  %v7272 = vadd.f32 %v7270, %v7271
  %v7273 = vrot.slane %v7272, 1
  %v7274 = vadd.f32 %v7272, %v7273
  %v7275 = vmul.f32 %v7139, %v1862
  %v7276 = vmul.f32 %v7140, %v1866
  %v7277 = vmul.f32 %v7141, %v1870
  %v7278 = vmul.f32 %v7142, %v1874
  %v7279 = vmul.f32 %v7143, %v1878
  %v7280 = vmul.f32 %v7144, %v1882
  %v7281 = vmul.f32 %v7145, %v1886
  %v7282 = vmul.f32 %v7146, %v1890
  %v7283 = vsel %vm3351, %v7275, 0.0
  %v7284 = vrot.slane %v7283, 4
  %v7285 = vadd.f32 %v7283, %v7284
  %v7286 = vrot.slane %v7285, 2
  %v7287 = vadd.f32 %v7285, %v7286
  %v7288 = vrot.slane %v7287, 1
  %v7289 = vadd.f32 %v7287, %v7288
  %v7290 = vsel %vm3351, %v7276, 0.0
  %v7291 = vrot.slane %v7290, 4
  %v7292 = vadd.f32 %v7290, %v7291
  %v7293 = vrot.slane %v7292, 2
  %v7294 = vadd.f32 %v7292, %v7293
  %v7295 = vrot.slane %v7294, 1
  %v7296 = vadd.f32 %v7294, %v7295
  %v7297 = vsel %vm3351, %v7277, 0.0
  %v7298 = vrot.slane %v7297, 4
  %v7299 = vadd.f32 %v7297, %v7298
  %v7300 = vrot.slane %v7299, 2
  %v7301 = vadd.f32 %v7299, %v7300
  %v7302 = vrot.slane %v7301, 1
  %v7303 = vadd.f32 %v7301, %v7302
  %v7304 = vsel %vm3351, %v7278, 0.0
  %v7305 = vrot.slane %v7304, 4
  %v7306 = vadd.f32 %v7304, %v7305
  %v7307 = vrot.slane %v7306, 2
  %v7308 = vadd.f32 %v7306, %v7307
  %v7309 = vrot.slane %v7308, 1
  %v7310 = vadd.f32 %v7308, %v7309
  %v7311 = vsel %vm3351, %v7279, 0.0
  %v7312 = vrot.slane %v7311, 4
  %v7313 = vadd.f32 %v7311, %v7312
  %v7314 = vrot.slane %v7313, 2
  %v7315 = vadd.f32 %v7313, %v7314
  %v7316 = vrot.slane %v7315, 1
  %v7317 = vadd.f32 %v7315, %v7316
  %v7318 = vsel %vm3351, %v7280, 0.0
  %v7319 = vrot.slane %v7318, 4
  %v7320 = vadd.f32 %v7318, %v7319
  %v7321 = vrot.slane %v7320, 2
  %v7322 = vadd.f32 %v7320, %v7321
  %v7323 = vrot.slane %v7322, 1
  %v7324 = vadd.f32 %v7322, %v7323
  %v7325 = vsel %vm3351, %v7281, 0.0
  %v7326 = vrot.slane %v7325, 4
  %v7327 = vadd.f32 %v7325, %v7326
  %v7328 = vrot.slane %v7327, 2
  %v7329 = vadd.f32 %v7327, %v7328
  %v7330 = vrot.slane %v7329, 1
  %v7331 = vadd.f32 %v7329, %v7330
  %v7332 = vsel %vm3351, %v7282, 0.0
  %v7333 = vrot.slane %v7332, 4
  %v7334 = vadd.f32 %v7332, %v7333
  %v7335 = vrot.slane %v7334, 2
  %v7336 = vadd.f32 %v7334, %v7335
  %v7337 = vrot.slane %v7336, 1
  %v7338 = vadd.f32 %v7336, %v7337
  %v7347 = vsel %vm1133, %v7168, %v7161
  %v7348 = vsel %vm1135, %v7175, %v7347
  %v7349 = vsel %vm1137, %v7182, %v7348
  %v7350 = vsel %vm1139, %v7189, %v7349
  %v7351 = vsel %vm1141, %v7196, %v7350
  %v7352 = vsel %vm1143, %v7203, %v7351
  %v7353 = vsel %vm1145, %v7210, %v7352
  %v7362 = vsel %vm1133, %v7232, %v7225
  %v7363 = vsel %vm1135, %v7239, %v7362
  %v7364 = vsel %vm1137, %v7246, %v7363
  %v7365 = vsel %vm1139, %v7253, %v7364
  %v7366 = vsel %vm1141, %v7260, %v7365
  %v7367 = vsel %vm1143, %v7267, %v7366
  %v7368 = vsel %vm1145, %v7274, %v7367
  %v7377 = vsel %vm1133, %v7296, %v7289
  %v7378 = vsel %vm1135, %v7303, %v7377
  %v7379 = vsel %vm1137, %v7310, %v7378
  %v7380 = vsel %vm1139, %v7317, %v7379
  %v7381 = vsel %vm1141, %v7324, %v7380
  %v7382 = vsel %vm1143, %v7331, %v7381
  %v7383 = vsel %vm1145, %v7338, %v7382
  %v7384 = vsub.f32 0.0, %v7085
  %v7385 = vsub.f32 0.0, %v7092
  %v7386 = vsub.f32 0.0, %v7099
  %v7387 = vsub.f32 0.0, %v7106
  %v7388 = vsub.f32 0.0, %v7113
  %v7389 = vsub.f32 0.0, %v7120
  %v7390 = vsub.f32 0.0, %v7127
  %v7391 = vsub.f32 0.0, %v7134
  %v7392 = vmul.f32 %v7384, 1.442695
  %v7393 = vpow.pop %v7392
  %v7394 = vmul.f32 %v7385, 1.442695
  %v7395 = vpow.pop %v7394
  %v7396 = vmul.f32 %v7386, 1.442695
  %v7397 = vpow.pop %v7396
  %v7398 = vmul.f32 %v7387, 1.442695
  %v7399 = vpow.pop %v7398
  %v7400 = vmul.f32 %v7388, 1.442695
  %v7401 = vpow.pop %v7400
  %v7402 = vmul.f32 %v7389, 1.442695
  %v7403 = vpow.pop %v7402
  %v7404 = vmul.f32 %v7390, 1.442695
  %v7405 = vpow.pop %v7404
  %v7406 = vmul.f32 %v7391, 1.442695
  %v7407 = vpow.pop %v7406
  %v7408 = vadd.f32 %v7393, 1.0
  %v7409 = vadd.f32 %v7395, 1.0
  %v7410 = vadd.f32 %v7397, 1.0
  %v7411 = vadd.f32 %v7399, 1.0
  %v7412 = vadd.f32 %v7401, 1.0
  %v7413 = vadd.f32 %v7403, 1.0
  %v7414 = vadd.f32 %v7405, 1.0
  %v7415 = vadd.f32 %v7407, 1.0
  %v7416 = vrcp.pop %v7408
  %v7417 = vrcp.pop %v7409
  %v7418 = vrcp.pop %v7410
  %v7419 = vrcp.pop %v7411
  %v7420 = vrcp.pop %v7412
  %v7421 = vrcp.pop %v7413
  %v7422 = vrcp.pop %v7414
  %v7423 = vrcp.pop %v7415
  %v7424 = vmul.f32 %v7085, %v7416
  %v7425 = vmul.f32 %v7092, %v7417
  %v7426 = vmul.f32 %v7099, %v7418
  %v7427 = vmul.f32 %v7106, %v7419
  %v7428 = vmul.f32 %v7113, %v7420
  %v7429 = vmul.f32 %v7120, %v7421
  %v7430 = vmul.f32 %v7127, %v7422
  %v7431 = vmul.f32 %v7134, %v7423
  %s7432 = scalar_lea.vmem %s67, 16
  %v7433 = vld [vmem:[%s7432] sm:$0xff]
  %v7434 = vld [vmem:[%s7432 + $0x8] sm:$0xff]
  %v7443 = vsel %vm1133, %v7425, %v7424
  %v7444 = vsel %vm1135, %v7426, %v7443
  %v7445 = vsel %vm1137, %v7427, %v7444
  %v7446 = vsel %vm1139, %v7428, %v7445
  %v7447 = vsel %vm1141, %v7429, %v7446
  %v7448 = vsel %vm1143, %v7430, %v7447
  %v7449 = vsel %vm1145, %v7431, %v7448
  %7450 = vrot.lane.b32.xlu0 %v7449, 64
  %v7451 = vpop.permute.xlu0 %7450
  %v7452 = vsel %vm598, %v7451, 0
  %7454 = vmatprep.subr.mxu0 0.0
  %7455 = vmatpush1.msra.mxu0 %v7433
  %7456 = vmatprep.subr.mxu0 0.0
  %7457 = vmatpush1.msra.mxu0 %v7434
  %7458 = vmatprep.subr.mxu0 0.0
  %7459 = vmatpush1.msra.mxu0 0.0
  %7460 = vmatprep.subr.mxu0 0.0
  %7461 = vmatpush1.msra.mxu0 0.0
  %7462 = vmatprep.subr.mxu0 0.0
  %7463 = vmatpush1.msra.mxu0 0.0
  %7464 = vmatprep.subr.mxu0 0.0
  %7465 = vmatpush1.msra.mxu0 0.0
  %7466 = vmatprep.subr.mxu0 0.0
  %7467 = vmatpush1.msra.mxu0 0.0
  %7468 = vmatprep.subr.mxu0 0.0
  %7469 = vmatpush1.msra.mxu0 0.0
  %7470 = vmatprep.subr.mxu0 0.0
  %7471 = vmatpush1.msra.mxu0 0.0
  %7472 = vmatprep.subr.mxu0 0.0
  %7473 = vmatpush1.msra.mxu0 0.0
  %7474 = vmatprep.subr.mxu0 0.0
  %7475 = vmatpush1.msra.mxu0 0.0
  %7476 = vmatprep.subr.mxu0 0.0
  %7477 = vmatpush1.msra.mxu0 0.0
  %7478 = vmatprep.subr.mxu0 0.0
  %7479 = vmatpush1.msra.mxu0 0.0
  %7480 = vmatprep.subr.mxu0 0.0
  %7481 = vmatpush1.msra.mxu0 0.0
  %7482 = vmatprep.subr.mxu0 0.0
  %7483 = vmatpush1.msra.mxu0 0.0
  %7484 = vmatprep.subr.mxu0 0.0
  %7485 = vmatpush1.msra.mxu0 0.0
  %7486 = vmatprep.subr.mxu0 0.0
  %7487 = vmatpush1.msra.mxu0 0.0
  %7488 = vmatprep.subr.mxu0 0.0
  %7489 = vmatpush1.msra.mxu0 0.0
  %7490 = vmatprep.subr.mxu0 0.0
  %7491 = vmatpush1.msra.mxu0 0.0
  %7492 = vmatprep.subr.mxu0 0.0
  %7493 = vmatpush1.msra.mxu0 0.0
  %7494 = vmatprep.subr.mxu0 0.0
  %7495 = vmatpush1.msra.mxu0 0.0
  %7496 = vmatprep.subr.mxu0 0.0
  %7497 = vmatpush1.msra.mxu0 0.0
  %7498 = vmatprep.subr.mxu0 0.0
  %7499 = vmatpush1.msra.mxu0 0.0
  %7500 = vmatprep.subr.mxu0 0.0
  %7501 = vmatpush1.msra.mxu0 0.0
  %7502 = vmatprep.subr.mxu0 0.0
  %7503 = vmatpush1.msra.mxu0 0.0
  %7504 = vmatprep.subr.mxu0 0.0
  %7505 = vmatpush1.msra.mxu0 0.0
  %7506 = vmatprep.subr.mxu0 0.0
  %7507 = vmatpush1.msra.mxu0 0.0
  %7508 = vmatprep.subr.mxu0 0.0
  %7509 = vmatpush1.msra.mxu0 0.0
  %7510 = vmatprep.subr.mxu0 0.0
  %7511 = vmatpush1.msra.mxu0 0.0
  %7512 = vmatprep.subr.mxu0 0.0
  %7513 = vmatpush1.msra.mxu0 0.0
  %7514 = vmatprep.subr.mxu0 0.0
  %7515 = vmatpush1.msra.mxu0 0.0
  %7516 = vmatprep.subr.mxu0 0.0
  %7517 = vmatpush1.msra.mxu0 0.0
  %7518 = vmatprep.mubr.f32.mxu0 0.0
  %7519 = vmatmul.mubr.f32.gmra.mrb[0].mxu0 %v7452
  %v7520 = vpop.f32.mrb[0].mxu0
  %v7521 = vadd.f32 0.0, %v7520
  %v7522 = vpop.f32.mrb[0].mxu0
  %7523 = vdwg.mxu0
  %v7524 = vadd.f32 %v6740, %v7521
  %s7525 = scalar_lea.vmem %s69, 16
  %v7526 = vld [vmem:[%s7525] sm:$0xff]
  %v7527 = vld [vmem:[%s7525 + $0x8] sm:$0xff]
  %7528 = vrot.lane.b32.xlu0 %v7353, 64
  %v7529 = vpop.permute.xlu0 %7528
  %7530 = vrot.lane.b32.xlu0 %v7368, 64
  %v7531 = vpop.permute.xlu0 %7530
  %7532 = vrot.lane.b32.xlu0 %v7383, 64
  %v7533 = vpop.permute.xlu0 %7532
  %v7534 = vsel %vm598, %v7529, 0
  %v7536 = vsel %vm598, %v7531, 0
  %v7538 = vsel %vm598, %v7533, 0
  %7540 = vmatprep.subr.mxu0 0.0
  %7541 = vmatpush1.msra.mxu0 %v7526
  %7542 = vmatprep.subr.mxu0 0.0
  %7543 = vmatpush1.msra.mxu0 %v7527
  %7544 = vmatprep.subr.mxu0 0.0
  %7545 = vmatpush1.msra.mxu0 0.0
  %7546 = vmatprep.subr.mxu0 0.0
  %7547 = vmatpush1.msra.mxu0 0.0
  %7548 = vmatprep.subr.mxu0 0.0
  %7549 = vmatpush1.msra.mxu0 0.0
  %7550 = vmatprep.subr.mxu0 0.0
  %7551 = vmatpush1.msra.mxu0 0.0
  %7552 = vmatprep.subr.mxu0 0.0
  %7553 = vmatpush1.msra.mxu0 0.0
  %7554 = vmatprep.subr.mxu0 0.0
  %7555 = vmatpush1.msra.mxu0 0.0
  %7556 = vmatprep.subr.mxu0 0.0
  %7557 = vmatpush1.msra.mxu0 0.0
  %7558 = vmatprep.subr.mxu0 0.0
  %7559 = vmatpush1.msra.mxu0 0.0
  %7560 = vmatprep.subr.mxu0 0.0
  %7561 = vmatpush1.msra.mxu0 0.0
  %7562 = vmatprep.subr.mxu0 0.0
  %7563 = vmatpush1.msra.mxu0 0.0
  %7564 = vmatprep.subr.mxu0 0.0
  %7565 = vmatpush1.msra.mxu0 0.0
  %7566 = vmatprep.subr.mxu0 0.0
  %7567 = vmatpush1.msra.mxu0 0.0
  %7568 = vmatprep.subr.mxu0 0.0
  %7569 = vmatpush1.msra.mxu0 0.0
  %7570 = vmatprep.subr.mxu0 0.0
  %7571 = vmatpush1.msra.mxu0 0.0
  %7572 = vmatprep.subr.mxu0 0.0
  %7573 = vmatpush1.msra.mxu0 0.0
  %7574 = vmatprep.subr.mxu0 0.0
  %7575 = vmatpush1.msra.mxu0 0.0
  %7576 = vmatprep.subr.mxu0 0.0
  %7577 = vmatpush1.msra.mxu0 0.0
  %7578 = vmatprep.subr.mxu0 0.0
  %7579 = vmatpush1.msra.mxu0 0.0
  %7580 = vmatprep.subr.mxu0 0.0
  %7581 = vmatpush1.msra.mxu0 0.0
  %7582 = vmatprep.subr.mxu0 0.0
  %7583 = vmatpush1.msra.mxu0 0.0
  %7584 = vmatprep.subr.mxu0 0.0
  %7585 = vmatpush1.msra.mxu0 0.0
  %7586 = vmatprep.subr.mxu0 0.0
  %7587 = vmatpush1.msra.mxu0 0.0
  %7588 = vmatprep.subr.mxu0 0.0
  %7589 = vmatpush1.msra.mxu0 0.0
  %7590 = vmatprep.subr.mxu0 0.0
  %7591 = vmatpush1.msra.mxu0 0.0
  %7592 = vmatprep.subr.mxu0 0.0
  %7593 = vmatpush1.msra.mxu0 0.0
  %7594 = vmatprep.subr.mxu0 0.0
  %7595 = vmatpush1.msra.mxu0 0.0
  %7596 = vmatprep.subr.mxu0 0.0
  %7597 = vmatpush1.msra.mxu0 0.0
  %7598 = vmatprep.subr.mxu0 0.0
  %7599 = vmatpush1.msra.mxu0 0.0
  %7600 = vmatprep.subr.mxu0 0.0
  %7601 = vmatpush1.msra.mxu0 0.0
  %7602 = vmatprep.subr.mxu0 0.0
  %7603 = vmatpush1.msra.mxu0 0.0
  %7604 = vmatprep.mubr.f32.mxu0 0.0
  %7605 = vmatmul.mubr.f32.gmra.mrb[0].mxu0 %v7534
  %v7606 = vpop.f32.mrb[0].mxu0
  %v7607 = vadd.f32 0.0, %v7606
  %v7608 = vpop.f32.mrb[0].mxu0
  %7609 = vmatprep.mubr.f32.mxu0 0.0
  %7610 = vmatmul.mubr.f32.gmra.mrb[0].mxu0 %v7536
  %v7611 = vpop.f32.mrb[0].mxu0
  %v7612 = vadd.f32 0.0, %v7611
  %v7613 = vpop.f32.mrb[0].mxu0
  %7614 = vmatprep.mubr.f32.mxu0 0.0
  %7615 = vmatmul.mubr.f32.gmra.mrb[0].mxu0 %v7538
  %v7616 = vpop.f32.mrb[0].mxu0
  %v7617 = vadd.f32 0.0, %v7616
  %v7618 = vpop.f32.mrb[0].mxu0
  %7619 = vdwg.mxu0
  %v7620 = vadd.f32 %v6833, %v7607
  %v7621 = vadd.f32 %v6834, %v7612
  %v7622 = vadd.f32 %v6835, %v7617
  %s7623 = scalar_lea.vmem %s43, 32
  %v7624 = vld [vmem:[%s7623] sm:$0xff]
  %v7625 = vld [vmem:[%s7623 + $0x8] sm:$0xff]
  %v7626 = vld [vmem:[%s7623 + $0x10] sm:$0xff]
  %v7627 = vld [vmem:[%s7623 + $0x18] sm:$0xff]
  %v7629 = vsel %vm828, %v7620, 0
  %v7632 = vsel %vm828, %v7621, 0
  %v7635 = vsel %vm828, %v7622, 0
  %7637 = vmatprep.subr.mxu0 0.0
  %7638 = vmatpush1.msra.mxu0 %v7624
  %7639 = vmatprep.subr.mxu0 0.0
  %7640 = vmatpush1.msra.mxu0 %v7625
  %7641 = vmatprep.subr.mxu0 0.0
  %7642 = vmatpush1.msra.mxu0 %v7626
  %7643 = vmatprep.subr.mxu0 0.0
  %7644 = vmatpush1.msra.mxu0 %v7627
  %7645 = vmatprep.subr.mxu0 0.0
  %7646 = vmatpush1.msra.mxu0 0.0
  %7647 = vmatprep.subr.mxu0 0.0
  %7648 = vmatpush1.msra.mxu0 0.0
  %7649 = vmatprep.subr.mxu0 0.0
  %7650 = vmatpush1.msra.mxu0 0.0
  %7651 = vmatprep.subr.mxu0 0.0
  %7652 = vmatpush1.msra.mxu0 0.0
  %7653 = vmatprep.subr.mxu0 0.0
  %7654 = vmatpush1.msra.mxu0 0.0
  %7655 = vmatprep.subr.mxu0 0.0
  %7656 = vmatpush1.msra.mxu0 0.0
  %7657 = vmatprep.subr.mxu0 0.0
  %7658 = vmatpush1.msra.mxu0 0.0
  %7659 = vmatprep.subr.mxu0 0.0
  %7660 = vmatpush1.msra.mxu0 0.0
  %7661 = vmatprep.subr.mxu0 0.0
  %7662 = vmatpush1.msra.mxu0 0.0
  %7663 = vmatprep.subr.mxu0 0.0
  %7664 = vmatpush1.msra.mxu0 0.0
  %7665 = vmatprep.subr.mxu0 0.0
  %7666 = vmatpush1.msra.mxu0 0.0
  %7667 = vmatprep.subr.mxu0 0.0
  %7668 = vmatpush1.msra.mxu0 0.0
  %7669 = vmatprep.subr.mxu0 0.0
  %7670 = vmatpush1.msra.mxu0 0.0
  %7671 = vmatprep.subr.mxu0 0.0
  %7672 = vmatpush1.msra.mxu0 0.0
  %7673 = vmatprep.subr.mxu0 0.0
  %7674 = vmatpush1.msra.mxu0 0.0
  %7675 = vmatprep.subr.mxu0 0.0
  %7676 = vmatpush1.msra.mxu0 0.0
  %7677 = vmatprep.subr.mxu0 0.0
  %7678 = vmatpush1.msra.mxu0 0.0
  %7679 = vmatprep.subr.mxu0 0.0
  %7680 = vmatpush1.msra.mxu0 0.0
  %7681 = vmatprep.subr.mxu0 0.0
  %7682 = vmatpush1.msra.mxu0 0.0
  %7683 = vmatprep.subr.mxu0 0.0
  %7684 = vmatpush1.msra.mxu0 0.0
  %7685 = vmatprep.subr.mxu0 0.0
  %7686 = vmatpush1.msra.mxu0 0.0
  %7687 = vmatprep.subr.mxu0 0.0
  %7688 = vmatpush1.msra.mxu0 0.0
  %7689 = vmatprep.subr.mxu0 0.0
  %7690 = vmatpush1.msra.mxu0 0.0
  %7691 = vmatprep.subr.mxu0 0.0
  %7692 = vmatpush1.msra.mxu0 0.0
  %7693 = vmatprep.subr.mxu0 0.0
  %7694 = vmatpush1.msra.mxu0 0.0
  %7695 = vmatprep.subr.mxu0 0.0
  %7696 = vmatpush1.msra.mxu0 0.0
  %7697 = vmatprep.subr.mxu0 0.0
  %7698 = vmatpush1.msra.mxu0 0.0
  %7699 = vmatprep.subr.mxu0 0.0
  %7700 = vmatpush1.msra.mxu0 0.0
  %7701 = vmatprep.mubr.f32.mxu0 0.0
  %7702 = vmatmul.mubr.f32.gmra.mrb[0].mxu0 %v7629
  %v7703 = vpop.f32.mrb[0].mxu0
  %v7704 = vadd.f32 0.0, %v7703
  %v7705 = vpop.f32.mrb[0].mxu0
  %7706 = vmatprep.mubr.f32.mxu0 0.0
  %7707 = vmatmul.mubr.f32.gmra.mrb[0].mxu0 %v7632
  %v7708 = vpop.f32.mrb[0].mxu0
  %v7709 = vadd.f32 0.0, %v7708
  %v7710 = vpop.f32.mrb[0].mxu0
  %7711 = vmatprep.mubr.f32.mxu0 0.0
  %7712 = vmatmul.mubr.f32.gmra.mrb[0].mxu0 %v7635
  %v7713 = vpop.f32.mrb[0].mxu0
  %v7714 = vadd.f32 0.0, %v7713
  %v7715 = vpop.f32.mrb[0].mxu0
  %7716 = vdwg.mxu0
  %v7717 = vmul.f32 %v7704, %v7704
  %v7718 = vmul.f32 %v7709, %v7709
  %v7719 = vadd.f32 %v7717, %v7718
  %v7720 = vmul.f32 %v7714, %v7714
  %v7721 = vadd.f32 %v7719, %v7720
  %v7722 = vadd.f32 %v7721, 1e-08
  %v7723 = vrsqrt.pop %v7722
  %v7724 = vmul.f32 %v7722, %v7723
  %vm7725 = vcmp.eq.f32.partialorder %v7722, inf
  %v7726 = vsel %vm7725, %v7722, %v7724
  %vm7727 = vcmp.eq.f32.partialorder %v7722, 0.0
  %v7728 = vand.u32 %v7722, 2147483648
  %v7729 = vsel %vm7727, %v7728, %v7726
  %s7730 = scalar_lea.vmem %s45, 32
  %v7731 = vld [vmem:[%s7730] sm:$0xff]
  %v7732 = vld [vmem:[%s7730 + $0x8] sm:$0xff]
  %v7733 = vld [vmem:[%s7730 + $0x10] sm:$0xff]
  %v7734 = vld [vmem:[%s7730 + $0x18] sm:$0xff]
  %s7735 = scalar_lea.vmem %s47, 32
  %v7736 = vld [vmem:[%s7735] sm:$0xff]
  %v7737 = vld [vmem:[%s7735 + $0x8] sm:$0xff]
  %v7738 = vld [vmem:[%s7735 + $0x10] sm:$0xff]
  %v7739 = vld [vmem:[%s7735 + $0x18] sm:$0xff]
  %7741 = vrot.lane.b32.xlu0 %v7729, 96
  %v7742 = vpop.permute.xlu0 %7741
  %v7743 = vsel %vm828, %v7742, 0
  %7745 = vmatprep.subr.mxu0 0.0
  %7746 = vmatpush1.msra.mxu0 %v7736
  %7747 = vmatprep.subr.mxu0 0.0
  %7748 = vmatpush1.msra.mxu0 %v7737
  %7749 = vmatprep.subr.mxu0 0.0
  %7750 = vmatpush1.msra.mxu0 %v7738
  %7751 = vmatprep.subr.mxu0 0.0
  %7752 = vmatpush1.msra.mxu0 %v7739
  %7753 = vmatprep.subr.mxu0 0.0
  %7754 = vmatpush1.msra.mxu0 0.0
  %7755 = vmatprep.subr.mxu0 0.0
  %7756 = vmatpush1.msra.mxu0 0.0
  %7757 = vmatprep.subr.mxu0 0.0
  %7758 = vmatpush1.msra.mxu0 0.0
  %7759 = vmatprep.subr.mxu0 0.0
  %7760 = vmatpush1.msra.mxu0 0.0
  %7761 = vmatprep.subr.mxu0 0.0
  %7762 = vmatpush1.msra.mxu0 0.0
  %7763 = vmatprep.subr.mxu0 0.0
  %7764 = vmatpush1.msra.mxu0 0.0
  %7765 = vmatprep.subr.mxu0 0.0
  %7766 = vmatpush1.msra.mxu0 0.0
  %7767 = vmatprep.subr.mxu0 0.0
  %7768 = vmatpush1.msra.mxu0 0.0
  %7769 = vmatprep.subr.mxu0 0.0
  %7770 = vmatpush1.msra.mxu0 0.0
  %7771 = vmatprep.subr.mxu0 0.0
  %7772 = vmatpush1.msra.mxu0 0.0
  %7773 = vmatprep.subr.mxu0 0.0
  %7774 = vmatpush1.msra.mxu0 0.0
  %7775 = vmatprep.subr.mxu0 0.0
  %7776 = vmatpush1.msra.mxu0 0.0
  %7777 = vmatprep.subr.mxu0 0.0
  %7778 = vmatpush1.msra.mxu0 0.0
  %7779 = vmatprep.subr.mxu0 0.0
  %7780 = vmatpush1.msra.mxu0 0.0
  %7781 = vmatprep.subr.mxu0 0.0
  %7782 = vmatpush1.msra.mxu0 0.0
  %7783 = vmatprep.subr.mxu0 0.0
  %7784 = vmatpush1.msra.mxu0 0.0
  %7785 = vmatprep.subr.mxu0 0.0
  %7786 = vmatpush1.msra.mxu0 0.0
  %7787 = vmatprep.subr.mxu0 0.0
  %7788 = vmatpush1.msra.mxu0 0.0
  %7789 = vmatprep.subr.mxu0 0.0
  %7790 = vmatpush1.msra.mxu0 0.0
  %7791 = vmatprep.subr.mxu0 0.0
  %7792 = vmatpush1.msra.mxu0 0.0
  %7793 = vmatprep.subr.mxu0 0.0
  %7794 = vmatpush1.msra.mxu0 0.0
  %7795 = vmatprep.subr.mxu0 0.0
  %7796 = vmatpush1.msra.mxu0 0.0
  %7797 = vmatprep.subr.mxu0 0.0
  %7798 = vmatpush1.msra.mxu0 0.0
  %7799 = vmatprep.subr.mxu0 0.0
  %7800 = vmatpush1.msra.mxu0 0.0
  %7801 = vmatprep.subr.mxu0 0.0
  %7802 = vmatpush1.msra.mxu0 0.0
  %7803 = vmatprep.subr.mxu0 0.0
  %7804 = vmatpush1.msra.mxu0 0.0
  %7805 = vmatprep.subr.mxu0 0.0
  %7806 = vmatpush1.msra.mxu0 0.0
  %7807 = vmatprep.subr.mxu0 0.0
  %7808 = vmatpush1.msra.mxu0 0.0
  %7809 = vmatprep.mubr.f32.mxu0 0.0
  %7810 = vmatmul.mubr.f32.gmra.mrb[0].mxu0 %v7743
  %v7811 = vpop.f32.mrb[0].mxu0
  %v7812 = vadd.f32 0.0, %v7811
  %v7813 = vpop.f32.mrb[0].mxu0
  %7814 = vdwg.mxu0
  %v7816 = vsel %vm828, %v7524, 0
  %7818 = vmatprep.subr.mxu0 0.0
  %7819 = vmatpush1.msra.mxu0 %v7731
  %7820 = vmatprep.subr.mxu0 0.0
  %7821 = vmatpush1.msra.mxu0 %v7732
  %7822 = vmatprep.subr.mxu0 0.0
  %7823 = vmatpush1.msra.mxu0 %v7733
  %7824 = vmatprep.subr.mxu0 0.0
  %7825 = vmatpush1.msra.mxu0 %v7734
  %7826 = vmatprep.subr.mxu0 0.0
  %7827 = vmatpush1.msra.mxu0 0.0
  %7828 = vmatprep.subr.mxu0 0.0
  %7829 = vmatpush1.msra.mxu0 0.0
  %7830 = vmatprep.subr.mxu0 0.0
  %7831 = vmatpush1.msra.mxu0 0.0
  %7832 = vmatprep.subr.mxu0 0.0
  %7833 = vmatpush1.msra.mxu0 0.0
  %7834 = vmatprep.subr.mxu0 0.0
  %7835 = vmatpush1.msra.mxu0 0.0
  %7836 = vmatprep.subr.mxu0 0.0
  %7837 = vmatpush1.msra.mxu0 0.0
  %7838 = vmatprep.subr.mxu0 0.0
  %7839 = vmatpush1.msra.mxu0 0.0
  %7840 = vmatprep.subr.mxu0 0.0
  %7841 = vmatpush1.msra.mxu0 0.0
  %7842 = vmatprep.subr.mxu0 0.0
  %7843 = vmatpush1.msra.mxu0 0.0
  %7844 = vmatprep.subr.mxu0 0.0
  %7845 = vmatpush1.msra.mxu0 0.0
  %7846 = vmatprep.subr.mxu0 0.0
  %7847 = vmatpush1.msra.mxu0 0.0
  %7848 = vmatprep.subr.mxu0 0.0
  %7849 = vmatpush1.msra.mxu0 0.0
  %7850 = vmatprep.subr.mxu0 0.0
  %7851 = vmatpush1.msra.mxu0 0.0
  %7852 = vmatprep.subr.mxu0 0.0
  %7853 = vmatpush1.msra.mxu0 0.0
  %7854 = vmatprep.subr.mxu0 0.0
  %7855 = vmatpush1.msra.mxu0 0.0
  %7856 = vmatprep.subr.mxu0 0.0
  %7857 = vmatpush1.msra.mxu0 0.0
  %7858 = vmatprep.subr.mxu0 0.0
  %7859 = vmatpush1.msra.mxu0 0.0
  %7860 = vmatprep.subr.mxu0 0.0
  %7861 = vmatpush1.msra.mxu0 0.0
  %7862 = vmatprep.subr.mxu0 0.0
  %7863 = vmatpush1.msra.mxu0 0.0
  %7864 = vmatprep.subr.mxu0 0.0
  %7865 = vmatpush1.msra.mxu0 0.0
  %7866 = vmatprep.subr.mxu0 0.0
  %7867 = vmatpush1.msra.mxu0 0.0
  %7868 = vmatprep.subr.mxu0 0.0
  %7869 = vmatpush1.msra.mxu0 0.0
  %7870 = vmatprep.subr.mxu0 0.0
  %7871 = vmatpush1.msra.mxu0 0.0
  %7872 = vmatprep.subr.mxu0 0.0
  %7873 = vmatpush1.msra.mxu0 0.0
  %7874 = vmatprep.subr.mxu0 0.0
  %7875 = vmatpush1.msra.mxu0 0.0
  %7876 = vmatprep.subr.mxu0 0.0
  %7877 = vmatpush1.msra.mxu0 0.0
  %7878 = vmatprep.subr.mxu0 0.0
  %7879 = vmatpush1.msra.mxu0 0.0
  %7880 = vmatprep.subr.mxu0 0.0
  %7881 = vmatpush1.msra.mxu0 0.0
  %7882 = vmatprep.mubr.f32.mxu0 0.0
  %7883 = vmatmul.mubr.f32.gmra.mrb[0].mxu0 %v7816
  %v7884 = vpop.f32.mrb[0].mxu0
  %v7885 = vadd.f32 %v7812, %v7884
  %v7886 = vpop.f32.mrb[0].mxu0
  %7887 = vdwg.mxu0
  %s7888 = scalar_lea.vmem %s49, 1
  %v7889 = vld [vmem:[%s7888] sm:$0x1]
  %v7891 = vlaneseq
  %v7892 = vshrl.u32 %v7891, 7
  %v7893 = vsub.s32 0, %v7892
  %v7894 = vrot.slane %v7889, %v7893
  %v7896 = vadd.f32 %v7885, %v7894
  %v7897 = vsub.f32 0.0, %v7896
  %v7898 = vmul.f32 %v7897, 1.442695
  %v7899 = vpow.pop %v7898
  %v7900 = vadd.f32 %v7899, 1.0
  %v7901 = vrcp.pop %v7900
  %v7902 = vmul.f32 %v7896, %v7901
  %s7903 = scalar_lea.vmem %s51, 32
  %v7904 = vld [vmem:[%s7903] sm:$0xff]
  %v7905 = vld [vmem:[%s7903 + $0x8] sm:$0xff]
  %v7906 = vld [vmem:[%s7903 + $0x10] sm:$0xff]
  %v7907 = vld [vmem:[%s7903 + $0x18] sm:$0xff]
  %s7908 = scalar_lea.vmem %s53, 1
  %v7909 = vld [vmem:[%s7908] sm:$0x1]
  %v7911 = vlaneseq
  %v7912 = vshrl.u32 %v7911, 7
  %v7913 = vsub.s32 0, %v7912
  %v7914 = vrot.slane %v7909, %v7913
  %v7917 = vsel %vm828, %v7902, 0
  %7919 = vmatprep.subr.mxu0 0.0
  %7920 = vmatpush1.msra.mxu0 %v7904
  %7921 = vmatprep.subr.mxu0 0.0
  %7922 = vmatpush1.msra.mxu0 %v7905
  %7923 = vmatprep.subr.mxu0 0.0
  %7924 = vmatpush1.msra.mxu0 %v7906
  %7925 = vmatprep.subr.mxu0 0.0
  %7926 = vmatpush1.msra.mxu0 %v7907
  %7927 = vmatprep.subr.mxu0 0.0
  %7928 = vmatpush1.msra.mxu0 0.0
  %7929 = vmatprep.subr.mxu0 0.0
  %7930 = vmatpush1.msra.mxu0 0.0
  %7931 = vmatprep.subr.mxu0 0.0
  %7932 = vmatpush1.msra.mxu0 0.0
  %7933 = vmatprep.subr.mxu0 0.0
  %7934 = vmatpush1.msra.mxu0 0.0
  %7935 = vmatprep.subr.mxu0 0.0
  %7936 = vmatpush1.msra.mxu0 0.0
  %7937 = vmatprep.subr.mxu0 0.0
  %7938 = vmatpush1.msra.mxu0 0.0
  %7939 = vmatprep.subr.mxu0 0.0
  %7940 = vmatpush1.msra.mxu0 0.0
  %7941 = vmatprep.subr.mxu0 0.0
  %7942 = vmatpush1.msra.mxu0 0.0
  %7943 = vmatprep.subr.mxu0 0.0
  %7944 = vmatpush1.msra.mxu0 0.0
  %7945 = vmatprep.subr.mxu0 0.0
  %7946 = vmatpush1.msra.mxu0 0.0
  %7947 = vmatprep.subr.mxu0 0.0
  %7948 = vmatpush1.msra.mxu0 0.0
  %7949 = vmatprep.subr.mxu0 0.0
  %7950 = vmatpush1.msra.mxu0 0.0
  %7951 = vmatprep.subr.mxu0 0.0
  %7952 = vmatpush1.msra.mxu0 0.0
  %7953 = vmatprep.subr.mxu0 0.0
  %7954 = vmatpush1.msra.mxu0 0.0
  %7955 = vmatprep.subr.mxu0 0.0
  %7956 = vmatpush1.msra.mxu0 0.0
  %7957 = vmatprep.subr.mxu0 0.0
  %7958 = vmatpush1.msra.mxu0 0.0
  %7959 = vmatprep.subr.mxu0 0.0
  %7960 = vmatpush1.msra.mxu0 0.0
  %7961 = vmatprep.subr.mxu0 0.0
  %7962 = vmatpush1.msra.mxu0 0.0
  %7963 = vmatprep.subr.mxu0 0.0
  %7964 = vmatpush1.msra.mxu0 0.0
  %7965 = vmatprep.subr.mxu0 0.0
  %7966 = vmatpush1.msra.mxu0 0.0
  %7967 = vmatprep.subr.mxu0 0.0
  %7968 = vmatpush1.msra.mxu0 0.0
  %7969 = vmatprep.subr.mxu0 0.0
  %7970 = vmatpush1.msra.mxu0 0.0
  %7971 = vmatprep.subr.mxu0 0.0
  %7972 = vmatpush1.msra.mxu0 0.0
  %7973 = vmatprep.subr.mxu0 0.0
  %7974 = vmatpush1.msra.mxu0 0.0
  %7975 = vmatprep.subr.mxu0 0.0
  %7976 = vmatpush1.msra.mxu0 0.0
  %7977 = vmatprep.subr.mxu0 0.0
  %7978 = vmatpush1.msra.mxu0 0.0
  %7979 = vmatprep.subr.mxu0 0.0
  %7980 = vmatpush1.msra.mxu0 0.0
  %7981 = vmatprep.subr.mxu0 0.0
  %7982 = vmatpush1.msra.mxu0 0.0
  %7983 = vmatprep.mubr.f32.mxu0 0.0
  %7984 = vmatmul.mubr.f32.gmra.mrb[0].mxu0 %v7917
  %v7985 = vpop.f32.mrb[0].mxu0
  %v7986 = vadd.f32 %v7914, %v7985
  %v7987 = vpop.f32.mrb[0].mxu0
  %7988 = vdwg.mxu0
  %7990 = vrot.lane.b32.xlu0 %v7704, 96
  %v7991 = vpop.permute.xlu0 %7990
  %v7993 = vmul.f32 %v7704, %v7991
  %7995 = vrot.lane.b32.xlu0 %v7709, 96
  %v7996 = vpop.permute.xlu0 %7995
  %v7998 = vmul.f32 %v7709, %v7996
  %v7999 = vadd.f32 %v7993, %v7998
  %8001 = vrot.lane.b32.xlu0 %v7714, 96
  %v8002 = vpop.permute.xlu0 %8001
  %v8004 = vmul.f32 %v7714, %v8002
  %v8005 = vadd.f32 %v7999, %v8004
  %8007 = vrot.lane.b32.xlu0 %v8005, 32
  %v8008 = vpop.permute.xlu0 %8007
  %v8010 = vmul.f32 %v7986, %v8008
  %8012 = vrot.lane.b32.xlu0 %v8010, 96
  %v8013 = vpop.permute.xlu0 %8012
  %v8015 = vadd.f32 %v7986, %v8013
  %8016 = vrot.lane.b32.xlu0 %v7704, 64
  %v8017 = vpop.permute.xlu0 %8016
  %v8019 = vmul.f32 %v7986, %v8017
  %8020 = vrot.lane.b32.xlu0 %v7709, 64
  %v8021 = vpop.permute.xlu0 %8020
  %v8023 = vmul.f32 %v7986, %v8021
  %8024 = vrot.lane.b32.xlu0 %v7714, 64
  %v8025 = vpop.permute.xlu0 %8024
  %v8027 = vmul.f32 %v7986, %v8025
  %v8028 = vadd.f32 %v7524, %v8015
  %8032 = vrot.lane.b32.xlu0 %v8019, 64
  %v8033 = vpop.permute.xlu0 %8032
  %8034 = vrot.lane.b32.xlu0 %v8023, 64
  %v8035 = vpop.permute.xlu0 %8034
  %8036 = vrot.lane.b32.xlu0 %v8027, 64
  %v8037 = vpop.permute.xlu0 %8036
  %v8041 = vadd.f32 %v7620, %v8033
  %v8042 = vadd.f32 %v7621, %v8035
  %v8043 = vadd.f32 %v7622, %v8037
  %8045 = vrot.lane.b32.xlu0 %v8041, 32
  %v8046 = vpop.permute.xlu0 %8045
  %8049 = vrot.lane.b32.xlu0 %v8042, 64
  %v8050 = vpop.permute.xlu0 %8049
  %8053 = vrot.lane.b32.xlu0 %v8043, 96
  %v8054 = vpop.permute.xlu0 %8053
  %v8056 = vsel %vm828, %v8028, %v8046
  %vm8057 = vcmask 523264
  %v8058 = vsel %vm8057, %v8056, %v8050
  %vm8059 = vcmask 785408
  %v8060 = vsel %vm8059, %v8058, %v8054
  %8061 = vst [vmem:[%s71] sm:$0xff] %v8060
  // Predicated region
  $region142: #{fieldnet_forward.1} parent=0 // pred_check
    _
  $region143: #{fieldnet_forward.1} parent=0 // pred_check_branch
    %8063 = sbr.rel (0) target = $region145
  $region144: #{fieldnet_forward.1} parent=0 // pred_region
    _
  $region145: #{fieldnet_forward.1} parent=0 // pred_fallthru
    _
  // Predicated region
  $region146: #{fieldnet_forward.1} parent=0 // pred_check
    _
  $region147: #{fieldnet_forward.1} parent=0 // pred_check_branch
    %8065 = sbr.rel (0) target = $region149
  $region148: #{fieldnet_forward.1} parent=0 // pred_region
    _
  $region149: #{fieldnet_forward.1} parent=0 // pred_fallthru
    _

</llo_original>
